<compile_context>
chip_gen: v7x
topology: tpu7x:2x2x1
jax: 0.10.0
libtpu: 0.0.40
codegen_flags: <defaults>
</compile_context>

<pallas_src>
import functools

import jax
import jax.numpy as jnp
import numpy as np
from jax.experimental import pallas as pl
from jax.experimental.pallas import tpu as pltpu

_BN_EPS = 1e-5
_NEG_SLOPE = 0.2


def _lrelu(y):
    return jnp.where(y > 0, y, _NEG_SLOPE * y)


def _fold_bn(p):
    """Eval-mode BN (mean=0, var=1) + conv bias -> per-channel scale/shift."""
    scale = p["gamma"].astype(jnp.float32) / jnp.sqrt(jnp.float32(1.0 + _BN_EPS))
    shift = p["b"].astype(jnp.float32) * scale + p["beta"].astype(jnp.float32)
    return scale, shift


# ---------------------------------------------------------------------------
# Weight preparation (run once, outside the hot path).
# ---------------------------------------------------------------------------
def _banded_weights(w, scale, w_sp, stride, pad):
    """(kh,kw,Cin,Cout) conv weight -> (kh, w_sp*Cin, Wo*Cout) banded matrices.

    Row index = xi*Cin + ci, column index = xo*Cout + co.  The kw taps, the
    width zero-padding and the folded BN scale are baked in, so one kh tap is
    a single (H, w_sp*Cin) @ (w_sp*Cin, Wo*Cout) matmul inside the kernel.
    """
    kh, kw, cin, cout = w.shape
    wo = (w_sp + 2 * pad - kw) // stride + 1
    ws = w.astype(jnp.float32) * scale.astype(jnp.float32)        # fold BN scale
    xi = np.arange(w_sp)[:, None]
    xo = np.arange(wo)[None, :]
    taps = np.stack([(xi == stride * xo + k - pad) for k in range(kw)], axis=0)
    taps = jnp.asarray(taps.astype(np.float32))                   # (kw, w_sp, wo)
    m = jnp.einsum("hkio,kab->haibo", ws, taps)                    # (kh,xi,ci,xo,co)
    return m.reshape(kh, w_sp * cin, wo * cout).astype(jnp.bfloat16)


def _bias_row(shift, wo):
    return jnp.tile(shift.astype(jnp.float32), wo).reshape(1, -1)


def prepare_encoder(params, *, W, n_ResidualBlock, n_levels, bUseMultiResSkips=True):
    """Fold BN and pre-band every conv weight for the fused kernel (run once)."""
    args = []

    def add(p, w_sp, stride, pad, with_bn=True):
        if with_bn:
            scale, shift = _fold_bn(p)
        else:
            cout = p["w"].shape[-1]
            scale = jnp.ones((cout,), jnp.float32)
            shift = p["b"].astype(jnp.float32)
        kw = p["w"].shape[1]
        wo = (w_sp + 2 * pad - kw) // stride + 1
        args.append(_banded_weights(p["w"], scale, w_sp, stride, pad))
        args.append(_bias_row(shift, wo))

    add(params["input_conv"], W, 1, 1)
    w_sp = W
    for i in range(n_levels):
        for blk in params["res"][i]:
            add(blk["c1"], w_sp, 1, 1)
            add(blk["c2"], w_sp, 1, 1)
        if bUseMultiResSkips:
            ks = 2 ** (n_levels - i)
            add(params["skip"][i], w_sp, ks, 0)
        add(params["down"][i], w_sp, 2, 0)
        w_sp //= 2
    add(params["output_conv"], w_sp, 1, 1, with_bn=False)
    return args


# ---------------------------------------------------------------------------
# The single fused encoder kernel: one image per grid step.
# ---------------------------------------------------------------------------
def _encoder_kernel(*refs, n_levels, n_res, use_skips):
    x_ref = refs[0]
    o_ref = refs[-1]
    it = iter(refs[1:-1])

    sel_cache = {}

    def row_select(rows_in, rows_out, stride, shift):
        """0/1 selection matrix S with S[y, h] = 1 iff h == stride*y + shift."""
        key = (rows_in, rows_out, stride, shift)
        if key not in sel_cache:
            y = jax.lax.broadcasted_iota(jnp.int32, (rows_out, rows_in), 0)
            h = jax.lax.broadcasted_iota(jnp.int32, (rows_out, rows_in), 1)
            sel_cache[key] = (h == stride * y + shift).astype(jnp.float32)
        return sel_cache[key]

    def conv(x, w_ref, b_ref, *, stride, pad, act):
        # x: (rows_in, w_sp*Cin) f32.  w_ref: (kh, w_sp*Cin, wo*Cout) bf16.
        taps = w_ref.shape[0]
        rows_in = x.shape[0]
        rows_out = (rows_in + 2 * pad - taps) // stride + 1
        xb = x.astype(jnp.bfloat16)
        acc = jnp.zeros((rows_out, w_ref.shape[-1]), jnp.float32)
        for kh in range(taps):
            u = jnp.dot(xb, w_ref[kh], preferred_element_type=jnp.float32)
            sel = row_select(rows_in, rows_out, stride, kh - pad)
            acc = acc + jnp.dot(sel, u, preferred_element_type=jnp.float32)
        y = acc + b_ref[...]
        return _lrelu(y) if act else y

    x = x_ref[...].astype(jnp.float32)
    x = conv(x, next(it), next(it), stride=1, pad=1, act=True)      # input_conv

    skip_sum = None
    for _ in range(n_levels):
        for _ in range(n_res):
            w1, b1, w2, b2 = next(it), next(it), next(it), next(it)
            t = conv(x, w1, b1, stride=1, pad=1, act=True)
            t = conv(t, w2, b2, stride=1, pad=1, act=True)
            x = x + t                                               # residual add
        if use_skips:
            sw, sb = next(it), next(it)
            sk = conv(x, sw, sb, stride=sw.shape[0], pad=0, act=True)
            skip_sum = sk if skip_sum is None else skip_sum + sk
        dw, db = next(it), next(it)
        x = conv(x, dw, db, stride=2, pad=0, act=True)              # downsample
    if use_skips:
        x = x + skip_sum                                            # sum([x]+skips)

    ow, ob = next(it), next(it)
    y = conv(x, ow, ob, stride=1, pad=1, act=False)                 # output_conv
    o_ref[...] = y.astype(o_ref.dtype)


def _const_index(ndim):
    zeros = (0,) * ndim
    return lambda n: zeros


def resnet_encoder_forward(prepared, x_nchw, *, n_ResidualBlock, n_levels, z_dim,
                           bUseMultiResSkips=True):
    N, Cin, H, W = x_nchw.shape
    x = jnp.transpose(x_nchw, (0, 2, 3, 1)).astype(jnp.float32)
    x = x.reshape(N, H, W * Cin)                                    # lane-dense layout

    Hf = H // (2 ** n_levels)
    Wf = W // (2 ** n_levels)
    out_cols = Wf * z_dim

    in_specs = [pl.BlockSpec((None, H, W * Cin), lambda n: (n, 0, 0))]
    for a in prepared:
        in_specs.append(pl.BlockSpec(a.shape, _const_index(a.ndim)))

    kernel = functools.partial(_encoder_kernel, n_levels=n_levels,
                               n_res=n_ResidualBlock,
                               use_skips=bUseMultiResSkips)

    out = pl.pallas_call(
        kernel,
        out_shape=jax.ShapeDtypeStruct((N, Hf, out_cols), jnp.float32),
        grid=(N,),
        in_specs=in_specs,
        out_specs=pl.BlockSpec((None, Hf, out_cols), lambda n: (n, 0, 0)),
        compiler_params=pltpu.CompilerParams(
            dimension_semantics=("parallel",)),
    )(x, *prepared)

    out = out.reshape(N, Hf, Wf, z_dim)
    return jnp.transpose(out, (0, 3, 1, 2))                         # NHWC -> NCHW


# ---------------------------------------------------------------------------
# Parameter construction (deterministic, synthetic)
# ---------------------------------------------------------------------------
def _conv_params(key, kh, kw, cin, cout, with_bn=True):
    kw_, kb, kg, kbe = jax.random.split(key, 4)
    fan_in = kh * kw * cin
    bound = 1.0 / (fan_in ** 0.5)
    p = {
        "w": jax.random.uniform(kw_, (kh, kw, cin, cout), jnp.float32,
                                -bound, bound),
        "b": jax.random.uniform(kb, (cout,), jnp.float32, -bound, bound),
    }
    if with_bn:
        p["gamma"] = 1.0 + 0.1 * jax.random.normal(kg, (cout,), jnp.float32)
        p["beta"] = 0.1 * jax.random.normal(kbe, (cout,), jnp.float32)
    return p


def init_encoder_params(key, n_ResidualBlock, n_levels, input_ch, z_dim):
    max_filters = 2 ** (n_levels + 3)
    n_keys = 2 + n_levels * (2 * n_ResidualBlock + 2)
    k_iter = iter(jax.random.split(key, n_keys))

    params = {"input_conv": _conv_params(next(k_iter), 3, 3, input_ch, 8)}
    res, skip, down = [], [], []
    for i in range(n_levels):
        nf1 = 2 ** (i + 3)
        nf2 = 2 ** (i + 4)
        ks = 2 ** (n_levels - i)
        blocks = []
        for _ in range(n_ResidualBlock):
            blocks.append({
                "c1": _conv_params(next(k_iter), 3, 3, nf1, nf1),
                "c2": _conv_params(next(k_iter), 3, 3, nf1, nf1),
            })
        res.append(blocks)
        skip.append(_conv_params(next(k_iter), ks, ks, nf1, max_filters))
        down.append(_conv_params(next(k_iter), 2, 2, nf1, nf2))
    params["res"] = res
    params["skip"] = skip
    params["down"] = down
    params["output_conv"] = _conv_params(next(k_iter), 3, 3, max_filters,
                                         z_dim, with_bn=False)
    return params


# ---------------------------------------------------------------------------
# Pure-JAX f32 reference (same folded eval-mode BN assumption)
# ---------------------------------------------------------------------------
def _ref_conv(x, p, *, stride, padding, with_bn=True, act=True):
    y = jax.lax.conv_general_dilated(
        x, p["w"], (stride, stride),
        [(padding, padding), (padding, padding)],
        dimension_numbers=("NHWC", "HWIO", "NHWC"))
    y = y + p["b"]
    if with_bn:
        y = y * (p["gamma"] / jnp.sqrt(jnp.float32(1.0 + _BN_EPS))) + p["beta"]
    if act:
        y = _lrelu(y)
    return y


def reference_forward(params, x_nchw, *, n_ResidualBlock, n_levels,
                      bUseMultiResSkips=True):
    x = jnp.transpose(x_nchw, (0, 2, 3, 1)).astype(jnp.float32)
    x = _ref_conv(x, params["input_conv"], stride=1, padding=1)
    skips = []
    for i in range(n_levels):
        for blk in params["res"][i]:
            h = _ref_conv(x, blk["c1"], stride=1, padding=1)
            h = _ref_conv(h, blk["c2"], stride=1, padding=1)
            x = x + h
        if bUseMultiResSkips:
            ks = 2 ** (n_levels - i)
            skips.append(_ref_conv(x, params["skip"][i], stride=ks, padding=0))
        x = _ref_conv(x, params["down"][i], stride=2, padding=0)
    if bUseMultiResSkips:
        x = x + sum(skips)
    x = _ref_conv(x, params["output_conv"], stride=1, padding=1,
                  with_bn=False, act=False)
    return jnp.transpose(x, (0, 3, 1, 2))


# ---------------------------------------------------------------------------
if __name__ == "__main__":
    n_ResidualBlock = 2
    n_levels = 2
    input_ch = 3
    z_dim = 10
    N, H, W = 2, 16, 16

    key = jax.random.PRNGKey(0)
    pkey, xkey = jax.random.split(key)
    params = init_encoder_params(pkey, n_ResidualBlock, n_levels, input_ch, z_dim)
    x = jax.random.normal(xkey, (N, input_ch, H, W), jnp.float32)

    # Fold BN / band the conv weights once, outside the hot path.
    prepared = prepare_encoder(params, W=W, n_ResidualBlock=n_ResidualBlock,
                               n_levels=n_levels, bUseMultiResSkips=True)

    fwd = jax.jit(functools.partial(resnet_encoder_forward,
                                    n_ResidualBlock=n_ResidualBlock,
                                    n_levels=n_levels, z_dim=z_dim,
                                    bUseMultiResSkips=True))
    out = jax.block_until_ready(fwd(prepared, x))

    expected = (N, z_dim, H // (2 ** n_levels), W // (2 ** n_levels))
    assert out.shape == expected, (out.shape, expected)
    assert bool(jnp.all(jnp.isfinite(out)))

    # Numerical check against a pure-JAX f32 reference (loose tolerance: the
    # Pallas path uses bf16 weights / bf16 matmul inputs with f32 accumulation).
    ref_fn = jax.jit(functools.partial(reference_forward,
                                       n_ResidualBlock=n_ResidualBlock,
                                       n_levels=n_levels,
                                       bUseMultiResSkips=True))
    ref = jax.block_until_ready(ref_fn(params, x))
    err = float(jnp.max(jnp.abs(out - ref)))
    scale = float(jnp.max(jnp.abs(ref))) + 1e-6
    assert err <= 0.1 * scale + 1e-2, (err, scale)

    print("KERNEL_OK")
</pallas_src>

<mosaic_0001>
module attributes {stable_mosaic.version = 11 : i64} {
  func.func @_encoder_kernel(%arg0: i32, %arg1: memref<1x16x48xf32, #tpu.memory_space<vmem>>, %arg2: memref<3x48x128xbf16, #tpu.memory_space<vmem>>, %arg3: memref<1x128xf32, #tpu.memory_space<vmem>>, %arg4: memref<3x128x128xbf16, #tpu.memory_space<vmem>>, %arg5: memref<1x128xf32, #tpu.memory_space<vmem>>, %arg6: memref<3x128x128xbf16, #tpu.memory_space<vmem>>, %arg7: memref<1x128xf32, #tpu.memory_space<vmem>>, %arg8: memref<3x128x128xbf16, #tpu.memory_space<vmem>>, %arg9: memref<1x128xf32, #tpu.memory_space<vmem>>, %arg10: memref<3x128x128xbf16, #tpu.memory_space<vmem>>, %arg11: memref<1x128xf32, #tpu.memory_space<vmem>>, %arg12: memref<4x128x128xbf16, #tpu.memory_space<vmem>>, %arg13: memref<1x128xf32, #tpu.memory_space<vmem>>, %arg14: memref<2x128x128xbf16, #tpu.memory_space<vmem>>, %arg15: memref<1x128xf32, #tpu.memory_space<vmem>>, %arg16: memref<3x128x128xbf16, #tpu.memory_space<vmem>>, %arg17: memref<1x128xf32, #tpu.memory_space<vmem>>, %arg18: memref<3x128x128xbf16, #tpu.memory_space<vmem>>, %arg19: memref<1x128xf32, #tpu.memory_space<vmem>>, %arg20: memref<3x128x128xbf16, #tpu.memory_space<vmem>>, %arg21: memref<1x128xf32, #tpu.memory_space<vmem>>, %arg22: memref<3x128x128xbf16, #tpu.memory_space<vmem>>, %arg23: memref<1x128xf32, #tpu.memory_space<vmem>>, %arg24: memref<2x128x128xbf16, #tpu.memory_space<vmem>>, %arg25: memref<1x128xf32, #tpu.memory_space<vmem>>, %arg26: memref<2x128x128xbf16, #tpu.memory_space<vmem>>, %arg27: memref<1x128xf32, #tpu.memory_space<vmem>>, %arg28: memref<3x128x40xbf16, #tpu.memory_space<vmem>>, %arg29: memref<1x40xf32, #tpu.memory_space<vmem>>, %arg30: memref<1x4x40xf32, #tpu.memory_space<vmem>>) attributes {dimension_semantics = [#tpu.dimension_semantics<parallel>], iteration_bounds = array<i64: 2>, scalar_prefetch = 0 : i64, scratch_operands = 0 : i64, tpu.core_type = #tpu.core_type<tc>, window_params = [{transform_indices = @transform_0, window_bounds = array<i64: 1, 16, 48>}, {pipeline_mode = #tpu.pipeline_mode<synchronous>, transform_indices = @transform_1, window_bounds = array<i64: 3, 48, 128>}, {pipeline_mode = #tpu.pipeline_mode<synchronous>, transform_indices = @transform_2, window_bounds = array<i64: 1, 128>}, {pipeline_mode = #tpu.pipeline_mode<synchronous>, transform_indices = @transform_3, window_bounds = array<i64: 3, 128, 128>}, {pipeline_mode = #tpu.pipeline_mode<synchronous>, transform_indices = @transform_4, window_bounds = array<i64: 1, 128>}, {pipeline_mode = #tpu.pipeline_mode<synchronous>, transform_indices = @transform_5, window_bounds = array<i64: 3, 128, 128>}, {pipeline_mode = #tpu.pipeline_mode<synchronous>, transform_indices = @transform_6, window_bounds = array<i64: 1, 128>}, {pipeline_mode = #tpu.pipeline_mode<synchronous>, transform_indices = @transform_7, window_bounds = array<i64: 3, 128, 128>}, {pipeline_mode = #tpu.pipeline_mode<synchronous>, transform_indices = @transform_8, window_bounds = array<i64: 1, 128>}, {pipeline_mode = #tpu.pipeline_mode<synchronous>, transform_indices = @transform_9, window_bounds = array<i64: 3, 128, 128>}, {pipeline_mode = #tpu.pipeline_mode<synchronous>, transform_indices = @transform_10, window_bounds = array<i64: 1, 128>}, {pipeline_mode = #tpu.pipeline_mode<synchronous>, transform_indices = @transform_11, window_bounds = array<i64: 4, 128, 128>}, {pipeline_mode = #tpu.pipeline_mode<synchronous>, transform_indices = @transform_12, window_bounds = array<i64: 1, 128>}, {pipeline_mode = #tpu.pipeline_mode<synchronous>, transform_indices = @transform_13, window_bounds = array<i64: 2, 128, 128>}, {pipeline_mode = #tpu.pipeline_mode<synchronous>, transform_indices = @transform_14, window_bounds = array<i64: 1, 128>}, {pipeline_mode = #tpu.pipeline_mode<synchronous>, transform_indices = @transform_15, window_bounds = array<i64: 3, 128, 128>}, {pipeline_mode = #tpu.pipeline_mode<synchronous>, transform_indices = @transform_16, window_bounds = array<i64: 1, 128>}, {pipeline_mode = #tpu.pipeline_mode<synchronous>, transform_indices = @transform_17, window_bounds = array<i64: 3, 128, 128>}, {pipeline_mode = #tpu.pipeline_mode<synchronous>, transform_indices = @transform_18, window_bounds = array<i64: 1, 128>}, {pipeline_mode = #tpu.pipeline_mode<synchronous>, transform_indices = @transform_19, window_bounds = array<i64: 3, 128, 128>}, {pipeline_mode = #tpu.pipeline_mode<synchronous>, transform_indices = @transform_20, window_bounds = array<i64: 1, 128>}, {pipeline_mode = #tpu.pipeline_mode<synchronous>, transform_indices = @transform_21, window_bounds = array<i64: 3, 128, 128>}, {pipeline_mode = #tpu.pipeline_mode<synchronous>, transform_indices = @transform_22, window_bounds = array<i64: 1, 128>}, {pipeline_mode = #tpu.pipeline_mode<synchronous>, transform_indices = @transform_23, window_bounds = array<i64: 2, 128, 128>}, {pipeline_mode = #tpu.pipeline_mode<synchronous>, transform_indices = @transform_24, window_bounds = array<i64: 1, 128>}, {pipeline_mode = #tpu.pipeline_mode<synchronous>, transform_indices = @transform_25, window_bounds = array<i64: 2, 128, 128>}, {pipeline_mode = #tpu.pipeline_mode<synchronous>, transform_indices = @transform_26, window_bounds = array<i64: 1, 128>}, {pipeline_mode = #tpu.pipeline_mode<synchronous>, transform_indices = @transform_27, window_bounds = array<i64: 3, 128, 40>}, {pipeline_mode = #tpu.pipeline_mode<synchronous>, transform_indices = @transform_28, window_bounds = array<i64: 1, 40>}, {transform_indices = @transform_29, window_bounds = array<i64: 1, 4, 40>}]} {
    %c0 = arith.constant 0 : index
    %c0_0 = arith.constant 0 : index
    %c0_1 = arith.constant 0 : index
    %0 = vector.load %arg1[%c0, %c0_0, %c0_1] : memref<1x16x48xf32, #tpu.memory_space<vmem>>, vector<1x16x48xf32>
    %1 = vector.shape_cast %0 : vector<1x16x48xf32> to vector<16x48xf32>
    %2 = arith.truncf %1 : vector<16x48xf32> to vector<16x48xbf16>
    %cst = arith.constant 0.000000e+00 : f32
    %3 = vector.broadcast %cst : f32 to vector<16x128xf32>
    %c0_2 = arith.constant 0 : index
    %c0_3 = arith.constant 0 : index
    %c0_4 = arith.constant 0 : index
    %4 = vector.load %arg2[%c0_2, %c0_3, %c0_4] : memref<3x48x128xbf16, #tpu.memory_space<vmem>>, vector<1x48x128xbf16>
    %5 = vector.shape_cast %4 : vector<1x48x128xbf16> to vector<48x128xbf16>
    %cst_5 = arith.constant dense<0.000000e+00> : vector<16x128xf32>
    %6 = tpu.matmul %2, %5, %cst_5 {dimension_numbers = #tpu.dot_dimension_numbers<[1], [0], [0], [1], [0, 0, 1, 1], [], []>} : vector<16x48xbf16>, vector<48x128xbf16>, vector<16x128xf32> -> vector<16x128xf32>
    %7 = tpu.iota {dimensions = array<i32: 0>} : vector<16x16xi32>
    %8 = tpu.iota {dimensions = array<i32: 1>} : vector<16x16xi32>
    %c1_i32 = arith.constant 1 : i32
    %9 = vector.broadcast %c1_i32 : i32 to vector<16x16xi32>
    %10 = arith.muli %9, %7 : vector<16x16xi32>
    %c-1_i32 = arith.constant -1 : i32
    %11 = vector.broadcast %c-1_i32 : i32 to vector<16x16xi32>
    %12 = arith.addi %10, %11 : vector<16x16xi32>
    %13 = arith.cmpi eq, %8, %12 : vector<16x16xi32>
    %14 = arith.extui %13 : vector<16x16xi1> to vector<16x16xi32>
    %15 = arith.sitofp %14 : vector<16x16xi32> to vector<16x16xf32>
    %cst_6 = arith.constant dense<0.000000e+00> : vector<16x128xf32>
    %16 = tpu.matmul %15, %6, %cst_6 {dimension_numbers = #tpu.dot_dimension_numbers<[1], [0], [0], [1], [0, 0, 1, 1], [], []>} : vector<16x16xf32>, vector<16x128xf32>, vector<16x128xf32> -> vector<16x128xf32>
    %17 = arith.addf %3, %16 : vector<16x128xf32>
    %c1 = arith.constant 1 : index
    %c0_7 = arith.constant 0 : index
    %c0_8 = arith.constant 0 : index
    %18 = vector.load %arg2[%c1, %c0_7, %c0_8] : memref<3x48x128xbf16, #tpu.memory_space<vmem>>, vector<1x48x128xbf16>
    %19 = vector.shape_cast %18 : vector<1x48x128xbf16> to vector<48x128xbf16>
    %cst_9 = arith.constant dense<0.000000e+00> : vector<16x128xf32>
    %20 = tpu.matmul %2, %19, %cst_9 {dimension_numbers = #tpu.dot_dimension_numbers<[1], [0], [0], [1], [0, 0, 1, 1], [], []>} : vector<16x48xbf16>, vector<48x128xbf16>, vector<16x128xf32> -> vector<16x128xf32>
    %21 = tpu.iota {dimensions = array<i32: 0>} : vector<16x16xi32>
    %22 = tpu.iota {dimensions = array<i32: 1>} : vector<16x16xi32>
    %c1_i32_10 = arith.constant 1 : i32
    %23 = vector.broadcast %c1_i32_10 : i32 to vector<16x16xi32>
    %24 = arith.muli %23, %21 : vector<16x16xi32>
    %c0_i32 = arith.constant 0 : i32
    %25 = vector.broadcast %c0_i32 : i32 to vector<16x16xi32>
    %26 = arith.addi %24, %25 : vector<16x16xi32>
    %27 = arith.cmpi eq, %22, %26 : vector<16x16xi32>
    %28 = arith.extui %27 : vector<16x16xi1> to vector<16x16xi32>
    %29 = arith.sitofp %28 : vector<16x16xi32> to vector<16x16xf32>
    %cst_11 = arith.constant dense<0.000000e+00> : vector<16x128xf32>
    %30 = tpu.matmul %29, %20, %cst_11 {dimension_numbers = #tpu.dot_dimension_numbers<[1], [0], [0], [1], [0, 0, 1, 1], [], []>} : vector<16x16xf32>, vector<16x128xf32>, vector<16x128xf32> -> vector<16x128xf32>
    %31 = arith.addf %17, %30 : vector<16x128xf32>
    %c2 = arith.constant 2 : index
    %c0_12 = arith.constant 0 : index
    %c0_13 = arith.constant 0 : index
    %32 = vector.load %arg2[%c2, %c0_12, %c0_13] : memref<3x48x128xbf16, #tpu.memory_space<vmem>>, vector<1x48x128xbf16>
    %33 = vector.shape_cast %32 : vector<1x48x128xbf16> to vector<48x128xbf16>
    %cst_14 = arith.constant dense<0.000000e+00> : vector<16x128xf32>
    %34 = tpu.matmul %2, %33, %cst_14 {dimension_numbers = #tpu.dot_dimension_numbers<[1], [0], [0], [1], [0, 0, 1, 1], [], []>} : vector<16x48xbf16>, vector<48x128xbf16>, vector<16x128xf32> -> vector<16x128xf32>
    %35 = tpu.iota {dimensions = array<i32: 0>} : vector<16x16xi32>
    %36 = tpu.iota {dimensions = array<i32: 1>} : vector<16x16xi32>
    %c1_i32_15 = arith.constant 1 : i32
    %37 = vector.broadcast %c1_i32_15 : i32 to vector<16x16xi32>
    %38 = arith.muli %37, %35 : vector<16x16xi32>
    %c1_i32_16 = arith.constant 1 : i32
    %39 = vector.broadcast %c1_i32_16 : i32 to vector<16x16xi32>
    %40 = arith.addi %38, %39 : vector<16x16xi32>
    %41 = arith.cmpi eq, %36, %40 : vector<16x16xi32>
    %42 = arith.extui %41 : vector<16x16xi1> to vector<16x16xi32>
    %43 = arith.sitofp %42 : vector<16x16xi32> to vector<16x16xf32>
    %cst_17 = arith.constant dense<0.000000e+00> : vector<16x128xf32>
    %44 = tpu.matmul %43, %34, %cst_17 {dimension_numbers = #tpu.dot_dimension_numbers<[1], [0], [0], [1], [0, 0, 1, 1], [], []>} : vector<16x16xf32>, vector<16x128xf32>, vector<16x128xf32> -> vector<16x128xf32>
    %45 = arith.addf %31, %44 : vector<16x128xf32>
    %c0_18 = arith.constant 0 : index
    %c0_19 = arith.constant 0 : index
    %46 = vector.load %arg3[%c0_18, %c0_19] : memref<1x128xf32, #tpu.memory_space<vmem>>, vector<1x128xf32>
    %47 = vector.broadcast %46 : vector<1x128xf32> to vector<16x128xf32>
    %48 = arith.addf %45, %47 : vector<16x128xf32>
    %cst_20 = arith.constant 0.000000e+00 : f32
    %49 = vector.broadcast %cst_20 : f32 to vector<16x128xf32>
    %50 = arith.cmpf ogt, %48, %49 : vector<16x128xf32>
    %cst_21 = arith.constant 2.000000e-01 : f32
    %51 = vector.broadcast %cst_21 : f32 to vector<16x128xf32>
    %52 = arith.mulf %51, %48 : vector<16x128xf32>
    %53 = arith.select %50, %48, %52 : vector<16x128xi1>, vector<16x128xf32>
    %54 = arith.truncf %53 : vector<16x128xf32> to vector<16x128xbf16>
    %cst_22 = arith.constant 0.000000e+00 : f32
    %55 = vector.broadcast %cst_22 : f32 to vector<16x128xf32>
    %c0_23 = arith.constant 0 : index
    %c0_24 = arith.constant 0 : index
    %c0_25 = arith.constant 0 : index
    %56 = vector.load %arg4[%c0_23, %c0_24, %c0_25] : memref<3x128x128xbf16, #tpu.memory_space<vmem>>, vector<1x128x128xbf16>
    %57 = vector.shape_cast %56 : vector<1x128x128xbf16> to vector<128x128xbf16>
    %cst_26 = arith.constant dense<0.000000e+00> : vector<16x128xf32>
    %58 = tpu.matmul %54, %57, %cst_26 {dimension_numbers = #tpu.dot_dimension_numbers<[1], [0], [0], [1], [0, 0, 1, 1], [], []>} : vector<16x128xbf16>, vector<128x128xbf16>, vector<16x128xf32> -> vector<16x128xf32>
    %cst_27 = arith.constant dense<0.000000e+00> : vector<16x128xf32>
    %59 = tpu.matmul %15, %58, %cst_27 {dimension_numbers = #tpu.dot_dimension_numbers<[1], [0], [0], [1], [0, 0, 1, 1], [], []>} : vector<16x16xf32>, vector<16x128xf32>, vector<16x128xf32> -> vector<16x128xf32>
    %60 = arith.addf %55, %59 : vector<16x128xf32>
    %c1_28 = arith.constant 1 : index
    %c0_29 = arith.constant 0 : index
    %c0_30 = arith.constant 0 : index
    %61 = vector.load %arg4[%c1_28, %c0_29, %c0_30] : memref<3x128x128xbf16, #tpu.memory_space<vmem>>, vector<1x128x128xbf16>
    %62 = vector.shape_cast %61 : vector<1x128x128xbf16> to vector<128x128xbf16>
    %cst_31 = arith.constant dense<0.000000e+00> : vector<16x128xf32>
    %63 = tpu.matmul %54, %62, %cst_31 {dimension_numbers = #tpu.dot_dimension_numbers<[1], [0], [0], [1], [0, 0, 1, 1], [], []>} : vector<16x128xbf16>, vector<128x128xbf16>, vector<16x128xf32> -> vector<16x128xf32>
    %cst_32 = arith.constant dense<0.000000e+00> : vector<16x128xf32>
    %64 = tpu.matmul %29, %63, %cst_32 {dimension_numbers = #tpu.dot_dimension_numbers<[1], [0], [0], [1], [0, 0, 1, 1], [], []>} : vector<16x16xf32>, vector<16x128xf32>, vector<16x128xf32> -> vector<16x128xf32>
    %65 = arith.addf %60, %64 : vector<16x128xf32>
    %c2_33 = arith.constant 2 : index
    %c0_34 = arith.constant 0 : index
    %c0_35 = arith.constant 0 : index
    %66 = vector.load %arg4[%c2_33, %c0_34, %c0_35] : memref<3x128x128xbf16, #tpu.memory_space<vmem>>, vector<1x128x128xbf16>
    %67 = vector.shape_cast %66 : vector<1x128x128xbf16> to vector<128x128xbf16>
    %cst_36 = arith.constant dense<0.000000e+00> : vector<16x128xf32>
    %68 = tpu.matmul %54, %67, %cst_36 {dimension_numbers = #tpu.dot_dimension_numbers<[1], [0], [0], [1], [0, 0, 1, 1], [], []>} : vector<16x128xbf16>, vector<128x128xbf16>, vector<16x128xf32> -> vector<16x128xf32>
    %cst_37 = arith.constant dense<0.000000e+00> : vector<16x128xf32>
    %69 = tpu.matmul %43, %68, %cst_37 {dimension_numbers = #tpu.dot_dimension_numbers<[1], [0], [0], [1], [0, 0, 1, 1], [], []>} : vector<16x16xf32>, vector<16x128xf32>, vector<16x128xf32> -> vector<16x128xf32>
    %70 = arith.addf %65, %69 : vector<16x128xf32>
    %c0_38 = arith.constant 0 : index
    %c0_39 = arith.constant 0 : index
    %71 = vector.load %arg5[%c0_38, %c0_39] : memref<1x128xf32, #tpu.memory_space<vmem>>, vector<1x128xf32>
    %72 = vector.broadcast %71 : vector<1x128xf32> to vector<16x128xf32>
    %73 = arith.addf %70, %72 : vector<16x128xf32>
    %cst_40 = arith.constant 0.000000e+00 : f32
    %74 = vector.broadcast %cst_40 : f32 to vector<16x128xf32>
    %75 = arith.cmpf ogt, %73, %74 : vector<16x128xf32>
    %cst_41 = arith.constant 2.000000e-01 : f32
    %76 = vector.broadcast %cst_41 : f32 to vector<16x128xf32>
    %77 = arith.mulf %76, %73 : vector<16x128xf32>
    %78 = arith.select %75, %73, %77 : vector<16x128xi1>, vector<16x128xf32>
    %79 = arith.truncf %78 : vector<16x128xf32> to vector<16x128xbf16>
    %cst_42 = arith.constant 0.000000e+00 : f32
    %80 = vector.broadcast %cst_42 : f32 to vector<16x128xf32>
    %c0_43 = arith.constant 0 : index
    %c0_44 = arith.constant 0 : index
    %c0_45 = arith.constant 0 : index
    %81 = vector.load %arg6[%c0_43, %c0_44, %c0_45] : memref<3x128x128xbf16, #tpu.memory_space<vmem>>, vector<1x128x128xbf16>
    %82 = vector.shape_cast %81 : vector<1x128x128xbf16> to vector<128x128xbf16>
    %cst_46 = arith.constant dense<0.000000e+00> : vector<16x128xf32>
    %83 = tpu.matmul %79, %82, %cst_46 {dimension_numbers = #tpu.dot_dimension_numbers<[1], [0], [0], [1], [0, 0, 1, 1], [], []>} : vector<16x128xbf16>, vector<128x128xbf16>, vector<16x128xf32> -> vector<16x128xf32>
    %cst_47 = arith.constant dense<0.000000e+00> : vector<16x128xf32>
    %84 = tpu.matmul %15, %83, %cst_47 {dimension_numbers = #tpu.dot_dimension_numbers<[1], [0], [0], [1], [0, 0, 1, 1], [], []>} : vector<16x16xf32>, vector<16x128xf32>, vector<16x128xf32> -> vector<16x128xf32>
    %85 = arith.addf %80, %84 : vector<16x128xf32>
    %c1_48 = arith.constant 1 : index
    %c0_49 = arith.constant 0 : index
    %c0_50 = arith.constant 0 : index
    %86 = vector.load %arg6[%c1_48, %c0_49, %c0_50] : memref<3x128x128xbf16, #tpu.memory_space<vmem>>, vector<1x128x128xbf16>
    %87 = vector.shape_cast %86 : vector<1x128x128xbf16> to vector<128x128xbf16>
    %cst_51 = arith.constant dense<0.000000e+00> : vector<16x128xf32>
    %88 = tpu.matmul %79, %87, %cst_51 {dimension_numbers = #tpu.dot_dimension_numbers<[1], [0], [0], [1], [0, 0, 1, 1], [], []>} : vector<16x128xbf16>, vector<128x128xbf16>, vector<16x128xf32> -> vector<16x128xf32>
    %cst_52 = arith.constant dense<0.000000e+00> : vector<16x128xf32>
    %89 = tpu.matmul %29, %88, %cst_52 {dimension_numbers = #tpu.dot_dimension_numbers<[1], [0], [0], [1], [0, 0, 1, 1], [], []>} : vector<16x16xf32>, vector<16x128xf32>, vector<16x128xf32> -> vector<16x128xf32>
    %90 = arith.addf %85, %89 : vector<16x128xf32>
    %c2_53 = arith.constant 2 : index
    %c0_54 = arith.constant 0 : index
    %c0_55 = arith.constant 0 : index
    %91 = vector.load %arg6[%c2_53, %c0_54, %c0_55] : memref<3x128x128xbf16, #tpu.memory_space<vmem>>, vector<1x128x128xbf16>
    %92 = vector.shape_cast %91 : vector<1x128x128xbf16> to vector<128x128xbf16>
    %cst_56 = arith.constant dense<0.000000e+00> : vector<16x128xf32>
    %93 = tpu.matmul %79, %92, %cst_56 {dimension_numbers = #tpu.dot_dimension_numbers<[1], [0], [0], [1], [0, 0, 1, 1], [], []>} : vector<16x128xbf16>, vector<128x128xbf16>, vector<16x128xf32> -> vector<16x128xf32>
    %cst_57 = arith.constant dense<0.000000e+00> : vector<16x128xf32>
    %94 = tpu.matmul %43, %93, %cst_57 {dimension_numbers = #tpu.dot_dimension_numbers<[1], [0], [0], [1], [0, 0, 1, 1], [], []>} : vector<16x16xf32>, vector<16x128xf32>, vector<16x128xf32> -> vector<16x128xf32>
    %95 = arith.addf %90, %94 : vector<16x128xf32>
    %c0_58 = arith.constant 0 : index
    %c0_59 = arith.constant 0 : index
    %96 = vector.load %arg7[%c0_58, %c0_59] : memref<1x128xf32, #tpu.memory_space<vmem>>, vector<1x128xf32>
    %97 = vector.broadcast %96 : vector<1x128xf32> to vector<16x128xf32>
    %98 = arith.addf %95, %97 : vector<16x128xf32>
    %cst_60 = arith.constant 0.000000e+00 : f32
    %99 = vector.broadcast %cst_60 : f32 to vector<16x128xf32>
    %100 = arith.cmpf ogt, %98, %99 : vector<16x128xf32>
    %cst_61 = arith.constant 2.000000e-01 : f32
    %101 = vector.broadcast %cst_61 : f32 to vector<16x128xf32>
    %102 = arith.mulf %101, %98 : vector<16x128xf32>
    %103 = arith.select %100, %98, %102 : vector<16x128xi1>, vector<16x128xf32>
    %104 = arith.addf %53, %103 : vector<16x128xf32>
    %105 = arith.truncf %104 : vector<16x128xf32> to vector<16x128xbf16>
    %cst_62 = arith.constant 0.000000e+00 : f32
    %106 = vector.broadcast %cst_62 : f32 to vector<16x128xf32>
    %c0_63 = arith.constant 0 : index
    %c0_64 = arith.constant 0 : index
    %c0_65 = arith.constant 0 : index
    %107 = vector.load %arg8[%c0_63, %c0_64, %c0_65] : memref<3x128x128xbf16, #tpu.memory_space<vmem>>, vector<1x128x128xbf16>
    %108 = vector.shape_cast %107 : vector<1x128x128xbf16> to vector<128x128xbf16>
    %cst_66 = arith.constant dense<0.000000e+00> : vector<16x128xf32>
    %109 = tpu.matmul %105, %108, %cst_66 {dimension_numbers = #tpu.dot_dimension_numbers<[1], [0], [0], [1], [0, 0, 1, 1], [], []>} : vector<16x128xbf16>, vector<128x128xbf16>, vector<16x128xf32> -> vector<16x128xf32>
    %cst_67 = arith.constant dense<0.000000e+00> : vector<16x128xf32>
    %110 = tpu.matmul %15, %109, %cst_67 {dimension_numbers = #tpu.dot_dimension_numbers<[1], [0], [0], [1], [0, 0, 1, 1], [], []>} : vector<16x16xf32>, vector<16x128xf32>, vector<16x128xf32> -> vector<16x128xf32>
    %111 = arith.addf %106, %110 : vector<16x128xf32>
    %c1_68 = arith.constant 1 : index
    %c0_69 = arith.constant 0 : index
    %c0_70 = arith.constant 0 : index
    %112 = vector.load %arg8[%c1_68, %c0_69, %c0_70] : memref<3x128x128xbf16, #tpu.memory_space<vmem>>, vector<1x128x128xbf16>
    %113 = vector.shape_cast %112 : vector<1x128x128xbf16> to vector<128x128xbf16>
    %cst_71 = arith.constant dense<0.000000e+00> : vector<16x128xf32>
    %114 = tpu.matmul %105, %113, %cst_71 {dimension_numbers = #tpu.dot_dimension_numbers<[1], [0], [0], [1], [0, 0, 1, 1], [], []>} : vector<16x128xbf16>, vector<128x128xbf16>, vector<16x128xf32> -> vector<16x128xf32>
    %cst_72 = arith.constant dense<0.000000e+00> : vector<16x128xf32>
    %115 = tpu.matmul %29, %114, %cst_72 {dimension_numbers = #tpu.dot_dimension_numbers<[1], [0], [0], [1], [0, 0, 1, 1], [], []>} : vector<16x16xf32>, vector<16x128xf32>, vector<16x128xf32> -> vector<16x128xf32>
    %116 = arith.addf %111, %115 : vector<16x128xf32>
    %c2_73 = arith.constant 2 : index
    %c0_74 = arith.constant 0 : index
    %c0_75 = arith.constant 0 : index
    %117 = vector.load %arg8[%c2_73, %c0_74, %c0_75] : memref<3x128x128xbf16, #tpu.memory_space<vmem>>, vector<1x128x128xbf16>
    %118 = vector.shape_cast %117 : vector<1x128x128xbf16> to vector<128x128xbf16>
    %cst_76 = arith.constant dense<0.000000e+00> : vector<16x128xf32>
    %119 = tpu.matmul %105, %118, %cst_76 {dimension_numbers = #tpu.dot_dimension_numbers<[1], [0], [0], [1], [0, 0, 1, 1], [], []>} : vector<16x128xbf16>, vector<128x128xbf16>, vector<16x128xf32> -> vector<16x128xf32>
    %cst_77 = arith.constant dense<0.000000e+00> : vector<16x128xf32>
    %120 = tpu.matmul %43, %119, %cst_77 {dimension_numbers = #tpu.dot_dimension_numbers<[1], [0], [0], [1], [0, 0, 1, 1], [], []>} : vector<16x16xf32>, vector<16x128xf32>, vector<16x128xf32> -> vector<16x128xf32>
    %121 = arith.addf %116, %120 : vector<16x128xf32>
    %c0_78 = arith.constant 0 : index
    %c0_79 = arith.constant 0 : index
    %122 = vector.load %arg9[%c0_78, %c0_79] : memref<1x128xf32, #tpu.memory_space<vmem>>, vector<1x128xf32>
    %123 = vector.broadcast %122 : vector<1x128xf32> to vector<16x128xf32>
    %124 = arith.addf %121, %123 : vector<16x128xf32>
    %cst_80 = arith.constant 0.000000e+00 : f32
    %125 = vector.broadcast %cst_80 : f32 to vector<16x128xf32>
    %126 = arith.cmpf ogt, %124, %125 : vector<16x128xf32>
    %cst_81 = arith.constant 2.000000e-01 : f32
    %127 = vector.broadcast %cst_81 : f32 to vector<16x128xf32>
    %128 = arith.mulf %127, %124 : vector<16x128xf32>
    %129 = arith.select %126, %124, %128 : vector<16x128xi1>, vector<16x128xf32>
    %130 = arith.truncf %129 : vector<16x128xf32> to vector<16x128xbf16>
    %cst_82 = arith.constant 0.000000e+00 : f32
    %131 = vector.broadcast %cst_82 : f32 to vector<16x128xf32>
    %c0_83 = arith.constant 0 : index
    %c0_84 = arith.constant 0 : index
    %c0_85 = arith.constant 0 : index
    %132 = vector.load %arg10[%c0_83, %c0_84, %c0_85] : memref<3x128x128xbf16, #tpu.memory_space<vmem>>, vector<1x128x128xbf16>
    %133 = vector.shape_cast %132 : vector<1x128x128xbf16> to vector<128x128xbf16>
    %cst_86 = arith.constant dense<0.000000e+00> : vector<16x128xf32>
    %134 = tpu.matmul %130, %133, %cst_86 {dimension_numbers = #tpu.dot_dimension_numbers<[1], [0], [0], [1], [0, 0, 1, 1], [], []>} : vector<16x128xbf16>, vector<128x128xbf16>, vector<16x128xf32> -> vector<16x128xf32>
    %cst_87 = arith.constant dense<0.000000e+00> : vector<16x128xf32>
    %135 = tpu.matmul %15, %134, %cst_87 {dimension_numbers = #tpu.dot_dimension_numbers<[1], [0], [0], [1], [0, 0, 1, 1], [], []>} : vector<16x16xf32>, vector<16x128xf32>, vector<16x128xf32> -> vector<16x128xf32>
    %136 = arith.addf %131, %135 : vector<16x128xf32>
    %c1_88 = arith.constant 1 : index
    %c0_89 = arith.constant 0 : index
    %c0_90 = arith.constant 0 : index
    %137 = vector.load %arg10[%c1_88, %c0_89, %c0_90] : memref<3x128x128xbf16, #tpu.memory_space<vmem>>, vector<1x128x128xbf16>
    %138 = vector.shape_cast %137 : vector<1x128x128xbf16> to vector<128x128xbf16>
    %cst_91 = arith.constant dense<0.000000e+00> : vector<16x128xf32>
    %139 = tpu.matmul %130, %138, %cst_91 {dimension_numbers = #tpu.dot_dimension_numbers<[1], [0], [0], [1], [0, 0, 1, 1], [], []>} : vector<16x128xbf16>, vector<128x128xbf16>, vector<16x128xf32> -> vector<16x128xf32>
    %cst_92 = arith.constant dense<0.000000e+00> : vector<16x128xf32>
    %140 = tpu.matmul %29, %139, %cst_92 {dimension_numbers = #tpu.dot_dimension_numbers<[1], [0], [0], [1], [0, 0, 1, 1], [], []>} : vector<16x16xf32>, vector<16x128xf32>, vector<16x128xf32> -> vector<16x128xf32>
    %141 = arith.addf %136, %140 : vector<16x128xf32>
    %c2_93 = arith.constant 2 : index
    %c0_94 = arith.constant 0 : index
    %c0_95 = arith.constant 0 : index
    %142 = vector.load %arg10[%c2_93, %c0_94, %c0_95] : memref<3x128x128xbf16, #tpu.memory_space<vmem>>, vector<1x128x128xbf16>
    %143 = vector.shape_cast %142 : vector<1x128x128xbf16> to vector<128x128xbf16>
    %cst_96 = arith.constant dense<0.000000e+00> : vector<16x128xf32>
    %144 = tpu.matmul %130, %143, %cst_96 {dimension_numbers = #tpu.dot_dimension_numbers<[1], [0], [0], [1], [0, 0, 1, 1], [], []>} : vector<16x128xbf16>, vector<128x128xbf16>, vector<16x128xf32> -> vector<16x128xf32>
    %cst_97 = arith.constant dense<0.000000e+00> : vector<16x128xf32>
    %145 = tpu.matmul %43, %144, %cst_97 {dimension_numbers = #tpu.dot_dimension_numbers<[1], [0], [0], [1], [0, 0, 1, 1], [], []>} : vector<16x16xf32>, vector<16x128xf32>, vector<16x128xf32> -> vector<16x128xf32>
    %146 = arith.addf %141, %145 : vector<16x128xf32>
    %c0_98 = arith.constant 0 : index
    %c0_99 = arith.constant 0 : index
    %147 = vector.load %arg11[%c0_98, %c0_99] : memref<1x128xf32, #tpu.memory_space<vmem>>, vector<1x128xf32>
    %148 = vector.broadcast %147 : vector<1x128xf32> to vector<16x128xf32>
    %149 = arith.addf %146, %148 : vector<16x128xf32>
    %cst_100 = arith.constant 0.000000e+00 : f32
    %150 = vector.broadcast %cst_100 : f32 to vector<16x128xf32>
    %151 = arith.cmpf ogt, %149, %150 : vector<16x128xf32>
    %cst_101 = arith.constant 2.000000e-01 : f32
    %152 = vector.broadcast %cst_101 : f32 to vector<16x128xf32>
    %153 = arith.mulf %152, %149 : vector<16x128xf32>
    %154 = arith.select %151, %149, %153 : vector<16x128xi1>, vector<16x128xf32>
    %155 = arith.addf %104, %154 : vector<16x128xf32>
    %156 = arith.truncf %155 : vector<16x128xf32> to vector<16x128xbf16>
    %cst_102 = arith.constant 0.000000e+00 : f32
    %157 = vector.broadcast %cst_102 : f32 to vector<4x128xf32>
    %c0_103 = arith.constant 0 : index
    %c0_104 = arith.constant 0 : index
    %c0_105 = arith.constant 0 : index
    %158 = vector.load %arg12[%c0_103, %c0_104, %c0_105] : memref<4x128x128xbf16, #tpu.memory_space<vmem>>, vector<1x128x128xbf16>
    %159 = vector.shape_cast %158 : vector<1x128x128xbf16> to vector<128x128xbf16>
    %cst_106 = arith.constant dense<0.000000e+00> : vector<16x128xf32>
    %160 = tpu.matmul %156, %159, %cst_106 {dimension_numbers = #tpu.dot_dimension_numbers<[1], [0], [0], [1], [0, 0, 1, 1], [], []>} : vector<16x128xbf16>, vector<128x128xbf16>, vector<16x128xf32> -> vector<16x128xf32>
    %161 = tpu.iota {dimensions = array<i32: 0>} : vector<4x16xi32>
    %162 = tpu.iota {dimensions = array<i32: 1>} : vector<4x16xi32>
    %c4_i32 = arith.constant 4 : i32
    %163 = vector.broadcast %c4_i32 : i32 to vector<4x16xi32>
    %164 = arith.muli %163, %161 : vector<4x16xi32>
    %c0_i32_107 = arith.constant 0 : i32
    %165 = vector.broadcast %c0_i32_107 : i32 to vector<4x16xi32>
    %166 = arith.addi %164, %165 : vector<4x16xi32>
    %167 = arith.cmpi eq, %162, %166 : vector<4x16xi32>
    %168 = arith.extui %167 : vector<4x16xi1> to vector<4x16xi32>
    %169 = arith.sitofp %168 : vector<4x16xi32> to vector<4x16xf32>
    %cst_108 = arith.constant dense<0.000000e+00> : vector<4x128xf32>
    %170 = tpu.matmul %169, %160, %cst_108 {dimension_numbers = #tpu.dot_dimension_numbers<[1], [0], [0], [1], [0, 0, 1, 1], [], []>} : vector<4x16xf32>, vector<16x128xf32>, vector<4x128xf32> -> vector<4x128xf32>
    %171 = arith.addf %157, %170 : vector<4x128xf32>
    %c1_109 = arith.constant 1 : index
    %c0_110 = arith.constant 0 : index
    %c0_111 = arith.constant 0 : index
    %172 = vector.load %arg12[%c1_109, %c0_110, %c0_111] : memref<4x128x128xbf16, #tpu.memory_space<vmem>>, vector<1x128x128xbf16>
    %173 = vector.shape_cast %172 : vector<1x128x128xbf16> to vector<128x128xbf16>
    %cst_112 = arith.constant dense<0.000000e+00> : vector<16x128xf32>
    %174 = tpu.matmul %156, %173, %cst_112 {dimension_numbers = #tpu.dot_dimension_numbers<[1], [0], [0], [1], [0, 0, 1, 1], [], []>} : vector<16x128xbf16>, vector<128x128xbf16>, vector<16x128xf32> -> vector<16x128xf32>
    %175 = tpu.iota {dimensions = array<i32: 0>} : vector<4x16xi32>
    %176 = tpu.iota {dimensions = array<i32: 1>} : vector<4x16xi32>
    %c4_i32_113 = arith.constant 4 : i32
    %177 = vector.broadcast %c4_i32_113 : i32 to vector<4x16xi32>
    %178 = arith.muli %177, %175 : vector<4x16xi32>
    %c1_i32_114 = arith.constant 1 : i32
    %179 = vector.broadcast %c1_i32_114 : i32 to vector<4x16xi32>
    %180 = arith.addi %178, %179 : vector<4x16xi32>
    %181 = arith.cmpi eq, %176, %180 : vector<4x16xi32>
    %182 = arith.extui %181 : vector<4x16xi1> to vector<4x16xi32>
    %183 = arith.sitofp %182 : vector<4x16xi32> to vector<4x16xf32>
    %cst_115 = arith.constant dense<0.000000e+00> : vector<4x128xf32>
    %184 = tpu.matmul %183, %174, %cst_115 {dimension_numbers = #tpu.dot_dimension_numbers<[1], [0], [0], [1], [0, 0, 1, 1], [], []>} : vector<4x16xf32>, vector<16x128xf32>, vector<4x128xf32> -> vector<4x128xf32>
    %185 = arith.addf %171, %184 : vector<4x128xf32>
    %c2_116 = arith.constant 2 : index
    %c0_117 = arith.constant 0 : index
    %c0_118 = arith.constant 0 : index
    %186 = vector.load %arg12[%c2_116, %c0_117, %c0_118] : memref<4x128x128xbf16, #tpu.memory_space<vmem>>, vector<1x128x128xbf16>
    %187 = vector.shape_cast %186 : vector<1x128x128xbf16> to vector<128x128xbf16>
    %cst_119 = arith.constant dense<0.000000e+00> : vector<16x128xf32>
    %188 = tpu.matmul %156, %187, %cst_119 {dimension_numbers = #tpu.dot_dimension_numbers<[1], [0], [0], [1], [0, 0, 1, 1], [], []>} : vector<16x128xbf16>, vector<128x128xbf16>, vector<16x128xf32> -> vector<16x128xf32>
    %189 = tpu.iota {dimensions = array<i32: 0>} : vector<4x16xi32>
    %190 = tpu.iota {dimensions = array<i32: 1>} : vector<4x16xi32>
    %c4_i32_120 = arith.constant 4 : i32
    %191 = vector.broadcast %c4_i32_120 : i32 to vector<4x16xi32>
    %192 = arith.muli %191, %189 : vector<4x16xi32>
    %c2_i32 = arith.constant 2 : i32
    %193 = vector.broadcast %c2_i32 : i32 to vector<4x16xi32>
    %194 = arith.addi %192, %193 : vector<4x16xi32>
    %195 = arith.cmpi eq, %190, %194 : vector<4x16xi32>
    %196 = arith.extui %195 : vector<4x16xi1> to vector<4x16xi32>
    %197 = arith.sitofp %196 : vector<4x16xi32> to vector<4x16xf32>
    %cst_121 = arith.constant dense<0.000000e+00> : vector<4x128xf32>
    %198 = tpu.matmul %197, %188, %cst_121 {dimension_numbers = #tpu.dot_dimension_numbers<[1], [0], [0], [1], [0, 0, 1, 1], [], []>} : vector<4x16xf32>, vector<16x128xf32>, vector<4x128xf32> -> vector<4x128xf32>
    %199 = arith.addf %185, %198 : vector<4x128xf32>
    %c3 = arith.constant 3 : index
    %c0_122 = arith.constant 0 : index
    %c0_123 = arith.constant 0 : index
    %200 = vector.load %arg12[%c3, %c0_122, %c0_123] : memref<4x128x128xbf16, #tpu.memory_space<vmem>>, vector<1x128x128xbf16>
    %201 = vector.shape_cast %200 : vector<1x128x128xbf16> to vector<128x128xbf16>
    %cst_124 = arith.constant dense<0.000000e+00> : vector<16x128xf32>
    %202 = tpu.matmul %156, %201, %cst_124 {dimension_numbers = #tpu.dot_dimension_numbers<[1], [0], [0], [1], [0, 0, 1, 1], [], []>} : vector<16x128xbf16>, vector<128x128xbf16>, vector<16x128xf32> -> vector<16x128xf32>
    %203 = tpu.iota {dimensions = array<i32: 0>} : vector<4x16xi32>
    %204 = tpu.iota {dimensions = array<i32: 1>} : vector<4x16xi32>
    %c4_i32_125 = arith.constant 4 : i32
    %205 = vector.broadcast %c4_i32_125 : i32 to vector<4x16xi32>
    %206 = arith.muli %205, %203 : vector<4x16xi32>
    %c3_i32 = arith.constant 3 : i32
    %207 = vector.broadcast %c3_i32 : i32 to vector<4x16xi32>
    %208 = arith.addi %206, %207 : vector<4x16xi32>
    %209 = arith.cmpi eq, %204, %208 : vector<4x16xi32>
    %210 = arith.extui %209 : vector<4x16xi1> to vector<4x16xi32>
    %211 = arith.sitofp %210 : vector<4x16xi32> to vector<4x16xf32>
    %cst_126 = arith.constant dense<0.000000e+00> : vector<4x128xf32>
    %212 = tpu.matmul %211, %202, %cst_126 {dimension_numbers = #tpu.dot_dimension_numbers<[1], [0], [0], [1], [0, 0, 1, 1], [], []>} : vector<4x16xf32>, vector<16x128xf32>, vector<4x128xf32> -> vector<4x128xf32>
    %213 = arith.addf %199, %212 : vector<4x128xf32>
    %c0_127 = arith.constant 0 : index
    %c0_128 = arith.constant 0 : index
    %214 = vector.load %arg13[%c0_127, %c0_128] : memref<1x128xf32, #tpu.memory_space<vmem>>, vector<1x128xf32>
    %215 = vector.broadcast %214 : vector<1x128xf32> to vector<4x128xf32>
    %216 = arith.addf %213, %215 : vector<4x128xf32>
    %cst_129 = arith.constant 0.000000e+00 : f32
    %217 = vector.broadcast %cst_129 : f32 to vector<4x128xf32>
    %218 = arith.cmpf ogt, %216, %217 : vector<4x128xf32>
    %cst_130 = arith.constant 2.000000e-01 : f32
    %219 = vector.broadcast %cst_130 : f32 to vector<4x128xf32>
    %220 = arith.mulf %219, %216 : vector<4x128xf32>
    %221 = arith.select %218, %216, %220 : vector<4x128xi1>, vector<4x128xf32>
    %222 = arith.truncf %155 : vector<16x128xf32> to vector<16x128xbf16>
    %cst_131 = arith.constant 0.000000e+00 : f32
    %223 = vector.broadcast %cst_131 : f32 to vector<8x128xf32>
    %c0_132 = arith.constant 0 : index
    %c0_133 = arith.constant 0 : index
    %c0_134 = arith.constant 0 : index
    %224 = vector.load %arg14[%c0_132, %c0_133, %c0_134] : memref<2x128x128xbf16, #tpu.memory_space<vmem>>, vector<1x128x128xbf16>
    %225 = vector.shape_cast %224 : vector<1x128x128xbf16> to vector<128x128xbf16>
    %cst_135 = arith.constant dense<0.000000e+00> : vector<16x128xf32>
    %226 = tpu.matmul %222, %225, %cst_135 {dimension_numbers = #tpu.dot_dimension_numbers<[1], [0], [0], [1], [0, 0, 1, 1], [], []>} : vector<16x128xbf16>, vector<128x128xbf16>, vector<16x128xf32> -> vector<16x128xf32>
    %227 = tpu.iota {dimensions = array<i32: 0>} : vector<8x16xi32>
    %228 = tpu.iota {dimensions = array<i32: 1>} : vector<8x16xi32>
    %c2_i32_136 = arith.constant 2 : i32
    %229 = vector.broadcast %c2_i32_136 : i32 to vector<8x16xi32>
    %230 = arith.muli %229, %227 : vector<8x16xi32>
    %c0_i32_137 = arith.constant 0 : i32
    %231 = vector.broadcast %c0_i32_137 : i32 to vector<8x16xi32>
    %232 = arith.addi %230, %231 : vector<8x16xi32>
    %233 = arith.cmpi eq, %228, %232 : vector<8x16xi32>
    %234 = arith.extui %233 : vector<8x16xi1> to vector<8x16xi32>
    %235 = arith.sitofp %234 : vector<8x16xi32> to vector<8x16xf32>
    %cst_138 = arith.constant dense<0.000000e+00> : vector<8x128xf32>
    %236 = tpu.matmul %235, %226, %cst_138 {dimension_numbers = #tpu.dot_dimension_numbers<[1], [0], [0], [1], [0, 0, 1, 1], [], []>} : vector<8x16xf32>, vector<16x128xf32>, vector<8x128xf32> -> vector<8x128xf32>
    %237 = arith.addf %223, %236 : vector<8x128xf32>
    %c1_139 = arith.constant 1 : index
    %c0_140 = arith.constant 0 : index
    %c0_141 = arith.constant 0 : index
    %238 = vector.load %arg14[%c1_139, %c0_140, %c0_141] : memref<2x128x128xbf16, #tpu.memory_space<vmem>>, vector<1x128x128xbf16>
    %239 = vector.shape_cast %238 : vector<1x128x128xbf16> to vector<128x128xbf16>
    %cst_142 = arith.constant dense<0.000000e+00> : vector<16x128xf32>
    %240 = tpu.matmul %222, %239, %cst_142 {dimension_numbers = #tpu.dot_dimension_numbers<[1], [0], [0], [1], [0, 0, 1, 1], [], []>} : vector<16x128xbf16>, vector<128x128xbf16>, vector<16x128xf32> -> vector<16x128xf32>
    %241 = tpu.iota {dimensions = array<i32: 0>} : vector<8x16xi32>
    %242 = tpu.iota {dimensions = array<i32: 1>} : vector<8x16xi32>
    %c2_i32_143 = arith.constant 2 : i32
    %243 = vector.broadcast %c2_i32_143 : i32 to vector<8x16xi32>
    %244 = arith.muli %243, %241 : vector<8x16xi32>
    %c1_i32_144 = arith.constant 1 : i32
    %245 = vector.broadcast %c1_i32_144 : i32 to vector<8x16xi32>
    %246 = arith.addi %244, %245 : vector<8x16xi32>
    %247 = arith.cmpi eq, %242, %246 : vector<8x16xi32>
    %248 = arith.extui %247 : vector<8x16xi1> to vector<8x16xi32>
    %249 = arith.sitofp %248 : vector<8x16xi32> to vector<8x16xf32>
    %cst_145 = arith.constant dense<0.000000e+00> : vector<8x128xf32>
    %250 = tpu.matmul %249, %240, %cst_145 {dimension_numbers = #tpu.dot_dimension_numbers<[1], [0], [0], [1], [0, 0, 1, 1], [], []>} : vector<8x16xf32>, vector<16x128xf32>, vector<8x128xf32> -> vector<8x128xf32>
    %251 = arith.addf %237, %250 : vector<8x128xf32>
    %c0_146 = arith.constant 0 : index
    %c0_147 = arith.constant 0 : index
    %252 = vector.load %arg15[%c0_146, %c0_147] : memref<1x128xf32, #tpu.memory_space<vmem>>, vector<1x128xf32>
    %253 = vector.broadcast %252 : vector<1x128xf32> to vector<8x128xf32>
    %254 = arith.addf %251, %253 : vector<8x128xf32>
    %cst_148 = arith.constant 0.000000e+00 : f32
    %255 = vector.broadcast %cst_148 : f32 to vector<8x128xf32>
    %256 = arith.cmpf ogt, %254, %255 : vector<8x128xf32>
    %cst_149 = arith.constant 2.000000e-01 : f32
    %257 = vector.broadcast %cst_149 : f32 to vector<8x128xf32>
    %258 = arith.mulf %257, %254 : vector<8x128xf32>
    %259 = arith.select %256, %254, %258 : vector<8x128xi1>, vector<8x128xf32>
    %260 = arith.truncf %259 : vector<8x128xf32> to vector<8x128xbf16>
    %cst_150 = arith.constant 0.000000e+00 : f32
    %261 = vector.broadcast %cst_150 : f32 to vector<8x128xf32>
    %c0_151 = arith.constant 0 : index
    %c0_152 = arith.constant 0 : index
    %c0_153 = arith.constant 0 : index
    %262 = vector.load %arg16[%c0_151, %c0_152, %c0_153] : memref<3x128x128xbf16, #tpu.memory_space<vmem>>, vector<1x128x128xbf16>
    %263 = vector.shape_cast %262 : vector<1x128x128xbf16> to vector<128x128xbf16>
    %cst_154 = arith.constant dense<0.000000e+00> : vector<8x128xf32>
    %264 = tpu.matmul %260, %263, %cst_154 {dimension_numbers = #tpu.dot_dimension_numbers<[1], [0], [0], [1], [0, 0, 1, 1], [], []>} : vector<8x128xbf16>, vector<128x128xbf16>, vector<8x128xf32> -> vector<8x128xf32>
    %265 = tpu.iota {dimensions = array<i32: 0>} : vector<8x8xi32>
    %266 = tpu.iota {dimensions = array<i32: 1>} : vector<8x8xi32>
    %c1_i32_155 = arith.constant 1 : i32
    %267 = vector.broadcast %c1_i32_155 : i32 to vector<8x8xi32>
    %268 = arith.muli %267, %265 : vector<8x8xi32>
    %c-1_i32_156 = arith.constant -1 : i32
    %269 = vector.broadcast %c-1_i32_156 : i32 to vector<8x8xi32>
    %270 = arith.addi %268, %269 : vector<8x8xi32>
    %271 = arith.cmpi eq, %266, %270 : vector<8x8xi32>
    %272 = arith.extui %271 : vector<8x8xi1> to vector<8x8xi32>
    %273 = arith.sitofp %272 : vector<8x8xi32> to vector<8x8xf32>
    %cst_157 = arith.constant dense<0.000000e+00> : vector<8x128xf32>
    %274 = tpu.matmul %273, %264, %cst_157 {dimension_numbers = #tpu.dot_dimension_numbers<[1], [0], [0], [1], [0, 0, 1, 1], [], []>} : vector<8x8xf32>, vector<8x128xf32>, vector<8x128xf32> -> vector<8x128xf32>
    %275 = arith.addf %261, %274 : vector<8x128xf32>
    %c1_158 = arith.constant 1 : index
    %c0_159 = arith.constant 0 : index
    %c0_160 = arith.constant 0 : index
    %276 = vector.load %arg16[%c1_158, %c0_159, %c0_160] : memref<3x128x128xbf16, #tpu.memory_space<vmem>>, vector<1x128x128xbf16>
    %277 = vector.shape_cast %276 : vector<1x128x128xbf16> to vector<128x128xbf16>
    %cst_161 = arith.constant dense<0.000000e+00> : vector<8x128xf32>
    %278 = tpu.matmul %260, %277, %cst_161 {dimension_numbers = #tpu.dot_dimension_numbers<[1], [0], [0], [1], [0, 0, 1, 1], [], []>} : vector<8x128xbf16>, vector<128x128xbf16>, vector<8x128xf32> -> vector<8x128xf32>
    %279 = tpu.iota {dimensions = array<i32: 0>} : vector<8x8xi32>
    %280 = tpu.iota {dimensions = array<i32: 1>} : vector<8x8xi32>
    %c1_i32_162 = arith.constant 1 : i32
    %281 = vector.broadcast %c1_i32_162 : i32 to vector<8x8xi32>
    %282 = arith.muli %281, %279 : vector<8x8xi32>
    %c0_i32_163 = arith.constant 0 : i32
    %283 = vector.broadcast %c0_i32_163 : i32 to vector<8x8xi32>
    %284 = arith.addi %282, %283 : vector<8x8xi32>
    %285 = arith.cmpi eq, %280, %284 : vector<8x8xi32>
    %286 = arith.extui %285 : vector<8x8xi1> to vector<8x8xi32>
    %287 = arith.sitofp %286 : vector<8x8xi32> to vector<8x8xf32>
    %cst_164 = arith.constant dense<0.000000e+00> : vector<8x128xf32>
    %288 = tpu.matmul %287, %278, %cst_164 {dimension_numbers = #tpu.dot_dimension_numbers<[1], [0], [0], [1], [0, 0, 1, 1], [], []>} : vector<8x8xf32>, vector<8x128xf32>, vector<8x128xf32> -> vector<8x128xf32>
    %289 = arith.addf %275, %288 : vector<8x128xf32>
    %c2_165 = arith.constant 2 : index
    %c0_166 = arith.constant 0 : index
    %c0_167 = arith.constant 0 : index
    %290 = vector.load %arg16[%c2_165, %c0_166, %c0_167] : memref<3x128x128xbf16, #tpu.memory_space<vmem>>, vector<1x128x128xbf16>
    %291 = vector.shape_cast %290 : vector<1x128x128xbf16> to vector<128x128xbf16>
    %cst_168 = arith.constant dense<0.000000e+00> : vector<8x128xf32>
    %292 = tpu.matmul %260, %291, %cst_168 {dimension_numbers = #tpu.dot_dimension_numbers<[1], [0], [0], [1], [0, 0, 1, 1], [], []>} : vector<8x128xbf16>, vector<128x128xbf16>, vector<8x128xf32> -> vector<8x128xf32>
    %293 = tpu.iota {dimensions = array<i32: 0>} : vector<8x8xi32>
    %294 = tpu.iota {dimensions = array<i32: 1>} : vector<8x8xi32>
    %c1_i32_169 = arith.constant 1 : i32
    %295 = vector.broadcast %c1_i32_169 : i32 to vector<8x8xi32>
    %296 = arith.muli %295, %293 : vector<8x8xi32>
    %c1_i32_170 = arith.constant 1 : i32
    %297 = vector.broadcast %c1_i32_170 : i32 to vector<8x8xi32>
    %298 = arith.addi %296, %297 : vector<8x8xi32>
    %299 = arith.cmpi eq, %294, %298 : vector<8x8xi32>
    %300 = arith.extui %299 : vector<8x8xi1> to vector<8x8xi32>
    %301 = arith.sitofp %300 : vector<8x8xi32> to vector<8x8xf32>
    %cst_171 = arith.constant dense<0.000000e+00> : vector<8x128xf32>
    %302 = tpu.matmul %301, %292, %cst_171 {dimension_numbers = #tpu.dot_dimension_numbers<[1], [0], [0], [1], [0, 0, 1, 1], [], []>} : vector<8x8xf32>, vector<8x128xf32>, vector<8x128xf32> -> vector<8x128xf32>
    %303 = arith.addf %289, %302 : vector<8x128xf32>
    %c0_172 = arith.constant 0 : index
    %c0_173 = arith.constant 0 : index
    %304 = vector.load %arg17[%c0_172, %c0_173] : memref<1x128xf32, #tpu.memory_space<vmem>>, vector<1x128xf32>
    %305 = vector.broadcast %304 : vector<1x128xf32> to vector<8x128xf32>
    %306 = arith.addf %303, %305 : vector<8x128xf32>
    %cst_174 = arith.constant 0.000000e+00 : f32
    %307 = vector.broadcast %cst_174 : f32 to vector<8x128xf32>
    %308 = arith.cmpf ogt, %306, %307 : vector<8x128xf32>
    %cst_175 = arith.constant 2.000000e-01 : f32
    %309 = vector.broadcast %cst_175 : f32 to vector<8x128xf32>
    %310 = arith.mulf %309, %306 : vector<8x128xf32>
    %311 = arith.select %308, %306, %310 : vector<8x128xi1>, vector<8x128xf32>
    %312 = arith.truncf %311 : vector<8x128xf32> to vector<8x128xbf16>
    %cst_176 = arith.constant 0.000000e+00 : f32
    %313 = vector.broadcast %cst_176 : f32 to vector<8x128xf32>
    %c0_177 = arith.constant 0 : index
    %c0_178 = arith.constant 0 : index
    %c0_179 = arith.constant 0 : index
    %314 = vector.load %arg18[%c0_177, %c0_178, %c0_179] : memref<3x128x128xbf16, #tpu.memory_space<vmem>>, vector<1x128x128xbf16>
    %315 = vector.shape_cast %314 : vector<1x128x128xbf16> to vector<128x128xbf16>
    %cst_180 = arith.constant dense<0.000000e+00> : vector<8x128xf32>
    %316 = tpu.matmul %312, %315, %cst_180 {dimension_numbers = #tpu.dot_dimension_numbers<[1], [0], [0], [1], [0, 0, 1, 1], [], []>} : vector<8x128xbf16>, vector<128x128xbf16>, vector<8x128xf32> -> vector<8x128xf32>
    %cst_181 = arith.constant dense<0.000000e+00> : vector<8x128xf32>
    %317 = tpu.matmul %273, %316, %cst_181 {dimension_numbers = #tpu.dot_dimension_numbers<[1], [0], [0], [1], [0, 0, 1, 1], [], []>} : vector<8x8xf32>, vector<8x128xf32>, vector<8x128xf32> -> vector<8x128xf32>
    %318 = arith.addf %313, %317 : vector<8x128xf32>
    %c1_182 = arith.constant 1 : index
    %c0_183 = arith.constant 0 : index
    %c0_184 = arith.constant 0 : index
    %319 = vector.load %arg18[%c1_182, %c0_183, %c0_184] : memref<3x128x128xbf16, #tpu.memory_space<vmem>>, vector<1x128x128xbf16>
    %320 = vector.shape_cast %319 : vector<1x128x128xbf16> to vector<128x128xbf16>
    %cst_185 = arith.constant dense<0.000000e+00> : vector<8x128xf32>
    %321 = tpu.matmul %312, %320, %cst_185 {dimension_numbers = #tpu.dot_dimension_numbers<[1], [0], [0], [1], [0, 0, 1, 1], [], []>} : vector<8x128xbf16>, vector<128x128xbf16>, vector<8x128xf32> -> vector<8x128xf32>
    %cst_186 = arith.constant dense<0.000000e+00> : vector<8x128xf32>
    %322 = tpu.matmul %287, %321, %cst_186 {dimension_numbers = #tpu.dot_dimension_numbers<[1], [0], [0], [1], [0, 0, 1, 1], [], []>} : vector<8x8xf32>, vector<8x128xf32>, vector<8x128xf32> -> vector<8x128xf32>
    %323 = arith.addf %318, %322 : vector<8x128xf32>
    %c2_187 = arith.constant 2 : index
    %c0_188 = arith.constant 0 : index
    %c0_189 = arith.constant 0 : index
    %324 = vector.load %arg18[%c2_187, %c0_188, %c0_189] : memref<3x128x128xbf16, #tpu.memory_space<vmem>>, vector<1x128x128xbf16>
    %325 = vector.shape_cast %324 : vector<1x128x128xbf16> to vector<128x128xbf16>
    %cst_190 = arith.constant dense<0.000000e+00> : vector<8x128xf32>
    %326 = tpu.matmul %312, %325, %cst_190 {dimension_numbers = #tpu.dot_dimension_numbers<[1], [0], [0], [1], [0, 0, 1, 1], [], []>} : vector<8x128xbf16>, vector<128x128xbf16>, vector<8x128xf32> -> vector<8x128xf32>
    %cst_191 = arith.constant dense<0.000000e+00> : vector<8x128xf32>
    %327 = tpu.matmul %301, %326, %cst_191 {dimension_numbers = #tpu.dot_dimension_numbers<[1], [0], [0], [1], [0, 0, 1, 1], [], []>} : vector<8x8xf32>, vector<8x128xf32>, vector<8x128xf32> -> vector<8x128xf32>
    %328 = arith.addf %323, %327 : vector<8x128xf32>
    %c0_192 = arith.constant 0 : index
    %c0_193 = arith.constant 0 : index
    %329 = vector.load %arg19[%c0_192, %c0_193] : memref<1x128xf32, #tpu.memory_space<vmem>>, vector<1x128xf32>
    %330 = vector.broadcast %329 : vector<1x128xf32> to vector<8x128xf32>
    %331 = arith.addf %328, %330 : vector<8x128xf32>
    %cst_194 = arith.constant 0.000000e+00 : f32
    %332 = vector.broadcast %cst_194 : f32 to vector<8x128xf32>
    %333 = arith.cmpf ogt, %331, %332 : vector<8x128xf32>
    %cst_195 = arith.constant 2.000000e-01 : f32
    %334 = vector.broadcast %cst_195 : f32 to vector<8x128xf32>
    %335 = arith.mulf %334, %331 : vector<8x128xf32>
    %336 = arith.select %333, %331, %335 : vector<8x128xi1>, vector<8x128xf32>
    %337 = arith.addf %259, %336 : vector<8x128xf32>
    %338 = arith.truncf %337 : vector<8x128xf32> to vector<8x128xbf16>
    %cst_196 = arith.constant 0.000000e+00 : f32
    %339 = vector.broadcast %cst_196 : f32 to vector<8x128xf32>
    %c0_197 = arith.constant 0 : index
    %c0_198 = arith.constant 0 : index
    %c0_199 = arith.constant 0 : index
    %340 = vector.load %arg20[%c0_197, %c0_198, %c0_199] : memref<3x128x128xbf16, #tpu.memory_space<vmem>>, vector<1x128x128xbf16>
    %341 = vector.shape_cast %340 : vector<1x128x128xbf16> to vector<128x128xbf16>
    %cst_200 = arith.constant dense<0.000000e+00> : vector<8x128xf32>
    %342 = tpu.matmul %338, %341, %cst_200 {dimension_numbers = #tpu.dot_dimension_numbers<[1], [0], [0], [1], [0, 0, 1, 1], [], []>} : vector<8x128xbf16>, vector<128x128xbf16>, vector<8x128xf32> -> vector<8x128xf32>
    %cst_201 = arith.constant dense<0.000000e+00> : vector<8x128xf32>
    %343 = tpu.matmul %273, %342, %cst_201 {dimension_numbers = #tpu.dot_dimension_numbers<[1], [0], [0], [1], [0, 0, 1, 1], [], []>} : vector<8x8xf32>, vector<8x128xf32>, vector<8x128xf32> -> vector<8x128xf32>
    %344 = arith.addf %339, %343 : vector<8x128xf32>
    %c1_202 = arith.constant 1 : index
    %c0_203 = arith.constant 0 : index
    %c0_204 = arith.constant 0 : index
    %345 = vector.load %arg20[%c1_202, %c0_203, %c0_204] : memref<3x128x128xbf16, #tpu.memory_space<vmem>>, vector<1x128x128xbf16>
    %346 = vector.shape_cast %345 : vector<1x128x128xbf16> to vector<128x128xbf16>
    %cst_205 = arith.constant dense<0.000000e+00> : vector<8x128xf32>
    %347 = tpu.matmul %338, %346, %cst_205 {dimension_numbers = #tpu.dot_dimension_numbers<[1], [0], [0], [1], [0, 0, 1, 1], [], []>} : vector<8x128xbf16>, vector<128x128xbf16>, vector<8x128xf32> -> vector<8x128xf32>
    %cst_206 = arith.constant dense<0.000000e+00> : vector<8x128xf32>
    %348 = tpu.matmul %287, %347, %cst_206 {dimension_numbers = #tpu.dot_dimension_numbers<[1], [0], [0], [1], [0, 0, 1, 1], [], []>} : vector<8x8xf32>, vector<8x128xf32>, vector<8x128xf32> -> vector<8x128xf32>
    %349 = arith.addf %344, %348 : vector<8x128xf32>
    %c2_207 = arith.constant 2 : index
    %c0_208 = arith.constant 0 : index
    %c0_209 = arith.constant 0 : index
    %350 = vector.load %arg20[%c2_207, %c0_208, %c0_209] : memref<3x128x128xbf16, #tpu.memory_space<vmem>>, vector<1x128x128xbf16>
    %351 = vector.shape_cast %350 : vector<1x128x128xbf16> to vector<128x128xbf16>
    %cst_210 = arith.constant dense<0.000000e+00> : vector<8x128xf32>
    %352 = tpu.matmul %338, %351, %cst_210 {dimension_numbers = #tpu.dot_dimension_numbers<[1], [0], [0], [1], [0, 0, 1, 1], [], []>} : vector<8x128xbf16>, vector<128x128xbf16>, vector<8x128xf32> -> vector<8x128xf32>
    %cst_211 = arith.constant dense<0.000000e+00> : vector<8x128xf32>
    %353 = tpu.matmul %301, %352, %cst_211 {dimension_numbers = #tpu.dot_dimension_numbers<[1], [0], [0], [1], [0, 0, 1, 1], [], []>} : vector<8x8xf32>, vector<8x128xf32>, vector<8x128xf32> -> vector<8x128xf32>
    %354 = arith.addf %349, %353 : vector<8x128xf32>
    %c0_212 = arith.constant 0 : index
    %c0_213 = arith.constant 0 : index
    %355 = vector.load %arg21[%c0_212, %c0_213] : memref<1x128xf32, #tpu.memory_space<vmem>>, vector<1x128xf32>
    %356 = vector.broadcast %355 : vector<1x128xf32> to vector<8x128xf32>
    %357 = arith.addf %354, %356 : vector<8x128xf32>
    %cst_214 = arith.constant 0.000000e+00 : f32
    %358 = vector.broadcast %cst_214 : f32 to vector<8x128xf32>
    %359 = arith.cmpf ogt, %357, %358 : vector<8x128xf32>
    %cst_215 = arith.constant 2.000000e-01 : f32
    %360 = vector.broadcast %cst_215 : f32 to vector<8x128xf32>
    %361 = arith.mulf %360, %357 : vector<8x128xf32>
    %362 = arith.select %359, %357, %361 : vector<8x128xi1>, vector<8x128xf32>
    %363 = arith.truncf %362 : vector<8x128xf32> to vector<8x128xbf16>
    %cst_216 = arith.constant 0.000000e+00 : f32
    %364 = vector.broadcast %cst_216 : f32 to vector<8x128xf32>
    %c0_217 = arith.constant 0 : index
    %c0_218 = arith.constant 0 : index
    %c0_219 = arith.constant 0 : index
    %365 = vector.load %arg22[%c0_217, %c0_218, %c0_219] : memref<3x128x128xbf16, #tpu.memory_space<vmem>>, vector<1x128x128xbf16>
    %366 = vector.shape_cast %365 : vector<1x128x128xbf16> to vector<128x128xbf16>
    %cst_220 = arith.constant dense<0.000000e+00> : vector<8x128xf32>
    %367 = tpu.matmul %363, %366, %cst_220 {dimension_numbers = #tpu.dot_dimension_numbers<[1], [0], [0], [1], [0, 0, 1, 1], [], []>} : vector<8x128xbf16>, vector<128x128xbf16>, vector<8x128xf32> -> vector<8x128xf32>
    %cst_221 = arith.constant dense<0.000000e+00> : vector<8x128xf32>
    %368 = tpu.matmul %273, %367, %cst_221 {dimension_numbers = #tpu.dot_dimension_numbers<[1], [0], [0], [1], [0, 0, 1, 1], [], []>} : vector<8x8xf32>, vector<8x128xf32>, vector<8x128xf32> -> vector<8x128xf32>
    %369 = arith.addf %364, %368 : vector<8x128xf32>
    %c1_222 = arith.constant 1 : index
    %c0_223 = arith.constant 0 : index
    %c0_224 = arith.constant 0 : index
    %370 = vector.load %arg22[%c1_222, %c0_223, %c0_224] : memref<3x128x128xbf16, #tpu.memory_space<vmem>>, vector<1x128x128xbf16>
    %371 = vector.shape_cast %370 : vector<1x128x128xbf16> to vector<128x128xbf16>
    %cst_225 = arith.constant dense<0.000000e+00> : vector<8x128xf32>
    %372 = tpu.matmul %363, %371, %cst_225 {dimension_numbers = #tpu.dot_dimension_numbers<[1], [0], [0], [1], [0, 0, 1, 1], [], []>} : vector<8x128xbf16>, vector<128x128xbf16>, vector<8x128xf32> -> vector<8x128xf32>
    %cst_226 = arith.constant dense<0.000000e+00> : vector<8x128xf32>
    %373 = tpu.matmul %287, %372, %cst_226 {dimension_numbers = #tpu.dot_dimension_numbers<[1], [0], [0], [1], [0, 0, 1, 1], [], []>} : vector<8x8xf32>, vector<8x128xf32>, vector<8x128xf32> -> vector<8x128xf32>
    %374 = arith.addf %369, %373 : vector<8x128xf32>
    %c2_227 = arith.constant 2 : index
    %c0_228 = arith.constant 0 : index
    %c0_229 = arith.constant 0 : index
    %375 = vector.load %arg22[%c2_227, %c0_228, %c0_229] : memref<3x128x128xbf16, #tpu.memory_space<vmem>>, vector<1x128x128xbf16>
    %376 = vector.shape_cast %375 : vector<1x128x128xbf16> to vector<128x128xbf16>
    %cst_230 = arith.constant dense<0.000000e+00> : vector<8x128xf32>
    %377 = tpu.matmul %363, %376, %cst_230 {dimension_numbers = #tpu.dot_dimension_numbers<[1], [0], [0], [1], [0, 0, 1, 1], [], []>} : vector<8x128xbf16>, vector<128x128xbf16>, vector<8x128xf32> -> vector<8x128xf32>
    %cst_231 = arith.constant dense<0.000000e+00> : vector<8x128xf32>
    %378 = tpu.matmul %301, %377, %cst_231 {dimension_numbers = #tpu.dot_dimension_numbers<[1], [0], [0], [1], [0, 0, 1, 1], [], []>} : vector<8x8xf32>, vector<8x128xf32>, vector<8x128xf32> -> vector<8x128xf32>
    %379 = arith.addf %374, %378 : vector<8x128xf32>
    %c0_232 = arith.constant 0 : index
    %c0_233 = arith.constant 0 : index
    %380 = vector.load %arg23[%c0_232, %c0_233] : memref<1x128xf32, #tpu.memory_space<vmem>>, vector<1x128xf32>
    %381 = vector.broadcast %380 : vector<1x128xf32> to vector<8x128xf32>
    %382 = arith.addf %379, %381 : vector<8x128xf32>
    %cst_234 = arith.constant 0.000000e+00 : f32
    %383 = vector.broadcast %cst_234 : f32 to vector<8x128xf32>
    %384 = arith.cmpf ogt, %382, %383 : vector<8x128xf32>
    %cst_235 = arith.constant 2.000000e-01 : f32
    %385 = vector.broadcast %cst_235 : f32 to vector<8x128xf32>
    %386 = arith.mulf %385, %382 : vector<8x128xf32>
    %387 = arith.select %384, %382, %386 : vector<8x128xi1>, vector<8x128xf32>
    %388 = arith.addf %337, %387 : vector<8x128xf32>
    %389 = arith.truncf %388 : vector<8x128xf32> to vector<8x128xbf16>
    %cst_236 = arith.constant 0.000000e+00 : f32
    %390 = vector.broadcast %cst_236 : f32 to vector<4x128xf32>
    %c0_237 = arith.constant 0 : index
    %c0_238 = arith.constant 0 : index
    %c0_239 = arith.constant 0 : index
    %391 = vector.load %arg24[%c0_237, %c0_238, %c0_239] : memref<2x128x128xbf16, #tpu.memory_space<vmem>>, vector<1x128x128xbf16>
    %392 = vector.shape_cast %391 : vector<1x128x128xbf16> to vector<128x128xbf16>
    %cst_240 = arith.constant dense<0.000000e+00> : vector<8x128xf32>
    %393 = tpu.matmul %389, %392, %cst_240 {dimension_numbers = #tpu.dot_dimension_numbers<[1], [0], [0], [1], [0, 0, 1, 1], [], []>} : vector<8x128xbf16>, vector<128x128xbf16>, vector<8x128xf32> -> vector<8x128xf32>
    %394 = tpu.iota {dimensions = array<i32: 0>} : vector<4x8xi32>
    %395 = tpu.iota {dimensions = array<i32: 1>} : vector<4x8xi32>
    %c2_i32_241 = arith.constant 2 : i32
    %396 = vector.broadcast %c2_i32_241 : i32 to vector<4x8xi32>
    %397 = arith.muli %396, %394 : vector<4x8xi32>
    %c0_i32_242 = arith.constant 0 : i32
    %398 = vector.broadcast %c0_i32_242 : i32 to vector<4x8xi32>
    %399 = arith.addi %397, %398 : vector<4x8xi32>
    %400 = arith.cmpi eq, %395, %399 : vector<4x8xi32>
    %401 = arith.extui %400 : vector<4x8xi1> to vector<4x8xi32>
    %402 = arith.sitofp %401 : vector<4x8xi32> to vector<4x8xf32>
    %cst_243 = arith.constant dense<0.000000e+00> : vector<4x128xf32>
    %403 = tpu.matmul %402, %393, %cst_243 {dimension_numbers = #tpu.dot_dimension_numbers<[1], [0], [0], [1], [0, 0, 1, 1], [], []>} : vector<4x8xf32>, vector<8x128xf32>, vector<4x128xf32> -> vector<4x128xf32>
    %404 = arith.addf %390, %403 : vector<4x128xf32>
    %c1_244 = arith.constant 1 : index
    %c0_245 = arith.constant 0 : index
    %c0_246 = arith.constant 0 : index
    %405 = vector.load %arg24[%c1_244, %c0_245, %c0_246] : memref<2x128x128xbf16, #tpu.memory_space<vmem>>, vector<1x128x128xbf16>
    %406 = vector.shape_cast %405 : vector<1x128x128xbf16> to vector<128x128xbf16>
    %cst_247 = arith.constant dense<0.000000e+00> : vector<8x128xf32>
    %407 = tpu.matmul %389, %406, %cst_247 {dimension_numbers = #tpu.dot_dimension_numbers<[1], [0], [0], [1], [0, 0, 1, 1], [], []>} : vector<8x128xbf16>, vector<128x128xbf16>, vector<8x128xf32> -> vector<8x128xf32>
    %408 = tpu.iota {dimensions = array<i32: 0>} : vector<4x8xi32>
    %409 = tpu.iota {dimensions = array<i32: 1>} : vector<4x8xi32>
    %c2_i32_248 = arith.constant 2 : i32
    %410 = vector.broadcast %c2_i32_248 : i32 to vector<4x8xi32>
    %411 = arith.muli %410, %408 : vector<4x8xi32>
    %c1_i32_249 = arith.constant 1 : i32
    %412 = vector.broadcast %c1_i32_249 : i32 to vector<4x8xi32>
    %413 = arith.addi %411, %412 : vector<4x8xi32>
    %414 = arith.cmpi eq, %409, %413 : vector<4x8xi32>
    %415 = arith.extui %414 : vector<4x8xi1> to vector<4x8xi32>
    %416 = arith.sitofp %415 : vector<4x8xi32> to vector<4x8xf32>
    %cst_250 = arith.constant dense<0.000000e+00> : vector<4x128xf32>
    %417 = tpu.matmul %416, %407, %cst_250 {dimension_numbers = #tpu.dot_dimension_numbers<[1], [0], [0], [1], [0, 0, 1, 1], [], []>} : vector<4x8xf32>, vector<8x128xf32>, vector<4x128xf32> -> vector<4x128xf32>
    %418 = arith.addf %404, %417 : vector<4x128xf32>
    %c0_251 = arith.constant 0 : index
    %c0_252 = arith.constant 0 : index
    %419 = vector.load %arg25[%c0_251, %c0_252] : memref<1x128xf32, #tpu.memory_space<vmem>>, vector<1x128xf32>
    %420 = vector.broadcast %419 : vector<1x128xf32> to vector<4x128xf32>
    %421 = arith.addf %418, %420 : vector<4x128xf32>
    %cst_253 = arith.constant 0.000000e+00 : f32
    %422 = vector.broadcast %cst_253 : f32 to vector<4x128xf32>
    %423 = arith.cmpf ogt, %421, %422 : vector<4x128xf32>
    %cst_254 = arith.constant 2.000000e-01 : f32
    %424 = vector.broadcast %cst_254 : f32 to vector<4x128xf32>
    %425 = arith.mulf %424, %421 : vector<4x128xf32>
    %426 = arith.select %423, %421, %425 : vector<4x128xi1>, vector<4x128xf32>
    %427 = arith.addf %221, %426 : vector<4x128xf32>
    %428 = arith.truncf %388 : vector<8x128xf32> to vector<8x128xbf16>
    %cst_255 = arith.constant 0.000000e+00 : f32
    %429 = vector.broadcast %cst_255 : f32 to vector<4x128xf32>
    %c0_256 = arith.constant 0 : index
    %c0_257 = arith.constant 0 : index
    %c0_258 = arith.constant 0 : index
    %430 = vector.load %arg26[%c0_256, %c0_257, %c0_258] : memref<2x128x128xbf16, #tpu.memory_space<vmem>>, vector<1x128x128xbf16>
    %431 = vector.shape_cast %430 : vector<1x128x128xbf16> to vector<128x128xbf16>
    %cst_259 = arith.constant dense<0.000000e+00> : vector<8x128xf32>
    %432 = tpu.matmul %428, %431, %cst_259 {dimension_numbers = #tpu.dot_dimension_numbers<[1], [0], [0], [1], [0, 0, 1, 1], [], []>} : vector<8x128xbf16>, vector<128x128xbf16>, vector<8x128xf32> -> vector<8x128xf32>
    %cst_260 = arith.constant dense<0.000000e+00> : vector<4x128xf32>
    %433 = tpu.matmul %402, %432, %cst_260 {dimension_numbers = #tpu.dot_dimension_numbers<[1], [0], [0], [1], [0, 0, 1, 1], [], []>} : vector<4x8xf32>, vector<8x128xf32>, vector<4x128xf32> -> vector<4x128xf32>
    %434 = arith.addf %429, %433 : vector<4x128xf32>
    %c1_261 = arith.constant 1 : index
    %c0_262 = arith.constant 0 : index
    %c0_263 = arith.constant 0 : index
    %435 = vector.load %arg26[%c1_261, %c0_262, %c0_263] : memref<2x128x128xbf16, #tpu.memory_space<vmem>>, vector<1x128x128xbf16>
    %436 = vector.shape_cast %435 : vector<1x128x128xbf16> to vector<128x128xbf16>
    %cst_264 = arith.constant dense<0.000000e+00> : vector<8x128xf32>
    %437 = tpu.matmul %428, %436, %cst_264 {dimension_numbers = #tpu.dot_dimension_numbers<[1], [0], [0], [1], [0, 0, 1, 1], [], []>} : vector<8x128xbf16>, vector<128x128xbf16>, vector<8x128xf32> -> vector<8x128xf32>
    %cst_265 = arith.constant dense<0.000000e+00> : vector<4x128xf32>
    %438 = tpu.matmul %416, %437, %cst_265 {dimension_numbers = #tpu.dot_dimension_numbers<[1], [0], [0], [1], [0, 0, 1, 1], [], []>} : vector<4x8xf32>, vector<8x128xf32>, vector<4x128xf32> -> vector<4x128xf32>
    %439 = arith.addf %434, %438 : vector<4x128xf32>
    %c0_266 = arith.constant 0 : index
    %c0_267 = arith.constant 0 : index
    %440 = vector.load %arg27[%c0_266, %c0_267] : memref<1x128xf32, #tpu.memory_space<vmem>>, vector<1x128xf32>
    %441 = vector.broadcast %440 : vector<1x128xf32> to vector<4x128xf32>
    %442 = arith.addf %439, %441 : vector<4x128xf32>
    %cst_268 = arith.constant 0.000000e+00 : f32
    %443 = vector.broadcast %cst_268 : f32 to vector<4x128xf32>
    %444 = arith.cmpf ogt, %442, %443 : vector<4x128xf32>
    %cst_269 = arith.constant 2.000000e-01 : f32
    %445 = vector.broadcast %cst_269 : f32 to vector<4x128xf32>
    %446 = arith.mulf %445, %442 : vector<4x128xf32>
    %447 = arith.select %444, %442, %446 : vector<4x128xi1>, vector<4x128xf32>
    %448 = arith.addf %447, %427 : vector<4x128xf32>
    %449 = arith.truncf %448 : vector<4x128xf32> to vector<4x128xbf16>
    %cst_270 = arith.constant 0.000000e+00 : f32
    %450 = vector.broadcast %cst_270 : f32 to vector<4x40xf32>
    %c0_271 = arith.constant 0 : index
    %c0_272 = arith.constant 0 : index
    %c0_273 = arith.constant 0 : index
    %451 = vector.load %arg28[%c0_271, %c0_272, %c0_273] : memref<3x128x40xbf16, #tpu.memory_space<vmem>>, vector<1x128x40xbf16>
    %452 = vector.shape_cast %451 : vector<1x128x40xbf16> to vector<128x40xbf16>
    %cst_274 = arith.constant dense<0.000000e+00> : vector<4x40xf32>
    %453 = tpu.matmul %449, %452, %cst_274 {dimension_numbers = #tpu.dot_dimension_numbers<[1], [0], [0], [1], [0, 0, 1, 1], [], []>} : vector<4x128xbf16>, vector<128x40xbf16>, vector<4x40xf32> -> vector<4x40xf32>
    %454 = tpu.iota {dimensions = array<i32: 0>} : vector<4x4xi32>
    %455 = tpu.iota {dimensions = array<i32: 1>} : vector<4x4xi32>
    %c1_i32_275 = arith.constant 1 : i32
    %456 = vector.broadcast %c1_i32_275 : i32 to vector<4x4xi32>
    %457 = arith.muli %456, %454 : vector<4x4xi32>
    %c-1_i32_276 = arith.constant -1 : i32
    %458 = vector.broadcast %c-1_i32_276 : i32 to vector<4x4xi32>
    %459 = arith.addi %457, %458 : vector<4x4xi32>
    %460 = arith.cmpi eq, %455, %459 : vector<4x4xi32>
    %461 = arith.extui %460 : vector<4x4xi1> to vector<4x4xi32>
    %462 = arith.sitofp %461 : vector<4x4xi32> to vector<4x4xf32>
    %cst_277 = arith.constant dense<0.000000e+00> : vector<4x40xf32>
    %463 = tpu.matmul %462, %453, %cst_277 {dimension_numbers = #tpu.dot_dimension_numbers<[1], [0], [0], [1], [0, 0, 1, 1], [], []>} : vector<4x4xf32>, vector<4x40xf32>, vector<4x40xf32> -> vector<4x40xf32>
    %464 = arith.addf %450, %463 : vector<4x40xf32>
    %c1_278 = arith.constant 1 : index
    %c0_279 = arith.constant 0 : index
    %c0_280 = arith.constant 0 : index
    %465 = vector.load %arg28[%c1_278, %c0_279, %c0_280] : memref<3x128x40xbf16, #tpu.memory_space<vmem>>, vector<1x128x40xbf16>
    %466 = vector.shape_cast %465 : vector<1x128x40xbf16> to vector<128x40xbf16>
    %cst_281 = arith.constant dense<0.000000e+00> : vector<4x40xf32>
    %467 = tpu.matmul %449, %466, %cst_281 {dimension_numbers = #tpu.dot_dimension_numbers<[1], [0], [0], [1], [0, 0, 1, 1], [], []>} : vector<4x128xbf16>, vector<128x40xbf16>, vector<4x40xf32> -> vector<4x40xf32>
    %468 = tpu.iota {dimensions = array<i32: 0>} : vector<4x4xi32>
    %469 = tpu.iota {dimensions = array<i32: 1>} : vector<4x4xi32>
    %c1_i32_282 = arith.constant 1 : i32
    %470 = vector.broadcast %c1_i32_282 : i32 to vector<4x4xi32>
    %471 = arith.muli %470, %468 : vector<4x4xi32>
    %c0_i32_283 = arith.constant 0 : i32
    %472 = vector.broadcast %c0_i32_283 : i32 to vector<4x4xi32>
    %473 = arith.addi %471, %472 : vector<4x4xi32>
    %474 = arith.cmpi eq, %469, %473 : vector<4x4xi32>
    %475 = arith.extui %474 : vector<4x4xi1> to vector<4x4xi32>
    %476 = arith.sitofp %475 : vector<4x4xi32> to vector<4x4xf32>
    %cst_284 = arith.constant dense<0.000000e+00> : vector<4x40xf32>
    %477 = tpu.matmul %476, %467, %cst_284 {dimension_numbers = #tpu.dot_dimension_numbers<[1], [0], [0], [1], [0, 0, 1, 1], [], []>} : vector<4x4xf32>, vector<4x40xf32>, vector<4x40xf32> -> vector<4x40xf32>
    %478 = arith.addf %464, %477 : vector<4x40xf32>
    %c2_285 = arith.constant 2 : index
    %c0_286 = arith.constant 0 : index
    %c0_287 = arith.constant 0 : index
    %479 = vector.load %arg28[%c2_285, %c0_286, %c0_287] : memref<3x128x40xbf16, #tpu.memory_space<vmem>>, vector<1x128x40xbf16>
    %480 = vector.shape_cast %479 : vector<1x128x40xbf16> to vector<128x40xbf16>
    %cst_288 = arith.constant dense<0.000000e+00> : vector<4x40xf32>
    %481 = tpu.matmul %449, %480, %cst_288 {dimension_numbers = #tpu.dot_dimension_numbers<[1], [0], [0], [1], [0, 0, 1, 1], [], []>} : vector<4x128xbf16>, vector<128x40xbf16>, vector<4x40xf32> -> vector<4x40xf32>
    %482 = tpu.iota {dimensions = array<i32: 0>} : vector<4x4xi32>
    %483 = tpu.iota {dimensions = array<i32: 1>} : vector<4x4xi32>
    %c1_i32_289 = arith.constant 1 : i32
    %484 = vector.broadcast %c1_i32_289 : i32 to vector<4x4xi32>
    %485 = arith.muli %484, %482 : vector<4x4xi32>
    %c1_i32_290 = arith.constant 1 : i32
    %486 = vector.broadcast %c1_i32_290 : i32 to vector<4x4xi32>
    %487 = arith.addi %485, %486 : vector<4x4xi32>
    %488 = arith.cmpi eq, %483, %487 : vector<4x4xi32>
    %489 = arith.extui %488 : vector<4x4xi1> to vector<4x4xi32>
    %490 = arith.sitofp %489 : vector<4x4xi32> to vector<4x4xf32>
    %cst_291 = arith.constant dense<0.000000e+00> : vector<4x40xf32>
    %491 = tpu.matmul %490, %481, %cst_291 {dimension_numbers = #tpu.dot_dimension_numbers<[1], [0], [0], [1], [0, 0, 1, 1], [], []>} : vector<4x4xf32>, vector<4x40xf32>, vector<4x40xf32> -> vector<4x40xf32>
    %492 = arith.addf %478, %491 : vector<4x40xf32>
    %c0_292 = arith.constant 0 : index
    %c0_293 = arith.constant 0 : index
    %493 = vector.load %arg29[%c0_292, %c0_293] : memref<1x40xf32, #tpu.memory_space<vmem>>, vector<1x40xf32>
    %494 = vector.broadcast %493 : vector<1x40xf32> to vector<4x40xf32>
    %495 = arith.addf %492, %494 : vector<4x40xf32>
    %c0_294 = arith.constant 0 : index
    %c0_295 = arith.constant 0 : index
    %c0_296 = arith.constant 0 : index
    %496 = vector.load %arg30[%c0_294, %c0_295, %c0_296] : memref<1x4x40xf32, #tpu.memory_space<vmem>>, vector<1x4x40xf32>
    %497 = vector.shape_cast %496 : vector<1x4x40xf32> to vector<4x40xf32>
    %498 = vector.shape_cast %495 : vector<4x40xf32> to vector<1x4x40xf32>
    tpu.vector_store %arg30[%c0_294, %c0_295, %c0_296], %498 {strides = array<i32>} : memref<1x4x40xf32, #tpu.memory_space<vmem>>, vector<1x4x40xf32>,
    return
  }
  func.func @transform_0(%arg0: i32) -> (i32, i32, i32) {
    %c0_i32 = arith.constant 0 : i32
    %c0_i32_0 = arith.constant 0 : i32
    %c0_i32_1 = arith.constant 0 : i32
    return %arg0, %c0_i32, %c0_i32_0 : i32, i32, i32
  }
  func.func @transform_1(%arg0: i32) -> (i32, i32, i32) {
    %c0_i32 = arith.constant 0 : i32
    %c0_i32_0 = arith.constant 0 : i32
    %c0_i32_1 = arith.constant 0 : i32
    %c0_i32_2 = arith.constant 0 : i32
    return %c0_i32, %c0_i32_0, %c0_i32_1 : i32, i32, i32
  }
  func.func @transform_2(%arg0: i32) -> (i32, i32) {
    %c0_i32 = arith.constant 0 : i32
    %c0_i32_0 = arith.constant 0 : i32
    %c0_i32_1 = arith.constant 0 : i32
    return %c0_i32, %c0_i32_0 : i32, i32
  }
  func.func @transform_3(%arg0: i32) -> (i32, i32, i32) {
    %c0_i32 = arith.constant 0 : i32
    %c0_i32_0 = arith.constant 0 : i32
    %c0_i32_1 = arith.constant 0 : i32
    %c0_i32_2 = arith.constant 0 : i32
    return %c0_i32, %c0_i32_0, %c0_i32_1 : i32, i32, i32
  }
  func.func @transform_4(%arg0: i32) -> (i32, i32) {
    %c0_i32 = arith.constant 0 : i32
    %c0_i32_0 = arith.constant 0 : i32
    %c0_i32_1 = arith.constant 0 : i32
    return %c0_i32, %c0_i32_0 : i32, i32
  }
  func.func @transform_5(%arg0: i32) -> (i32, i32, i32) {
    %c0_i32 = arith.constant 0 : i32
    %c0_i32_0 = arith.constant 0 : i32
    %c0_i32_1 = arith.constant 0 : i32
    %c0_i32_2 = arith.constant 0 : i32
    return %c0_i32, %c0_i32_0, %c0_i32_1 : i32, i32, i32
  }
  func.func @transform_6(%arg0: i32) -> (i32, i32) {
    %c0_i32 = arith.constant 0 : i32
    %c0_i32_0 = arith.constant 0 : i32
    %c0_i32_1 = arith.constant 0 : i32
    return %c0_i32, %c0_i32_0 : i32, i32
  }
  func.func @transform_7(%arg0: i32) -> (i32, i32, i32) {
    %c0_i32 = arith.constant 0 : i32
    %c0_i32_0 = arith.constant 0 : i32
    %c0_i32_1 = arith.constant 0 : i32
    %c0_i32_2 = arith.constant 0 : i32
    return %c0_i32, %c0_i32_0, %c0_i32_1 : i32, i32, i32
  }
  func.func @transform_8(%arg0: i32) -> (i32, i32) {
    %c0_i32 = arith.constant 0 : i32
    %c0_i32_0 = arith.constant 0 : i32
    %c0_i32_1 = arith.constant 0 : i32
    return %c0_i32, %c0_i32_0 : i32, i32
  }
  func.func @transform_9(%arg0: i32) -> (i32, i32, i32) {
    %c0_i32 = arith.constant 0 : i32
    %c0_i32_0 = arith.constant 0 : i32
    %c0_i32_1 = arith.constant 0 : i32
    %c0_i32_2 = arith.constant 0 : i32
    return %c0_i32, %c0_i32_0, %c0_i32_1 : i32, i32, i32
  }
  func.func @transform_10(%arg0: i32) -> (i32, i32) {
    %c0_i32 = arith.constant 0 : i32
    %c0_i32_0 = arith.constant 0 : i32
    %c0_i32_1 = arith.constant 0 : i32
    return %c0_i32, %c0_i32_0 : i32, i32
  }
  func.func @transform_11(%arg0: i32) -> (i32, i32, i32) {
    %c0_i32 = arith.constant 0 : i32
    %c0_i32_0 = arith.constant 0 : i32
    %c0_i32_1 = arith.constant 0 : i32
    %c0_i32_2 = arith.constant 0 : i32
    return %c0_i32, %c0_i32_0, %c0_i32_1 : i32, i32, i32
  }
  func.func @transform_12(%arg0: i32) -> (i32, i32) {
    %c0_i32 = arith.constant 0 : i32
    %c0_i32_0 = arith.constant 0 : i32
    %c0_i32_1 = arith.constant 0 : i32
    return %c0_i32, %c0_i32_0 : i32, i32
  }
  func.func @transform_13(%arg0: i32) -> (i32, i32, i32) {
    %c0_i32 = arith.constant 0 : i32
    %c0_i32_0 = arith.constant 0 : i32
    %c0_i32_1 = arith.constant 0 : i32
    %c0_i32_2 = arith.constant 0 : i32
    return %c0_i32, %c0_i32_0, %c0_i32_1 : i32, i32, i32
  }
  func.func @transform_14(%arg0: i32) -> (i32, i32) {
    %c0_i32 = arith.constant 0 : i32
    %c0_i32_0 = arith.constant 0 : i32
    %c0_i32_1 = arith.constant 0 : i32
    return %c0_i32, %c0_i32_0 : i32, i32
  }
  func.func @transform_15(%arg0: i32) -> (i32, i32, i32) {
    %c0_i32 = arith.constant 0 : i32
    %c0_i32_0 = arith.constant 0 : i32
    %c0_i32_1 = arith.constant 0 : i32
    %c0_i32_2 = arith.constant 0 : i32
    return %c0_i32, %c0_i32_0, %c0_i32_1 : i32, i32, i32
  }
  func.func @transform_16(%arg0: i32) -> (i32, i32) {
    %c0_i32 = arith.constant 0 : i32
    %c0_i32_0 = arith.constant 0 : i32
    %c0_i32_1 = arith.constant 0 : i32
    return %c0_i32, %c0_i32_0 : i32, i32
  }
  func.func @transform_17(%arg0: i32) -> (i32, i32, i32) {
    %c0_i32 = arith.constant 0 : i32
    %c0_i32_0 = arith.constant 0 : i32
    %c0_i32_1 = arith.constant 0 : i32
    %c0_i32_2 = arith.constant 0 : i32
    return %c0_i32, %c0_i32_0, %c0_i32_1 : i32, i32, i32
  }
  func.func @transform_18(%arg0: i32) -> (i32, i32) {
    %c0_i32 = arith.constant 0 : i32
    %c0_i32_0 = arith.constant 0 : i32
    %c0_i32_1 = arith.constant 0 : i32
    return %c0_i32, %c0_i32_0 : i32, i32
  }
  func.func @transform_19(%arg0: i32) -> (i32, i32, i32) {
    %c0_i32 = arith.constant 0 : i32
    %c0_i32_0 = arith.constant 0 : i32
    %c0_i32_1 = arith.constant 0 : i32
    %c0_i32_2 = arith.constant 0 : i32
    return %c0_i32, %c0_i32_0, %c0_i32_1 : i32, i32, i32
  }
  func.func @transform_20(%arg0: i32) -> (i32, i32) {
    %c0_i32 = arith.constant 0 : i32
    %c0_i32_0 = arith.constant 0 : i32
    %c0_i32_1 = arith.constant 0 : i32
    return %c0_i32, %c0_i32_0 : i32, i32
  }
  func.func @transform_21(%arg0: i32) -> (i32, i32, i32) {
    %c0_i32 = arith.constant 0 : i32
    %c0_i32_0 = arith.constant 0 : i32
    %c0_i32_1 = arith.constant 0 : i32
    %c0_i32_2 = arith.constant 0 : i32
    return %c0_i32, %c0_i32_0, %c0_i32_1 : i32, i32, i32
  }
  func.func @transform_22(%arg0: i32) -> (i32, i32) {
    %c0_i32 = arith.constant 0 : i32
    %c0_i32_0 = arith.constant 0 : i32
    %c0_i32_1 = arith.constant 0 : i32
    return %c0_i32, %c0_i32_0 : i32, i32
  }
  func.func @transform_23(%arg0: i32) -> (i32, i32, i32) {
    %c0_i32 = arith.constant 0 : i32
    %c0_i32_0 = arith.constant 0 : i32
    %c0_i32_1 = arith.constant 0 : i32
    %c0_i32_2 = arith.constant 0 : i32
    return %c0_i32, %c0_i32_0, %c0_i32_1 : i32, i32, i32
  }
  func.func @transform_24(%arg0: i32) -> (i32, i32) {
    %c0_i32 = arith.constant 0 : i32
    %c0_i32_0 = arith.constant 0 : i32
    %c0_i32_1 = arith.constant 0 : i32
    return %c0_i32, %c0_i32_0 : i32, i32
  }
  func.func @transform_25(%arg0: i32) -> (i32, i32, i32) {
    %c0_i32 = arith.constant 0 : i32
    %c0_i32_0 = arith.constant 0 : i32
    %c0_i32_1 = arith.constant 0 : i32
    %c0_i32_2 = arith.constant 0 : i32
    return %c0_i32, %c0_i32_0, %c0_i32_1 : i32, i32, i32
  }
  func.func @transform_26(%arg0: i32) -> (i32, i32) {
    %c0_i32 = arith.constant 0 : i32
    %c0_i32_0 = arith.constant 0 : i32
    %c0_i32_1 = arith.constant 0 : i32
    return %c0_i32, %c0_i32_0 : i32, i32
  }
  func.func @transform_27(%arg0: i32) -> (i32, i32, i32) {
    %c0_i32 = arith.constant 0 : i32
    %c0_i32_0 = arith.constant 0 : i32
    %c0_i32_1 = arith.constant 0 : i32
    %c0_i32_2 = arith.constant 0 : i32
    return %c0_i32, %c0_i32_0, %c0_i32_1 : i32, i32, i32
  }
  func.func @transform_28(%arg0: i32) -> (i32, i32) {
    %c0_i32 = arith.constant 0 : i32
    %c0_i32_0 = arith.constant 0 : i32
    %c0_i32_1 = arith.constant 0 : i32
    return %c0_i32, %c0_i32_0 : i32, i32
  }
  func.func @transform_29(%arg0: i32) -> (i32, i32, i32) {
    %c0_i32 = arith.constant 0 : i32
    %c0_i32_0 = arith.constant 0 : i32
    %c0_i32_1 = arith.constant 0 : i32
    return %arg0, %c0_i32, %c0_i32_0 : i32, i32, i32
  }
}

</mosaic_0001>

<llo_original>
// kernel: resnet_encoder_forward.1
$region0: #{resnet_encoder_forward.1}
  #allocation0 [shape = 'u32[]', space=smem, size = 0x4, offset = 0x4, fixed_abs, tag = 'smem constant byte address 0x4 - core index']
  #allocation1 [shape = 'u32[144,128]{1,0:T(1,128)}', space=vmem, size = 0x12000, scoped, tag = 'internal scratch']
  %s0 = inlined_call_operand.smem [shape: u32[30], index: -1, kind: input, shape index: {}]
  %s1 = sld [smem:[%s0]]
  %s2 = scalar_lea.smem %s0, 1
  %s3 = sld [smem:[%s2]]
  %s4 = scalar_lea.smem %s0, 2
  %s5 = sld [smem:[%s4]]
  %s6 = scalar_lea.smem %s0, 3
  %s7 = sld [smem:[%s6]]
  %s8 = scalar_lea.smem %s0, 4
  %s9 = sld [smem:[%s8]]
  %s10 = scalar_lea.smem %s0, 5
  %s11 = sld [smem:[%s10]]
  %s12 = scalar_lea.smem %s0, 6
  %s13 = sld [smem:[%s12]]
  %s14 = scalar_lea.smem %s0, 7
  %s15 = sld [smem:[%s14]]
  %s16 = scalar_lea.smem %s0, 8
  %s17 = sld [smem:[%s16]]
  %s18 = scalar_lea.smem %s0, 9
  %s19 = sld [smem:[%s18]]
  %s20 = scalar_lea.smem %s0, 10
  %s21 = sld [smem:[%s20]]
  %s22 = scalar_lea.smem %s0, 11
  %s23 = sld [smem:[%s22]]
  %s24 = scalar_lea.smem %s0, 12
  %s25 = sld [smem:[%s24]]
  %s26 = scalar_lea.smem %s0, 13
  %s27 = sld [smem:[%s26]]
  %s28 = scalar_lea.smem %s0, 14
  %s29 = sld [smem:[%s28]]
  %s30 = scalar_lea.smem %s0, 15
  %s31 = sld [smem:[%s30]]
  %s32 = scalar_lea.smem %s0, 16
  %s33 = sld [smem:[%s32]]
  %s34 = scalar_lea.smem %s0, 17
  %s35 = sld [smem:[%s34]]
  %s36 = scalar_lea.smem %s0, 18
  %s37 = sld [smem:[%s36]]
  %s38 = scalar_lea.smem %s0, 19
  %s39 = sld [smem:[%s38]]
  %s40 = scalar_lea.smem %s0, 20
  %s41 = sld [smem:[%s40]]
  %s42 = scalar_lea.smem %s0, 21
  %s43 = sld [smem:[%s42]]
  %s44 = scalar_lea.smem %s0, 22
  %s45 = sld [smem:[%s44]]
  %s46 = scalar_lea.smem %s0, 23
  %s47 = sld [smem:[%s46]]
  %s48 = scalar_lea.smem %s0, 24
  %s49 = sld [smem:[%s48]]
  %s50 = scalar_lea.smem %s0, 25
  %s51 = sld [smem:[%s50]]
  %s52 = scalar_lea.smem %s0, 26
  %s53 = sld [smem:[%s52]]
  %s54 = scalar_lea.smem %s0, 27
  %s55 = sld [smem:[%s54]]
  %s56 = scalar_lea.smem %s0, 28
  %s57 = sld [smem:[%s56]]
  %s58 = scalar_lea.smem %s0, 29
  %s59 = sld [smem:[%s58]]
  %s60 = sld [smem:[#allocation0]]
  $region221: #{resnet_encoder_forward.1} parent=0
    _
  %s62 = ssub.s32 1, %s60
  %s63 = scalar_select 0, %s62, %s60
  $region1: #{resnet_encoder_forward.1} parent=0
    #allocation2 [shape = 'u8[36864]{0}', space=vmem, size = 0x9000, scoped, tag = 'input window, operand 1, single buffered']
    #allocation3 [shape = 's32[2]{0}', space=sflag, size = 0x8, scoped, tag = 'scoped memory for resnet_encoder_forward.1']
    #allocation4 [shape = 'u8[512]{0}', space=vmem, size = 0x400, scoped, tag = 'input window, operand 2, single buffered']
    #allocation5 [shape = 's32[1]{0}', space=sflag, size = 0x4, scoped, tag = 'scoped memory for resnet_encoder_forward.1']
    #allocation6 [shape = 'u8[512]{0}', space=vmem, size = 0x400, scoped, tag = 'input window, operand 4, single buffered']
    #allocation7 [shape = 'u8[98304]{0}', space=vmem, size = 0x18000, scoped, tag = 'input window, operand 5, single buffered']
    #allocation8 [shape = 's32[1]{0}', space=sflag, size = 0x4, scoped, tag = 'scoped memory for resnet_encoder_forward.1']
    #allocation9 [shape = 'u8[512]{0}', space=vmem, size = 0x400, scoped, tag = 'input window, operand 6, single buffered']
    #allocation10 [shape = 'u8[98304]{0}', space=vmem, size = 0x18000, scoped, tag = 'input window, operand 7, single buffered']
    #allocation11 [shape = 's32[1]{0}', space=sflag, size = 0x4, scoped, tag = 'scoped memory for resnet_encoder_forward.1']
    #allocation12 [shape = 'u8[512]{0}', space=vmem, size = 0x400, scoped, tag = 'input window, operand 8, single buffered']
    #allocation13 [shape = 'u8[98304]{0}', space=vmem, size = 0x18000, scoped, tag = 'input window, operand 9, single buffered']
    #allocation14 [shape = 's32[1]{0}', space=sflag, size = 0x4, scoped, tag = 'scoped memory for resnet_encoder_forward.1']
    #allocation15 [shape = 'u8[512]{0}', space=vmem, size = 0x400, scoped, tag = 'input window, operand 10, single buffered']
    #allocation16 [shape = 'u8[512]{0}', space=vmem, size = 0x400, scoped, tag = 'input window, operand 12, single buffered']
    #allocation17 [shape = 's32[1]{0}', space=sflag, size = 0x4, scoped, tag = 'scoped memory for resnet_encoder_forward.1']
    #allocation18 [shape = 'u8[65536]{0}', space=vmem, size = 0x10000, scoped, tag = 'input window, operand 13, single buffered']
    #allocation19 [shape = 'u8[512]{0}', space=vmem, size = 0x400, scoped, tag = 'input window, operand 14, single buffered']
    #allocation20 [shape = 's32[1]{0}', space=sflag, size = 0x4, scoped, tag = 'scoped memory for resnet_encoder_forward.1']
    #allocation21 [shape = 'u8[98304]{0}', space=vmem, size = 0x18000, scoped, tag = 'input window, operand 15, single buffered']
    #allocation22 [shape = 'u8[512]{0}', space=vmem, size = 0x400, scoped, tag = 'input window, operand 16, single buffered']
    #allocation23 [shape = 's32[1]{0}', space=sflag, size = 0x4, scoped, tag = 'scoped memory for resnet_encoder_forward.1']
    #allocation24 [shape = 'u8[98304]{0}', space=vmem, size = 0x18000, scoped, tag = 'input window, operand 19, single buffered']
    #allocation25 [shape = 'u8[98304]{0}', space=vmem, size = 0x18000, scoped, tag = 'input window, operand 21, single buffered']
    #allocation26 [shape = 's32[1]{0}', space=sflag, size = 0x4, scoped, tag = 'scoped memory for resnet_encoder_forward.1']
    #allocation27 [shape = 'u8[65536]{0}', space=vmem, size = 0x10000, scoped, tag = 'input window, operand 23, single buffered']
    #allocation28 [shape = 'u8[65536]{0}', space=vmem, size = 0x10000, scoped, tag = 'input window, operand 25, single buffered']
    #allocation29 [shape = 's32[1]{0}', space=sflag, size = 0x4, scoped, tag = 'scoped memory for resnet_encoder_forward.1']
    %64 = vsyncpa [#allocation3], 0
    %65 = vsyncpa [#allocation5], 0
    %66 = vsyncpa [#allocation8], 0
    %67 = vsyncpa [#allocation11], 0
    %68 = vsyncpa [#allocation14], 0
    %69 = vsyncpa [#allocation17], 0
    %70 = vsyncpa [#allocation20], 0
    %71 = vsyncpa [#allocation23], 0
    %72 = vsyncpa [#allocation26], 0
    %73 = vsyncpa [#allocation29], 0
    loop: start=0, step=1, limit=4
    $region2: #{resnet_encoder_forward.1} parent=1 // loop_pre_header
      _
    $region3: #{resnet_encoder_forward.1} parent=1 // loop_header
      %s75 = sphi 0, %s79
      %p76 = scmp.ge.s32.totalorder %s75, 4
      %s85 = sphi 0, %s87
      %s88 = sphi 0, %s85
      %s89 = sphi 0, %s88
      %s105 = sphi 0, %s89
      %s109 = sphi 0, %s109
      %s111 = sphi 0, %s109
      %s112 = sphi 0, %s111
      %s126 = sphi 0, %s112
      %s130 = sphi 0, %s130
      %s132 = sphi 0, %s130
      %s133 = sphi 0, %s132
      %s147 = sphi 0, %s133
      %s151 = sphi 0, %s151
      %s153 = sphi 0, %s151
      %s154 = sphi 0, %s153
      %s168 = sphi 0, %s154
      %s172 = sphi 0, %s172
      %s174 = sphi 0, %s172
      %s175 = sphi 0, %s174
      %s189 = sphi 0, %s175
      %s193 = sphi 0, %s193
      %s195 = sphi 0, %s193
      %s196 = sphi 0, %s195
      %s210 = sphi 0, %s196
      %s214 = sphi 0, %s214
      %s216 = sphi 0, %s214
      %s217 = sphi 0, %s216
      %s231 = sphi 0, %s217
      %s235 = sphi 0, %s235
      %s237 = sphi 0, %s235
      %s238 = sphi 0, %s237
      %s252 = sphi 0, %s238
      %s256 = sphi 0, %s256
      %s258 = sphi 0, %s256
      %s259 = sphi 0, %s258
      %s273 = sphi 0, %s259
      %s277 = sphi 0, %s277
      %s279 = sphi 0, %s277
      %s280 = sphi 0, %s279
      %s294 = sphi 0, %s280
      %s298 = sphi 0, %s298
      %s300 = sphi 0, %s298
      %s301 = sphi 0, %s300
      %s315 = sphi 0, %s301
      %s319 = sphi 0, %s319
      %s321 = sphi 0, %s319
      %s322 = sphi 0, %s321
      %s336 = sphi 0, %s322
      %s340 = sphi 0, %s340
      %s342 = sphi 0, %s340
      %s343 = sphi 0, %s342
      %s357 = sphi 0, %s343
      %s361 = sphi 0, %s361
      %s363 = sphi 0, %s361
      %s364 = sphi 0, %s363
      %s378 = sphi 0, %s364
      %s382 = sphi 0, %s382
      %s384 = sphi 0, %s382
      %s385 = sphi 0, %s384
      %s399 = sphi 0, %s385
      %s403 = sphi 0, %s403
      %s405 = sphi 0, %s403
      %s406 = sphi 0, %s405
      %s420 = sphi 0, %s406
      %s424 = sphi 0, %s424
      %s426 = sphi 0, %s424
      %s427 = sphi 0, %s426
      %s441 = sphi 0, %s427
      %s445 = sphi 0, %s445
      %s447 = sphi 0, %s445
      %s448 = sphi 0, %s447
      %s462 = sphi 0, %s448
      %s466 = sphi 0, %s466
      %s468 = sphi 0, %s466
      %s469 = sphi 0, %s468
      %s483 = sphi 0, %s469
      %s487 = sphi 0, %s487
      %s489 = sphi 0, %s487
      %s490 = sphi 0, %s489
      %s504 = sphi 0, %s490
      %s508 = sphi 0, %s508
      %s510 = sphi 0, %s508
      %s511 = sphi 0, %s510
      %s525 = sphi 0, %s511
      %s529 = sphi 0, %s529
      %s531 = sphi 0, %s529
      %s532 = sphi 0, %s531
      %s546 = sphi 0, %s532
      %s550 = sphi 0, %s550
      %s552 = sphi 0, %s550
      %s553 = sphi 0, %s552
      %s567 = sphi 0, %s553
      %s571 = sphi 0, %s571
      %s573 = sphi 0, %s571
      %s574 = sphi 0, %s573
      %s588 = sphi 0, %s574
      %s592 = sphi 0, %s592
      %s594 = sphi 0, %s592
      %s595 = sphi 0, %s594
      %s609 = sphi 0, %s595
      %s613 = sphi 0, %s613
      %s615 = sphi 0, %s613
      %s616 = sphi 0, %s615
      %s630 = sphi 0, %s616
      %s634 = sphi 0, %s634
      %s636 = sphi 0, %s634
      %s637 = sphi 0, %s636
      %s651 = sphi 0, %s637
      %s655 = sphi 0, %s655
      %s657 = sphi 0, %s655
      %s658 = sphi 0, %s657
      %s672 = sphi 0, %s658
      %s676 = sphi 0, %s676
      %s678 = sphi 0, %s676
      %s679 = sphi 0, %s678
      %s693 = sphi 0, %s679
      %s699 = sphi 0, %s701
      %s702 = sphi 0, %s699
      %s703 = sphi 0, %s702
      %s719 = sphi 0, %s703
    $region4: #{resnet_encoder_forward.1} parent=1 // loop_header_branch
      %78 = sbr.rel (%p76) target = $region8
    $region5: #{resnet_encoder_forward.1} parent=1 // loop_body
      %s80 = ssub.s32 %s75, 1
      %s81 = ssub.s32 %s75, 2
      %s82 = sadd.s32 %s75, 1
      %s83 = ssub.s32 %s75, %s82
      %p84 = scmp.eq.s32.totalorder %s83, 0
      %s86 = sadd.s32 %s85, 1
      %s87 = scalar_select %p84, %s85, %s86
      %p90 = pneg %p84
      %p91 = scmp.eq.s32.totalorder %s75, 1
      %p92 = por %p90, %p91
      %p93 = scmp.ne.s32.totalorder %s85, %s88
      %p94 = scmp.eq.s32.totalorder %s75, 0
      %p95 = por %p93, %p94
      %p96 = scmp.ne.s32.totalorder %s85, %s88
      %p97 = scmp.eq.s32.totalorder %s80, 1
      %p98 = por %p96, %p97
      %p99 = scmp.ne.s32.totalorder %s88, %s89
      %p100 = scmp.eq.s32.totalorder %s80, 0
      %p101 = por %p99, %p100
      %p102 = scmp.ne.s32.totalorder %s88, %s89
      %p103 = scmp.eq.s32.totalorder %s81, 1
      %p104 = por %p102, %p103
      %p106 = scmp.ne.s32.totalorder %s89, %s105
      %p107 = scmp.eq.s32.totalorder %s81, 0
      %p108 = por %p106, %p107
      %s110 = sadd.s32 %s109, 1
      %p113 = scmp.eq.s32.totalorder %s75, 1
      %p114 = scmp.ne.s32.totalorder %s109, %s111
      %p115 = scmp.eq.s32.totalorder %s75, 0
      %p116 = por %p114, %p115
      %p117 = scmp.ne.s32.totalorder %s109, %s111
      %p118 = scmp.eq.s32.totalorder %s80, 1
      %p119 = por %p117, %p118
      %p120 = scmp.ne.s32.totalorder %s111, %s112
      %p121 = scmp.eq.s32.totalorder %s80, 0
      %p122 = por %p120, %p121
      %p123 = scmp.ne.s32.totalorder %s111, %s112
      %p124 = scmp.eq.s32.totalorder %s81, 1
      %p125 = por %p123, %p124
      %p127 = scmp.ne.s32.totalorder %s112, %s126
      %p128 = scmp.eq.s32.totalorder %s81, 0
      %p129 = por %p127, %p128
      %s131 = sadd.s32 %s130, 1
      %p134 = scmp.eq.s32.totalorder %s75, 1
      %p135 = scmp.ne.s32.totalorder %s130, %s132
      %p136 = scmp.eq.s32.totalorder %s75, 0
      %p137 = por %p135, %p136
      %p138 = scmp.ne.s32.totalorder %s130, %s132
      %p139 = scmp.eq.s32.totalorder %s80, 1
      %p140 = por %p138, %p139
      %p141 = scmp.ne.s32.totalorder %s132, %s133
      %p142 = scmp.eq.s32.totalorder %s80, 0
      %p143 = por %p141, %p142
      %p144 = scmp.ne.s32.totalorder %s132, %s133
      %p145 = scmp.eq.s32.totalorder %s81, 1
      %p146 = por %p144, %p145
      %p148 = scmp.ne.s32.totalorder %s133, %s147
      %p149 = scmp.eq.s32.totalorder %s81, 0
      %p150 = por %p148, %p149
      %s152 = sadd.s32 %s151, 1
      %p155 = scmp.eq.s32.totalorder %s75, 1
      %p156 = scmp.ne.s32.totalorder %s151, %s153
      %p157 = scmp.eq.s32.totalorder %s75, 0
      %p158 = por %p156, %p157
      %p159 = scmp.ne.s32.totalorder %s151, %s153
      %p160 = scmp.eq.s32.totalorder %s80, 1
      %p161 = por %p159, %p160
      %p162 = scmp.ne.s32.totalorder %s153, %s154
      %p163 = scmp.eq.s32.totalorder %s80, 0
      %p164 = por %p162, %p163
      %p165 = scmp.ne.s32.totalorder %s153, %s154
      %p166 = scmp.eq.s32.totalorder %s81, 1
      %p167 = por %p165, %p166
      %p169 = scmp.ne.s32.totalorder %s154, %s168
      %p170 = scmp.eq.s32.totalorder %s81, 0
      %p171 = por %p169, %p170
      %s173 = sadd.s32 %s172, 1
      %p176 = scmp.eq.s32.totalorder %s75, 1
      %p177 = scmp.ne.s32.totalorder %s172, %s174
      %p178 = scmp.eq.s32.totalorder %s75, 0
      %p179 = por %p177, %p178
      %p180 = scmp.ne.s32.totalorder %s172, %s174
      %p181 = scmp.eq.s32.totalorder %s80, 1
      %p182 = por %p180, %p181
      %p183 = scmp.ne.s32.totalorder %s174, %s175
      %p184 = scmp.eq.s32.totalorder %s80, 0
      %p185 = por %p183, %p184
      %p186 = scmp.ne.s32.totalorder %s174, %s175
      %p187 = scmp.eq.s32.totalorder %s81, 1
      %p188 = por %p186, %p187
      %p190 = scmp.ne.s32.totalorder %s175, %s189
      %p191 = scmp.eq.s32.totalorder %s81, 0
      %p192 = por %p190, %p191
      %s194 = sadd.s32 %s193, 1
      %p197 = scmp.eq.s32.totalorder %s75, 1
      %p198 = scmp.ne.s32.totalorder %s193, %s195
      %p199 = scmp.eq.s32.totalorder %s75, 0
      %p200 = por %p198, %p199
      %p201 = scmp.ne.s32.totalorder %s193, %s195
      %p202 = scmp.eq.s32.totalorder %s80, 1
      %p203 = por %p201, %p202
      %p204 = scmp.ne.s32.totalorder %s195, %s196
      %p205 = scmp.eq.s32.totalorder %s80, 0
      %p206 = por %p204, %p205
      %p207 = scmp.ne.s32.totalorder %s195, %s196
      %p208 = scmp.eq.s32.totalorder %s81, 1
      %p209 = por %p207, %p208
      %p211 = scmp.ne.s32.totalorder %s196, %s210
      %p212 = scmp.eq.s32.totalorder %s81, 0
      %p213 = por %p211, %p212
      %s215 = sadd.s32 %s214, 1
      %p218 = scmp.eq.s32.totalorder %s75, 1
      %p219 = scmp.ne.s32.totalorder %s214, %s216
      %p220 = scmp.eq.s32.totalorder %s75, 0
      %p221 = por %p219, %p220
      %p222 = scmp.ne.s32.totalorder %s214, %s216
      %p223 = scmp.eq.s32.totalorder %s80, 1
      %p224 = por %p222, %p223
      %p225 = scmp.ne.s32.totalorder %s216, %s217
      %p226 = scmp.eq.s32.totalorder %s80, 0
      %p227 = por %p225, %p226
      %p228 = scmp.ne.s32.totalorder %s216, %s217
      %p229 = scmp.eq.s32.totalorder %s81, 1
      %p230 = por %p228, %p229
      %p232 = scmp.ne.s32.totalorder %s217, %s231
      %p233 = scmp.eq.s32.totalorder %s81, 0
      %p234 = por %p232, %p233
      %s236 = sadd.s32 %s235, 1
      %p239 = scmp.eq.s32.totalorder %s75, 1
      %p240 = scmp.ne.s32.totalorder %s235, %s237
      %p241 = scmp.eq.s32.totalorder %s75, 0
      %p242 = por %p240, %p241
      %p243 = scmp.ne.s32.totalorder %s235, %s237
      %p244 = scmp.eq.s32.totalorder %s80, 1
      %p245 = por %p243, %p244
      %p246 = scmp.ne.s32.totalorder %s237, %s238
      %p247 = scmp.eq.s32.totalorder %s80, 0
      %p248 = por %p246, %p247
      %p249 = scmp.ne.s32.totalorder %s237, %s238
      %p250 = scmp.eq.s32.totalorder %s81, 1
      %p251 = por %p249, %p250
      %p253 = scmp.ne.s32.totalorder %s238, %s252
      %p254 = scmp.eq.s32.totalorder %s81, 0
      %p255 = por %p253, %p254
      %s257 = sadd.s32 %s256, 1
      %p260 = scmp.eq.s32.totalorder %s75, 1
      %p261 = scmp.ne.s32.totalorder %s256, %s258
      %p262 = scmp.eq.s32.totalorder %s75, 0
      %p263 = por %p261, %p262
      %p264 = scmp.ne.s32.totalorder %s256, %s258
      %p265 = scmp.eq.s32.totalorder %s80, 1
      %p266 = por %p264, %p265
      %p267 = scmp.ne.s32.totalorder %s258, %s259
      %p268 = scmp.eq.s32.totalorder %s80, 0
      %p269 = por %p267, %p268
      %p270 = scmp.ne.s32.totalorder %s258, %s259
      %p271 = scmp.eq.s32.totalorder %s81, 1
      %p272 = por %p270, %p271
      %p274 = scmp.ne.s32.totalorder %s259, %s273
      %p275 = scmp.eq.s32.totalorder %s81, 0
      %p276 = por %p274, %p275
      %s278 = sadd.s32 %s277, 1
      %p281 = scmp.eq.s32.totalorder %s75, 1
      %p282 = scmp.ne.s32.totalorder %s277, %s279
      %p283 = scmp.eq.s32.totalorder %s75, 0
      %p284 = por %p282, %p283
      %p285 = scmp.ne.s32.totalorder %s277, %s279
      %p286 = scmp.eq.s32.totalorder %s80, 1
      %p287 = por %p285, %p286
      %p288 = scmp.ne.s32.totalorder %s279, %s280
      %p289 = scmp.eq.s32.totalorder %s80, 0
      %p290 = por %p288, %p289
      %p291 = scmp.ne.s32.totalorder %s279, %s280
      %p292 = scmp.eq.s32.totalorder %s81, 1
      %p293 = por %p291, %p292
      %p295 = scmp.ne.s32.totalorder %s280, %s294
      %p296 = scmp.eq.s32.totalorder %s81, 0
      %p297 = por %p295, %p296
      %s299 = sadd.s32 %s298, 1
      %p302 = scmp.eq.s32.totalorder %s75, 1
      %p303 = scmp.ne.s32.totalorder %s298, %s300
      %p304 = scmp.eq.s32.totalorder %s75, 0
      %p305 = por %p303, %p304
      %p306 = scmp.ne.s32.totalorder %s298, %s300
      %p307 = scmp.eq.s32.totalorder %s80, 1
      %p308 = por %p306, %p307
      %p309 = scmp.ne.s32.totalorder %s300, %s301
      %p310 = scmp.eq.s32.totalorder %s80, 0
      %p311 = por %p309, %p310
      %p312 = scmp.ne.s32.totalorder %s300, %s301
      %p313 = scmp.eq.s32.totalorder %s81, 1
      %p314 = por %p312, %p313
      %p316 = scmp.ne.s32.totalorder %s301, %s315
      %p317 = scmp.eq.s32.totalorder %s81, 0
      %p318 = por %p316, %p317
      %s320 = sadd.s32 %s319, 1
      %p323 = scmp.eq.s32.totalorder %s75, 1
      %p324 = scmp.ne.s32.totalorder %s319, %s321
      %p325 = scmp.eq.s32.totalorder %s75, 0
      %p326 = por %p324, %p325
      %p327 = scmp.ne.s32.totalorder %s319, %s321
      %p328 = scmp.eq.s32.totalorder %s80, 1
      %p329 = por %p327, %p328
      %p330 = scmp.ne.s32.totalorder %s321, %s322
      %p331 = scmp.eq.s32.totalorder %s80, 0
      %p332 = por %p330, %p331
      %p333 = scmp.ne.s32.totalorder %s321, %s322
      %p334 = scmp.eq.s32.totalorder %s81, 1
      %p335 = por %p333, %p334
      %p337 = scmp.ne.s32.totalorder %s322, %s336
      %p338 = scmp.eq.s32.totalorder %s81, 0
      %p339 = por %p337, %p338
      %s341 = sadd.s32 %s340, 1
      %p344 = scmp.eq.s32.totalorder %s75, 1
      %p345 = scmp.ne.s32.totalorder %s340, %s342
      %p346 = scmp.eq.s32.totalorder %s75, 0
      %p347 = por %p345, %p346
      %p348 = scmp.ne.s32.totalorder %s340, %s342
      %p349 = scmp.eq.s32.totalorder %s80, 1
      %p350 = por %p348, %p349
      %p351 = scmp.ne.s32.totalorder %s342, %s343
      %p352 = scmp.eq.s32.totalorder %s80, 0
      %p353 = por %p351, %p352
      %p354 = scmp.ne.s32.totalorder %s342, %s343
      %p355 = scmp.eq.s32.totalorder %s81, 1
      %p356 = por %p354, %p355
      %p358 = scmp.ne.s32.totalorder %s343, %s357
      %p359 = scmp.eq.s32.totalorder %s81, 0
      %p360 = por %p358, %p359
      %s362 = sadd.s32 %s361, 1
      %p365 = scmp.eq.s32.totalorder %s75, 1
      %p366 = scmp.ne.s32.totalorder %s361, %s363
      %p367 = scmp.eq.s32.totalorder %s75, 0
      %p368 = por %p366, %p367
      %p369 = scmp.ne.s32.totalorder %s361, %s363
      %p370 = scmp.eq.s32.totalorder %s80, 1
      %p371 = por %p369, %p370
      %p372 = scmp.ne.s32.totalorder %s363, %s364
      %p373 = scmp.eq.s32.totalorder %s80, 0
      %p374 = por %p372, %p373
      %p375 = scmp.ne.s32.totalorder %s363, %s364
      %p376 = scmp.eq.s32.totalorder %s81, 1
      %p377 = por %p375, %p376
      %p379 = scmp.ne.s32.totalorder %s364, %s378
      %p380 = scmp.eq.s32.totalorder %s81, 0
      %p381 = por %p379, %p380
      %s383 = sadd.s32 %s382, 1
      %p386 = scmp.eq.s32.totalorder %s75, 1
      %p387 = scmp.ne.s32.totalorder %s382, %s384
      %p388 = scmp.eq.s32.totalorder %s75, 0
      %p389 = por %p387, %p388
      %p390 = scmp.ne.s32.totalorder %s382, %s384
      %p391 = scmp.eq.s32.totalorder %s80, 1
      %p392 = por %p390, %p391
      %p393 = scmp.ne.s32.totalorder %s384, %s385
      %p394 = scmp.eq.s32.totalorder %s80, 0
      %p395 = por %p393, %p394
      %p396 = scmp.ne.s32.totalorder %s384, %s385
      %p397 = scmp.eq.s32.totalorder %s81, 1
      %p398 = por %p396, %p397
      %p400 = scmp.ne.s32.totalorder %s385, %s399
      %p401 = scmp.eq.s32.totalorder %s81, 0
      %p402 = por %p400, %p401
      %s404 = sadd.s32 %s403, 1
      %p407 = scmp.eq.s32.totalorder %s75, 1
      %p408 = scmp.ne.s32.totalorder %s403, %s405
      %p409 = scmp.eq.s32.totalorder %s75, 0
      %p410 = por %p408, %p409
      %p411 = scmp.ne.s32.totalorder %s403, %s405
      %p412 = scmp.eq.s32.totalorder %s80, 1
      %p413 = por %p411, %p412
      %p414 = scmp.ne.s32.totalorder %s405, %s406
      %p415 = scmp.eq.s32.totalorder %s80, 0
      %p416 = por %p414, %p415
      %p417 = scmp.ne.s32.totalorder %s405, %s406
      %p418 = scmp.eq.s32.totalorder %s81, 1
      %p419 = por %p417, %p418
      %p421 = scmp.ne.s32.totalorder %s406, %s420
      %p422 = scmp.eq.s32.totalorder %s81, 0
      %p423 = por %p421, %p422
      %s425 = sadd.s32 %s424, 1
      %p428 = scmp.eq.s32.totalorder %s75, 1
      %p429 = scmp.ne.s32.totalorder %s424, %s426
      %p430 = scmp.eq.s32.totalorder %s75, 0
      %p431 = por %p429, %p430
      %p432 = scmp.ne.s32.totalorder %s424, %s426
      %p433 = scmp.eq.s32.totalorder %s80, 1
      %p434 = por %p432, %p433
      %p435 = scmp.ne.s32.totalorder %s426, %s427
      %p436 = scmp.eq.s32.totalorder %s80, 0
      %p437 = por %p435, %p436
      %p438 = scmp.ne.s32.totalorder %s426, %s427
      %p439 = scmp.eq.s32.totalorder %s81, 1
      %p440 = por %p438, %p439
      %p442 = scmp.ne.s32.totalorder %s427, %s441
      %p443 = scmp.eq.s32.totalorder %s81, 0
      %p444 = por %p442, %p443
      %s446 = sadd.s32 %s445, 1
      %p449 = scmp.eq.s32.totalorder %s75, 1
      %p450 = scmp.ne.s32.totalorder %s445, %s447
      %p451 = scmp.eq.s32.totalorder %s75, 0
      %p452 = por %p450, %p451
      %p453 = scmp.ne.s32.totalorder %s445, %s447
      %p454 = scmp.eq.s32.totalorder %s80, 1
      %p455 = por %p453, %p454
      %p456 = scmp.ne.s32.totalorder %s447, %s448
      %p457 = scmp.eq.s32.totalorder %s80, 0
      %p458 = por %p456, %p457
      %p459 = scmp.ne.s32.totalorder %s447, %s448
      %p460 = scmp.eq.s32.totalorder %s81, 1
      %p461 = por %p459, %p460
      %p463 = scmp.ne.s32.totalorder %s448, %s462
      %p464 = scmp.eq.s32.totalorder %s81, 0
      %p465 = por %p463, %p464
      %s467 = sadd.s32 %s466, 1
      %p470 = scmp.eq.s32.totalorder %s75, 1
      %p471 = scmp.ne.s32.totalorder %s466, %s468
      %p472 = scmp.eq.s32.totalorder %s75, 0
      %p473 = por %p471, %p472
      %p474 = scmp.ne.s32.totalorder %s466, %s468
      %p475 = scmp.eq.s32.totalorder %s80, 1
      %p476 = por %p474, %p475
      %p477 = scmp.ne.s32.totalorder %s468, %s469
      %p478 = scmp.eq.s32.totalorder %s80, 0
      %p479 = por %p477, %p478
      %p480 = scmp.ne.s32.totalorder %s468, %s469
      %p481 = scmp.eq.s32.totalorder %s81, 1
      %p482 = por %p480, %p481
      %p484 = scmp.ne.s32.totalorder %s469, %s483
      %p485 = scmp.eq.s32.totalorder %s81, 0
      %p486 = por %p484, %p485
      %s488 = sadd.s32 %s487, 1
      %p491 = scmp.eq.s32.totalorder %s75, 1
      %p492 = scmp.ne.s32.totalorder %s487, %s489
      %p493 = scmp.eq.s32.totalorder %s75, 0
      %p494 = por %p492, %p493
      %p495 = scmp.ne.s32.totalorder %s487, %s489
      %p496 = scmp.eq.s32.totalorder %s80, 1
      %p497 = por %p495, %p496
      %p498 = scmp.ne.s32.totalorder %s489, %s490
      %p499 = scmp.eq.s32.totalorder %s80, 0
      %p500 = por %p498, %p499
      %p501 = scmp.ne.s32.totalorder %s489, %s490
      %p502 = scmp.eq.s32.totalorder %s81, 1
      %p503 = por %p501, %p502
      %p505 = scmp.ne.s32.totalorder %s490, %s504
      %p506 = scmp.eq.s32.totalorder %s81, 0
      %p507 = por %p505, %p506
      %s509 = sadd.s32 %s508, 1
      %p512 = scmp.eq.s32.totalorder %s75, 1
      %p513 = scmp.ne.s32.totalorder %s508, %s510
      %p514 = scmp.eq.s32.totalorder %s75, 0
      %p515 = por %p513, %p514
      %p516 = scmp.ne.s32.totalorder %s508, %s510
      %p517 = scmp.eq.s32.totalorder %s80, 1
      %p518 = por %p516, %p517
      %p519 = scmp.ne.s32.totalorder %s510, %s511
      %p520 = scmp.eq.s32.totalorder %s80, 0
      %p521 = por %p519, %p520
      %p522 = scmp.ne.s32.totalorder %s510, %s511
      %p523 = scmp.eq.s32.totalorder %s81, 1
      %p524 = por %p522, %p523
      %p526 = scmp.ne.s32.totalorder %s511, %s525
      %p527 = scmp.eq.s32.totalorder %s81, 0
      %p528 = por %p526, %p527
      %s530 = sadd.s32 %s529, 1
      %p533 = scmp.eq.s32.totalorder %s75, 1
      %p534 = scmp.ne.s32.totalorder %s529, %s531
      %p535 = scmp.eq.s32.totalorder %s75, 0
      %p536 = por %p534, %p535
      %p537 = scmp.ne.s32.totalorder %s529, %s531
      %p538 = scmp.eq.s32.totalorder %s80, 1
      %p539 = por %p537, %p538
      %p540 = scmp.ne.s32.totalorder %s531, %s532
      %p541 = scmp.eq.s32.totalorder %s80, 0
      %p542 = por %p540, %p541
      %p543 = scmp.ne.s32.totalorder %s531, %s532
      %p544 = scmp.eq.s32.totalorder %s81, 1
      %p545 = por %p543, %p544
      %p547 = scmp.ne.s32.totalorder %s532, %s546
      %p548 = scmp.eq.s32.totalorder %s81, 0
      %p549 = por %p547, %p548
      %s551 = sadd.s32 %s550, 1
      %p554 = scmp.eq.s32.totalorder %s75, 1
      %p555 = scmp.ne.s32.totalorder %s550, %s552
      %p556 = scmp.eq.s32.totalorder %s75, 0
      %p557 = por %p555, %p556
      %p558 = scmp.ne.s32.totalorder %s550, %s552
      %p559 = scmp.eq.s32.totalorder %s80, 1
      %p560 = por %p558, %p559
      %p561 = scmp.ne.s32.totalorder %s552, %s553
      %p562 = scmp.eq.s32.totalorder %s80, 0
      %p563 = por %p561, %p562
      %p564 = scmp.ne.s32.totalorder %s552, %s553
      %p565 = scmp.eq.s32.totalorder %s81, 1
      %p566 = por %p564, %p565
      %p568 = scmp.ne.s32.totalorder %s553, %s567
      %p569 = scmp.eq.s32.totalorder %s81, 0
      %p570 = por %p568, %p569
      %s572 = sadd.s32 %s571, 1
      %p575 = scmp.eq.s32.totalorder %s75, 1
      %p576 = scmp.ne.s32.totalorder %s571, %s573
      %p577 = scmp.eq.s32.totalorder %s75, 0
      %p578 = por %p576, %p577
      %p579 = scmp.ne.s32.totalorder %s571, %s573
      %p580 = scmp.eq.s32.totalorder %s80, 1
      %p581 = por %p579, %p580
      %p582 = scmp.ne.s32.totalorder %s573, %s574
      %p583 = scmp.eq.s32.totalorder %s80, 0
      %p584 = por %p582, %p583
      %p585 = scmp.ne.s32.totalorder %s573, %s574
      %p586 = scmp.eq.s32.totalorder %s81, 1
      %p587 = por %p585, %p586
      %p589 = scmp.ne.s32.totalorder %s574, %s588
      %p590 = scmp.eq.s32.totalorder %s81, 0
      %p591 = por %p589, %p590
      %s593 = sadd.s32 %s592, 1
      %p596 = scmp.eq.s32.totalorder %s75, 1
      %p597 = scmp.ne.s32.totalorder %s592, %s594
      %p598 = scmp.eq.s32.totalorder %s75, 0
      %p599 = por %p597, %p598
      %p600 = scmp.ne.s32.totalorder %s592, %s594
      %p601 = scmp.eq.s32.totalorder %s80, 1
      %p602 = por %p600, %p601
      %p603 = scmp.ne.s32.totalorder %s594, %s595
      %p604 = scmp.eq.s32.totalorder %s80, 0
      %p605 = por %p603, %p604
      %p606 = scmp.ne.s32.totalorder %s594, %s595
      %p607 = scmp.eq.s32.totalorder %s81, 1
      %p608 = por %p606, %p607
      %p610 = scmp.ne.s32.totalorder %s595, %s609
      %p611 = scmp.eq.s32.totalorder %s81, 0
      %p612 = por %p610, %p611
      %s614 = sadd.s32 %s613, 1
      %p617 = scmp.eq.s32.totalorder %s75, 1
      %p618 = scmp.ne.s32.totalorder %s613, %s615
      %p619 = scmp.eq.s32.totalorder %s75, 0
      %p620 = por %p618, %p619
      %p621 = scmp.ne.s32.totalorder %s613, %s615
      %p622 = scmp.eq.s32.totalorder %s80, 1
      %p623 = por %p621, %p622
      %p624 = scmp.ne.s32.totalorder %s615, %s616
      %p625 = scmp.eq.s32.totalorder %s80, 0
      %p626 = por %p624, %p625
      %p627 = scmp.ne.s32.totalorder %s615, %s616
      %p628 = scmp.eq.s32.totalorder %s81, 1
      %p629 = por %p627, %p628
      %p631 = scmp.ne.s32.totalorder %s616, %s630
      %p632 = scmp.eq.s32.totalorder %s81, 0
      %p633 = por %p631, %p632
      %s635 = sadd.s32 %s634, 1
      %p638 = scmp.eq.s32.totalorder %s75, 1
      %p639 = scmp.ne.s32.totalorder %s634, %s636
      %p640 = scmp.eq.s32.totalorder %s75, 0
      %p641 = por %p639, %p640
      %p642 = scmp.ne.s32.totalorder %s634, %s636
      %p643 = scmp.eq.s32.totalorder %s80, 1
      %p644 = por %p642, %p643
      %p645 = scmp.ne.s32.totalorder %s636, %s637
      %p646 = scmp.eq.s32.totalorder %s80, 0
      %p647 = por %p645, %p646
      %p648 = scmp.ne.s32.totalorder %s636, %s637
      %p649 = scmp.eq.s32.totalorder %s81, 1
      %p650 = por %p648, %p649
      %p652 = scmp.ne.s32.totalorder %s637, %s651
      %p653 = scmp.eq.s32.totalorder %s81, 0
      %p654 = por %p652, %p653
      %s656 = sadd.s32 %s655, 1
      %p659 = scmp.eq.s32.totalorder %s75, 1
      %p660 = scmp.ne.s32.totalorder %s655, %s657
      %p661 = scmp.eq.s32.totalorder %s75, 0
      %p662 = por %p660, %p661
      %p663 = scmp.ne.s32.totalorder %s655, %s657
      %p664 = scmp.eq.s32.totalorder %s80, 1
      %p665 = por %p663, %p664
      %p666 = scmp.ne.s32.totalorder %s657, %s658
      %p667 = scmp.eq.s32.totalorder %s80, 0
      %p668 = por %p666, %p667
      %p669 = scmp.ne.s32.totalorder %s657, %s658
      %p670 = scmp.eq.s32.totalorder %s81, 1
      %p671 = por %p669, %p670
      %p673 = scmp.ne.s32.totalorder %s658, %s672
      %p674 = scmp.eq.s32.totalorder %s81, 0
      %p675 = por %p673, %p674
      %s677 = sadd.s32 %s676, 1
      %p680 = scmp.eq.s32.totalorder %s75, 1
      %p681 = scmp.ne.s32.totalorder %s676, %s678
      %p682 = scmp.eq.s32.totalorder %s75, 0
      %p683 = por %p681, %p682
      %p684 = scmp.ne.s32.totalorder %s676, %s678
      %p685 = scmp.eq.s32.totalorder %s80, 1
      %p686 = por %p684, %p685
      %p687 = scmp.ne.s32.totalorder %s678, %s679
      %p688 = scmp.eq.s32.totalorder %s80, 0
      %p689 = por %p687, %p688
      %p690 = scmp.ne.s32.totalorder %s678, %s679
      %p691 = scmp.eq.s32.totalorder %s81, 1
      %p692 = por %p690, %p691
      %p694 = scmp.ne.s32.totalorder %s679, %s693
      %p695 = scmp.eq.s32.totalorder %s81, 0
      %p696 = por %p694, %p695
      %s697 = ssub.s32 %s75, %s82
      %p698 = scmp.eq.s32.totalorder %s697, 0
      %s700 = sadd.s32 %s699, 1
      %s701 = scalar_select %p698, %s699, %s700
      %p704 = pneg %p698
      %p705 = scmp.eq.s32.totalorder %s75, 1
      %p706 = por %p704, %p705
      %p707 = scmp.ne.s32.totalorder %s699, %s702
      %p708 = scmp.eq.s32.totalorder %s75, 0
      %p709 = por %p707, %p708
      %p710 = scmp.ne.s32.totalorder %s699, %s702
      %p711 = scmp.eq.s32.totalorder %s80, 1
      %p712 = por %p710, %p711
      %p713 = scmp.ne.s32.totalorder %s702, %s703
      %p714 = scmp.eq.s32.totalorder %s80, 0
      %p715 = por %p713, %p714
      %p716 = scmp.ne.s32.totalorder %s702, %s703
      %p717 = scmp.eq.s32.totalorder %s81, 1
      %p718 = por %p716, %p717
      %p720 = scmp.ne.s32.totalorder %s703, %s719
      %p721 = scmp.eq.s32.totalorder %s81, 0
      %p722 = por %p720, %p721
      %p723 = scmp.le.s32.totalorder 1, %s75
      %p724 = scmp.lt.s32.totalorder %s75, 3
      %p725 = pnand %p723, %p724
      %p726 = pneg %p725
      // Predicated region
      $region9: #{resnet_encoder_forward.1} parent=5 // pred_check
        _
      $region10: #{resnet_encoder_forward.1} parent=5 // pred_check_branch
        %728 = sbr.rel (%p725) target = $region12
      $region11: #{resnet_encoder_forward.1} parent=5 // pred_region
        %s729 = ssub.s32 %s75, 1
        // Predicated region
        $region13: #{resnet_encoder_forward.1} parent=11 // pred_check
          %p730 = pneg %p122
        $region14: #{resnet_encoder_forward.1} parent=11 // pred_check_branch
          %732 = sbr.rel (%p730) target = $region16
        $region15: #{resnet_encoder_forward.1} parent=11 // pred_region
          %s734 = ssub.s32 1152, 1152
          %735 = vsyncadd [#allocation3], %s734
          %s736 = sshll.u32 [#allocation2], 4
          %s737 = int_to_ptr.vmem [resolvable:$true] %s736
          %742 = dma.hbm_to_vmem [thread:$0]  %s3, 1152, %s737, [#allocation3], 64, 64, 4
        $region16: #{resnet_encoder_forward.1} parent=11 // pred_fallthru
          _
        // Predicated region
        $region17: #{resnet_encoder_forward.1} parent=11 // pred_check
          %p743 = pneg %p143
        $region18: #{resnet_encoder_forward.1} parent=11 // pred_check_branch
          %745 = sbr.rel (%p743) target = $region20
        $region19: #{resnet_encoder_forward.1} parent=11 // pred_region
          %s747 = ssub.s32 16, 16
          %748 = vsyncadd [#allocation5], %s747
          %s750 = sshll.u32 [#allocation4], 4
          %s751 = int_to_ptr.vmem [resolvable:$true] %s750
          %753 = dma.hbm_to_vmem [thread:$0]  %s5, 16, %s751, [#allocation5]
        $region20: #{resnet_encoder_forward.1} parent=11 // pred_fallthru
          _
        // Predicated region
        $region21: #{resnet_encoder_forward.1} parent=11 // pred_check
          %p754 = pneg %p164
        $region22: #{resnet_encoder_forward.1} parent=11 // pred_check_branch
          %756 = sbr.rel (%p754) target = $region24
        $region23: #{resnet_encoder_forward.1} parent=11 // pred_region
          _
        $region24: #{resnet_encoder_forward.1} parent=11 // pred_fallthru
          _
        // Predicated region
        $region25: #{resnet_encoder_forward.1} parent=11 // pred_check
          %p757 = pneg %p185
        $region26: #{resnet_encoder_forward.1} parent=11 // pred_check_branch
          %759 = sbr.rel (%p757) target = $region28
        $region27: #{resnet_encoder_forward.1} parent=11 // pred_region
          %s761 = ssub.s32 16, 16
          %762 = vsyncadd [#allocation5], %s761
          %s764 = sshll.u32 [#allocation6], 4
          %s765 = int_to_ptr.vmem [resolvable:$true] %s764
          %767 = dma.hbm_to_vmem [thread:$0]  %s9, 16, %s765, [#allocation5]
        $region28: #{resnet_encoder_forward.1} parent=11 // pred_fallthru
          _
        // Predicated region
        $region29: #{resnet_encoder_forward.1} parent=11 // pred_check
          %p768 = pneg %p206
        $region30: #{resnet_encoder_forward.1} parent=11 // pred_check_branch
          %770 = sbr.rel (%p768) target = $region32
        $region31: #{resnet_encoder_forward.1} parent=11 // pred_region
          %s772 = ssub.s32 3072, 3072
          %773 = vsyncadd [#allocation8], %s772
          %s774 = sshll.u32 [#allocation7], 4
          %s775 = int_to_ptr.vmem [resolvable:$true] %s774
          %780 = dma.hbm_to_vmem [thread:$0]  %s11, 3072, %s775, [#allocation8], 64, 64, 4
        $region32: #{resnet_encoder_forward.1} parent=11 // pred_fallthru
          _
        // Predicated region
        $region33: #{resnet_encoder_forward.1} parent=11 // pred_check
          %p781 = pneg %p227
        $region34: #{resnet_encoder_forward.1} parent=11 // pred_check_branch
          %783 = sbr.rel (%p781) target = $region36
        $region35: #{resnet_encoder_forward.1} parent=11 // pred_region
          %s785 = ssub.s32 16, 16
          %786 = vsyncadd [#allocation8], %s785
          %s788 = sshll.u32 [#allocation9], 4
          %s789 = int_to_ptr.vmem [resolvable:$true] %s788
          %791 = dma.hbm_to_vmem [thread:$0]  %s13, 16, %s789, [#allocation8]
        $region36: #{resnet_encoder_forward.1} parent=11 // pred_fallthru
          _
        // Predicated region
        $region37: #{resnet_encoder_forward.1} parent=11 // pred_check
          %p792 = pneg %p248
        $region38: #{resnet_encoder_forward.1} parent=11 // pred_check_branch
          %794 = sbr.rel (%p792) target = $region40
        $region39: #{resnet_encoder_forward.1} parent=11 // pred_region
          %s796 = ssub.s32 3072, 3072
          %797 = vsyncadd [#allocation11], %s796
          %s798 = sshll.u32 [#allocation10], 4
          %s799 = int_to_ptr.vmem [resolvable:$true] %s798
          %804 = dma.hbm_to_vmem [thread:$0]  %s15, 3072, %s799, [#allocation11], 64, 64, 4
        $region40: #{resnet_encoder_forward.1} parent=11 // pred_fallthru
          _
        // Predicated region
        $region41: #{resnet_encoder_forward.1} parent=11 // pred_check
          %p805 = pneg %p269
        $region42: #{resnet_encoder_forward.1} parent=11 // pred_check_branch
          %807 = sbr.rel (%p805) target = $region44
        $region43: #{resnet_encoder_forward.1} parent=11 // pred_region
          %s809 = ssub.s32 16, 16
          %810 = vsyncadd [#allocation11], %s809
          %s812 = sshll.u32 [#allocation12], 4
          %s813 = int_to_ptr.vmem [resolvable:$true] %s812
          %815 = dma.hbm_to_vmem [thread:$0]  %s17, 16, %s813, [#allocation11]
        $region44: #{resnet_encoder_forward.1} parent=11 // pred_fallthru
          _
        // Predicated region
        $region45: #{resnet_encoder_forward.1} parent=11 // pred_check
          %p816 = pneg %p290
        $region46: #{resnet_encoder_forward.1} parent=11 // pred_check_branch
          %818 = sbr.rel (%p816) target = $region48
        $region47: #{resnet_encoder_forward.1} parent=11 // pred_region
          %s820 = ssub.s32 3072, 3072
          %821 = vsyncadd [#allocation14], %s820
          %s822 = sshll.u32 [#allocation13], 4
          %s823 = int_to_ptr.vmem [resolvable:$true] %s822
          %828 = dma.hbm_to_vmem [thread:$0]  %s19, 3072, %s823, [#allocation14], 64, 64, 4
        $region48: #{resnet_encoder_forward.1} parent=11 // pred_fallthru
          _
        // Predicated region
        $region49: #{resnet_encoder_forward.1} parent=11 // pred_check
          %p829 = pneg %p311
        $region50: #{resnet_encoder_forward.1} parent=11 // pred_check_branch
          %831 = sbr.rel (%p829) target = $region52
        $region51: #{resnet_encoder_forward.1} parent=11 // pred_region
          %s833 = ssub.s32 16, 16
          %834 = vsyncadd [#allocation14], %s833
          %s836 = sshll.u32 [#allocation15], 4
          %s837 = int_to_ptr.vmem [resolvable:$true] %s836
          %839 = dma.hbm_to_vmem [thread:$0]  %s21, 16, %s837, [#allocation14]
        $region52: #{resnet_encoder_forward.1} parent=11 // pred_fallthru
          _
        // Predicated region
        $region53: #{resnet_encoder_forward.1} parent=11 // pred_check
          %p840 = pneg %p332
        $region54: #{resnet_encoder_forward.1} parent=11 // pred_check_branch
          %842 = sbr.rel (%p840) target = $region56
        $region55: #{resnet_encoder_forward.1} parent=11 // pred_region
          _
        $region56: #{resnet_encoder_forward.1} parent=11 // pred_fallthru
          _
        // Predicated region
        $region57: #{resnet_encoder_forward.1} parent=11 // pred_check
          %p843 = pneg %p353
        $region58: #{resnet_encoder_forward.1} parent=11 // pred_check_branch
          %845 = sbr.rel (%p843) target = $region60
        $region59: #{resnet_encoder_forward.1} parent=11 // pred_region
          %s847 = ssub.s32 16, 16
          %848 = vsyncadd [#allocation17], %s847
          %s850 = sshll.u32 [#allocation16], 4
          %s851 = int_to_ptr.vmem [resolvable:$true] %s850
          %853 = dma.hbm_to_vmem [thread:$0]  %s25, 16, %s851, [#allocation17]
        $region60: #{resnet_encoder_forward.1} parent=11 // pred_fallthru
          _
        // Predicated region
        $region61: #{resnet_encoder_forward.1} parent=11 // pred_check
          %p854 = pneg %p374
        $region62: #{resnet_encoder_forward.1} parent=11 // pred_check_branch
          %856 = sbr.rel (%p854) target = $region64
        $region63: #{resnet_encoder_forward.1} parent=11 // pred_region
          %s858 = ssub.s32 2048, 2048
          %859 = vsyncadd [#allocation17], %s858
          %s860 = sshll.u32 [#allocation18], 4
          %s861 = int_to_ptr.vmem [resolvable:$true] %s860
          %866 = dma.hbm_to_vmem [thread:$0]  %s27, 2048, %s861, [#allocation17], 64, 64, 4
        $region64: #{resnet_encoder_forward.1} parent=11 // pred_fallthru
          _
        // Predicated region
        $region65: #{resnet_encoder_forward.1} parent=11 // pred_check
          %p867 = pneg %p395
        $region66: #{resnet_encoder_forward.1} parent=11 // pred_check_branch
          %869 = sbr.rel (%p867) target = $region68
        $region67: #{resnet_encoder_forward.1} parent=11 // pred_region
          %s871 = ssub.s32 16, 16
          %872 = vsyncadd [#allocation20], %s871
          %s874 = sshll.u32 [#allocation19], 4
          %s875 = int_to_ptr.vmem [resolvable:$true] %s874
          %877 = dma.hbm_to_vmem [thread:$0]  %s29, 16, %s875, [#allocation20]
        $region68: #{resnet_encoder_forward.1} parent=11 // pred_fallthru
          _
        // Predicated region
        $region69: #{resnet_encoder_forward.1} parent=11 // pred_check
          %p878 = pneg %p416
        $region70: #{resnet_encoder_forward.1} parent=11 // pred_check_branch
          %880 = sbr.rel (%p878) target = $region72
        $region71: #{resnet_encoder_forward.1} parent=11 // pred_region
          %s882 = ssub.s32 3072, 3072
          %883 = vsyncadd [#allocation20], %s882
          %s884 = sshll.u32 [#allocation21], 4
          %s885 = int_to_ptr.vmem [resolvable:$true] %s884
          %890 = dma.hbm_to_vmem [thread:$0]  %s31, 3072, %s885, [#allocation20], 64, 64, 4
        $region72: #{resnet_encoder_forward.1} parent=11 // pred_fallthru
          _
        // Predicated region
        $region73: #{resnet_encoder_forward.1} parent=11 // pred_check
          %p891 = pneg %p437
        $region74: #{resnet_encoder_forward.1} parent=11 // pred_check_branch
          %893 = sbr.rel (%p891) target = $region76
        $region75: #{resnet_encoder_forward.1} parent=11 // pred_region
          %s895 = ssub.s32 16, 16
          %896 = vsyncadd [#allocation23], %s895
          %s898 = sshll.u32 [#allocation22], 4
          %s899 = int_to_ptr.vmem [resolvable:$true] %s898
          %901 = dma.hbm_to_vmem [thread:$0]  %s33, 16, %s899, [#allocation23]
        $region76: #{resnet_encoder_forward.1} parent=11 // pred_fallthru
          _
        // Predicated region
        $region77: #{resnet_encoder_forward.1} parent=11 // pred_check
          %p902 = pneg %p458
        $region78: #{resnet_encoder_forward.1} parent=11 // pred_check_branch
          %904 = sbr.rel (%p902) target = $region80
        $region79: #{resnet_encoder_forward.1} parent=11 // pred_region
          _
        $region80: #{resnet_encoder_forward.1} parent=11 // pred_fallthru
          _
        // Predicated region
        $region81: #{resnet_encoder_forward.1} parent=11 // pred_check
          %p905 = pneg %p479
        $region82: #{resnet_encoder_forward.1} parent=11 // pred_check_branch
          %907 = sbr.rel (%p905) target = $region84
        $region83: #{resnet_encoder_forward.1} parent=11 // pred_region
          _
        $region84: #{resnet_encoder_forward.1} parent=11 // pred_fallthru
          _
        // Predicated region
        $region85: #{resnet_encoder_forward.1} parent=11 // pred_check
          %p908 = pneg %p500
        $region86: #{resnet_encoder_forward.1} parent=11 // pred_check_branch
          %910 = sbr.rel (%p908) target = $region88
        $region87: #{resnet_encoder_forward.1} parent=11 // pred_region
          %s912 = ssub.s32 3072, 3072
          %913 = vsyncadd [#allocation23], %s912
          %s914 = sshll.u32 [#allocation24], 4
          %s915 = int_to_ptr.vmem [resolvable:$true] %s914
          %920 = dma.hbm_to_vmem [thread:$0]  %s39, 3072, %s915, [#allocation23], 64, 64, 4
        $region88: #{resnet_encoder_forward.1} parent=11 // pred_fallthru
          _
        // Predicated region
        $region89: #{resnet_encoder_forward.1} parent=11 // pred_check
          %p921 = pneg %p521
        $region90: #{resnet_encoder_forward.1} parent=11 // pred_check_branch
          %923 = sbr.rel (%p921) target = $region92
        $region91: #{resnet_encoder_forward.1} parent=11 // pred_region
          _
        $region92: #{resnet_encoder_forward.1} parent=11 // pred_fallthru
          _
        // Predicated region
        $region93: #{resnet_encoder_forward.1} parent=11 // pred_check
          %p924 = pneg %p542
        $region94: #{resnet_encoder_forward.1} parent=11 // pred_check_branch
          %926 = sbr.rel (%p924) target = $region96
        $region95: #{resnet_encoder_forward.1} parent=11 // pred_region
          %s928 = ssub.s32 3072, 3072
          %929 = vsyncadd [#allocation26], %s928
          %s930 = sshll.u32 [#allocation25], 4
          %s931 = int_to_ptr.vmem [resolvable:$true] %s930
          %936 = dma.hbm_to_vmem [thread:$0]  %s43, 3072, %s931, [#allocation26], 64, 64, 4
        $region96: #{resnet_encoder_forward.1} parent=11 // pred_fallthru
          _
        // Predicated region
        $region97: #{resnet_encoder_forward.1} parent=11 // pred_check
          %p937 = pneg %p563
        $region98: #{resnet_encoder_forward.1} parent=11 // pred_check_branch
          %939 = sbr.rel (%p937) target = $region100
        $region99: #{resnet_encoder_forward.1} parent=11 // pred_region
          _
        $region100: #{resnet_encoder_forward.1} parent=11 // pred_fallthru
          _
        // Predicated region
        $region101: #{resnet_encoder_forward.1} parent=11 // pred_check
          %p940 = pneg %p584
        $region102: #{resnet_encoder_forward.1} parent=11 // pred_check_branch
          %942 = sbr.rel (%p940) target = $region104
        $region103: #{resnet_encoder_forward.1} parent=11 // pred_region
          %s944 = ssub.s32 2048, 2048
          %945 = vsyncadd [#allocation26], %s944
          %s946 = sshll.u32 [#allocation27], 4
          %s947 = int_to_ptr.vmem [resolvable:$true] %s946
          %952 = dma.hbm_to_vmem [thread:$0]  %s47, 2048, %s947, [#allocation26], 64, 64, 4
        $region104: #{resnet_encoder_forward.1} parent=11 // pred_fallthru
          _
        // Predicated region
        $region105: #{resnet_encoder_forward.1} parent=11 // pred_check
          %p953 = pneg %p605
        $region106: #{resnet_encoder_forward.1} parent=11 // pred_check_branch
          %955 = sbr.rel (%p953) target = $region108
        $region107: #{resnet_encoder_forward.1} parent=11 // pred_region
          _
        $region108: #{resnet_encoder_forward.1} parent=11 // pred_fallthru
          _
        // Predicated region
        $region109: #{resnet_encoder_forward.1} parent=11 // pred_check
          %p956 = pneg %p626
        $region110: #{resnet_encoder_forward.1} parent=11 // pred_check_branch
          %958 = sbr.rel (%p956) target = $region112
        $region111: #{resnet_encoder_forward.1} parent=11 // pred_region
          %s960 = ssub.s32 2048, 2048
          %961 = vsyncadd [#allocation29], %s960
          %s962 = sshll.u32 [#allocation28], 4
          %s963 = int_to_ptr.vmem [resolvable:$true] %s962
          %968 = dma.hbm_to_vmem [thread:$0]  %s51, 2048, %s963, [#allocation29], 64, 64, 4
        $region112: #{resnet_encoder_forward.1} parent=11 // pred_fallthru
          _
        // Predicated region
        $region113: #{resnet_encoder_forward.1} parent=11 // pred_check
          %p969 = pneg %p647
        $region114: #{resnet_encoder_forward.1} parent=11 // pred_check_branch
          %971 = sbr.rel (%p969) target = $region116
        $region115: #{resnet_encoder_forward.1} parent=11 // pred_region
          _
        $region116: #{resnet_encoder_forward.1} parent=11 // pred_fallthru
          _
        // Predicated region
        $region117: #{resnet_encoder_forward.1} parent=11 // pred_check
          %p972 = pneg %p668
        $region118: #{resnet_encoder_forward.1} parent=11 // pred_check_branch
          %974 = sbr.rel (%p972) target = $region120
        $region119: #{resnet_encoder_forward.1} parent=11 // pred_region
          _
        $region120: #{resnet_encoder_forward.1} parent=11 // pred_fallthru
          _
        // Predicated region
        $region121: #{resnet_encoder_forward.1} parent=11 // pred_check
          %p975 = pneg %p689
        $region122: #{resnet_encoder_forward.1} parent=11 // pred_check_branch
          %977 = sbr.rel (%p975) target = $region124
        $region123: #{resnet_encoder_forward.1} parent=11 // pred_region
          _
        $region124: #{resnet_encoder_forward.1} parent=11 // pred_fallthru
          _
      $region12: #{resnet_encoder_forward.1} parent=5 // pred_fallthru
        _
      %p978 = scmp.lt.s32.totalorder %s75, 2
      // Predicated region
      $region125: #{resnet_encoder_forward.1} parent=5 // pred_check
        %p979 = pneg %p978
      $region126: #{resnet_encoder_forward.1} parent=5 // pred_check_branch
        %981 = sbr.rel (%p979) target = $region128
      $region127: #{resnet_encoder_forward.1} parent=5 // pred_region
        // Predicated region
        $region129: #{resnet_encoder_forward.1} parent=127 // pred_check
          %p982 = pneg %p95
        $region130: #{resnet_encoder_forward.1} parent=127 // pred_check_branch
          %984 = sbr.rel (%p982) target = $region132
        $region131: #{resnet_encoder_forward.1} parent=127 // pred_region
          %p985 = scmp.lt.s32.totalorder %s75, 1
          %s986 = scalar_select %p985, %s75, 1
          %s987 = smul.addr %s986, 2
          %s988 = smul.addr %s987, 8
          %s989 = scalar_lea.vmem %s1, %s988
        $region132: #{resnet_encoder_forward.1} parent=127 // pred_fallthru
          _
      $region128: #{resnet_encoder_forward.1} parent=5 // pred_fallthru
        _
      %p990 = scmp.le.s32.totalorder 1, %s75
      %p991 = scmp.lt.s32.totalorder %s75, 3
      %p992 = pnand %p990, %p991
      %p993 = pneg %p992
      // Predicated region
      $region133: #{resnet_encoder_forward.1} parent=5 // pred_check
        _
      $region134: #{resnet_encoder_forward.1} parent=5 // pred_check_branch
        %995 = sbr.rel (%p992) target = $region136
      $region135: #{resnet_encoder_forward.1} parent=5 // pred_region
        %s996 = ssub.s32 %s75, 1
        // Predicated region
        $region137: #{resnet_encoder_forward.1} parent=135 // pred_check
          %p997 = pneg %p122
        $region138: #{resnet_encoder_forward.1} parent=135 // pred_check_branch
          %999 = sbr.rel (%p997) target = $region140
        $region139: #{resnet_encoder_forward.1} parent=135 // pred_region
          %1000 = dma.done [#allocation3], 1152
        $region140: #{resnet_encoder_forward.1} parent=135 // pred_fallthru
          _
        // Predicated region
        $region141: #{resnet_encoder_forward.1} parent=135 // pred_check
          %p1001 = pneg %p143
        $region142: #{resnet_encoder_forward.1} parent=135 // pred_check_branch
          %1003 = sbr.rel (%p1001) target = $region144
        $region143: #{resnet_encoder_forward.1} parent=135 // pred_region
          %1004 = dma.done [#allocation5], 16
        $region144: #{resnet_encoder_forward.1} parent=135 // pred_fallthru
          _
        // Predicated region
        $region145: #{resnet_encoder_forward.1} parent=135 // pred_check
          %p1005 = pneg %p185
        $region146: #{resnet_encoder_forward.1} parent=135 // pred_check_branch
          %1007 = sbr.rel (%p1005) target = $region148
        $region147: #{resnet_encoder_forward.1} parent=135 // pred_region
          %1008 = dma.done [#allocation5], 16
        $region148: #{resnet_encoder_forward.1} parent=135 // pred_fallthru
          _
        // Predicated region
        $region149: #{resnet_encoder_forward.1} parent=135 // pred_check
          %p1009 = pneg %p206
        $region150: #{resnet_encoder_forward.1} parent=135 // pred_check_branch
          %1011 = sbr.rel (%p1009) target = $region152
        $region151: #{resnet_encoder_forward.1} parent=135 // pred_region
          %1012 = dma.done [#allocation8], 3072
        $region152: #{resnet_encoder_forward.1} parent=135 // pred_fallthru
          _
        // Predicated region
        $region153: #{resnet_encoder_forward.1} parent=135 // pred_check
          %p1013 = pneg %p227
        $region154: #{resnet_encoder_forward.1} parent=135 // pred_check_branch
          %1015 = sbr.rel (%p1013) target = $region156
        $region155: #{resnet_encoder_forward.1} parent=135 // pred_region
          %1016 = dma.done [#allocation8], 16
        $region156: #{resnet_encoder_forward.1} parent=135 // pred_fallthru
          _
        // Predicated region
        $region157: #{resnet_encoder_forward.1} parent=135 // pred_check
          %p1017 = pneg %p248
        $region158: #{resnet_encoder_forward.1} parent=135 // pred_check_branch
          %1019 = sbr.rel (%p1017) target = $region160
        $region159: #{resnet_encoder_forward.1} parent=135 // pred_region
          %1020 = dma.done [#allocation11], 3072
        $region160: #{resnet_encoder_forward.1} parent=135 // pred_fallthru
          _
        // Predicated region
        $region161: #{resnet_encoder_forward.1} parent=135 // pred_check
          %p1021 = pneg %p269
        $region162: #{resnet_encoder_forward.1} parent=135 // pred_check_branch
          %1023 = sbr.rel (%p1021) target = $region164
        $region163: #{resnet_encoder_forward.1} parent=135 // pred_region
          %1024 = dma.done [#allocation11], 16
        $region164: #{resnet_encoder_forward.1} parent=135 // pred_fallthru
          _
        // Predicated region
        $region165: #{resnet_encoder_forward.1} parent=135 // pred_check
          %p1025 = pneg %p290
        $region166: #{resnet_encoder_forward.1} parent=135 // pred_check_branch
          %1027 = sbr.rel (%p1025) target = $region168
        $region167: #{resnet_encoder_forward.1} parent=135 // pred_region
          %1028 = dma.done [#allocation14], 3072
        $region168: #{resnet_encoder_forward.1} parent=135 // pred_fallthru
          _
        // Predicated region
        $region169: #{resnet_encoder_forward.1} parent=135 // pred_check
          %p1029 = pneg %p311
        $region170: #{resnet_encoder_forward.1} parent=135 // pred_check_branch
          %1031 = sbr.rel (%p1029) target = $region172
        $region171: #{resnet_encoder_forward.1} parent=135 // pred_region
          %1032 = dma.done [#allocation14], 16
        $region172: #{resnet_encoder_forward.1} parent=135 // pred_fallthru
          _
        // Predicated region
        $region173: #{resnet_encoder_forward.1} parent=135 // pred_check
          %p1033 = pneg %p353
        $region174: #{resnet_encoder_forward.1} parent=135 // pred_check_branch
          %1035 = sbr.rel (%p1033) target = $region176
        $region175: #{resnet_encoder_forward.1} parent=135 // pred_region
          %1036 = dma.done [#allocation17], 16
        $region176: #{resnet_encoder_forward.1} parent=135 // pred_fallthru
          _
        // Predicated region
        $region177: #{resnet_encoder_forward.1} parent=135 // pred_check
          %p1037 = pneg %p374
        $region178: #{resnet_encoder_forward.1} parent=135 // pred_check_branch
          %1039 = sbr.rel (%p1037) target = $region180
        $region179: #{resnet_encoder_forward.1} parent=135 // pred_region
          %1040 = dma.done [#allocation17], 2048
        $region180: #{resnet_encoder_forward.1} parent=135 // pred_fallthru
          _
        // Predicated region
        $region181: #{resnet_encoder_forward.1} parent=135 // pred_check
          %p1041 = pneg %p395
        $region182: #{resnet_encoder_forward.1} parent=135 // pred_check_branch
          %1043 = sbr.rel (%p1041) target = $region184
        $region183: #{resnet_encoder_forward.1} parent=135 // pred_region
          %1044 = dma.done [#allocation20], 16
        $region184: #{resnet_encoder_forward.1} parent=135 // pred_fallthru
          _
        // Predicated region
        $region185: #{resnet_encoder_forward.1} parent=135 // pred_check
          %p1045 = pneg %p416
        $region186: #{resnet_encoder_forward.1} parent=135 // pred_check_branch
          %1047 = sbr.rel (%p1045) target = $region188
        $region187: #{resnet_encoder_forward.1} parent=135 // pred_region
          %1048 = dma.done [#allocation20], 3072
        $region188: #{resnet_encoder_forward.1} parent=135 // pred_fallthru
          _
        // Predicated region
        $region189: #{resnet_encoder_forward.1} parent=135 // pred_check
          %p1049 = pneg %p437
        $region190: #{resnet_encoder_forward.1} parent=135 // pred_check_branch
          %1051 = sbr.rel (%p1049) target = $region192
        $region191: #{resnet_encoder_forward.1} parent=135 // pred_region
          %1052 = dma.done [#allocation23], 16
        $region192: #{resnet_encoder_forward.1} parent=135 // pred_fallthru
          _
        // Predicated region
        $region193: #{resnet_encoder_forward.1} parent=135 // pred_check
          %p1053 = pneg %p500
        $region194: #{resnet_encoder_forward.1} parent=135 // pred_check_branch
          %1055 = sbr.rel (%p1053) target = $region196
        $region195: #{resnet_encoder_forward.1} parent=135 // pred_region
          %1056 = dma.done [#allocation23], 3072
        $region196: #{resnet_encoder_forward.1} parent=135 // pred_fallthru
          _
        // Predicated region
        $region197: #{resnet_encoder_forward.1} parent=135 // pred_check
          %p1057 = pneg %p542
        $region198: #{resnet_encoder_forward.1} parent=135 // pred_check_branch
          %1059 = sbr.rel (%p1057) target = $region200
        $region199: #{resnet_encoder_forward.1} parent=135 // pred_region
          %1060 = dma.done [#allocation26], 3072
        $region200: #{resnet_encoder_forward.1} parent=135 // pred_fallthru
          _
        // Predicated region
        $region201: #{resnet_encoder_forward.1} parent=135 // pred_check
          %p1061 = pneg %p584
        $region202: #{resnet_encoder_forward.1} parent=135 // pred_check_branch
          %1063 = sbr.rel (%p1061) target = $region204
        $region203: #{resnet_encoder_forward.1} parent=135 // pred_region
          %1064 = dma.done [#allocation26], 2048
        $region204: #{resnet_encoder_forward.1} parent=135 // pred_fallthru
          _
        // Predicated region
        $region205: #{resnet_encoder_forward.1} parent=135 // pred_check
          %p1065 = pneg %p626
        $region206: #{resnet_encoder_forward.1} parent=135 // pred_check_branch
          %1067 = sbr.rel (%p1065) target = $region208
        $region207: #{resnet_encoder_forward.1} parent=135 // pred_region
          %1068 = dma.done [#allocation29], 2048
        $region208: #{resnet_encoder_forward.1} parent=135 // pred_fallthru
          _
        %p1069 = scmp.lt.s32.totalorder %s80, 1
        %s1070 = scalar_select %p1069, %s80, 1
        %s1071 = smul.addr %s1070, 2
        %s1072 = smul.addr %s1071, 8
        %s1073 = scalar_lea.vmem %s1, %s1072
        %p1074 = pneg %p101
        %p1075 = pneg %p98
        %p1076 = pneg %p122
        %p1077 = pneg %p119
        %p1078 = pneg %p143
        %p1079 = pneg %p140
        %p1080 = pneg %p164
        %p1081 = pneg %p161
        %p1082 = pneg %p185
        %p1083 = pneg %p182
        %p1084 = pneg %p206
        %p1085 = pneg %p203
        %p1086 = pneg %p227
        %p1087 = pneg %p224
        %p1088 = pneg %p248
        %p1089 = pneg %p245
        %p1090 = pneg %p269
        %p1091 = pneg %p266
        %p1092 = pneg %p290
        %p1093 = pneg %p287
        %p1094 = pneg %p311
        %p1095 = pneg %p308
        %p1096 = pneg %p332
        %p1097 = pneg %p329
        %p1098 = pneg %p353
        %p1099 = pneg %p350
        %p1100 = pneg %p374
        %p1101 = pneg %p371
        %p1102 = pneg %p395
        %p1103 = pneg %p392
        %p1104 = pneg %p416
        %p1105 = pneg %p413
        %p1106 = pneg %p437
        %p1107 = pneg %p434
        %p1108 = pneg %p458
        %p1109 = pneg %p455
        %p1110 = pneg %p479
        %p1111 = pneg %p476
        %p1112 = pneg %p500
        %p1113 = pneg %p497
        %p1114 = pneg %p521
        %p1115 = pneg %p518
        %p1116 = pneg %p542
        %p1117 = pneg %p539
        %p1118 = pneg %p563
        %p1119 = pneg %p560
        %p1120 = pneg %p584
        %p1121 = pneg %p581
        %p1122 = pneg %p605
        %p1123 = pneg %p602
        %p1124 = pneg %p626
        %p1125 = pneg %p623
        %p1126 = pneg %p647
        %p1127 = pneg %p644
        %p1128 = pneg %p668
        %p1129 = pneg %p665
        %p1130 = pneg %p689
        %p1131 = pneg %p686
        %p1132 = pneg %p715
        %p1133 = pneg %p712
        %p1134 = scmp.lt.s32.totalorder %s80, 1
        %s1135 = scalar_select %p1134, %s80, 1
        %s1136 = smul.addr %s1135, 4
        %s1137 = scalar_lea.vmem %s59, %s1136
        %p1138 = scmp.lt.s32.totalorder %s80, 1
        %s1139 = scalar_select %p1138, %s80, 1
        %s1140 = smul.addr %s1139, 2
        %s1141 = smul.addr %s1140, 8
        %s1142 = scalar_lea.vmem %s1, %s1141
        %p1143 = scmp.lt.s32.totalorder %s80, 1
        %s1144 = scalar_select %p1143, %s80, 1
        %s1145 = smul.addr %s1144, 4
        %s1146 = scalar_lea.vmem %s59, %s1145
        %v1148 = vld [vmem:[%s1142] sm:$0xff]
        %v1149 = vld [vmem:[%s1142 + $0x8] sm:$0xff]
        %v1150 = vpack.c.bf16 %v1149, %v1148
        %v1151 = vld [vmem:[#allocation2] sm:$0xf]
        %v1152 = vld [vmem:[#allocation2 + $0x4] sm:$0xf]
        %v1153 = vld [vmem:[#allocation2 + $0x8] sm:$0xf]
        %v1154 = vld [vmem:[#allocation2 + $0xc] sm:$0xf]
        %v1155 = vld [vmem:[#allocation2 + $0x10] sm:$0xf]
        %v1156 = vld [vmem:[#allocation2 + $0x14] sm:$0xf]
        %v1163 = vunpack.c.l.b16 %v1151
        %v1164 = vunpack.c.l.b16 %v1152
        %v1165 = vunpack.c.l.b16 %v1153
        %v1166 = vunpack.c.l.b16 %v1154
        %v1167 = vunpack.c.l.b16 %v1155
        %v1168 = vunpack.c.l.b16 %v1156
        %v1169 = vpack.c.b16 %v1164, %v1163
        %v1170 = vpack.c.b16 %v1166, %v1165
        %v1171 = vpack.c.b16 %v1168, %v1167
        %vm1175 = vcmask 392192
        %v1177 = vsel %vm1175, %v1150, 0
        %1179 = vmatprep.subr.bf16.mxu0 0
        %1180 = vmatpush1.bf16.msra.mxu0 %v1169
        %1181 = vmatprep.subr.bf16.mxu0 0
        %1182 = vmatpush1.bf16.msra.mxu0 %v1170
        %1183 = vmatprep.subr.bf16.mxu0 0
        %1184 = vmatpush1.bf16.msra.mxu0 %v1171
        %1185 = vmatprep.subr.bf16.mxu0 0
        %1186 = vmatpush1.bf16.msra.mxu0 0
        %1187 = vmatprep.subr.bf16.mxu0 0
        %1188 = vmatpush1.bf16.msra.mxu0 0
        %1189 = vmatprep.subr.bf16.mxu0 0
        %1190 = vmatpush1.bf16.msra.mxu0 0
        %1191 = vmatprep.subr.bf16.mxu0 0
        %1192 = vmatpush1.bf16.msra.mxu0 0
        %1193 = vmatprep.subr.bf16.mxu0 0
        %1194 = vmatpush1.bf16.msra.mxu0 0
        %1195 = vmatprep.subr.bf16.mxu0 0
        %1196 = vmatpush1.bf16.msra.mxu0 0
        %1197 = vmatprep.subr.bf16.mxu0 0
        %1198 = vmatpush1.bf16.msra.mxu0 0
        %1199 = vmatprep.subr.bf16.mxu0 0
        %1200 = vmatpush1.bf16.msra.mxu0 0
        %1201 = vmatprep.subr.bf16.mxu0 0
        %1202 = vmatpush1.bf16.msra.mxu0 0
        %1203 = vmatprep.subr.bf16.mxu0 0
        %1204 = vmatpush1.bf16.msra.mxu0 0
        %1205 = vmatprep.subr.bf16.mxu0 0
        %1206 = vmatpush1.bf16.msra.mxu0 0
        %1207 = vmatprep.subr.bf16.mxu0 0
        %1208 = vmatpush1.bf16.msra.mxu0 0
        %1209 = vmatprep.subr.bf16.mxu0 0
        %1210 = vmatpush1.bf16.msra.mxu0 0
        %1211 = vmatprep.mubr.bf16.mxu0 0
        %1212 = vmatmul.mubr.bf16.gmra.mrb[0].mxu0 %v1177
        %v1213 = vpop.f32.mrb[0].mxu0
        %v1214 = vadd.f32 0.0, %v1213
        %v1215 = vpop.f32.mrb[0].mxu0
        %v1216 = vpop.f32.mrb[0].mxu0
        %v1217 = vadd.f32 0.0, %v1216
        %v1218 = vpop.f32.mrb[0].mxu0
        %1219 = vdwg.mxu0
        %v1220 = vlaneseq
        %v1221 = vshrl.u32 %v1220, 7
        %v1222 = vadd.s32 %v1221, 8
        %v1223 = vlaneseq
        %v1224 = vand.u32 %v1223, 127
        %v1225 = vadd.s32 %v1221, 4294967295
        %v1226 = vadd.s32 %v1222, 4294967295
        %vm1227 = vcmp.eq.s32.totalorder %v1224, %v1225
        %vm1228 = vcmp.eq.s32.totalorder %v1224, %v1226
        %v1229 = vsel %vm1227, 1, 0
        %v1230 = vsel %vm1228, 1, 0
        %v1231 = vcvt.s32.f32 %v1229
        %v1232 = vcvt.s32.f32 %v1230
        %s1233 = scalar_lea.vmem [#allocation2], 24
        %v1234 = vld [vmem:[%s1233] sm:$0xf]
        %v1235 = vld [vmem:[%s1233 + $0x4] sm:$0xf]
        %v1236 = vld [vmem:[%s1233 + $0x8] sm:$0xf]
        %v1237 = vld [vmem:[%s1233 + $0xc] sm:$0xf]
        %v1238 = vld [vmem:[%s1233 + $0x10] sm:$0xf]
        %v1239 = vld [vmem:[%s1233 + $0x14] sm:$0xf]
        %v1246 = vunpack.c.l.b16 %v1234
        %v1247 = vunpack.c.l.b16 %v1235
        %v1248 = vunpack.c.l.b16 %v1236
        %v1249 = vunpack.c.l.b16 %v1237
        %v1250 = vunpack.c.l.b16 %v1238
        %v1251 = vunpack.c.l.b16 %v1239
        %v1252 = vpack.c.b16 %v1247, %v1246
        %v1253 = vpack.c.b16 %v1249, %v1248
        %v1254 = vpack.c.b16 %v1251, %v1250
        %1258 = vmatprep.subr.bf16.mxu0 0
        %1259 = vmatpush1.bf16.msra.mxu0 %v1252
        %1260 = vmatprep.subr.bf16.mxu0 0
        %1261 = vmatpush1.bf16.msra.mxu0 %v1253
        %1262 = vmatprep.subr.bf16.mxu0 0
        %1263 = vmatpush1.bf16.msra.mxu0 %v1254
        %1264 = vmatprep.subr.bf16.mxu0 0
        %1265 = vmatpush1.bf16.msra.mxu0 0
        %1266 = vmatprep.subr.bf16.mxu0 0
        %1267 = vmatpush1.bf16.msra.mxu0 0
        %1268 = vmatprep.subr.bf16.mxu0 0
        %1269 = vmatpush1.bf16.msra.mxu0 0
        %1270 = vmatprep.subr.bf16.mxu0 0
        %1271 = vmatpush1.bf16.msra.mxu0 0
        %1272 = vmatprep.subr.bf16.mxu0 0
        %1273 = vmatpush1.bf16.msra.mxu0 0
        %1274 = vmatprep.subr.bf16.mxu0 0
        %1275 = vmatpush1.bf16.msra.mxu0 0
        %1276 = vmatprep.subr.bf16.mxu0 0
        %1277 = vmatpush1.bf16.msra.mxu0 0
        %1278 = vmatprep.subr.bf16.mxu0 0
        %1279 = vmatpush1.bf16.msra.mxu0 0
        %1280 = vmatprep.subr.bf16.mxu0 0
        %1281 = vmatpush1.bf16.msra.mxu0 0
        %1282 = vmatprep.subr.bf16.mxu0 0
        %1283 = vmatpush1.bf16.msra.mxu0 0
        %1284 = vmatprep.subr.bf16.mxu0 0
        %1285 = vmatpush1.bf16.msra.mxu0 0
        %1286 = vmatprep.subr.bf16.mxu0 0
        %1287 = vmatpush1.bf16.msra.mxu0 0
        %1288 = vmatprep.subr.bf16.mxu0 0
        %1289 = vmatpush1.bf16.msra.mxu0 0
        %1290 = vmatprep.mubr.bf16.mxu0 0
        %1291 = vmatmul.mubr.bf16.gmra.mrb[0].mxu0 %v1177
        %v1292 = vpop.f32.mrb[0].mxu0
        %v1293 = vadd.f32 0.0, %v1292
        %v1294 = vpop.f32.mrb[0].mxu0
        %v1295 = vpop.f32.mrb[0].mxu0
        %v1296 = vadd.f32 0.0, %v1295
        %v1297 = vpop.f32.mrb[0].mxu0
        %1298 = vdwg.mxu0
        %vm1299 = vcmp.eq.s32.totalorder %v1224, %v1221
        %vm1300 = vcmp.eq.s32.totalorder %v1224, %v1222
        %v1301 = vsel %vm1299, 1, 0
        %v1302 = vsel %vm1300, 1, 0
        %v1303 = vcvt.s32.f32 %v1301
        %v1304 = vcvt.s32.f32 %v1302
        %vm1305 = vcmask 130048
        %v1307 = vsel %vm1305, %v1303, 0
        %v1310 = vsel %vm1305, %v1304, 0
        %1312 = vmatprep.subr.mxu0 0.0
        %1313 = vmatpush1.msra.mxu0 %v1293
        %1314 = vmatprep.subr.mxu0 0.0
        %1315 = vmatpush1.msra.mxu0 %v1296
        %1316 = vmatprep.subr.mxu0 0.0
        %1317 = vmatpush1.msra.mxu0 0.0
        %1318 = vmatprep.subr.mxu0 0.0
        %1319 = vmatpush1.msra.mxu0 0.0
        %1320 = vmatprep.subr.mxu0 0.0
        %1321 = vmatpush1.msra.mxu0 0.0
        %1322 = vmatprep.subr.mxu0 0.0
        %1323 = vmatpush1.msra.mxu0 0.0
        %1324 = vmatprep.subr.mxu0 0.0
        %1325 = vmatpush1.msra.mxu0 0.0
        %1326 = vmatprep.subr.mxu0 0.0
        %1327 = vmatpush1.msra.mxu0 0.0
        %1328 = vmatprep.subr.mxu0 0.0
        %1329 = vmatpush1.msra.mxu0 0.0
        %1330 = vmatprep.subr.mxu0 0.0
        %1331 = vmatpush1.msra.mxu0 0.0
        %1332 = vmatprep.subr.mxu0 0.0
        %1333 = vmatpush1.msra.mxu0 0.0
        %1334 = vmatprep.subr.mxu0 0.0
        %1335 = vmatpush1.msra.mxu0 0.0
        %1336 = vmatprep.subr.mxu0 0.0
        %1337 = vmatpush1.msra.mxu0 0.0
        %1338 = vmatprep.subr.mxu0 0.0
        %1339 = vmatpush1.msra.mxu0 0.0
        %1340 = vmatprep.subr.mxu0 0.0
        %1341 = vmatpush1.msra.mxu0 0.0
        %1342 = vmatprep.subr.mxu0 0.0
        %1343 = vmatpush1.msra.mxu0 0.0
        %1344 = vmatprep.subr.mxu0 0.0
        %1345 = vmatpush1.msra.mxu0 0.0
        %1346 = vmatprep.subr.mxu0 0.0
        %1347 = vmatpush1.msra.mxu0 0.0
        %1348 = vmatprep.subr.mxu0 0.0
        %1349 = vmatpush1.msra.mxu0 0.0
        %1350 = vmatprep.subr.mxu0 0.0
        %1351 = vmatpush1.msra.mxu0 0.0
        %1352 = vmatprep.subr.mxu0 0.0
        %1353 = vmatpush1.msra.mxu0 0.0
        %1354 = vmatprep.subr.mxu0 0.0
        %1355 = vmatpush1.msra.mxu0 0.0
        %1356 = vmatprep.subr.mxu0 0.0
        %1357 = vmatpush1.msra.mxu0 0.0
        %1358 = vmatprep.subr.mxu0 0.0
        %1359 = vmatpush1.msra.mxu0 0.0
        %1360 = vmatprep.subr.mxu0 0.0
        %1361 = vmatpush1.msra.mxu0 0.0
        %1362 = vmatprep.subr.mxu0 0.0
        %1363 = vmatpush1.msra.mxu0 0.0
        %1364 = vmatprep.subr.mxu0 0.0
        %1365 = vmatpush1.msra.mxu0 0.0
        %1366 = vmatprep.subr.mxu0 0.0
        %1367 = vmatpush1.msra.mxu0 0.0
        %1368 = vmatprep.subr.mxu0 0.0
        %1369 = vmatpush1.msra.mxu0 0.0
        %1370 = vmatprep.subr.mxu0 0.0
        %1371 = vmatpush1.msra.mxu0 0.0
        %1372 = vmatprep.subr.mxu0 0.0
        %1373 = vmatpush1.msra.mxu0 0.0
        %1374 = vmatprep.subr.mxu0 0.0
        %1375 = vmatpush1.msra.mxu0 0.0
        %1376 = vmatprep.mubr.f32.mxu0 0.0
        %1377 = vmatmul.mubr.f32.gmra.mrb[0].mxu0 %v1307
        %v1378 = vpop.f32.mrb[0].mxu0
        %v1379 = vadd.f32 0.0, %v1378
        %v1380 = vpop.f32.mrb[0].mxu0
        %1381 = vmatprep.mubr.f32.mxu0 0.0
        %1382 = vmatmul.mubr.f32.gmra.mrb[0].mxu0 %v1310
        %v1383 = vpop.f32.mrb[0].mxu0
        %v1384 = vadd.f32 0.0, %v1383
        %v1385 = vpop.f32.mrb[0].mxu0
        %1386 = vdwg.mxu0
        %v1388 = vsel %vm1305, %v1231, 0
        %v1391 = vsel %vm1305, %v1232, 0
        %1393 = vmatprep.subr.mxu0 0.0
        %1394 = vmatpush1.msra.mxu0 %v1214
        %1395 = vmatprep.subr.mxu0 0.0
        %1396 = vmatpush1.msra.mxu0 %v1217
        %1397 = vmatprep.subr.mxu0 0.0
        %1398 = vmatpush1.msra.mxu0 0.0
        %1399 = vmatprep.subr.mxu0 0.0
        %1400 = vmatpush1.msra.mxu0 0.0
        %1401 = vmatprep.subr.mxu0 0.0
        %1402 = vmatpush1.msra.mxu0 0.0
        %1403 = vmatprep.subr.mxu0 0.0
        %1404 = vmatpush1.msra.mxu0 0.0
        %1405 = vmatprep.subr.mxu0 0.0
        %1406 = vmatpush1.msra.mxu0 0.0
        %1407 = vmatprep.subr.mxu0 0.0
        %1408 = vmatpush1.msra.mxu0 0.0
        %1409 = vmatprep.subr.mxu0 0.0
        %1410 = vmatpush1.msra.mxu0 0.0
        %1411 = vmatprep.subr.mxu0 0.0
        %1412 = vmatpush1.msra.mxu0 0.0
        %1413 = vmatprep.subr.mxu0 0.0
        %1414 = vmatpush1.msra.mxu0 0.0
        %1415 = vmatprep.subr.mxu0 0.0
        %1416 = vmatpush1.msra.mxu0 0.0
        %1417 = vmatprep.subr.mxu0 0.0
        %1418 = vmatpush1.msra.mxu0 0.0
        %1419 = vmatprep.subr.mxu0 0.0
        %1420 = vmatpush1.msra.mxu0 0.0
        %1421 = vmatprep.subr.mxu0 0.0
        %1422 = vmatpush1.msra.mxu0 0.0
        %1423 = vmatprep.subr.mxu0 0.0
        %1424 = vmatpush1.msra.mxu0 0.0
        %1425 = vmatprep.subr.mxu0 0.0
        %1426 = vmatpush1.msra.mxu0 0.0
        %1427 = vmatprep.subr.mxu0 0.0
        %1428 = vmatpush1.msra.mxu0 0.0
        %1429 = vmatprep.subr.mxu0 0.0
        %1430 = vmatpush1.msra.mxu0 0.0
        %1431 = vmatprep.subr.mxu0 0.0
        %1432 = vmatpush1.msra.mxu0 0.0
        %1433 = vmatprep.subr.mxu0 0.0
        %1434 = vmatpush1.msra.mxu0 0.0
        %1435 = vmatprep.subr.mxu0 0.0
        %1436 = vmatpush1.msra.mxu0 0.0
        %1437 = vmatprep.subr.mxu0 0.0
        %1438 = vmatpush1.msra.mxu0 0.0
        %1439 = vmatprep.subr.mxu0 0.0
        %1440 = vmatpush1.msra.mxu0 0.0
        %1441 = vmatprep.subr.mxu0 0.0
        %1442 = vmatpush1.msra.mxu0 0.0
        %1443 = vmatprep.subr.mxu0 0.0
        %1444 = vmatpush1.msra.mxu0 0.0
        %1445 = vmatprep.subr.mxu0 0.0
        %1446 = vmatpush1.msra.mxu0 0.0
        %1447 = vmatprep.subr.mxu0 0.0
        %1448 = vmatpush1.msra.mxu0 0.0
        %1449 = vmatprep.subr.mxu0 0.0
        %1450 = vmatpush1.msra.mxu0 0.0
        %1451 = vmatprep.subr.mxu0 0.0
        %1452 = vmatpush1.msra.mxu0 0.0
        %1453 = vmatprep.subr.mxu0 0.0
        %1454 = vmatpush1.msra.mxu0 0.0
        %1455 = vmatprep.subr.mxu0 0.0
        %1456 = vmatpush1.msra.mxu0 0.0
        %1457 = vmatprep.mubr.f32.mxu0 0.0
        %1458 = vmatmul.mubr.f32.gmra.mrb[0].mxu0 %v1388
        %v1459 = vpop.f32.mrb[0].mxu0
        %v1460 = vadd.f32 %v1379, %v1459
        %v1461 = vpop.f32.mrb[0].mxu0
        %1462 = vmatprep.mubr.f32.mxu0 0.0
        %1463 = vmatmul.mubr.f32.gmra.mrb[0].mxu0 %v1391
        %v1464 = vpop.f32.mrb[0].mxu0
        %v1465 = vadd.f32 %v1384, %v1464
        %v1466 = vpop.f32.mrb[0].mxu0
        %1467 = vdwg.mxu0
        %s1468 = scalar_lea.vmem [#allocation2], 48
        %v1469 = vld [vmem:[%s1468] sm:$0xf]
        %v1470 = vld [vmem:[%s1468 + $0x4] sm:$0xf]
        %v1471 = vld [vmem:[%s1468 + $0x8] sm:$0xf]
        %v1472 = vld [vmem:[%s1468 + $0xc] sm:$0xf]
        %v1473 = vld [vmem:[%s1468 + $0x10] sm:$0xf]
        %v1474 = vld [vmem:[%s1468 + $0x14] sm:$0xf]
        %v1481 = vunpack.c.l.b16 %v1469
        %v1482 = vunpack.c.l.b16 %v1470
        %v1483 = vunpack.c.l.b16 %v1471
        %v1484 = vunpack.c.l.b16 %v1472
        %v1485 = vunpack.c.l.b16 %v1473
        %v1486 = vunpack.c.l.b16 %v1474
        %v1487 = vpack.c.b16 %v1482, %v1481
        %v1488 = vpack.c.b16 %v1484, %v1483
        %v1489 = vpack.c.b16 %v1486, %v1485
        %1493 = vmatprep.subr.bf16.mxu0 0
        %1494 = vmatpush1.bf16.msra.mxu0 %v1487
        %1495 = vmatprep.subr.bf16.mxu0 0
        %1496 = vmatpush1.bf16.msra.mxu0 %v1488
        %1497 = vmatprep.subr.bf16.mxu0 0
        %1498 = vmatpush1.bf16.msra.mxu0 %v1489
        %1499 = vmatprep.subr.bf16.mxu0 0
        %1500 = vmatpush1.bf16.msra.mxu0 0
        %1501 = vmatprep.subr.bf16.mxu0 0
        %1502 = vmatpush1.bf16.msra.mxu0 0
        %1503 = vmatprep.subr.bf16.mxu0 0
        %1504 = vmatpush1.bf16.msra.mxu0 0
        %1505 = vmatprep.subr.bf16.mxu0 0
        %1506 = vmatpush1.bf16.msra.mxu0 0
        %1507 = vmatprep.subr.bf16.mxu0 0
        %1508 = vmatpush1.bf16.msra.mxu0 0
        %1509 = vmatprep.subr.bf16.mxu0 0
        %1510 = vmatpush1.bf16.msra.mxu0 0
        %1511 = vmatprep.subr.bf16.mxu0 0
        %1512 = vmatpush1.bf16.msra.mxu0 0
        %1513 = vmatprep.subr.bf16.mxu0 0
        %1514 = vmatpush1.bf16.msra.mxu0 0
        %1515 = vmatprep.subr.bf16.mxu0 0
        %1516 = vmatpush1.bf16.msra.mxu0 0
        %1517 = vmatprep.subr.bf16.mxu0 0
        %1518 = vmatpush1.bf16.msra.mxu0 0
        %1519 = vmatprep.subr.bf16.mxu0 0
        %1520 = vmatpush1.bf16.msra.mxu0 0
        %1521 = vmatprep.subr.bf16.mxu0 0
        %1522 = vmatpush1.bf16.msra.mxu0 0
        %1523 = vmatprep.subr.bf16.mxu0 0
        %1524 = vmatpush1.bf16.msra.mxu0 0
        %1525 = vmatprep.mubr.bf16.mxu0 0
        %1526 = vmatmul.mubr.bf16.gmra.mrb[0].mxu0 %v1177
        %v1527 = vpop.f32.mrb[0].mxu0
        %v1528 = vadd.f32 0.0, %v1527
        %v1529 = vpop.f32.mrb[0].mxu0
        %v1530 = vpop.f32.mrb[0].mxu0
        %v1531 = vadd.f32 0.0, %v1530
        %v1532 = vpop.f32.mrb[0].mxu0
        %1533 = vdwg.mxu0
        %v1534 = vadd.s32 %v1221, 1
        %v1535 = vadd.s32 %v1222, 1
        %vm1536 = vcmp.eq.s32.totalorder %v1224, %v1534
        %vm1537 = vcmp.eq.s32.totalorder %v1224, %v1535
        %v1538 = vsel %vm1536, 1, 0
        %v1539 = vsel %vm1537, 1, 0
        %v1540 = vcvt.s32.f32 %v1538
        %v1541 = vcvt.s32.f32 %v1539
        %v1543 = vsel %vm1305, %v1540, 0
        %v1546 = vsel %vm1305, %v1541, 0
        %1548 = vmatprep.subr.mxu0 0.0
        %1549 = vmatpush1.msra.mxu0 %v1528
        %1550 = vmatprep.subr.mxu0 0.0
        %1551 = vmatpush1.msra.mxu0 %v1531
        %1552 = vmatprep.subr.mxu0 0.0
        %1553 = vmatpush1.msra.mxu0 0.0
        %1554 = vmatprep.subr.mxu0 0.0
        %1555 = vmatpush1.msra.mxu0 0.0
        %1556 = vmatprep.subr.mxu0 0.0
        %1557 = vmatpush1.msra.mxu0 0.0
        %1558 = vmatprep.subr.mxu0 0.0
        %1559 = vmatpush1.msra.mxu0 0.0
        %1560 = vmatprep.subr.mxu0 0.0
        %1561 = vmatpush1.msra.mxu0 0.0
        %1562 = vmatprep.subr.mxu0 0.0
        %1563 = vmatpush1.msra.mxu0 0.0
        %1564 = vmatprep.subr.mxu0 0.0
        %1565 = vmatpush1.msra.mxu0 0.0
        %1566 = vmatprep.subr.mxu0 0.0
        %1567 = vmatpush1.msra.mxu0 0.0
        %1568 = vmatprep.subr.mxu0 0.0
        %1569 = vmatpush1.msra.mxu0 0.0
        %1570 = vmatprep.subr.mxu0 0.0
        %1571 = vmatpush1.msra.mxu0 0.0
        %1572 = vmatprep.subr.mxu0 0.0
        %1573 = vmatpush1.msra.mxu0 0.0
        %1574 = vmatprep.subr.mxu0 0.0
        %1575 = vmatpush1.msra.mxu0 0.0
        %1576 = vmatprep.subr.mxu0 0.0
        %1577 = vmatpush1.msra.mxu0 0.0
        %1578 = vmatprep.subr.mxu0 0.0
        %1579 = vmatpush1.msra.mxu0 0.0
        %1580 = vmatprep.subr.mxu0 0.0
        %1581 = vmatpush1.msra.mxu0 0.0
        %1582 = vmatprep.subr.mxu0 0.0
        %1583 = vmatpush1.msra.mxu0 0.0
        %1584 = vmatprep.subr.mxu0 0.0
        %1585 = vmatpush1.msra.mxu0 0.0
        %1586 = vmatprep.subr.mxu0 0.0
        %1587 = vmatpush1.msra.mxu0 0.0
        %1588 = vmatprep.subr.mxu0 0.0
        %1589 = vmatpush1.msra.mxu0 0.0
        %1590 = vmatprep.subr.mxu0 0.0
        %1591 = vmatpush1.msra.mxu0 0.0
        %1592 = vmatprep.subr.mxu0 0.0
        %1593 = vmatpush1.msra.mxu0 0.0
        %1594 = vmatprep.subr.mxu0 0.0
        %1595 = vmatpush1.msra.mxu0 0.0
        %1596 = vmatprep.subr.mxu0 0.0
        %1597 = vmatpush1.msra.mxu0 0.0
        %1598 = vmatprep.subr.mxu0 0.0
        %1599 = vmatpush1.msra.mxu0 0.0
        %1600 = vmatprep.subr.mxu0 0.0
        %1601 = vmatpush1.msra.mxu0 0.0
        %1602 = vmatprep.subr.mxu0 0.0
        %1603 = vmatpush1.msra.mxu0 0.0
        %1604 = vmatprep.subr.mxu0 0.0
        %1605 = vmatpush1.msra.mxu0 0.0
        %1606 = vmatprep.subr.mxu0 0.0
        %1607 = vmatpush1.msra.mxu0 0.0
        %1608 = vmatprep.subr.mxu0 0.0
        %1609 = vmatpush1.msra.mxu0 0.0
        %1610 = vmatprep.subr.mxu0 0.0
        %1611 = vmatpush1.msra.mxu0 0.0
        %1612 = vmatprep.mubr.f32.mxu0 0.0
        %1613 = vmatmul.mubr.f32.gmra.mrb[0].mxu0 %v1543
        %v1614 = vpop.f32.mrb[0].mxu0
        %v1615 = vadd.f32 0.0, %v1614
        %v1616 = vpop.f32.mrb[0].mxu0
        %1617 = vmatprep.mubr.f32.mxu0 0.0
        %1618 = vmatmul.mubr.f32.gmra.mrb[0].mxu0 %v1546
        %v1619 = vpop.f32.mrb[0].mxu0
        %v1620 = vadd.f32 0.0, %v1619
        %v1621 = vpop.f32.mrb[0].mxu0
        %1622 = vdwg.mxu0
        %v1623 = vadd.f32 %v1460, %v1615
        %v1624 = vadd.f32 %v1465, %v1620
        %v1625 = vld [vmem:[#allocation4] sm:$0x1]
        %v1627 = vlaneseq
        %v1628 = vshrl.u32 %v1627, 7
        %v1629 = vsub.s32 0, %v1628
        %v1630 = vrot.slane %v1625, %v1629
        %v1632 = vadd.f32 %v1623, %v1630
        %v1633 = vadd.f32 %v1624, %v1630
        %vm1634 = vcmp.gt.f32.partialorder %v1632, 0.0
        %vm1635 = vcmp.gt.f32.partialorder %v1633, 0.0
        %v1636 = vmul.f32 %v1632, 0.2
        %v1637 = vmul.f32 %v1633, 0.2
        %v1638 = vsel %vm1634, %v1632, %v1636
        %v1639 = vsel %vm1635, %v1633, %v1637
        %v1640 = vpack.c.bf16 %v1639, %v1638
        %v1641 = vld [vmem:[%s7] sm:$0xf]
        %v1642 = vld [vmem:[%s7 + $0x4] sm:$0xf]
        %v1643 = vld [vmem:[%s7 + $0x8] sm:$0xf]
        %v1644 = vld [vmem:[%s7 + $0xc] sm:$0xf]
        %v1645 = vld [vmem:[%s7 + $0x10] sm:$0xf]
        %v1646 = vld [vmem:[%s7 + $0x14] sm:$0xf]
        %v1647 = vld [vmem:[%s7 + $0x18] sm:$0xf]
        %v1648 = vld [vmem:[%s7 + $0x1c] sm:$0xf]
        %v1649 = vld [vmem:[%s7 + $0x20] sm:$0xf]
        %v1650 = vld [vmem:[%s7 + $0x24] sm:$0xf]
        %v1651 = vld [vmem:[%s7 + $0x28] sm:$0xf]
        %v1652 = vld [vmem:[%s7 + $0x2c] sm:$0xf]
        %v1653 = vld [vmem:[%s7 + $0x30] sm:$0xf]
        %v1654 = vld [vmem:[%s7 + $0x34] sm:$0xf]
        %v1655 = vld [vmem:[%s7 + $0x38] sm:$0xf]
        %v1656 = vld [vmem:[%s7 + $0x3c] sm:$0xf]
        %v1673 = vunpack.c.l.b16 %v1641
        %v1674 = vunpack.c.l.b16 %v1642
        %v1675 = vunpack.c.l.b16 %v1643
        %v1676 = vunpack.c.l.b16 %v1644
        %v1677 = vunpack.c.l.b16 %v1645
        %v1678 = vunpack.c.l.b16 %v1646
        %v1679 = vunpack.c.l.b16 %v1647
        %v1680 = vunpack.c.l.b16 %v1648
        %v1681 = vunpack.c.l.b16 %v1649
        %v1682 = vunpack.c.l.b16 %v1650
        %v1683 = vunpack.c.l.b16 %v1651
        %v1684 = vunpack.c.l.b16 %v1652
        %v1685 = vunpack.c.l.b16 %v1653
        %v1686 = vunpack.c.l.b16 %v1654
        %v1687 = vunpack.c.l.b16 %v1655
        %v1688 = vunpack.c.l.b16 %v1656
        %v1689 = vpack.c.b16 %v1674, %v1673
        %v1690 = vpack.c.b16 %v1676, %v1675
        %v1691 = vpack.c.b16 %v1678, %v1677
        %v1692 = vpack.c.b16 %v1680, %v1679
        %v1693 = vpack.c.b16 %v1682, %v1681
        %v1694 = vpack.c.b16 %v1684, %v1683
        %v1695 = vpack.c.b16 %v1686, %v1685
        %v1696 = vpack.c.b16 %v1688, %v1687
        %1705 = vmatprep.subr.bf16.mxu0 0
        %1706 = vmatpush1.bf16.msra.mxu0 %v1689
        %1707 = vmatprep.subr.bf16.mxu0 0
        %1708 = vmatpush1.bf16.msra.mxu0 %v1690
        %1709 = vmatprep.subr.bf16.mxu0 0
        %1710 = vmatpush1.bf16.msra.mxu0 %v1691
        %1711 = vmatprep.subr.bf16.mxu0 0
        %1712 = vmatpush1.bf16.msra.mxu0 %v1692
        %1713 = vmatprep.subr.bf16.mxu0 0
        %1714 = vmatpush1.bf16.msra.mxu0 %v1693
        %1715 = vmatprep.subr.bf16.mxu0 0
        %1716 = vmatpush1.bf16.msra.mxu0 %v1694
        %1717 = vmatprep.subr.bf16.mxu0 0
        %1718 = vmatpush1.bf16.msra.mxu0 %v1695
        %1719 = vmatprep.subr.bf16.mxu0 0
        %1720 = vmatpush1.bf16.msra.mxu0 %v1696
        %1721 = vmatprep.subr.bf16.mxu0 0
        %1722 = vmatpush1.bf16.msra.mxu0 0
        %1723 = vmatprep.subr.bf16.mxu0 0
        %1724 = vmatpush1.bf16.msra.mxu0 0
        %1725 = vmatprep.subr.bf16.mxu0 0
        %1726 = vmatpush1.bf16.msra.mxu0 0
        %1727 = vmatprep.subr.bf16.mxu0 0
        %1728 = vmatpush1.bf16.msra.mxu0 0
        %1729 = vmatprep.subr.bf16.mxu0 0
        %1730 = vmatpush1.bf16.msra.mxu0 0
        %1731 = vmatprep.subr.bf16.mxu0 0
        %1732 = vmatpush1.bf16.msra.mxu0 0
        %1733 = vmatprep.subr.bf16.mxu0 0
        %1734 = vmatpush1.bf16.msra.mxu0 0
        %1735 = vmatprep.subr.bf16.mxu0 0
        %1736 = vmatpush1.bf16.msra.mxu0 0
        %1737 = vmatprep.mubr.bf16.mxu0 0
        %1738 = vmatmul.mubr.bf16.gmra.mrb[0].mxu0 %v1640
        %v1739 = vpop.f32.mrb[0].mxu0
        %v1740 = vadd.f32 0.0, %v1739
        %v1741 = vpop.f32.mrb[0].mxu0
        %v1742 = vpop.f32.mrb[0].mxu0
        %v1743 = vadd.f32 0.0, %v1742
        %v1744 = vpop.f32.mrb[0].mxu0
        %1745 = vdwg.mxu0
        %s1746 = scalar_lea.vmem %s7, 64
        %v1747 = vld [vmem:[%s1746] sm:$0xf]
        %v1748 = vld [vmem:[%s1746 + $0x4] sm:$0xf]
        %v1749 = vld [vmem:[%s1746 + $0x8] sm:$0xf]
        %v1750 = vld [vmem:[%s1746 + $0xc] sm:$0xf]
        %v1751 = vld [vmem:[%s1746 + $0x10] sm:$0xf]
        %v1752 = vld [vmem:[%s1746 + $0x14] sm:$0xf]
        %v1753 = vld [vmem:[%s1746 + $0x18] sm:$0xf]
        %v1754 = vld [vmem:[%s1746 + $0x1c] sm:$0xf]
        %v1755 = vld [vmem:[%s1746 + $0x20] sm:$0xf]
        %v1756 = vld [vmem:[%s1746 + $0x24] sm:$0xf]
        %v1757 = vld [vmem:[%s1746 + $0x28] sm:$0xf]
        %v1758 = vld [vmem:[%s1746 + $0x2c] sm:$0xf]
        %v1759 = vld [vmem:[%s1746 + $0x30] sm:$0xf]
        %v1760 = vld [vmem:[%s1746 + $0x34] sm:$0xf]
        %v1761 = vld [vmem:[%s1746 + $0x38] sm:$0xf]
        %v1762 = vld [vmem:[%s1746 + $0x3c] sm:$0xf]
        %v1779 = vunpack.c.l.b16 %v1747
        %v1780 = vunpack.c.l.b16 %v1748
        %v1781 = vunpack.c.l.b16 %v1749
        %v1782 = vunpack.c.l.b16 %v1750
        %v1783 = vunpack.c.l.b16 %v1751
        %v1784 = vunpack.c.l.b16 %v1752
        %v1785 = vunpack.c.l.b16 %v1753
        %v1786 = vunpack.c.l.b16 %v1754
        %v1787 = vunpack.c.l.b16 %v1755
        %v1788 = vunpack.c.l.b16 %v1756
        %v1789 = vunpack.c.l.b16 %v1757
        %v1790 = vunpack.c.l.b16 %v1758
        %v1791 = vunpack.c.l.b16 %v1759
        %v1792 = vunpack.c.l.b16 %v1760
        %v1793 = vunpack.c.l.b16 %v1761
        %v1794 = vunpack.c.l.b16 %v1762
        %v1795 = vpack.c.b16 %v1780, %v1779
        %v1796 = vpack.c.b16 %v1782, %v1781
        %v1797 = vpack.c.b16 %v1784, %v1783
        %v1798 = vpack.c.b16 %v1786, %v1785
        %v1799 = vpack.c.b16 %v1788, %v1787
        %v1800 = vpack.c.b16 %v1790, %v1789
        %v1801 = vpack.c.b16 %v1792, %v1791
        %v1802 = vpack.c.b16 %v1794, %v1793
        %1811 = vmatprep.subr.bf16.mxu0 0
        %1812 = vmatpush1.bf16.msra.mxu0 %v1795
        %1813 = vmatprep.subr.bf16.mxu0 0
        %1814 = vmatpush1.bf16.msra.mxu0 %v1796
        %1815 = vmatprep.subr.bf16.mxu0 0
        %1816 = vmatpush1.bf16.msra.mxu0 %v1797
        %1817 = vmatprep.subr.bf16.mxu0 0
        %1818 = vmatpush1.bf16.msra.mxu0 %v1798
        %1819 = vmatprep.subr.bf16.mxu0 0
        %1820 = vmatpush1.bf16.msra.mxu0 %v1799
        %1821 = vmatprep.subr.bf16.mxu0 0
        %1822 = vmatpush1.bf16.msra.mxu0 %v1800
        %1823 = vmatprep.subr.bf16.mxu0 0
        %1824 = vmatpush1.bf16.msra.mxu0 %v1801
        %1825 = vmatprep.subr.bf16.mxu0 0
        %1826 = vmatpush1.bf16.msra.mxu0 %v1802
        %1827 = vmatprep.subr.bf16.mxu0 0
        %1828 = vmatpush1.bf16.msra.mxu0 0
        %1829 = vmatprep.subr.bf16.mxu0 0
        %1830 = vmatpush1.bf16.msra.mxu0 0
        %1831 = vmatprep.subr.bf16.mxu0 0
        %1832 = vmatpush1.bf16.msra.mxu0 0
        %1833 = vmatprep.subr.bf16.mxu0 0
        %1834 = vmatpush1.bf16.msra.mxu0 0
        %1835 = vmatprep.subr.bf16.mxu0 0
        %1836 = vmatpush1.bf16.msra.mxu0 0
        %1837 = vmatprep.subr.bf16.mxu0 0
        %1838 = vmatpush1.bf16.msra.mxu0 0
        %1839 = vmatprep.subr.bf16.mxu0 0
        %1840 = vmatpush1.bf16.msra.mxu0 0
        %1841 = vmatprep.subr.bf16.mxu0 0
        %1842 = vmatpush1.bf16.msra.mxu0 0
        %1843 = vmatprep.mubr.bf16.mxu0 0
        %1844 = vmatmul.mubr.bf16.gmra.mrb[0].mxu0 %v1640
        %v1845 = vpop.f32.mrb[0].mxu0
        %v1846 = vadd.f32 0.0, %v1845
        %v1847 = vpop.f32.mrb[0].mxu0
        %v1848 = vpop.f32.mrb[0].mxu0
        %v1849 = vadd.f32 0.0, %v1848
        %v1850 = vpop.f32.mrb[0].mxu0
        %1851 = vdwg.mxu0
        %1852 = vmatprep.subr.mxu0 0.0
        %1853 = vmatpush1.msra.mxu0 %v1846
        %1854 = vmatprep.subr.mxu0 0.0
        %1855 = vmatpush1.msra.mxu0 %v1849
        %1856 = vmatprep.subr.mxu0 0.0
        %1857 = vmatpush1.msra.mxu0 0.0
        %1858 = vmatprep.subr.mxu0 0.0
        %1859 = vmatpush1.msra.mxu0 0.0
        %1860 = vmatprep.subr.mxu0 0.0
        %1861 = vmatpush1.msra.mxu0 0.0
        %1862 = vmatprep.subr.mxu0 0.0
        %1863 = vmatpush1.msra.mxu0 0.0
        %1864 = vmatprep.subr.mxu0 0.0
        %1865 = vmatpush1.msra.mxu0 0.0
        %1866 = vmatprep.subr.mxu0 0.0
        %1867 = vmatpush1.msra.mxu0 0.0
        %1868 = vmatprep.subr.mxu0 0.0
        %1869 = vmatpush1.msra.mxu0 0.0
        %1870 = vmatprep.subr.mxu0 0.0
        %1871 = vmatpush1.msra.mxu0 0.0
        %1872 = vmatprep.subr.mxu0 0.0
        %1873 = vmatpush1.msra.mxu0 0.0
        %1874 = vmatprep.subr.mxu0 0.0
        %1875 = vmatpush1.msra.mxu0 0.0
        %1876 = vmatprep.subr.mxu0 0.0
        %1877 = vmatpush1.msra.mxu0 0.0
        %1878 = vmatprep.subr.mxu0 0.0
        %1879 = vmatpush1.msra.mxu0 0.0
        %1880 = vmatprep.subr.mxu0 0.0
        %1881 = vmatpush1.msra.mxu0 0.0
        %1882 = vmatprep.subr.mxu0 0.0
        %1883 = vmatpush1.msra.mxu0 0.0
        %1884 = vmatprep.subr.mxu0 0.0
        %1885 = vmatpush1.msra.mxu0 0.0
        %1886 = vmatprep.subr.mxu0 0.0
        %1887 = vmatpush1.msra.mxu0 0.0
        %1888 = vmatprep.subr.mxu0 0.0
        %1889 = vmatpush1.msra.mxu0 0.0
        %1890 = vmatprep.subr.mxu0 0.0
        %1891 = vmatpush1.msra.mxu0 0.0
        %1892 = vmatprep.subr.mxu0 0.0
        %1893 = vmatpush1.msra.mxu0 0.0
        %1894 = vmatprep.subr.mxu0 0.0
        %1895 = vmatpush1.msra.mxu0 0.0
        %1896 = vmatprep.subr.mxu0 0.0
        %1897 = vmatpush1.msra.mxu0 0.0
        %1898 = vmatprep.subr.mxu0 0.0
        %1899 = vmatpush1.msra.mxu0 0.0
        %1900 = vmatprep.subr.mxu0 0.0
        %1901 = vmatpush1.msra.mxu0 0.0
        %1902 = vmatprep.subr.mxu0 0.0
        %1903 = vmatpush1.msra.mxu0 0.0
        %1904 = vmatprep.subr.mxu0 0.0
        %1905 = vmatpush1.msra.mxu0 0.0
        %1906 = vmatprep.subr.mxu0 0.0
        %1907 = vmatpush1.msra.mxu0 0.0
        %1908 = vmatprep.subr.mxu0 0.0
        %1909 = vmatpush1.msra.mxu0 0.0
        %1910 = vmatprep.subr.mxu0 0.0
        %1911 = vmatpush1.msra.mxu0 0.0
        %1912 = vmatprep.subr.mxu0 0.0
        %1913 = vmatpush1.msra.mxu0 0.0
        %1914 = vmatprep.subr.mxu0 0.0
        %1915 = vmatpush1.msra.mxu0 0.0
        %1916 = vmatprep.mubr.f32.mxu0 0.0
        %1917 = vmatmul.mubr.f32.gmra.mrb[0].mxu0 %v1307
        %v1918 = vpop.f32.mrb[0].mxu0
        %v1919 = vadd.f32 0.0, %v1918
        %v1920 = vpop.f32.mrb[0].mxu0
        %1921 = vmatprep.mubr.f32.mxu0 0.0
        %1922 = vmatmul.mubr.f32.gmra.mrb[0].mxu0 %v1310
        %v1923 = vpop.f32.mrb[0].mxu0
        %v1924 = vadd.f32 0.0, %v1923
        %v1925 = vpop.f32.mrb[0].mxu0
        %1926 = vdwg.mxu0
        %1927 = vmatprep.subr.mxu0 0.0
        %1928 = vmatpush1.msra.mxu0 %v1740
        %1929 = vmatprep.subr.mxu0 0.0
        %1930 = vmatpush1.msra.mxu0 %v1743
        %1931 = vmatprep.subr.mxu0 0.0
        %1932 = vmatpush1.msra.mxu0 0.0
        %1933 = vmatprep.subr.mxu0 0.0
        %1934 = vmatpush1.msra.mxu0 0.0
        %1935 = vmatprep.subr.mxu0 0.0
        %1936 = vmatpush1.msra.mxu0 0.0
        %1937 = vmatprep.subr.mxu0 0.0
        %1938 = vmatpush1.msra.mxu0 0.0
        %1939 = vmatprep.subr.mxu0 0.0
        %1940 = vmatpush1.msra.mxu0 0.0
        %1941 = vmatprep.subr.mxu0 0.0
        %1942 = vmatpush1.msra.mxu0 0.0
        %1943 = vmatprep.subr.mxu0 0.0
        %1944 = vmatpush1.msra.mxu0 0.0
        %1945 = vmatprep.subr.mxu0 0.0
        %1946 = vmatpush1.msra.mxu0 0.0
        %1947 = vmatprep.subr.mxu0 0.0
        %1948 = vmatpush1.msra.mxu0 0.0
        %1949 = vmatprep.subr.mxu0 0.0
        %1950 = vmatpush1.msra.mxu0 0.0
        %1951 = vmatprep.subr.mxu0 0.0
        %1952 = vmatpush1.msra.mxu0 0.0
        %1953 = vmatprep.subr.mxu0 0.0
        %1954 = vmatpush1.msra.mxu0 0.0
        %1955 = vmatprep.subr.mxu0 0.0
        %1956 = vmatpush1.msra.mxu0 0.0
        %1957 = vmatprep.subr.mxu0 0.0
        %1958 = vmatpush1.msra.mxu0 0.0
        %1959 = vmatprep.subr.mxu0 0.0
        %1960 = vmatpush1.msra.mxu0 0.0
        %1961 = vmatprep.subr.mxu0 0.0
        %1962 = vmatpush1.msra.mxu0 0.0
        %1963 = vmatprep.subr.mxu0 0.0
        %1964 = vmatpush1.msra.mxu0 0.0
        %1965 = vmatprep.subr.mxu0 0.0
        %1966 = vmatpush1.msra.mxu0 0.0
        %1967 = vmatprep.subr.mxu0 0.0
        %1968 = vmatpush1.msra.mxu0 0.0
        %1969 = vmatprep.subr.mxu0 0.0
        %1970 = vmatpush1.msra.mxu0 0.0
        %1971 = vmatprep.subr.mxu0 0.0
        %1972 = vmatpush1.msra.mxu0 0.0
        %1973 = vmatprep.subr.mxu0 0.0
        %1974 = vmatpush1.msra.mxu0 0.0
        %1975 = vmatprep.subr.mxu0 0.0
        %1976 = vmatpush1.msra.mxu0 0.0
        %1977 = vmatprep.subr.mxu0 0.0
        %1978 = vmatpush1.msra.mxu0 0.0
        %1979 = vmatprep.subr.mxu0 0.0
        %1980 = vmatpush1.msra.mxu0 0.0
        %1981 = vmatprep.subr.mxu0 0.0
        %1982 = vmatpush1.msra.mxu0 0.0
        %1983 = vmatprep.subr.mxu0 0.0
        %1984 = vmatpush1.msra.mxu0 0.0
        %1985 = vmatprep.subr.mxu0 0.0
        %1986 = vmatpush1.msra.mxu0 0.0
        %1987 = vmatprep.subr.mxu0 0.0
        %1988 = vmatpush1.msra.mxu0 0.0
        %1989 = vmatprep.subr.mxu0 0.0
        %1990 = vmatpush1.msra.mxu0 0.0
        %1991 = vmatprep.mubr.f32.mxu0 0.0
        %1992 = vmatmul.mubr.f32.gmra.mrb[0].mxu0 %v1388
        %v1993 = vpop.f32.mrb[0].mxu0
        %v1994 = vadd.f32 %v1919, %v1993
        %v1995 = vpop.f32.mrb[0].mxu0
        %1996 = vmatprep.mubr.f32.mxu0 0.0
        %1997 = vmatmul.mubr.f32.gmra.mrb[0].mxu0 %v1391
        %v1998 = vpop.f32.mrb[0].mxu0
        %v1999 = vadd.f32 %v1924, %v1998
        %v2000 = vpop.f32.mrb[0].mxu0
        %2001 = vdwg.mxu0
        %s2002 = scalar_lea.vmem %s7, 128
        %v2003 = vld [vmem:[%s2002] sm:$0xf]
        %v2004 = vld [vmem:[%s2002 + $0x4] sm:$0xf]
        %v2005 = vld [vmem:[%s2002 + $0x8] sm:$0xf]
        %v2006 = vld [vmem:[%s2002 + $0xc] sm:$0xf]
        %v2007 = vld [vmem:[%s2002 + $0x10] sm:$0xf]
        %v2008 = vld [vmem:[%s2002 + $0x14] sm:$0xf]
        %v2009 = vld [vmem:[%s2002 + $0x18] sm:$0xf]
        %v2010 = vld [vmem:[%s2002 + $0x1c] sm:$0xf]
        %v2011 = vld [vmem:[%s2002 + $0x20] sm:$0xf]
        %v2012 = vld [vmem:[%s2002 + $0x24] sm:$0xf]
        %v2013 = vld [vmem:[%s2002 + $0x28] sm:$0xf]
        %v2014 = vld [vmem:[%s2002 + $0x2c] sm:$0xf]
        %v2015 = vld [vmem:[%s2002 + $0x30] sm:$0xf]
        %v2016 = vld [vmem:[%s2002 + $0x34] sm:$0xf]
        %v2017 = vld [vmem:[%s2002 + $0x38] sm:$0xf]
        %v2018 = vld [vmem:[%s2002 + $0x3c] sm:$0xf]
        %v2035 = vunpack.c.l.b16 %v2003
        %v2036 = vunpack.c.l.b16 %v2004
        %v2037 = vunpack.c.l.b16 %v2005
        %v2038 = vunpack.c.l.b16 %v2006
        %v2039 = vunpack.c.l.b16 %v2007
        %v2040 = vunpack.c.l.b16 %v2008
        %v2041 = vunpack.c.l.b16 %v2009
        %v2042 = vunpack.c.l.b16 %v2010
        %v2043 = vunpack.c.l.b16 %v2011
        %v2044 = vunpack.c.l.b16 %v2012
        %v2045 = vunpack.c.l.b16 %v2013
        %v2046 = vunpack.c.l.b16 %v2014
        %v2047 = vunpack.c.l.b16 %v2015
        %v2048 = vunpack.c.l.b16 %v2016
        %v2049 = vunpack.c.l.b16 %v2017
        %v2050 = vunpack.c.l.b16 %v2018
        %v2051 = vpack.c.b16 %v2036, %v2035
        %v2052 = vpack.c.b16 %v2038, %v2037
        %v2053 = vpack.c.b16 %v2040, %v2039
        %v2054 = vpack.c.b16 %v2042, %v2041
        %v2055 = vpack.c.b16 %v2044, %v2043
        %v2056 = vpack.c.b16 %v2046, %v2045
        %v2057 = vpack.c.b16 %v2048, %v2047
        %v2058 = vpack.c.b16 %v2050, %v2049
        %2067 = vmatprep.subr.bf16.mxu0 0
        %2068 = vmatpush1.bf16.msra.mxu0 %v2051
        %2069 = vmatprep.subr.bf16.mxu0 0
        %2070 = vmatpush1.bf16.msra.mxu0 %v2052
        %2071 = vmatprep.subr.bf16.mxu0 0
        %2072 = vmatpush1.bf16.msra.mxu0 %v2053
        %2073 = vmatprep.subr.bf16.mxu0 0
        %2074 = vmatpush1.bf16.msra.mxu0 %v2054
        %2075 = vmatprep.subr.bf16.mxu0 0
        %2076 = vmatpush1.bf16.msra.mxu0 %v2055
        %2077 = vmatprep.subr.bf16.mxu0 0
        %2078 = vmatpush1.bf16.msra.mxu0 %v2056
        %2079 = vmatprep.subr.bf16.mxu0 0
        %2080 = vmatpush1.bf16.msra.mxu0 %v2057
        %2081 = vmatprep.subr.bf16.mxu0 0
        %2082 = vmatpush1.bf16.msra.mxu0 %v2058
        %2083 = vmatprep.subr.bf16.mxu0 0
        %2084 = vmatpush1.bf16.msra.mxu0 0
        %2085 = vmatprep.subr.bf16.mxu0 0
        %2086 = vmatpush1.bf16.msra.mxu0 0
        %2087 = vmatprep.subr.bf16.mxu0 0
        %2088 = vmatpush1.bf16.msra.mxu0 0
        %2089 = vmatprep.subr.bf16.mxu0 0
        %2090 = vmatpush1.bf16.msra.mxu0 0
        %2091 = vmatprep.subr.bf16.mxu0 0
        %2092 = vmatpush1.bf16.msra.mxu0 0
        %2093 = vmatprep.subr.bf16.mxu0 0
        %2094 = vmatpush1.bf16.msra.mxu0 0
        %2095 = vmatprep.subr.bf16.mxu0 0
        %2096 = vmatpush1.bf16.msra.mxu0 0
        %2097 = vmatprep.subr.bf16.mxu0 0
        %2098 = vmatpush1.bf16.msra.mxu0 0
        %2099 = vmatprep.mubr.bf16.mxu0 0
        %2100 = vmatmul.mubr.bf16.gmra.mrb[0].mxu0 %v1640
        %v2101 = vpop.f32.mrb[0].mxu0
        %v2102 = vadd.f32 0.0, %v2101
        %v2103 = vpop.f32.mrb[0].mxu0
        %v2104 = vpop.f32.mrb[0].mxu0
        %v2105 = vadd.f32 0.0, %v2104
        %v2106 = vpop.f32.mrb[0].mxu0
        %2107 = vdwg.mxu0
        %2108 = vmatprep.subr.mxu0 0.0
        %2109 = vmatpush1.msra.mxu0 %v2102
        %2110 = vmatprep.subr.mxu0 0.0
        %2111 = vmatpush1.msra.mxu0 %v2105
        %2112 = vmatprep.subr.mxu0 0.0
        %2113 = vmatpush1.msra.mxu0 0.0
        %2114 = vmatprep.subr.mxu0 0.0
        %2115 = vmatpush1.msra.mxu0 0.0
        %2116 = vmatprep.subr.mxu0 0.0
        %2117 = vmatpush1.msra.mxu0 0.0
        %2118 = vmatprep.subr.mxu0 0.0
        %2119 = vmatpush1.msra.mxu0 0.0
        %2120 = vmatprep.subr.mxu0 0.0
        %2121 = vmatpush1.msra.mxu0 0.0
        %2122 = vmatprep.subr.mxu0 0.0
        %2123 = vmatpush1.msra.mxu0 0.0
        %2124 = vmatprep.subr.mxu0 0.0
        %2125 = vmatpush1.msra.mxu0 0.0
        %2126 = vmatprep.subr.mxu0 0.0
        %2127 = vmatpush1.msra.mxu0 0.0
        %2128 = vmatprep.subr.mxu0 0.0
        %2129 = vmatpush1.msra.mxu0 0.0
        %2130 = vmatprep.subr.mxu0 0.0
        %2131 = vmatpush1.msra.mxu0 0.0
        %2132 = vmatprep.subr.mxu0 0.0
        %2133 = vmatpush1.msra.mxu0 0.0
        %2134 = vmatprep.subr.mxu0 0.0
        %2135 = vmatpush1.msra.mxu0 0.0
        %2136 = vmatprep.subr.mxu0 0.0
        %2137 = vmatpush1.msra.mxu0 0.0
        %2138 = vmatprep.subr.mxu0 0.0
        %2139 = vmatpush1.msra.mxu0 0.0
        %2140 = vmatprep.subr.mxu0 0.0
        %2141 = vmatpush1.msra.mxu0 0.0
        %2142 = vmatprep.subr.mxu0 0.0
        %2143 = vmatpush1.msra.mxu0 0.0
        %2144 = vmatprep.subr.mxu0 0.0
        %2145 = vmatpush1.msra.mxu0 0.0
        %2146 = vmatprep.subr.mxu0 0.0
        %2147 = vmatpush1.msra.mxu0 0.0
        %2148 = vmatprep.subr.mxu0 0.0
        %2149 = vmatpush1.msra.mxu0 0.0
        %2150 = vmatprep.subr.mxu0 0.0
        %2151 = vmatpush1.msra.mxu0 0.0
        %2152 = vmatprep.subr.mxu0 0.0
        %2153 = vmatpush1.msra.mxu0 0.0
        %2154 = vmatprep.subr.mxu0 0.0
        %2155 = vmatpush1.msra.mxu0 0.0
        %2156 = vmatprep.subr.mxu0 0.0
        %2157 = vmatpush1.msra.mxu0 0.0
        %2158 = vmatprep.subr.mxu0 0.0
        %2159 = vmatpush1.msra.mxu0 0.0
        %2160 = vmatprep.subr.mxu0 0.0
        %2161 = vmatpush1.msra.mxu0 0.0
        %2162 = vmatprep.subr.mxu0 0.0
        %2163 = vmatpush1.msra.mxu0 0.0
        %2164 = vmatprep.subr.mxu0 0.0
        %2165 = vmatpush1.msra.mxu0 0.0
        %2166 = vmatprep.subr.mxu0 0.0
        %2167 = vmatpush1.msra.mxu0 0.0
        %2168 = vmatprep.subr.mxu0 0.0
        %2169 = vmatpush1.msra.mxu0 0.0
        %2170 = vmatprep.subr.mxu0 0.0
        %2171 = vmatpush1.msra.mxu0 0.0
        %2172 = vmatprep.mubr.f32.mxu0 0.0
        %2173 = vmatmul.mubr.f32.gmra.mrb[0].mxu0 %v1543
        %v2174 = vpop.f32.mrb[0].mxu0
        %v2175 = vadd.f32 0.0, %v2174
        %v2176 = vpop.f32.mrb[0].mxu0
        %2177 = vmatprep.mubr.f32.mxu0 0.0
        %2178 = vmatmul.mubr.f32.gmra.mrb[0].mxu0 %v1546
        %v2179 = vpop.f32.mrb[0].mxu0
        %v2180 = vadd.f32 0.0, %v2179
        %v2181 = vpop.f32.mrb[0].mxu0
        %2182 = vdwg.mxu0
        %v2183 = vadd.f32 %v1994, %v2175
        %v2184 = vadd.f32 %v1999, %v2180
        %v2185 = vld [vmem:[#allocation6] sm:$0x1]
        %v2187 = vlaneseq
        %v2188 = vshrl.u32 %v2187, 7
        %v2189 = vsub.s32 0, %v2188
        %v2190 = vrot.slane %v2185, %v2189
        %v2192 = vadd.f32 %v2183, %v2190
        %v2193 = vadd.f32 %v2184, %v2190
        %vm2194 = vcmp.gt.f32.partialorder %v2192, 0.0
        %vm2195 = vcmp.gt.f32.partialorder %v2193, 0.0
        %v2196 = vmul.f32 %v2192, 0.2
        %v2197 = vmul.f32 %v2193, 0.2
        %v2198 = vsel %vm2194, %v2192, %v2196
        %v2199 = vsel %vm2195, %v2193, %v2197
        %v2200 = vpack.c.bf16 %v2199, %v2198
        %v2201 = vld [vmem:[#allocation7] sm:$0xf]
        %v2202 = vld [vmem:[#allocation7 + $0x4] sm:$0xf]
        %v2203 = vld [vmem:[#allocation7 + $0x8] sm:$0xf]
        %v2204 = vld [vmem:[#allocation7 + $0xc] sm:$0xf]
        %v2205 = vld [vmem:[#allocation7 + $0x10] sm:$0xf]
        %v2206 = vld [vmem:[#allocation7 + $0x14] sm:$0xf]
        %v2207 = vld [vmem:[#allocation7 + $0x18] sm:$0xf]
        %v2208 = vld [vmem:[#allocation7 + $0x1c] sm:$0xf]
        %v2209 = vld [vmem:[#allocation7 + $0x20] sm:$0xf]
        %v2210 = vld [vmem:[#allocation7 + $0x24] sm:$0xf]
        %v2211 = vld [vmem:[#allocation7 + $0x28] sm:$0xf]
        %v2212 = vld [vmem:[#allocation7 + $0x2c] sm:$0xf]
        %v2213 = vld [vmem:[#allocation7 + $0x30] sm:$0xf]
        %v2214 = vld [vmem:[#allocation7 + $0x34] sm:$0xf]
        %v2215 = vld [vmem:[#allocation7 + $0x38] sm:$0xf]
        %v2216 = vld [vmem:[#allocation7 + $0x3c] sm:$0xf]
        %v2233 = vunpack.c.l.b16 %v2201
        %v2234 = vunpack.c.l.b16 %v2202
        %v2235 = vunpack.c.l.b16 %v2203
        %v2236 = vunpack.c.l.b16 %v2204
        %v2237 = vunpack.c.l.b16 %v2205
        %v2238 = vunpack.c.l.b16 %v2206
        %v2239 = vunpack.c.l.b16 %v2207
        %v2240 = vunpack.c.l.b16 %v2208
        %v2241 = vunpack.c.l.b16 %v2209
        %v2242 = vunpack.c.l.b16 %v2210
        %v2243 = vunpack.c.l.b16 %v2211
        %v2244 = vunpack.c.l.b16 %v2212
        %v2245 = vunpack.c.l.b16 %v2213
        %v2246 = vunpack.c.l.b16 %v2214
        %v2247 = vunpack.c.l.b16 %v2215
        %v2248 = vunpack.c.l.b16 %v2216
        %v2249 = vpack.c.b16 %v2234, %v2233
        %v2250 = vpack.c.b16 %v2236, %v2235
        %v2251 = vpack.c.b16 %v2238, %v2237
        %v2252 = vpack.c.b16 %v2240, %v2239
        %v2253 = vpack.c.b16 %v2242, %v2241
        %v2254 = vpack.c.b16 %v2244, %v2243
        %v2255 = vpack.c.b16 %v2246, %v2245
        %v2256 = vpack.c.b16 %v2248, %v2247
        %2265 = vmatprep.subr.bf16.mxu0 0
        %2266 = vmatpush1.bf16.msra.mxu0 %v2249
        %2267 = vmatprep.subr.bf16.mxu0 0
        %2268 = vmatpush1.bf16.msra.mxu0 %v2250
        %2269 = vmatprep.subr.bf16.mxu0 0
        %2270 = vmatpush1.bf16.msra.mxu0 %v2251
        %2271 = vmatprep.subr.bf16.mxu0 0
        %2272 = vmatpush1.bf16.msra.mxu0 %v2252
        %2273 = vmatprep.subr.bf16.mxu0 0
        %2274 = vmatpush1.bf16.msra.mxu0 %v2253
        %2275 = vmatprep.subr.bf16.mxu0 0
        %2276 = vmatpush1.bf16.msra.mxu0 %v2254
        %2277 = vmatprep.subr.bf16.mxu0 0
        %2278 = vmatpush1.bf16.msra.mxu0 %v2255
        %2279 = vmatprep.subr.bf16.mxu0 0
        %2280 = vmatpush1.bf16.msra.mxu0 %v2256
        %2281 = vmatprep.subr.bf16.mxu0 0
        %2282 = vmatpush1.bf16.msra.mxu0 0
        %2283 = vmatprep.subr.bf16.mxu0 0
        %2284 = vmatpush1.bf16.msra.mxu0 0
        %2285 = vmatprep.subr.bf16.mxu0 0
        %2286 = vmatpush1.bf16.msra.mxu0 0
        %2287 = vmatprep.subr.bf16.mxu0 0
        %2288 = vmatpush1.bf16.msra.mxu0 0
        %2289 = vmatprep.subr.bf16.mxu0 0
        %2290 = vmatpush1.bf16.msra.mxu0 0
        %2291 = vmatprep.subr.bf16.mxu0 0
        %2292 = vmatpush1.bf16.msra.mxu0 0
        %2293 = vmatprep.subr.bf16.mxu0 0
        %2294 = vmatpush1.bf16.msra.mxu0 0
        %2295 = vmatprep.subr.bf16.mxu0 0
        %2296 = vmatpush1.bf16.msra.mxu0 0
        %2297 = vmatprep.mubr.bf16.mxu0 0
        %2298 = vmatmul.mubr.bf16.gmra.mrb[0].mxu0 %v2200
        %v2299 = vpop.f32.mrb[0].mxu0
        %v2300 = vadd.f32 0.0, %v2299
        %v2301 = vpop.f32.mrb[0].mxu0
        %v2302 = vpop.f32.mrb[0].mxu0
        %v2303 = vadd.f32 0.0, %v2302
        %v2304 = vpop.f32.mrb[0].mxu0
        %2305 = vdwg.mxu0
        %s2306 = scalar_lea.vmem [#allocation7], 64
        %v2307 = vld [vmem:[%s2306] sm:$0xf]
        %v2308 = vld [vmem:[%s2306 + $0x4] sm:$0xf]
        %v2309 = vld [vmem:[%s2306 + $0x8] sm:$0xf]
        %v2310 = vld [vmem:[%s2306 + $0xc] sm:$0xf]
        %v2311 = vld [vmem:[%s2306 + $0x10] sm:$0xf]
        %v2312 = vld [vmem:[%s2306 + $0x14] sm:$0xf]
        %v2313 = vld [vmem:[%s2306 + $0x18] sm:$0xf]
        %v2314 = vld [vmem:[%s2306 + $0x1c] sm:$0xf]
        %v2315 = vld [vmem:[%s2306 + $0x20] sm:$0xf]
        %v2316 = vld [vmem:[%s2306 + $0x24] sm:$0xf]
        %v2317 = vld [vmem:[%s2306 + $0x28] sm:$0xf]
        %v2318 = vld [vmem:[%s2306 + $0x2c] sm:$0xf]
        %v2319 = vld [vmem:[%s2306 + $0x30] sm:$0xf]
        %v2320 = vld [vmem:[%s2306 + $0x34] sm:$0xf]
        %v2321 = vld [vmem:[%s2306 + $0x38] sm:$0xf]
        %v2322 = vld [vmem:[%s2306 + $0x3c] sm:$0xf]
        %v2339 = vunpack.c.l.b16 %v2307
        %v2340 = vunpack.c.l.b16 %v2308
        %v2341 = vunpack.c.l.b16 %v2309
        %v2342 = vunpack.c.l.b16 %v2310
        %v2343 = vunpack.c.l.b16 %v2311
        %v2344 = vunpack.c.l.b16 %v2312
        %v2345 = vunpack.c.l.b16 %v2313
        %v2346 = vunpack.c.l.b16 %v2314
        %v2347 = vunpack.c.l.b16 %v2315
        %v2348 = vunpack.c.l.b16 %v2316
        %v2349 = vunpack.c.l.b16 %v2317
        %v2350 = vunpack.c.l.b16 %v2318
        %v2351 = vunpack.c.l.b16 %v2319
        %v2352 = vunpack.c.l.b16 %v2320
        %v2353 = vunpack.c.l.b16 %v2321
        %v2354 = vunpack.c.l.b16 %v2322
        %v2355 = vpack.c.b16 %v2340, %v2339
        %v2356 = vpack.c.b16 %v2342, %v2341
        %v2357 = vpack.c.b16 %v2344, %v2343
        %v2358 = vpack.c.b16 %v2346, %v2345
        %v2359 = vpack.c.b16 %v2348, %v2347
        %v2360 = vpack.c.b16 %v2350, %v2349
        %v2361 = vpack.c.b16 %v2352, %v2351
        %v2362 = vpack.c.b16 %v2354, %v2353
        %2371 = vmatprep.subr.bf16.mxu0 0
        %2372 = vmatpush1.bf16.msra.mxu0 %v2355
        %2373 = vmatprep.subr.bf16.mxu0 0
        %2374 = vmatpush1.bf16.msra.mxu0 %v2356
        %2375 = vmatprep.subr.bf16.mxu0 0
        %2376 = vmatpush1.bf16.msra.mxu0 %v2357
        %2377 = vmatprep.subr.bf16.mxu0 0
        %2378 = vmatpush1.bf16.msra.mxu0 %v2358
        %2379 = vmatprep.subr.bf16.mxu0 0
        %2380 = vmatpush1.bf16.msra.mxu0 %v2359
        %2381 = vmatprep.subr.bf16.mxu0 0
        %2382 = vmatpush1.bf16.msra.mxu0 %v2360
        %2383 = vmatprep.subr.bf16.mxu0 0
        %2384 = vmatpush1.bf16.msra.mxu0 %v2361
        %2385 = vmatprep.subr.bf16.mxu0 0
        %2386 = vmatpush1.bf16.msra.mxu0 %v2362
        %2387 = vmatprep.subr.bf16.mxu0 0
        %2388 = vmatpush1.bf16.msra.mxu0 0
        %2389 = vmatprep.subr.bf16.mxu0 0
        %2390 = vmatpush1.bf16.msra.mxu0 0
        %2391 = vmatprep.subr.bf16.mxu0 0
        %2392 = vmatpush1.bf16.msra.mxu0 0
        %2393 = vmatprep.subr.bf16.mxu0 0
        %2394 = vmatpush1.bf16.msra.mxu0 0
        %2395 = vmatprep.subr.bf16.mxu0 0
        %2396 = vmatpush1.bf16.msra.mxu0 0
        %2397 = vmatprep.subr.bf16.mxu0 0
        %2398 = vmatpush1.bf16.msra.mxu0 0
        %2399 = vmatprep.subr.bf16.mxu0 0
        %2400 = vmatpush1.bf16.msra.mxu0 0
        %2401 = vmatprep.subr.bf16.mxu0 0
        %2402 = vmatpush1.bf16.msra.mxu0 0
        %2403 = vmatprep.mubr.bf16.mxu0 0
        %2404 = vmatmul.mubr.bf16.gmra.mrb[0].mxu0 %v2200
        %v2405 = vpop.f32.mrb[0].mxu0
        %v2406 = vadd.f32 0.0, %v2405
        %v2407 = vpop.f32.mrb[0].mxu0
        %v2408 = vpop.f32.mrb[0].mxu0
        %v2409 = vadd.f32 0.0, %v2408
        %v2410 = vpop.f32.mrb[0].mxu0
        %2411 = vdwg.mxu0
        %2412 = vmatprep.subr.mxu0 0.0
        %2413 = vmatpush1.msra.mxu0 %v2406
        %2414 = vmatprep.subr.mxu0 0.0
        %2415 = vmatpush1.msra.mxu0 %v2409
        %2416 = vmatprep.subr.mxu0 0.0
        %2417 = vmatpush1.msra.mxu0 0.0
        %2418 = vmatprep.subr.mxu0 0.0
        %2419 = vmatpush1.msra.mxu0 0.0
        %2420 = vmatprep.subr.mxu0 0.0
        %2421 = vmatpush1.msra.mxu0 0.0
        %2422 = vmatprep.subr.mxu0 0.0
        %2423 = vmatpush1.msra.mxu0 0.0
        %2424 = vmatprep.subr.mxu0 0.0
        %2425 = vmatpush1.msra.mxu0 0.0
        %2426 = vmatprep.subr.mxu0 0.0
        %2427 = vmatpush1.msra.mxu0 0.0
        %2428 = vmatprep.subr.mxu0 0.0
        %2429 = vmatpush1.msra.mxu0 0.0
        %2430 = vmatprep.subr.mxu0 0.0
        %2431 = vmatpush1.msra.mxu0 0.0
        %2432 = vmatprep.subr.mxu0 0.0
        %2433 = vmatpush1.msra.mxu0 0.0
        %2434 = vmatprep.subr.mxu0 0.0
        %2435 = vmatpush1.msra.mxu0 0.0
        %2436 = vmatprep.subr.mxu0 0.0
        %2437 = vmatpush1.msra.mxu0 0.0
        %2438 = vmatprep.subr.mxu0 0.0
        %2439 = vmatpush1.msra.mxu0 0.0
        %2440 = vmatprep.subr.mxu0 0.0
        %2441 = vmatpush1.msra.mxu0 0.0
        %2442 = vmatprep.subr.mxu0 0.0
        %2443 = vmatpush1.msra.mxu0 0.0
        %2444 = vmatprep.subr.mxu0 0.0
        %2445 = vmatpush1.msra.mxu0 0.0
        %2446 = vmatprep.subr.mxu0 0.0
        %2447 = vmatpush1.msra.mxu0 0.0
        %2448 = vmatprep.subr.mxu0 0.0
        %2449 = vmatpush1.msra.mxu0 0.0
        %2450 = vmatprep.subr.mxu0 0.0
        %2451 = vmatpush1.msra.mxu0 0.0
        %2452 = vmatprep.subr.mxu0 0.0
        %2453 = vmatpush1.msra.mxu0 0.0
        %2454 = vmatprep.subr.mxu0 0.0
        %2455 = vmatpush1.msra.mxu0 0.0
        %2456 = vmatprep.subr.mxu0 0.0
        %2457 = vmatpush1.msra.mxu0 0.0
        %2458 = vmatprep.subr.mxu0 0.0
        %2459 = vmatpush1.msra.mxu0 0.0
        %2460 = vmatprep.subr.mxu0 0.0
        %2461 = vmatpush1.msra.mxu0 0.0
        %2462 = vmatprep.subr.mxu0 0.0
        %2463 = vmatpush1.msra.mxu0 0.0
        %2464 = vmatprep.subr.mxu0 0.0
        %2465 = vmatpush1.msra.mxu0 0.0
        %2466 = vmatprep.subr.mxu0 0.0
        %2467 = vmatpush1.msra.mxu0 0.0
        %2468 = vmatprep.subr.mxu0 0.0
        %2469 = vmatpush1.msra.mxu0 0.0
        %2470 = vmatprep.subr.mxu0 0.0
        %2471 = vmatpush1.msra.mxu0 0.0
        %2472 = vmatprep.subr.mxu0 0.0
        %2473 = vmatpush1.msra.mxu0 0.0
        %2474 = vmatprep.subr.mxu0 0.0
        %2475 = vmatpush1.msra.mxu0 0.0
        %2476 = vmatprep.mubr.f32.mxu0 0.0
        %2477 = vmatmul.mubr.f32.gmra.mrb[0].mxu0 %v1307
        %v2478 = vpop.f32.mrb[0].mxu0
        %v2479 = vadd.f32 0.0, %v2478
        %v2480 = vpop.f32.mrb[0].mxu0
        %2481 = vmatprep.mubr.f32.mxu0 0.0
        %2482 = vmatmul.mubr.f32.gmra.mrb[0].mxu0 %v1310
        %v2483 = vpop.f32.mrb[0].mxu0
        %v2484 = vadd.f32 0.0, %v2483
        %v2485 = vpop.f32.mrb[0].mxu0
        %2486 = vdwg.mxu0
        %2487 = vmatprep.subr.mxu0 0.0
        %2488 = vmatpush1.msra.mxu0 %v2300
        %2489 = vmatprep.subr.mxu0 0.0
        %2490 = vmatpush1.msra.mxu0 %v2303
        %2491 = vmatprep.subr.mxu0 0.0
        %2492 = vmatpush1.msra.mxu0 0.0
        %2493 = vmatprep.subr.mxu0 0.0
        %2494 = vmatpush1.msra.mxu0 0.0
        %2495 = vmatprep.subr.mxu0 0.0
        %2496 = vmatpush1.msra.mxu0 0.0
        %2497 = vmatprep.subr.mxu0 0.0
        %2498 = vmatpush1.msra.mxu0 0.0
        %2499 = vmatprep.subr.mxu0 0.0
        %2500 = vmatpush1.msra.mxu0 0.0
        %2501 = vmatprep.subr.mxu0 0.0
        %2502 = vmatpush1.msra.mxu0 0.0
        %2503 = vmatprep.subr.mxu0 0.0
        %2504 = vmatpush1.msra.mxu0 0.0
        %2505 = vmatprep.subr.mxu0 0.0
        %2506 = vmatpush1.msra.mxu0 0.0
        %2507 = vmatprep.subr.mxu0 0.0
        %2508 = vmatpush1.msra.mxu0 0.0
        %2509 = vmatprep.subr.mxu0 0.0
        %2510 = vmatpush1.msra.mxu0 0.0
        %2511 = vmatprep.subr.mxu0 0.0
        %2512 = vmatpush1.msra.mxu0 0.0
        %2513 = vmatprep.subr.mxu0 0.0
        %2514 = vmatpush1.msra.mxu0 0.0
        %2515 = vmatprep.subr.mxu0 0.0
        %2516 = vmatpush1.msra.mxu0 0.0
        %2517 = vmatprep.subr.mxu0 0.0
        %2518 = vmatpush1.msra.mxu0 0.0
        %2519 = vmatprep.subr.mxu0 0.0
        %2520 = vmatpush1.msra.mxu0 0.0
        %2521 = vmatprep.subr.mxu0 0.0
        %2522 = vmatpush1.msra.mxu0 0.0
        %2523 = vmatprep.subr.mxu0 0.0
        %2524 = vmatpush1.msra.mxu0 0.0
        %2525 = vmatprep.subr.mxu0 0.0
        %2526 = vmatpush1.msra.mxu0 0.0
        %2527 = vmatprep.subr.mxu0 0.0
        %2528 = vmatpush1.msra.mxu0 0.0
        %2529 = vmatprep.subr.mxu0 0.0
        %2530 = vmatpush1.msra.mxu0 0.0
        %2531 = vmatprep.subr.mxu0 0.0
        %2532 = vmatpush1.msra.mxu0 0.0
        %2533 = vmatprep.subr.mxu0 0.0
        %2534 = vmatpush1.msra.mxu0 0.0
        %2535 = vmatprep.subr.mxu0 0.0
        %2536 = vmatpush1.msra.mxu0 0.0
        %2537 = vmatprep.subr.mxu0 0.0
        %2538 = vmatpush1.msra.mxu0 0.0
        %2539 = vmatprep.subr.mxu0 0.0
        %2540 = vmatpush1.msra.mxu0 0.0
        %2541 = vmatprep.subr.mxu0 0.0
        %2542 = vmatpush1.msra.mxu0 0.0
        %2543 = vmatprep.subr.mxu0 0.0
        %2544 = vmatpush1.msra.mxu0 0.0
        %2545 = vmatprep.subr.mxu0 0.0
        %2546 = vmatpush1.msra.mxu0 0.0
        %2547 = vmatprep.subr.mxu0 0.0
        %2548 = vmatpush1.msra.mxu0 0.0
        %2549 = vmatprep.subr.mxu0 0.0
        %2550 = vmatpush1.msra.mxu0 0.0
        %2551 = vmatprep.mubr.f32.mxu0 0.0
        %2552 = vmatmul.mubr.f32.gmra.mrb[0].mxu0 %v1388
        %v2553 = vpop.f32.mrb[0].mxu0
        %v2554 = vadd.f32 %v2479, %v2553
        %v2555 = vpop.f32.mrb[0].mxu0
        %2556 = vmatprep.mubr.f32.mxu0 0.0
        %2557 = vmatmul.mubr.f32.gmra.mrb[0].mxu0 %v1391
        %v2558 = vpop.f32.mrb[0].mxu0
        %v2559 = vadd.f32 %v2484, %v2558
        %v2560 = vpop.f32.mrb[0].mxu0
        %2561 = vdwg.mxu0
        %s2562 = scalar_lea.vmem [#allocation7], 128
        %v2563 = vld [vmem:[%s2562] sm:$0xf]
        %v2564 = vld [vmem:[%s2562 + $0x4] sm:$0xf]
        %v2565 = vld [vmem:[%s2562 + $0x8] sm:$0xf]
        %v2566 = vld [vmem:[%s2562 + $0xc] sm:$0xf]
        %v2567 = vld [vmem:[%s2562 + $0x10] sm:$0xf]
        %v2568 = vld [vmem:[%s2562 + $0x14] sm:$0xf]
        %v2569 = vld [vmem:[%s2562 + $0x18] sm:$0xf]
        %v2570 = vld [vmem:[%s2562 + $0x1c] sm:$0xf]
        %v2571 = vld [vmem:[%s2562 + $0x20] sm:$0xf]
        %v2572 = vld [vmem:[%s2562 + $0x24] sm:$0xf]
        %v2573 = vld [vmem:[%s2562 + $0x28] sm:$0xf]
        %v2574 = vld [vmem:[%s2562 + $0x2c] sm:$0xf]
        %v2575 = vld [vmem:[%s2562 + $0x30] sm:$0xf]
        %v2576 = vld [vmem:[%s2562 + $0x34] sm:$0xf]
        %v2577 = vld [vmem:[%s2562 + $0x38] sm:$0xf]
        %v2578 = vld [vmem:[%s2562 + $0x3c] sm:$0xf]
        %v2595 = vunpack.c.l.b16 %v2563
        %v2596 = vunpack.c.l.b16 %v2564
        %v2597 = vunpack.c.l.b16 %v2565
        %v2598 = vunpack.c.l.b16 %v2566
        %v2599 = vunpack.c.l.b16 %v2567
        %v2600 = vunpack.c.l.b16 %v2568
        %v2601 = vunpack.c.l.b16 %v2569
        %v2602 = vunpack.c.l.b16 %v2570
        %v2603 = vunpack.c.l.b16 %v2571
        %v2604 = vunpack.c.l.b16 %v2572
        %v2605 = vunpack.c.l.b16 %v2573
        %v2606 = vunpack.c.l.b16 %v2574
        %v2607 = vunpack.c.l.b16 %v2575
        %v2608 = vunpack.c.l.b16 %v2576
        %v2609 = vunpack.c.l.b16 %v2577
        %v2610 = vunpack.c.l.b16 %v2578
        %v2611 = vpack.c.b16 %v2596, %v2595
        %v2612 = vpack.c.b16 %v2598, %v2597
        %v2613 = vpack.c.b16 %v2600, %v2599
        %v2614 = vpack.c.b16 %v2602, %v2601
        %v2615 = vpack.c.b16 %v2604, %v2603
        %v2616 = vpack.c.b16 %v2606, %v2605
        %v2617 = vpack.c.b16 %v2608, %v2607
        %v2618 = vpack.c.b16 %v2610, %v2609
        %2627 = vmatprep.subr.bf16.mxu0 0
        %2628 = vmatpush1.bf16.msra.mxu0 %v2611
        %2629 = vmatprep.subr.bf16.mxu0 0
        %2630 = vmatpush1.bf16.msra.mxu0 %v2612
        %2631 = vmatprep.subr.bf16.mxu0 0
        %2632 = vmatpush1.bf16.msra.mxu0 %v2613
        %2633 = vmatprep.subr.bf16.mxu0 0
        %2634 = vmatpush1.bf16.msra.mxu0 %v2614
        %2635 = vmatprep.subr.bf16.mxu0 0
        %2636 = vmatpush1.bf16.msra.mxu0 %v2615
        %2637 = vmatprep.subr.bf16.mxu0 0
        %2638 = vmatpush1.bf16.msra.mxu0 %v2616
        %2639 = vmatprep.subr.bf16.mxu0 0
        %2640 = vmatpush1.bf16.msra.mxu0 %v2617
        %2641 = vmatprep.subr.bf16.mxu0 0
        %2642 = vmatpush1.bf16.msra.mxu0 %v2618
        %2643 = vmatprep.subr.bf16.mxu0 0
        %2644 = vmatpush1.bf16.msra.mxu0 0
        %2645 = vmatprep.subr.bf16.mxu0 0
        %2646 = vmatpush1.bf16.msra.mxu0 0
        %2647 = vmatprep.subr.bf16.mxu0 0
        %2648 = vmatpush1.bf16.msra.mxu0 0
        %2649 = vmatprep.subr.bf16.mxu0 0
        %2650 = vmatpush1.bf16.msra.mxu0 0
        %2651 = vmatprep.subr.bf16.mxu0 0
        %2652 = vmatpush1.bf16.msra.mxu0 0
        %2653 = vmatprep.subr.bf16.mxu0 0
        %2654 = vmatpush1.bf16.msra.mxu0 0
        %2655 = vmatprep.subr.bf16.mxu0 0
        %2656 = vmatpush1.bf16.msra.mxu0 0
        %2657 = vmatprep.subr.bf16.mxu0 0
        %2658 = vmatpush1.bf16.msra.mxu0 0
        %2659 = vmatprep.mubr.bf16.mxu0 0
        %2660 = vmatmul.mubr.bf16.gmra.mrb[0].mxu0 %v2200
        %v2661 = vpop.f32.mrb[0].mxu0
        %v2662 = vadd.f32 0.0, %v2661
        %v2663 = vpop.f32.mrb[0].mxu0
        %v2664 = vpop.f32.mrb[0].mxu0
        %v2665 = vadd.f32 0.0, %v2664
        %v2666 = vpop.f32.mrb[0].mxu0
        %2667 = vdwg.mxu0
        %2668 = vmatprep.subr.mxu0 0.0
        %2669 = vmatpush1.msra.mxu0 %v2662
        %2670 = vmatprep.subr.mxu0 0.0
        %2671 = vmatpush1.msra.mxu0 %v2665
        %2672 = vmatprep.subr.mxu0 0.0
        %2673 = vmatpush1.msra.mxu0 0.0
        %2674 = vmatprep.subr.mxu0 0.0
        %2675 = vmatpush1.msra.mxu0 0.0
        %2676 = vmatprep.subr.mxu0 0.0
        %2677 = vmatpush1.msra.mxu0 0.0
        %2678 = vmatprep.subr.mxu0 0.0
        %2679 = vmatpush1.msra.mxu0 0.0
        %2680 = vmatprep.subr.mxu0 0.0
        %2681 = vmatpush1.msra.mxu0 0.0
        %2682 = vmatprep.subr.mxu0 0.0
        %2683 = vmatpush1.msra.mxu0 0.0
        %2684 = vmatprep.subr.mxu0 0.0
        %2685 = vmatpush1.msra.mxu0 0.0
        %2686 = vmatprep.subr.mxu0 0.0
        %2687 = vmatpush1.msra.mxu0 0.0
        %2688 = vmatprep.subr.mxu0 0.0
        %2689 = vmatpush1.msra.mxu0 0.0
        %2690 = vmatprep.subr.mxu0 0.0
        %2691 = vmatpush1.msra.mxu0 0.0
        %2692 = vmatprep.subr.mxu0 0.0
        %2693 = vmatpush1.msra.mxu0 0.0
        %2694 = vmatprep.subr.mxu0 0.0
        %2695 = vmatpush1.msra.mxu0 0.0
        %2696 = vmatprep.subr.mxu0 0.0
        %2697 = vmatpush1.msra.mxu0 0.0
        %2698 = vmatprep.subr.mxu0 0.0
        %2699 = vmatpush1.msra.mxu0 0.0
        %2700 = vmatprep.subr.mxu0 0.0
        %2701 = vmatpush1.msra.mxu0 0.0
        %2702 = vmatprep.subr.mxu0 0.0
        %2703 = vmatpush1.msra.mxu0 0.0
        %2704 = vmatprep.subr.mxu0 0.0
        %2705 = vmatpush1.msra.mxu0 0.0
        %2706 = vmatprep.subr.mxu0 0.0
        %2707 = vmatpush1.msra.mxu0 0.0
        %2708 = vmatprep.subr.mxu0 0.0
        %2709 = vmatpush1.msra.mxu0 0.0
        %2710 = vmatprep.subr.mxu0 0.0
        %2711 = vmatpush1.msra.mxu0 0.0
        %2712 = vmatprep.subr.mxu0 0.0
        %2713 = vmatpush1.msra.mxu0 0.0
        %2714 = vmatprep.subr.mxu0 0.0
        %2715 = vmatpush1.msra.mxu0 0.0
        %2716 = vmatprep.subr.mxu0 0.0
        %2717 = vmatpush1.msra.mxu0 0.0
        %2718 = vmatprep.subr.mxu0 0.0
        %2719 = vmatpush1.msra.mxu0 0.0
        %2720 = vmatprep.subr.mxu0 0.0
        %2721 = vmatpush1.msra.mxu0 0.0
        %2722 = vmatprep.subr.mxu0 0.0
        %2723 = vmatpush1.msra.mxu0 0.0
        %2724 = vmatprep.subr.mxu0 0.0
        %2725 = vmatpush1.msra.mxu0 0.0
        %2726 = vmatprep.subr.mxu0 0.0
        %2727 = vmatpush1.msra.mxu0 0.0
        %2728 = vmatprep.subr.mxu0 0.0
        %2729 = vmatpush1.msra.mxu0 0.0
        %2730 = vmatprep.subr.mxu0 0.0
        %2731 = vmatpush1.msra.mxu0 0.0
        %2732 = vmatprep.mubr.f32.mxu0 0.0
        %2733 = vmatmul.mubr.f32.gmra.mrb[0].mxu0 %v1543
        %v2734 = vpop.f32.mrb[0].mxu0
        %v2735 = vadd.f32 0.0, %v2734
        %v2736 = vpop.f32.mrb[0].mxu0
        %2737 = vmatprep.mubr.f32.mxu0 0.0
        %2738 = vmatmul.mubr.f32.gmra.mrb[0].mxu0 %v1546
        %v2739 = vpop.f32.mrb[0].mxu0
        %v2740 = vadd.f32 0.0, %v2739
        %v2741 = vpop.f32.mrb[0].mxu0
        %2742 = vdwg.mxu0
        %v2743 = vadd.f32 %v2554, %v2735
        %v2744 = vadd.f32 %v2559, %v2740
        %v2745 = vld [vmem:[#allocation9] sm:$0x1]
        %v2747 = vlaneseq
        %v2748 = vshrl.u32 %v2747, 7
        %v2749 = vsub.s32 0, %v2748
        %v2750 = vrot.slane %v2745, %v2749
        %v2752 = vadd.f32 %v2743, %v2750
        %v2753 = vadd.f32 %v2744, %v2750
        %vm2754 = vcmp.gt.f32.partialorder %v2752, 0.0
        %vm2755 = vcmp.gt.f32.partialorder %v2753, 0.0
        %v2756 = vmul.f32 %v2752, 0.2
        %v2757 = vmul.f32 %v2753, 0.2
        %v2758 = vsel %vm2754, %v2752, %v2756
        %v2759 = vsel %vm2755, %v2753, %v2757
        %v2760 = vadd.f32 %v1638, %v2758
        %v2761 = vadd.f32 %v1639, %v2759
        %v2762 = vpack.c.bf16 %v2761, %v2760
        %v2763 = vld [vmem:[#allocation10] sm:$0xf]
        %v2764 = vld [vmem:[#allocation10 + $0x4] sm:$0xf]
        %v2765 = vld [vmem:[#allocation10 + $0x8] sm:$0xf]
        %v2766 = vld [vmem:[#allocation10 + $0xc] sm:$0xf]
        %v2767 = vld [vmem:[#allocation10 + $0x10] sm:$0xf]
        %v2768 = vld [vmem:[#allocation10 + $0x14] sm:$0xf]
        %v2769 = vld [vmem:[#allocation10 + $0x18] sm:$0xf]
        %v2770 = vld [vmem:[#allocation10 + $0x1c] sm:$0xf]
        %v2771 = vld [vmem:[#allocation10 + $0x20] sm:$0xf]
        %v2772 = vld [vmem:[#allocation10 + $0x24] sm:$0xf]
        %v2773 = vld [vmem:[#allocation10 + $0x28] sm:$0xf]
        %v2774 = vld [vmem:[#allocation10 + $0x2c] sm:$0xf]
        %v2775 = vld [vmem:[#allocation10 + $0x30] sm:$0xf]
        %v2776 = vld [vmem:[#allocation10 + $0x34] sm:$0xf]
        %v2777 = vld [vmem:[#allocation10 + $0x38] sm:$0xf]
        %v2778 = vld [vmem:[#allocation10 + $0x3c] sm:$0xf]
        %v2795 = vunpack.c.l.b16 %v2763
        %v2796 = vunpack.c.l.b16 %v2764
        %v2797 = vunpack.c.l.b16 %v2765
        %v2798 = vunpack.c.l.b16 %v2766
        %v2799 = vunpack.c.l.b16 %v2767
        %v2800 = vunpack.c.l.b16 %v2768
        %v2801 = vunpack.c.l.b16 %v2769
        %v2802 = vunpack.c.l.b16 %v2770
        %v2803 = vunpack.c.l.b16 %v2771
        %v2804 = vunpack.c.l.b16 %v2772
        %v2805 = vunpack.c.l.b16 %v2773
        %v2806 = vunpack.c.l.b16 %v2774
        %v2807 = vunpack.c.l.b16 %v2775
        %v2808 = vunpack.c.l.b16 %v2776
        %v2809 = vunpack.c.l.b16 %v2777
        %v2810 = vunpack.c.l.b16 %v2778
        %v2811 = vpack.c.b16 %v2796, %v2795
        %v2812 = vpack.c.b16 %v2798, %v2797
        %v2813 = vpack.c.b16 %v2800, %v2799
        %v2814 = vpack.c.b16 %v2802, %v2801
        %v2815 = vpack.c.b16 %v2804, %v2803
        %v2816 = vpack.c.b16 %v2806, %v2805
        %v2817 = vpack.c.b16 %v2808, %v2807
        %v2818 = vpack.c.b16 %v2810, %v2809
        %2827 = vmatprep.subr.bf16.mxu0 0
        %2828 = vmatpush1.bf16.msra.mxu0 %v2811
        %2829 = vmatprep.subr.bf16.mxu0 0
        %2830 = vmatpush1.bf16.msra.mxu0 %v2812
        %2831 = vmatprep.subr.bf16.mxu0 0
        %2832 = vmatpush1.bf16.msra.mxu0 %v2813
        %2833 = vmatprep.subr.bf16.mxu0 0
        %2834 = vmatpush1.bf16.msra.mxu0 %v2814
        %2835 = vmatprep.subr.bf16.mxu0 0
        %2836 = vmatpush1.bf16.msra.mxu0 %v2815
        %2837 = vmatprep.subr.bf16.mxu0 0
        %2838 = vmatpush1.bf16.msra.mxu0 %v2816
        %2839 = vmatprep.subr.bf16.mxu0 0
        %2840 = vmatpush1.bf16.msra.mxu0 %v2817
        %2841 = vmatprep.subr.bf16.mxu0 0
        %2842 = vmatpush1.bf16.msra.mxu0 %v2818
        %2843 = vmatprep.subr.bf16.mxu0 0
        %2844 = vmatpush1.bf16.msra.mxu0 0
        %2845 = vmatprep.subr.bf16.mxu0 0
        %2846 = vmatpush1.bf16.msra.mxu0 0
        %2847 = vmatprep.subr.bf16.mxu0 0
        %2848 = vmatpush1.bf16.msra.mxu0 0
        %2849 = vmatprep.subr.bf16.mxu0 0
        %2850 = vmatpush1.bf16.msra.mxu0 0
        %2851 = vmatprep.subr.bf16.mxu0 0
        %2852 = vmatpush1.bf16.msra.mxu0 0
        %2853 = vmatprep.subr.bf16.mxu0 0
        %2854 = vmatpush1.bf16.msra.mxu0 0
        %2855 = vmatprep.subr.bf16.mxu0 0
        %2856 = vmatpush1.bf16.msra.mxu0 0
        %2857 = vmatprep.subr.bf16.mxu0 0
        %2858 = vmatpush1.bf16.msra.mxu0 0
        %2859 = vmatprep.mubr.bf16.mxu0 0
        %2860 = vmatmul.mubr.bf16.gmra.mrb[0].mxu0 %v2762
        %v2861 = vpop.f32.mrb[0].mxu0
        %v2862 = vadd.f32 0.0, %v2861
        %v2863 = vpop.f32.mrb[0].mxu0
        %v2864 = vpop.f32.mrb[0].mxu0
        %v2865 = vadd.f32 0.0, %v2864
        %v2866 = vpop.f32.mrb[0].mxu0
        %2867 = vdwg.mxu0
        %s2868 = scalar_lea.vmem [#allocation10], 64
        %v2869 = vld [vmem:[%s2868] sm:$0xf]
        %v2870 = vld [vmem:[%s2868 + $0x4] sm:$0xf]
        %v2871 = vld [vmem:[%s2868 + $0x8] sm:$0xf]
        %v2872 = vld [vmem:[%s2868 + $0xc] sm:$0xf]
        %v2873 = vld [vmem:[%s2868 + $0x10] sm:$0xf]
        %v2874 = vld [vmem:[%s2868 + $0x14] sm:$0xf]
        %v2875 = vld [vmem:[%s2868 + $0x18] sm:$0xf]
        %v2876 = vld [vmem:[%s2868 + $0x1c] sm:$0xf]
        %v2877 = vld [vmem:[%s2868 + $0x20] sm:$0xf]
        %v2878 = vld [vmem:[%s2868 + $0x24] sm:$0xf]
        %v2879 = vld [vmem:[%s2868 + $0x28] sm:$0xf]
        %v2880 = vld [vmem:[%s2868 + $0x2c] sm:$0xf]
        %v2881 = vld [vmem:[%s2868 + $0x30] sm:$0xf]
        %v2882 = vld [vmem:[%s2868 + $0x34] sm:$0xf]
        %v2883 = vld [vmem:[%s2868 + $0x38] sm:$0xf]
        %v2884 = vld [vmem:[%s2868 + $0x3c] sm:$0xf]
        %v2901 = vunpack.c.l.b16 %v2869
        %v2902 = vunpack.c.l.b16 %v2870
        %v2903 = vunpack.c.l.b16 %v2871
        %v2904 = vunpack.c.l.b16 %v2872
        %v2905 = vunpack.c.l.b16 %v2873
        %v2906 = vunpack.c.l.b16 %v2874
        %v2907 = vunpack.c.l.b16 %v2875
        %v2908 = vunpack.c.l.b16 %v2876
        %v2909 = vunpack.c.l.b16 %v2877
        %v2910 = vunpack.c.l.b16 %v2878
        %v2911 = vunpack.c.l.b16 %v2879
        %v2912 = vunpack.c.l.b16 %v2880
        %v2913 = vunpack.c.l.b16 %v2881
        %v2914 = vunpack.c.l.b16 %v2882
        %v2915 = vunpack.c.l.b16 %v2883
        %v2916 = vunpack.c.l.b16 %v2884
        %v2917 = vpack.c.b16 %v2902, %v2901
        %v2918 = vpack.c.b16 %v2904, %v2903
        %v2919 = vpack.c.b16 %v2906, %v2905
        %v2920 = vpack.c.b16 %v2908, %v2907
        %v2921 = vpack.c.b16 %v2910, %v2909
        %v2922 = vpack.c.b16 %v2912, %v2911
        %v2923 = vpack.c.b16 %v2914, %v2913
        %v2924 = vpack.c.b16 %v2916, %v2915
        %2933 = vmatprep.subr.bf16.mxu0 0
        %2934 = vmatpush1.bf16.msra.mxu0 %v2917
        %2935 = vmatprep.subr.bf16.mxu0 0
        %2936 = vmatpush1.bf16.msra.mxu0 %v2918
        %2937 = vmatprep.subr.bf16.mxu0 0
        %2938 = vmatpush1.bf16.msra.mxu0 %v2919
        %2939 = vmatprep.subr.bf16.mxu0 0
        %2940 = vmatpush1.bf16.msra.mxu0 %v2920
        %2941 = vmatprep.subr.bf16.mxu0 0
        %2942 = vmatpush1.bf16.msra.mxu0 %v2921
        %2943 = vmatprep.subr.bf16.mxu0 0
        %2944 = vmatpush1.bf16.msra.mxu0 %v2922
        %2945 = vmatprep.subr.bf16.mxu0 0
        %2946 = vmatpush1.bf16.msra.mxu0 %v2923
        %2947 = vmatprep.subr.bf16.mxu0 0
        %2948 = vmatpush1.bf16.msra.mxu0 %v2924
        %2949 = vmatprep.subr.bf16.mxu0 0
        %2950 = vmatpush1.bf16.msra.mxu0 0
        %2951 = vmatprep.subr.bf16.mxu0 0
        %2952 = vmatpush1.bf16.msra.mxu0 0
        %2953 = vmatprep.subr.bf16.mxu0 0
        %2954 = vmatpush1.bf16.msra.mxu0 0
        %2955 = vmatprep.subr.bf16.mxu0 0
        %2956 = vmatpush1.bf16.msra.mxu0 0
        %2957 = vmatprep.subr.bf16.mxu0 0
        %2958 = vmatpush1.bf16.msra.mxu0 0
        %2959 = vmatprep.subr.bf16.mxu0 0
        %2960 = vmatpush1.bf16.msra.mxu0 0
        %2961 = vmatprep.subr.bf16.mxu0 0
        %2962 = vmatpush1.bf16.msra.mxu0 0
        %2963 = vmatprep.subr.bf16.mxu0 0
        %2964 = vmatpush1.bf16.msra.mxu0 0
        %2965 = vmatprep.mubr.bf16.mxu0 0
        %2966 = vmatmul.mubr.bf16.gmra.mrb[0].mxu0 %v2762
        %v2967 = vpop.f32.mrb[0].mxu0
        %v2968 = vadd.f32 0.0, %v2967
        %v2969 = vpop.f32.mrb[0].mxu0
        %v2970 = vpop.f32.mrb[0].mxu0
        %v2971 = vadd.f32 0.0, %v2970
        %v2972 = vpop.f32.mrb[0].mxu0
        %2973 = vdwg.mxu0
        %2974 = vmatprep.subr.mxu0 0.0
        %2975 = vmatpush1.msra.mxu0 %v2968
        %2976 = vmatprep.subr.mxu0 0.0
        %2977 = vmatpush1.msra.mxu0 %v2971
        %2978 = vmatprep.subr.mxu0 0.0
        %2979 = vmatpush1.msra.mxu0 0.0
        %2980 = vmatprep.subr.mxu0 0.0
        %2981 = vmatpush1.msra.mxu0 0.0
        %2982 = vmatprep.subr.mxu0 0.0
        %2983 = vmatpush1.msra.mxu0 0.0
        %2984 = vmatprep.subr.mxu0 0.0
        %2985 = vmatpush1.msra.mxu0 0.0
        %2986 = vmatprep.subr.mxu0 0.0
        %2987 = vmatpush1.msra.mxu0 0.0
        %2988 = vmatprep.subr.mxu0 0.0
        %2989 = vmatpush1.msra.mxu0 0.0
        %2990 = vmatprep.subr.mxu0 0.0
        %2991 = vmatpush1.msra.mxu0 0.0
        %2992 = vmatprep.subr.mxu0 0.0
        %2993 = vmatpush1.msra.mxu0 0.0
        %2994 = vmatprep.subr.mxu0 0.0
        %2995 = vmatpush1.msra.mxu0 0.0
        %2996 = vmatprep.subr.mxu0 0.0
        %2997 = vmatpush1.msra.mxu0 0.0
        %2998 = vmatprep.subr.mxu0 0.0
        %2999 = vmatpush1.msra.mxu0 0.0
        %3000 = vmatprep.subr.mxu0 0.0
        %3001 = vmatpush1.msra.mxu0 0.0
        %3002 = vmatprep.subr.mxu0 0.0
        %3003 = vmatpush1.msra.mxu0 0.0
        %3004 = vmatprep.subr.mxu0 0.0
        %3005 = vmatpush1.msra.mxu0 0.0
        %3006 = vmatprep.subr.mxu0 0.0
        %3007 = vmatpush1.msra.mxu0 0.0
        %3008 = vmatprep.subr.mxu0 0.0
        %3009 = vmatpush1.msra.mxu0 0.0
        %3010 = vmatprep.subr.mxu0 0.0
        %3011 = vmatpush1.msra.mxu0 0.0
        %3012 = vmatprep.subr.mxu0 0.0
        %3013 = vmatpush1.msra.mxu0 0.0
        %3014 = vmatprep.subr.mxu0 0.0
        %3015 = vmatpush1.msra.mxu0 0.0
        %3016 = vmatprep.subr.mxu0 0.0
        %3017 = vmatpush1.msra.mxu0 0.0
        %3018 = vmatprep.subr.mxu0 0.0
        %3019 = vmatpush1.msra.mxu0 0.0
        %3020 = vmatprep.subr.mxu0 0.0
        %3021 = vmatpush1.msra.mxu0 0.0
        %3022 = vmatprep.subr.mxu0 0.0
        %3023 = vmatpush1.msra.mxu0 0.0
        %3024 = vmatprep.subr.mxu0 0.0
        %3025 = vmatpush1.msra.mxu0 0.0
        %3026 = vmatprep.subr.mxu0 0.0
        %3027 = vmatpush1.msra.mxu0 0.0
        %3028 = vmatprep.subr.mxu0 0.0
        %3029 = vmatpush1.msra.mxu0 0.0
        %3030 = vmatprep.subr.mxu0 0.0
        %3031 = vmatpush1.msra.mxu0 0.0
        %3032 = vmatprep.subr.mxu0 0.0
        %3033 = vmatpush1.msra.mxu0 0.0
        %3034 = vmatprep.subr.mxu0 0.0
        %3035 = vmatpush1.msra.mxu0 0.0
        %3036 = vmatprep.subr.mxu0 0.0
        %3037 = vmatpush1.msra.mxu0 0.0
        %3038 = vmatprep.mubr.f32.mxu0 0.0
        %3039 = vmatmul.mubr.f32.gmra.mrb[0].mxu0 %v1307
        %v3040 = vpop.f32.mrb[0].mxu0
        %v3041 = vadd.f32 0.0, %v3040
        %v3042 = vpop.f32.mrb[0].mxu0
        %3043 = vmatprep.mubr.f32.mxu0 0.0
        %3044 = vmatmul.mubr.f32.gmra.mrb[0].mxu0 %v1310
        %v3045 = vpop.f32.mrb[0].mxu0
        %v3046 = vadd.f32 0.0, %v3045
        %v3047 = vpop.f32.mrb[0].mxu0
        %3048 = vdwg.mxu0
        %3049 = vmatprep.subr.mxu0 0.0
        %3050 = vmatpush1.msra.mxu0 %v2862
        %3051 = vmatprep.subr.mxu0 0.0
        %3052 = vmatpush1.msra.mxu0 %v2865
        %3053 = vmatprep.subr.mxu0 0.0
        %3054 = vmatpush1.msra.mxu0 0.0
        %3055 = vmatprep.subr.mxu0 0.0
        %3056 = vmatpush1.msra.mxu0 0.0
        %3057 = vmatprep.subr.mxu0 0.0
        %3058 = vmatpush1.msra.mxu0 0.0
        %3059 = vmatprep.subr.mxu0 0.0
        %3060 = vmatpush1.msra.mxu0 0.0
        %3061 = vmatprep.subr.mxu0 0.0
        %3062 = vmatpush1.msra.mxu0 0.0
        %3063 = vmatprep.subr.mxu0 0.0
        %3064 = vmatpush1.msra.mxu0 0.0
        %3065 = vmatprep.subr.mxu0 0.0
        %3066 = vmatpush1.msra.mxu0 0.0
        %3067 = vmatprep.subr.mxu0 0.0
        %3068 = vmatpush1.msra.mxu0 0.0
        %3069 = vmatprep.subr.mxu0 0.0
        %3070 = vmatpush1.msra.mxu0 0.0
        %3071 = vmatprep.subr.mxu0 0.0
        %3072 = vmatpush1.msra.mxu0 0.0
        %3073 = vmatprep.subr.mxu0 0.0
        %3074 = vmatpush1.msra.mxu0 0.0
        %3075 = vmatprep.subr.mxu0 0.0
        %3076 = vmatpush1.msra.mxu0 0.0
        %3077 = vmatprep.subr.mxu0 0.0
        %3078 = vmatpush1.msra.mxu0 0.0
        %3079 = vmatprep.subr.mxu0 0.0
        %3080 = vmatpush1.msra.mxu0 0.0
        %3081 = vmatprep.subr.mxu0 0.0
        %3082 = vmatpush1.msra.mxu0 0.0
        %3083 = vmatprep.subr.mxu0 0.0
        %3084 = vmatpush1.msra.mxu0 0.0
        %3085 = vmatprep.subr.mxu0 0.0
        %3086 = vmatpush1.msra.mxu0 0.0
        %3087 = vmatprep.subr.mxu0 0.0
        %3088 = vmatpush1.msra.mxu0 0.0
        %3089 = vmatprep.subr.mxu0 0.0
        %3090 = vmatpush1.msra.mxu0 0.0
        %3091 = vmatprep.subr.mxu0 0.0
        %3092 = vmatpush1.msra.mxu0 0.0
        %3093 = vmatprep.subr.mxu0 0.0
        %3094 = vmatpush1.msra.mxu0 0.0
        %3095 = vmatprep.subr.mxu0 0.0
        %3096 = vmatpush1.msra.mxu0 0.0
        %3097 = vmatprep.subr.mxu0 0.0
        %3098 = vmatpush1.msra.mxu0 0.0
        %3099 = vmatprep.subr.mxu0 0.0
        %3100 = vmatpush1.msra.mxu0 0.0
        %3101 = vmatprep.subr.mxu0 0.0
        %3102 = vmatpush1.msra.mxu0 0.0
        %3103 = vmatprep.subr.mxu0 0.0
        %3104 = vmatpush1.msra.mxu0 0.0
        %3105 = vmatprep.subr.mxu0 0.0
        %3106 = vmatpush1.msra.mxu0 0.0
        %3107 = vmatprep.subr.mxu0 0.0
        %3108 = vmatpush1.msra.mxu0 0.0
        %3109 = vmatprep.subr.mxu0 0.0
        %3110 = vmatpush1.msra.mxu0 0.0
        %3111 = vmatprep.subr.mxu0 0.0
        %3112 = vmatpush1.msra.mxu0 0.0
        %3113 = vmatprep.mubr.f32.mxu0 0.0
        %3114 = vmatmul.mubr.f32.gmra.mrb[0].mxu0 %v1388
        %v3115 = vpop.f32.mrb[0].mxu0
        %v3116 = vadd.f32 %v3041, %v3115
        %v3117 = vpop.f32.mrb[0].mxu0
        %3118 = vmatprep.mubr.f32.mxu0 0.0
        %3119 = vmatmul.mubr.f32.gmra.mrb[0].mxu0 %v1391
        %v3120 = vpop.f32.mrb[0].mxu0
        %v3121 = vadd.f32 %v3046, %v3120
        %v3122 = vpop.f32.mrb[0].mxu0
        %3123 = vdwg.mxu0
        %s3124 = scalar_lea.vmem [#allocation10], 128
        %v3125 = vld [vmem:[%s3124] sm:$0xf]
        %v3126 = vld [vmem:[%s3124 + $0x4] sm:$0xf]
        %v3127 = vld [vmem:[%s3124 + $0x8] sm:$0xf]
        %v3128 = vld [vmem:[%s3124 + $0xc] sm:$0xf]
        %v3129 = vld [vmem:[%s3124 + $0x10] sm:$0xf]
        %v3130 = vld [vmem:[%s3124 + $0x14] sm:$0xf]
        %v3131 = vld [vmem:[%s3124 + $0x18] sm:$0xf]
        %v3132 = vld [vmem:[%s3124 + $0x1c] sm:$0xf]
        %v3133 = vld [vmem:[%s3124 + $0x20] sm:$0xf]
        %v3134 = vld [vmem:[%s3124 + $0x24] sm:$0xf]
        %v3135 = vld [vmem:[%s3124 + $0x28] sm:$0xf]
        %v3136 = vld [vmem:[%s3124 + $0x2c] sm:$0xf]
        %v3137 = vld [vmem:[%s3124 + $0x30] sm:$0xf]
        %v3138 = vld [vmem:[%s3124 + $0x34] sm:$0xf]
        %v3139 = vld [vmem:[%s3124 + $0x38] sm:$0xf]
        %v3140 = vld [vmem:[%s3124 + $0x3c] sm:$0xf]
        %v3157 = vunpack.c.l.b16 %v3125
        %v3158 = vunpack.c.l.b16 %v3126
        %v3159 = vunpack.c.l.b16 %v3127
        %v3160 = vunpack.c.l.b16 %v3128
        %v3161 = vunpack.c.l.b16 %v3129
        %v3162 = vunpack.c.l.b16 %v3130
        %v3163 = vunpack.c.l.b16 %v3131
        %v3164 = vunpack.c.l.b16 %v3132
        %v3165 = vunpack.c.l.b16 %v3133
        %v3166 = vunpack.c.l.b16 %v3134
        %v3167 = vunpack.c.l.b16 %v3135
        %v3168 = vunpack.c.l.b16 %v3136
        %v3169 = vunpack.c.l.b16 %v3137
        %v3170 = vunpack.c.l.b16 %v3138
        %v3171 = vunpack.c.l.b16 %v3139
        %v3172 = vunpack.c.l.b16 %v3140
        %v3173 = vpack.c.b16 %v3158, %v3157
        %v3174 = vpack.c.b16 %v3160, %v3159
        %v3175 = vpack.c.b16 %v3162, %v3161
        %v3176 = vpack.c.b16 %v3164, %v3163
        %v3177 = vpack.c.b16 %v3166, %v3165
        %v3178 = vpack.c.b16 %v3168, %v3167
        %v3179 = vpack.c.b16 %v3170, %v3169
        %v3180 = vpack.c.b16 %v3172, %v3171
        %3189 = vmatprep.subr.bf16.mxu0 0
        %3190 = vmatpush1.bf16.msra.mxu0 %v3173
        %3191 = vmatprep.subr.bf16.mxu0 0
        %3192 = vmatpush1.bf16.msra.mxu0 %v3174
        %3193 = vmatprep.subr.bf16.mxu0 0
        %3194 = vmatpush1.bf16.msra.mxu0 %v3175
        %3195 = vmatprep.subr.bf16.mxu0 0
        %3196 = vmatpush1.bf16.msra.mxu0 %v3176
        %3197 = vmatprep.subr.bf16.mxu0 0
        %3198 = vmatpush1.bf16.msra.mxu0 %v3177
        %3199 = vmatprep.subr.bf16.mxu0 0
        %3200 = vmatpush1.bf16.msra.mxu0 %v3178
        %3201 = vmatprep.subr.bf16.mxu0 0
        %3202 = vmatpush1.bf16.msra.mxu0 %v3179
        %3203 = vmatprep.subr.bf16.mxu0 0
        %3204 = vmatpush1.bf16.msra.mxu0 %v3180
        %3205 = vmatprep.subr.bf16.mxu0 0
        %3206 = vmatpush1.bf16.msra.mxu0 0
        %3207 = vmatprep.subr.bf16.mxu0 0
        %3208 = vmatpush1.bf16.msra.mxu0 0
        %3209 = vmatprep.subr.bf16.mxu0 0
        %3210 = vmatpush1.bf16.msra.mxu0 0
        %3211 = vmatprep.subr.bf16.mxu0 0
        %3212 = vmatpush1.bf16.msra.mxu0 0
        %3213 = vmatprep.subr.bf16.mxu0 0
        %3214 = vmatpush1.bf16.msra.mxu0 0
        %3215 = vmatprep.subr.bf16.mxu0 0
        %3216 = vmatpush1.bf16.msra.mxu0 0
        %3217 = vmatprep.subr.bf16.mxu0 0
        %3218 = vmatpush1.bf16.msra.mxu0 0
        %3219 = vmatprep.subr.bf16.mxu0 0
        %3220 = vmatpush1.bf16.msra.mxu0 0
        %3221 = vmatprep.mubr.bf16.mxu0 0
        %3222 = vmatmul.mubr.bf16.gmra.mrb[0].mxu0 %v2762
        %v3223 = vpop.f32.mrb[0].mxu0
        %v3224 = vadd.f32 0.0, %v3223
        %v3225 = vpop.f32.mrb[0].mxu0
        %v3226 = vpop.f32.mrb[0].mxu0
        %v3227 = vadd.f32 0.0, %v3226
        %v3228 = vpop.f32.mrb[0].mxu0
        %3229 = vdwg.mxu0
        %3230 = vmatprep.subr.mxu0 0.0
        %3231 = vmatpush1.msra.mxu0 %v3224
        %3232 = vmatprep.subr.mxu0 0.0
        %3233 = vmatpush1.msra.mxu0 %v3227
        %3234 = vmatprep.subr.mxu0 0.0
        %3235 = vmatpush1.msra.mxu0 0.0
        %3236 = vmatprep.subr.mxu0 0.0
        %3237 = vmatpush1.msra.mxu0 0.0
        %3238 = vmatprep.subr.mxu0 0.0
        %3239 = vmatpush1.msra.mxu0 0.0
        %3240 = vmatprep.subr.mxu0 0.0
        %3241 = vmatpush1.msra.mxu0 0.0
        %3242 = vmatprep.subr.mxu0 0.0
        %3243 = vmatpush1.msra.mxu0 0.0
        %3244 = vmatprep.subr.mxu0 0.0
        %3245 = vmatpush1.msra.mxu0 0.0
        %3246 = vmatprep.subr.mxu0 0.0
        %3247 = vmatpush1.msra.mxu0 0.0
        %3248 = vmatprep.subr.mxu0 0.0
        %3249 = vmatpush1.msra.mxu0 0.0
        %3250 = vmatprep.subr.mxu0 0.0
        %3251 = vmatpush1.msra.mxu0 0.0
        %3252 = vmatprep.subr.mxu0 0.0
        %3253 = vmatpush1.msra.mxu0 0.0
        %3254 = vmatprep.subr.mxu0 0.0
        %3255 = vmatpush1.msra.mxu0 0.0
        %3256 = vmatprep.subr.mxu0 0.0
        %3257 = vmatpush1.msra.mxu0 0.0
        %3258 = vmatprep.subr.mxu0 0.0
        %3259 = vmatpush1.msra.mxu0 0.0
        %3260 = vmatprep.subr.mxu0 0.0
        %3261 = vmatpush1.msra.mxu0 0.0
        %3262 = vmatprep.subr.mxu0 0.0
        %3263 = vmatpush1.msra.mxu0 0.0
        %3264 = vmatprep.subr.mxu0 0.0
        %3265 = vmatpush1.msra.mxu0 0.0
        %3266 = vmatprep.subr.mxu0 0.0
        %3267 = vmatpush1.msra.mxu0 0.0
        %3268 = vmatprep.subr.mxu0 0.0
        %3269 = vmatpush1.msra.mxu0 0.0
        %3270 = vmatprep.subr.mxu0 0.0
        %3271 = vmatpush1.msra.mxu0 0.0
        %3272 = vmatprep.subr.mxu0 0.0
        %3273 = vmatpush1.msra.mxu0 0.0
        %3274 = vmatprep.subr.mxu0 0.0
        %3275 = vmatpush1.msra.mxu0 0.0
        %3276 = vmatprep.subr.mxu0 0.0
        %3277 = vmatpush1.msra.mxu0 0.0
        %3278 = vmatprep.subr.mxu0 0.0
        %3279 = vmatpush1.msra.mxu0 0.0
        %3280 = vmatprep.subr.mxu0 0.0
        %3281 = vmatpush1.msra.mxu0 0.0
        %3282 = vmatprep.subr.mxu0 0.0
        %3283 = vmatpush1.msra.mxu0 0.0
        %3284 = vmatprep.subr.mxu0 0.0
        %3285 = vmatpush1.msra.mxu0 0.0
        %3286 = vmatprep.subr.mxu0 0.0
        %3287 = vmatpush1.msra.mxu0 0.0
        %3288 = vmatprep.subr.mxu0 0.0
        %3289 = vmatpush1.msra.mxu0 0.0
        %3290 = vmatprep.subr.mxu0 0.0
        %3291 = vmatpush1.msra.mxu0 0.0
        %3292 = vmatprep.subr.mxu0 0.0
        %3293 = vmatpush1.msra.mxu0 0.0
        %3294 = vmatprep.mubr.f32.mxu0 0.0
        %3295 = vmatmul.mubr.f32.gmra.mrb[0].mxu0 %v1543
        %v3296 = vpop.f32.mrb[0].mxu0
        %v3297 = vadd.f32 0.0, %v3296
        %v3298 = vpop.f32.mrb[0].mxu0
        %3299 = vmatprep.mubr.f32.mxu0 0.0
        %3300 = vmatmul.mubr.f32.gmra.mrb[0].mxu0 %v1546
        %v3301 = vpop.f32.mrb[0].mxu0
        %v3302 = vadd.f32 0.0, %v3301
        %v3303 = vpop.f32.mrb[0].mxu0
        %3304 = vdwg.mxu0
        %v3305 = vadd.f32 %v3116, %v3297
        %v3306 = vadd.f32 %v3121, %v3302
        %v3307 = vld [vmem:[#allocation12] sm:$0x1]
        %v3309 = vlaneseq
        %v3310 = vshrl.u32 %v3309, 7
        %v3311 = vsub.s32 0, %v3310
        %v3312 = vrot.slane %v3307, %v3311
        %v3314 = vadd.f32 %v3305, %v3312
        %v3315 = vadd.f32 %v3306, %v3312
        %vm3316 = vcmp.gt.f32.partialorder %v3314, 0.0
        %vm3317 = vcmp.gt.f32.partialorder %v3315, 0.0
        %v3318 = vmul.f32 %v3314, 0.2
        %v3319 = vmul.f32 %v3315, 0.2
        %v3320 = vsel %vm3316, %v3314, %v3318
        %v3321 = vsel %vm3317, %v3315, %v3319
        %v3322 = vpack.c.bf16 %v3321, %v3320
        %v3323 = vld [vmem:[#allocation13] sm:$0xf]
        %v3324 = vld [vmem:[#allocation13 + $0x4] sm:$0xf]
        %v3325 = vld [vmem:[#allocation13 + $0x8] sm:$0xf]
        %v3326 = vld [vmem:[#allocation13 + $0xc] sm:$0xf]
        %v3327 = vld [vmem:[#allocation13 + $0x10] sm:$0xf]
        %v3328 = vld [vmem:[#allocation13 + $0x14] sm:$0xf]
        %v3329 = vld [vmem:[#allocation13 + $0x18] sm:$0xf]
        %v3330 = vld [vmem:[#allocation13 + $0x1c] sm:$0xf]
        %v3331 = vld [vmem:[#allocation13 + $0x20] sm:$0xf]
        %v3332 = vld [vmem:[#allocation13 + $0x24] sm:$0xf]
        %v3333 = vld [vmem:[#allocation13 + $0x28] sm:$0xf]
        %v3334 = vld [vmem:[#allocation13 + $0x2c] sm:$0xf]
        %v3335 = vld [vmem:[#allocation13 + $0x30] sm:$0xf]
        %v3336 = vld [vmem:[#allocation13 + $0x34] sm:$0xf]
        %v3337 = vld [vmem:[#allocation13 + $0x38] sm:$0xf]
        %v3338 = vld [vmem:[#allocation13 + $0x3c] sm:$0xf]
        %v3355 = vunpack.c.l.b16 %v3323
        %v3356 = vunpack.c.l.b16 %v3324
        %v3357 = vunpack.c.l.b16 %v3325
        %v3358 = vunpack.c.l.b16 %v3326
        %v3359 = vunpack.c.l.b16 %v3327
        %v3360 = vunpack.c.l.b16 %v3328
        %v3361 = vunpack.c.l.b16 %v3329
        %v3362 = vunpack.c.l.b16 %v3330
        %v3363 = vunpack.c.l.b16 %v3331
        %v3364 = vunpack.c.l.b16 %v3332
        %v3365 = vunpack.c.l.b16 %v3333
        %v3366 = vunpack.c.l.b16 %v3334
        %v3367 = vunpack.c.l.b16 %v3335
        %v3368 = vunpack.c.l.b16 %v3336
        %v3369 = vunpack.c.l.b16 %v3337
        %v3370 = vunpack.c.l.b16 %v3338
        %v3371 = vpack.c.b16 %v3356, %v3355
        %v3372 = vpack.c.b16 %v3358, %v3357
        %v3373 = vpack.c.b16 %v3360, %v3359
        %v3374 = vpack.c.b16 %v3362, %v3361
        %v3375 = vpack.c.b16 %v3364, %v3363
        %v3376 = vpack.c.b16 %v3366, %v3365
        %v3377 = vpack.c.b16 %v3368, %v3367
        %v3378 = vpack.c.b16 %v3370, %v3369
        %3387 = vmatprep.subr.bf16.mxu0 0
        %3388 = vmatpush1.bf16.msra.mxu0 %v3371
        %3389 = vmatprep.subr.bf16.mxu0 0
        %3390 = vmatpush1.bf16.msra.mxu0 %v3372
        %3391 = vmatprep.subr.bf16.mxu0 0
        %3392 = vmatpush1.bf16.msra.mxu0 %v3373
        %3393 = vmatprep.subr.bf16.mxu0 0
        %3394 = vmatpush1.bf16.msra.mxu0 %v3374
        %3395 = vmatprep.subr.bf16.mxu0 0
        %3396 = vmatpush1.bf16.msra.mxu0 %v3375
        %3397 = vmatprep.subr.bf16.mxu0 0
        %3398 = vmatpush1.bf16.msra.mxu0 %v3376
        %3399 = vmatprep.subr.bf16.mxu0 0
        %3400 = vmatpush1.bf16.msra.mxu0 %v3377
        %3401 = vmatprep.subr.bf16.mxu0 0
        %3402 = vmatpush1.bf16.msra.mxu0 %v3378
        %3403 = vmatprep.subr.bf16.mxu0 0
        %3404 = vmatpush1.bf16.msra.mxu0 0
        %3405 = vmatprep.subr.bf16.mxu0 0
        %3406 = vmatpush1.bf16.msra.mxu0 0
        %3407 = vmatprep.subr.bf16.mxu0 0
        %3408 = vmatpush1.bf16.msra.mxu0 0
        %3409 = vmatprep.subr.bf16.mxu0 0
        %3410 = vmatpush1.bf16.msra.mxu0 0
        %3411 = vmatprep.subr.bf16.mxu0 0
        %3412 = vmatpush1.bf16.msra.mxu0 0
        %3413 = vmatprep.subr.bf16.mxu0 0
        %3414 = vmatpush1.bf16.msra.mxu0 0
        %3415 = vmatprep.subr.bf16.mxu0 0
        %3416 = vmatpush1.bf16.msra.mxu0 0
        %3417 = vmatprep.subr.bf16.mxu0 0
        %3418 = vmatpush1.bf16.msra.mxu0 0
        %3419 = vmatprep.mubr.bf16.mxu0 0
        %3420 = vmatmul.mubr.bf16.gmra.mrb[0].mxu0 %v3322
        %v3421 = vpop.f32.mrb[0].mxu0
        %v3422 = vadd.f32 0.0, %v3421
        %v3423 = vpop.f32.mrb[0].mxu0
        %v3424 = vpop.f32.mrb[0].mxu0
        %v3425 = vadd.f32 0.0, %v3424
        %v3426 = vpop.f32.mrb[0].mxu0
        %3427 = vdwg.mxu0
        %s3428 = scalar_lea.vmem [#allocation13], 64
        %v3429 = vld [vmem:[%s3428] sm:$0xf]
        %v3430 = vld [vmem:[%s3428 + $0x4] sm:$0xf]
        %v3431 = vld [vmem:[%s3428 + $0x8] sm:$0xf]
        %v3432 = vld [vmem:[%s3428 + $0xc] sm:$0xf]
        %v3433 = vld [vmem:[%s3428 + $0x10] sm:$0xf]
        %v3434 = vld [vmem:[%s3428 + $0x14] sm:$0xf]
        %v3435 = vld [vmem:[%s3428 + $0x18] sm:$0xf]
        %v3436 = vld [vmem:[%s3428 + $0x1c] sm:$0xf]
        %v3437 = vld [vmem:[%s3428 + $0x20] sm:$0xf]
        %v3438 = vld [vmem:[%s3428 + $0x24] sm:$0xf]
        %v3439 = vld [vmem:[%s3428 + $0x28] sm:$0xf]
        %v3440 = vld [vmem:[%s3428 + $0x2c] sm:$0xf]
        %v3441 = vld [vmem:[%s3428 + $0x30] sm:$0xf]
        %v3442 = vld [vmem:[%s3428 + $0x34] sm:$0xf]
        %v3443 = vld [vmem:[%s3428 + $0x38] sm:$0xf]
        %v3444 = vld [vmem:[%s3428 + $0x3c] sm:$0xf]
        %v3461 = vunpack.c.l.b16 %v3429
        %v3462 = vunpack.c.l.b16 %v3430
        %v3463 = vunpack.c.l.b16 %v3431
        %v3464 = vunpack.c.l.b16 %v3432
        %v3465 = vunpack.c.l.b16 %v3433
        %v3466 = vunpack.c.l.b16 %v3434
        %v3467 = vunpack.c.l.b16 %v3435
        %v3468 = vunpack.c.l.b16 %v3436
        %v3469 = vunpack.c.l.b16 %v3437
        %v3470 = vunpack.c.l.b16 %v3438
        %v3471 = vunpack.c.l.b16 %v3439
        %v3472 = vunpack.c.l.b16 %v3440
        %v3473 = vunpack.c.l.b16 %v3441
        %v3474 = vunpack.c.l.b16 %v3442
        %v3475 = vunpack.c.l.b16 %v3443
        %v3476 = vunpack.c.l.b16 %v3444
        %v3477 = vpack.c.b16 %v3462, %v3461
        %v3478 = vpack.c.b16 %v3464, %v3463
        %v3479 = vpack.c.b16 %v3466, %v3465
        %v3480 = vpack.c.b16 %v3468, %v3467
        %v3481 = vpack.c.b16 %v3470, %v3469
        %v3482 = vpack.c.b16 %v3472, %v3471
        %v3483 = vpack.c.b16 %v3474, %v3473
        %v3484 = vpack.c.b16 %v3476, %v3475
        %3493 = vmatprep.subr.bf16.mxu0 0
        %3494 = vmatpush1.bf16.msra.mxu0 %v3477
        %3495 = vmatprep.subr.bf16.mxu0 0
        %3496 = vmatpush1.bf16.msra.mxu0 %v3478
        %3497 = vmatprep.subr.bf16.mxu0 0
        %3498 = vmatpush1.bf16.msra.mxu0 %v3479
        %3499 = vmatprep.subr.bf16.mxu0 0
        %3500 = vmatpush1.bf16.msra.mxu0 %v3480
        %3501 = vmatprep.subr.bf16.mxu0 0
        %3502 = vmatpush1.bf16.msra.mxu0 %v3481
        %3503 = vmatprep.subr.bf16.mxu0 0
        %3504 = vmatpush1.bf16.msra.mxu0 %v3482
        %3505 = vmatprep.subr.bf16.mxu0 0
        %3506 = vmatpush1.bf16.msra.mxu0 %v3483
        %3507 = vmatprep.subr.bf16.mxu0 0
        %3508 = vmatpush1.bf16.msra.mxu0 %v3484
        %3509 = vmatprep.subr.bf16.mxu0 0
        %3510 = vmatpush1.bf16.msra.mxu0 0
        %3511 = vmatprep.subr.bf16.mxu0 0
        %3512 = vmatpush1.bf16.msra.mxu0 0
        %3513 = vmatprep.subr.bf16.mxu0 0
        %3514 = vmatpush1.bf16.msra.mxu0 0
        %3515 = vmatprep.subr.bf16.mxu0 0
        %3516 = vmatpush1.bf16.msra.mxu0 0
        %3517 = vmatprep.subr.bf16.mxu0 0
        %3518 = vmatpush1.bf16.msra.mxu0 0
        %3519 = vmatprep.subr.bf16.mxu0 0
        %3520 = vmatpush1.bf16.msra.mxu0 0
        %3521 = vmatprep.subr.bf16.mxu0 0
        %3522 = vmatpush1.bf16.msra.mxu0 0
        %3523 = vmatprep.subr.bf16.mxu0 0
        %3524 = vmatpush1.bf16.msra.mxu0 0
        %3525 = vmatprep.mubr.bf16.mxu0 0
        %3526 = vmatmul.mubr.bf16.gmra.mrb[0].mxu0 %v3322
        %v3527 = vpop.f32.mrb[0].mxu0
        %v3528 = vadd.f32 0.0, %v3527
        %v3529 = vpop.f32.mrb[0].mxu0
        %v3530 = vpop.f32.mrb[0].mxu0
        %v3531 = vadd.f32 0.0, %v3530
        %v3532 = vpop.f32.mrb[0].mxu0
        %3533 = vdwg.mxu0
        %3534 = vmatprep.subr.mxu0 0.0
        %3535 = vmatpush1.msra.mxu0 %v3528
        %3536 = vmatprep.subr.mxu0 0.0
        %3537 = vmatpush1.msra.mxu0 %v3531
        %3538 = vmatprep.subr.mxu0 0.0
        %3539 = vmatpush1.msra.mxu0 0.0
        %3540 = vmatprep.subr.mxu0 0.0
        %3541 = vmatpush1.msra.mxu0 0.0
        %3542 = vmatprep.subr.mxu0 0.0
        %3543 = vmatpush1.msra.mxu0 0.0
        %3544 = vmatprep.subr.mxu0 0.0
        %3545 = vmatpush1.msra.mxu0 0.0
        %3546 = vmatprep.subr.mxu0 0.0
        %3547 = vmatpush1.msra.mxu0 0.0
        %3548 = vmatprep.subr.mxu0 0.0
        %3549 = vmatpush1.msra.mxu0 0.0
        %3550 = vmatprep.subr.mxu0 0.0
        %3551 = vmatpush1.msra.mxu0 0.0
        %3552 = vmatprep.subr.mxu0 0.0
        %3553 = vmatpush1.msra.mxu0 0.0
        %3554 = vmatprep.subr.mxu0 0.0
        %3555 = vmatpush1.msra.mxu0 0.0
        %3556 = vmatprep.subr.mxu0 0.0
        %3557 = vmatpush1.msra.mxu0 0.0
        %3558 = vmatprep.subr.mxu0 0.0
        %3559 = vmatpush1.msra.mxu0 0.0
        %3560 = vmatprep.subr.mxu0 0.0
        %3561 = vmatpush1.msra.mxu0 0.0
        %3562 = vmatprep.subr.mxu0 0.0
        %3563 = vmatpush1.msra.mxu0 0.0
        %3564 = vmatprep.subr.mxu0 0.0
        %3565 = vmatpush1.msra.mxu0 0.0
        %3566 = vmatprep.subr.mxu0 0.0
        %3567 = vmatpush1.msra.mxu0 0.0
        %3568 = vmatprep.subr.mxu0 0.0
        %3569 = vmatpush1.msra.mxu0 0.0
        %3570 = vmatprep.subr.mxu0 0.0
        %3571 = vmatpush1.msra.mxu0 0.0
        %3572 = vmatprep.subr.mxu0 0.0
        %3573 = vmatpush1.msra.mxu0 0.0
        %3574 = vmatprep.subr.mxu0 0.0
        %3575 = vmatpush1.msra.mxu0 0.0
        %3576 = vmatprep.subr.mxu0 0.0
        %3577 = vmatpush1.msra.mxu0 0.0
        %3578 = vmatprep.subr.mxu0 0.0
        %3579 = vmatpush1.msra.mxu0 0.0
        %3580 = vmatprep.subr.mxu0 0.0
        %3581 = vmatpush1.msra.mxu0 0.0
        %3582 = vmatprep.subr.mxu0 0.0
        %3583 = vmatpush1.msra.mxu0 0.0
        %3584 = vmatprep.subr.mxu0 0.0
        %3585 = vmatpush1.msra.mxu0 0.0
        %3586 = vmatprep.subr.mxu0 0.0
        %3587 = vmatpush1.msra.mxu0 0.0
        %3588 = vmatprep.subr.mxu0 0.0
        %3589 = vmatpush1.msra.mxu0 0.0
        %3590 = vmatprep.subr.mxu0 0.0
        %3591 = vmatpush1.msra.mxu0 0.0
        %3592 = vmatprep.subr.mxu0 0.0
        %3593 = vmatpush1.msra.mxu0 0.0
        %3594 = vmatprep.subr.mxu0 0.0
        %3595 = vmatpush1.msra.mxu0 0.0
        %3596 = vmatprep.subr.mxu0 0.0
        %3597 = vmatpush1.msra.mxu0 0.0
        %3598 = vmatprep.mubr.f32.mxu0 0.0
        %3599 = vmatmul.mubr.f32.gmra.mrb[0].mxu0 %v1307
        %v3600 = vpop.f32.mrb[0].mxu0
        %v3601 = vadd.f32 0.0, %v3600
        %v3602 = vpop.f32.mrb[0].mxu0
        %3603 = vmatprep.mubr.f32.mxu0 0.0
        %3604 = vmatmul.mubr.f32.gmra.mrb[0].mxu0 %v1310
        %v3605 = vpop.f32.mrb[0].mxu0
        %v3606 = vadd.f32 0.0, %v3605
        %v3607 = vpop.f32.mrb[0].mxu0
        %3608 = vdwg.mxu0
        %3609 = vmatprep.subr.mxu0 0.0
        %3610 = vmatpush1.msra.mxu0 %v3422
        %3611 = vmatprep.subr.mxu0 0.0
        %3612 = vmatpush1.msra.mxu0 %v3425
        %3613 = vmatprep.subr.mxu0 0.0
        %3614 = vmatpush1.msra.mxu0 0.0
        %3615 = vmatprep.subr.mxu0 0.0
        %3616 = vmatpush1.msra.mxu0 0.0
        %3617 = vmatprep.subr.mxu0 0.0
        %3618 = vmatpush1.msra.mxu0 0.0
        %3619 = vmatprep.subr.mxu0 0.0
        %3620 = vmatpush1.msra.mxu0 0.0
        %3621 = vmatprep.subr.mxu0 0.0
        %3622 = vmatpush1.msra.mxu0 0.0
        %3623 = vmatprep.subr.mxu0 0.0
        %3624 = vmatpush1.msra.mxu0 0.0
        %3625 = vmatprep.subr.mxu0 0.0
        %3626 = vmatpush1.msra.mxu0 0.0
        %3627 = vmatprep.subr.mxu0 0.0
        %3628 = vmatpush1.msra.mxu0 0.0
        %3629 = vmatprep.subr.mxu0 0.0
        %3630 = vmatpush1.msra.mxu0 0.0
        %3631 = vmatprep.subr.mxu0 0.0
        %3632 = vmatpush1.msra.mxu0 0.0
        %3633 = vmatprep.subr.mxu0 0.0
        %3634 = vmatpush1.msra.mxu0 0.0
        %3635 = vmatprep.subr.mxu0 0.0
        %3636 = vmatpush1.msra.mxu0 0.0
        %3637 = vmatprep.subr.mxu0 0.0
        %3638 = vmatpush1.msra.mxu0 0.0
        %3639 = vmatprep.subr.mxu0 0.0
        %3640 = vmatpush1.msra.mxu0 0.0
        %3641 = vmatprep.subr.mxu0 0.0
        %3642 = vmatpush1.msra.mxu0 0.0
        %3643 = vmatprep.subr.mxu0 0.0
        %3644 = vmatpush1.msra.mxu0 0.0
        %3645 = vmatprep.subr.mxu0 0.0
        %3646 = vmatpush1.msra.mxu0 0.0
        %3647 = vmatprep.subr.mxu0 0.0
        %3648 = vmatpush1.msra.mxu0 0.0
        %3649 = vmatprep.subr.mxu0 0.0
        %3650 = vmatpush1.msra.mxu0 0.0
        %3651 = vmatprep.subr.mxu0 0.0
        %3652 = vmatpush1.msra.mxu0 0.0
        %3653 = vmatprep.subr.mxu0 0.0
        %3654 = vmatpush1.msra.mxu0 0.0
        %3655 = vmatprep.subr.mxu0 0.0
        %3656 = vmatpush1.msra.mxu0 0.0
        %3657 = vmatprep.subr.mxu0 0.0
        %3658 = vmatpush1.msra.mxu0 0.0
        %3659 = vmatprep.subr.mxu0 0.0
        %3660 = vmatpush1.msra.mxu0 0.0
        %3661 = vmatprep.subr.mxu0 0.0
        %3662 = vmatpush1.msra.mxu0 0.0
        %3663 = vmatprep.subr.mxu0 0.0
        %3664 = vmatpush1.msra.mxu0 0.0
        %3665 = vmatprep.subr.mxu0 0.0
        %3666 = vmatpush1.msra.mxu0 0.0
        %3667 = vmatprep.subr.mxu0 0.0
        %3668 = vmatpush1.msra.mxu0 0.0
        %3669 = vmatprep.subr.mxu0 0.0
        %3670 = vmatpush1.msra.mxu0 0.0
        %3671 = vmatprep.subr.mxu0 0.0
        %3672 = vmatpush1.msra.mxu0 0.0
        %3673 = vmatprep.mubr.f32.mxu0 0.0
        %3674 = vmatmul.mubr.f32.gmra.mrb[0].mxu0 %v1388
        %v3675 = vpop.f32.mrb[0].mxu0
        %v3676 = vadd.f32 %v3601, %v3675
        %v3677 = vpop.f32.mrb[0].mxu0
        %3678 = vmatprep.mubr.f32.mxu0 0.0
        %3679 = vmatmul.mubr.f32.gmra.mrb[0].mxu0 %v1391
        %v3680 = vpop.f32.mrb[0].mxu0
        %v3681 = vadd.f32 %v3606, %v3680
        %v3682 = vpop.f32.mrb[0].mxu0
        %3683 = vdwg.mxu0
        %s3684 = scalar_lea.vmem [#allocation13], 128
        %v3685 = vld [vmem:[%s3684] sm:$0xf]
        %v3686 = vld [vmem:[%s3684 + $0x4] sm:$0xf]
        %v3687 = vld [vmem:[%s3684 + $0x8] sm:$0xf]
        %v3688 = vld [vmem:[%s3684 + $0xc] sm:$0xf]
        %v3689 = vld [vmem:[%s3684 + $0x10] sm:$0xf]
        %v3690 = vld [vmem:[%s3684 + $0x14] sm:$0xf]
        %v3691 = vld [vmem:[%s3684 + $0x18] sm:$0xf]
        %v3692 = vld [vmem:[%s3684 + $0x1c] sm:$0xf]
        %v3693 = vld [vmem:[%s3684 + $0x20] sm:$0xf]
        %v3694 = vld [vmem:[%s3684 + $0x24] sm:$0xf]
        %v3695 = vld [vmem:[%s3684 + $0x28] sm:$0xf]
        %v3696 = vld [vmem:[%s3684 + $0x2c] sm:$0xf]
        %v3697 = vld [vmem:[%s3684 + $0x30] sm:$0xf]
        %v3698 = vld [vmem:[%s3684 + $0x34] sm:$0xf]
        %v3699 = vld [vmem:[%s3684 + $0x38] sm:$0xf]
        %v3700 = vld [vmem:[%s3684 + $0x3c] sm:$0xf]
        %v3717 = vunpack.c.l.b16 %v3685
        %v3718 = vunpack.c.l.b16 %v3686
        %v3719 = vunpack.c.l.b16 %v3687
        %v3720 = vunpack.c.l.b16 %v3688
        %v3721 = vunpack.c.l.b16 %v3689
        %v3722 = vunpack.c.l.b16 %v3690
        %v3723 = vunpack.c.l.b16 %v3691
        %v3724 = vunpack.c.l.b16 %v3692
        %v3725 = vunpack.c.l.b16 %v3693
        %v3726 = vunpack.c.l.b16 %v3694
        %v3727 = vunpack.c.l.b16 %v3695
        %v3728 = vunpack.c.l.b16 %v3696
        %v3729 = vunpack.c.l.b16 %v3697
        %v3730 = vunpack.c.l.b16 %v3698
        %v3731 = vunpack.c.l.b16 %v3699
        %v3732 = vunpack.c.l.b16 %v3700
        %v3733 = vpack.c.b16 %v3718, %v3717
        %v3734 = vpack.c.b16 %v3720, %v3719
        %v3735 = vpack.c.b16 %v3722, %v3721
        %v3736 = vpack.c.b16 %v3724, %v3723
        %v3737 = vpack.c.b16 %v3726, %v3725
        %v3738 = vpack.c.b16 %v3728, %v3727
        %v3739 = vpack.c.b16 %v3730, %v3729
        %v3740 = vpack.c.b16 %v3732, %v3731
        %3749 = vmatprep.subr.bf16.mxu0 0
        %3750 = vmatpush1.bf16.msra.mxu0 %v3733
        %3751 = vmatprep.subr.bf16.mxu0 0
        %3752 = vmatpush1.bf16.msra.mxu0 %v3734
        %3753 = vmatprep.subr.bf16.mxu0 0
        %3754 = vmatpush1.bf16.msra.mxu0 %v3735
        %3755 = vmatprep.subr.bf16.mxu0 0
        %3756 = vmatpush1.bf16.msra.mxu0 %v3736
        %3757 = vmatprep.subr.bf16.mxu0 0
        %3758 = vmatpush1.bf16.msra.mxu0 %v3737
        %3759 = vmatprep.subr.bf16.mxu0 0
        %3760 = vmatpush1.bf16.msra.mxu0 %v3738
        %3761 = vmatprep.subr.bf16.mxu0 0
        %3762 = vmatpush1.bf16.msra.mxu0 %v3739
        %3763 = vmatprep.subr.bf16.mxu0 0
        %3764 = vmatpush1.bf16.msra.mxu0 %v3740
        %3765 = vmatprep.subr.bf16.mxu0 0
        %3766 = vmatpush1.bf16.msra.mxu0 0
        %3767 = vmatprep.subr.bf16.mxu0 0
        %3768 = vmatpush1.bf16.msra.mxu0 0
        %3769 = vmatprep.subr.bf16.mxu0 0
        %3770 = vmatpush1.bf16.msra.mxu0 0
        %3771 = vmatprep.subr.bf16.mxu0 0
        %3772 = vmatpush1.bf16.msra.mxu0 0
        %3773 = vmatprep.subr.bf16.mxu0 0
        %3774 = vmatpush1.bf16.msra.mxu0 0
        %3775 = vmatprep.subr.bf16.mxu0 0
        %3776 = vmatpush1.bf16.msra.mxu0 0
        %3777 = vmatprep.subr.bf16.mxu0 0
        %3778 = vmatpush1.bf16.msra.mxu0 0
        %3779 = vmatprep.subr.bf16.mxu0 0
        %3780 = vmatpush1.bf16.msra.mxu0 0
        %3781 = vmatprep.mubr.bf16.mxu0 0
        %3782 = vmatmul.mubr.bf16.gmra.mrb[0].mxu0 %v3322
        %v3783 = vpop.f32.mrb[0].mxu0
        %v3784 = vadd.f32 0.0, %v3783
        %v3785 = vpop.f32.mrb[0].mxu0
        %v3786 = vpop.f32.mrb[0].mxu0
        %v3787 = vadd.f32 0.0, %v3786
        %v3788 = vpop.f32.mrb[0].mxu0
        %3789 = vdwg.mxu0
        %3790 = vmatprep.subr.mxu0 0.0
        %3791 = vmatpush1.msra.mxu0 %v3784
        %3792 = vmatprep.subr.mxu0 0.0
        %3793 = vmatpush1.msra.mxu0 %v3787
        %3794 = vmatprep.subr.mxu0 0.0
        %3795 = vmatpush1.msra.mxu0 0.0
        %3796 = vmatprep.subr.mxu0 0.0
        %3797 = vmatpush1.msra.mxu0 0.0
        %3798 = vmatprep.subr.mxu0 0.0
        %3799 = vmatpush1.msra.mxu0 0.0
        %3800 = vmatprep.subr.mxu0 0.0
        %3801 = vmatpush1.msra.mxu0 0.0
        %3802 = vmatprep.subr.mxu0 0.0
        %3803 = vmatpush1.msra.mxu0 0.0
        %3804 = vmatprep.subr.mxu0 0.0
        %3805 = vmatpush1.msra.mxu0 0.0
        %3806 = vmatprep.subr.mxu0 0.0
        %3807 = vmatpush1.msra.mxu0 0.0
        %3808 = vmatprep.subr.mxu0 0.0
        %3809 = vmatpush1.msra.mxu0 0.0
        %3810 = vmatprep.subr.mxu0 0.0
        %3811 = vmatpush1.msra.mxu0 0.0
        %3812 = vmatprep.subr.mxu0 0.0
        %3813 = vmatpush1.msra.mxu0 0.0
        %3814 = vmatprep.subr.mxu0 0.0
        %3815 = vmatpush1.msra.mxu0 0.0
        %3816 = vmatprep.subr.mxu0 0.0
        %3817 = vmatpush1.msra.mxu0 0.0
        %3818 = vmatprep.subr.mxu0 0.0
        %3819 = vmatpush1.msra.mxu0 0.0
        %3820 = vmatprep.subr.mxu0 0.0
        %3821 = vmatpush1.msra.mxu0 0.0
        %3822 = vmatprep.subr.mxu0 0.0
        %3823 = vmatpush1.msra.mxu0 0.0
        %3824 = vmatprep.subr.mxu0 0.0
        %3825 = vmatpush1.msra.mxu0 0.0
        %3826 = vmatprep.subr.mxu0 0.0
        %3827 = vmatpush1.msra.mxu0 0.0
        %3828 = vmatprep.subr.mxu0 0.0
        %3829 = vmatpush1.msra.mxu0 0.0
        %3830 = vmatprep.subr.mxu0 0.0
        %3831 = vmatpush1.msra.mxu0 0.0
        %3832 = vmatprep.subr.mxu0 0.0
        %3833 = vmatpush1.msra.mxu0 0.0
        %3834 = vmatprep.subr.mxu0 0.0
        %3835 = vmatpush1.msra.mxu0 0.0
        %3836 = vmatprep.subr.mxu0 0.0
        %3837 = vmatpush1.msra.mxu0 0.0
        %3838 = vmatprep.subr.mxu0 0.0
        %3839 = vmatpush1.msra.mxu0 0.0
        %3840 = vmatprep.subr.mxu0 0.0
        %3841 = vmatpush1.msra.mxu0 0.0
        %3842 = vmatprep.subr.mxu0 0.0
        %3843 = vmatpush1.msra.mxu0 0.0
        %3844 = vmatprep.subr.mxu0 0.0
        %3845 = vmatpush1.msra.mxu0 0.0
        %3846 = vmatprep.subr.mxu0 0.0
        %3847 = vmatpush1.msra.mxu0 0.0
        %3848 = vmatprep.subr.mxu0 0.0
        %3849 = vmatpush1.msra.mxu0 0.0
        %3850 = vmatprep.subr.mxu0 0.0
        %3851 = vmatpush1.msra.mxu0 0.0
        %3852 = vmatprep.subr.mxu0 0.0
        %3853 = vmatpush1.msra.mxu0 0.0
        %3854 = vmatprep.mubr.f32.mxu0 0.0
        %3855 = vmatmul.mubr.f32.gmra.mrb[0].mxu0 %v1543
        %v3856 = vpop.f32.mrb[0].mxu0
        %v3857 = vadd.f32 0.0, %v3856
        %v3858 = vpop.f32.mrb[0].mxu0
        %3859 = vmatprep.mubr.f32.mxu0 0.0
        %3860 = vmatmul.mubr.f32.gmra.mrb[0].mxu0 %v1546
        %v3861 = vpop.f32.mrb[0].mxu0
        %v3862 = vadd.f32 0.0, %v3861
        %v3863 = vpop.f32.mrb[0].mxu0
        %3864 = vdwg.mxu0
        %v3865 = vadd.f32 %v3676, %v3857
        %v3866 = vadd.f32 %v3681, %v3862
        %v3867 = vld [vmem:[#allocation15] sm:$0x1]
        %v3869 = vlaneseq
        %v3870 = vshrl.u32 %v3869, 7
        %v3871 = vsub.s32 0, %v3870
        %v3872 = vrot.slane %v3867, %v3871
        %v3874 = vadd.f32 %v3865, %v3872
        %v3875 = vadd.f32 %v3866, %v3872
        %vm3876 = vcmp.gt.f32.partialorder %v3874, 0.0
        %vm3877 = vcmp.gt.f32.partialorder %v3875, 0.0
        %v3878 = vmul.f32 %v3874, 0.2
        %v3879 = vmul.f32 %v3875, 0.2
        %v3880 = vsel %vm3876, %v3874, %v3878
        %v3881 = vsel %vm3877, %v3875, %v3879
        %v3882 = vadd.f32 %v2760, %v3880
        %v3883 = vadd.f32 %v2761, %v3881
        %v3884 = vpack.c.bf16 %v3883, %v3882
        %v3885 = vld [vmem:[%s23] sm:$0xf]
        %v3886 = vld [vmem:[%s23 + $0x4] sm:$0xf]
        %v3887 = vld [vmem:[%s23 + $0x8] sm:$0xf]
        %v3888 = vld [vmem:[%s23 + $0xc] sm:$0xf]
        %v3889 = vld [vmem:[%s23 + $0x10] sm:$0xf]
        %v3890 = vld [vmem:[%s23 + $0x14] sm:$0xf]
        %v3891 = vld [vmem:[%s23 + $0x18] sm:$0xf]
        %v3892 = vld [vmem:[%s23 + $0x1c] sm:$0xf]
        %v3893 = vld [vmem:[%s23 + $0x20] sm:$0xf]
        %v3894 = vld [vmem:[%s23 + $0x24] sm:$0xf]
        %v3895 = vld [vmem:[%s23 + $0x28] sm:$0xf]
        %v3896 = vld [vmem:[%s23 + $0x2c] sm:$0xf]
        %v3897 = vld [vmem:[%s23 + $0x30] sm:$0xf]
        %v3898 = vld [vmem:[%s23 + $0x34] sm:$0xf]
        %v3899 = vld [vmem:[%s23 + $0x38] sm:$0xf]
        %v3900 = vld [vmem:[%s23 + $0x3c] sm:$0xf]
        %v3917 = vunpack.c.l.b16 %v3885
        %v3918 = vunpack.c.l.b16 %v3886
        %v3919 = vunpack.c.l.b16 %v3887
        %v3920 = vunpack.c.l.b16 %v3888
        %v3921 = vunpack.c.l.b16 %v3889
        %v3922 = vunpack.c.l.b16 %v3890
        %v3923 = vunpack.c.l.b16 %v3891
        %v3924 = vunpack.c.l.b16 %v3892
        %v3925 = vunpack.c.l.b16 %v3893
        %v3926 = vunpack.c.l.b16 %v3894
        %v3927 = vunpack.c.l.b16 %v3895
        %v3928 = vunpack.c.l.b16 %v3896
        %v3929 = vunpack.c.l.b16 %v3897
        %v3930 = vunpack.c.l.b16 %v3898
        %v3931 = vunpack.c.l.b16 %v3899
        %v3932 = vunpack.c.l.b16 %v3900
        %v3933 = vpack.c.b16 %v3918, %v3917
        %v3934 = vpack.c.b16 %v3920, %v3919
        %v3935 = vpack.c.b16 %v3922, %v3921
        %v3936 = vpack.c.b16 %v3924, %v3923
        %v3937 = vpack.c.b16 %v3926, %v3925
        %v3938 = vpack.c.b16 %v3928, %v3927
        %v3939 = vpack.c.b16 %v3930, %v3929
        %v3940 = vpack.c.b16 %v3932, %v3931
        %3949 = vmatprep.subr.bf16.mxu0 0
        %3950 = vmatpush1.bf16.msra.mxu0 %v3933
        %3951 = vmatprep.subr.bf16.mxu0 0
        %3952 = vmatpush1.bf16.msra.mxu0 %v3934
        %3953 = vmatprep.subr.bf16.mxu0 0
        %3954 = vmatpush1.bf16.msra.mxu0 %v3935
        %3955 = vmatprep.subr.bf16.mxu0 0
        %3956 = vmatpush1.bf16.msra.mxu0 %v3936
        %3957 = vmatprep.subr.bf16.mxu0 0
        %3958 = vmatpush1.bf16.msra.mxu0 %v3937
        %3959 = vmatprep.subr.bf16.mxu0 0
        %3960 = vmatpush1.bf16.msra.mxu0 %v3938
        %3961 = vmatprep.subr.bf16.mxu0 0
        %3962 = vmatpush1.bf16.msra.mxu0 %v3939
        %3963 = vmatprep.subr.bf16.mxu0 0
        %3964 = vmatpush1.bf16.msra.mxu0 %v3940
        %3965 = vmatprep.subr.bf16.mxu0 0
        %3966 = vmatpush1.bf16.msra.mxu0 0
        %3967 = vmatprep.subr.bf16.mxu0 0
        %3968 = vmatpush1.bf16.msra.mxu0 0
        %3969 = vmatprep.subr.bf16.mxu0 0
        %3970 = vmatpush1.bf16.msra.mxu0 0
        %3971 = vmatprep.subr.bf16.mxu0 0
        %3972 = vmatpush1.bf16.msra.mxu0 0
        %3973 = vmatprep.subr.bf16.mxu0 0
        %3974 = vmatpush1.bf16.msra.mxu0 0
        %3975 = vmatprep.subr.bf16.mxu0 0
        %3976 = vmatpush1.bf16.msra.mxu0 0
        %3977 = vmatprep.subr.bf16.mxu0 0
        %3978 = vmatpush1.bf16.msra.mxu0 0
        %3979 = vmatprep.subr.bf16.mxu0 0
        %3980 = vmatpush1.bf16.msra.mxu0 0
        %3981 = vmatprep.mubr.bf16.mxu0 0
        %3982 = vmatmul.mubr.bf16.gmra.mrb[0].mxu0 %v3884
        %v3983 = vpop.f32.mrb[0].mxu0
        %v3984 = vadd.f32 0.0, %v3983
        %v3985 = vpop.f32.mrb[0].mxu0
        %v3986 = vpop.f32.mrb[0].mxu0
        %v3987 = vadd.f32 0.0, %v3986
        %v3988 = vpop.f32.mrb[0].mxu0
        %3989 = vdwg.mxu0
        %v3990 = vmul.u32 %v1221, 4
        %vm3991 = vcmp.eq.s32.totalorder %v1224, %v3990
        %v3992 = vsel %vm3991, 1, 0
        %v3993 = vcvt.s32.f32 %v3992
        %s3994 = scalar_lea.vmem %s23, 64
        %v3995 = vld [vmem:[%s3994] sm:$0xf]
        %v3996 = vld [vmem:[%s3994 + $0x4] sm:$0xf]
        %v3997 = vld [vmem:[%s3994 + $0x8] sm:$0xf]
        %v3998 = vld [vmem:[%s3994 + $0xc] sm:$0xf]
        %v3999 = vld [vmem:[%s3994 + $0x10] sm:$0xf]
        %v4000 = vld [vmem:[%s3994 + $0x14] sm:$0xf]
        %v4001 = vld [vmem:[%s3994 + $0x18] sm:$0xf]
        %v4002 = vld [vmem:[%s3994 + $0x1c] sm:$0xf]
        %v4003 = vld [vmem:[%s3994 + $0x20] sm:$0xf]
        %v4004 = vld [vmem:[%s3994 + $0x24] sm:$0xf]
        %v4005 = vld [vmem:[%s3994 + $0x28] sm:$0xf]
        %v4006 = vld [vmem:[%s3994 + $0x2c] sm:$0xf]
        %v4007 = vld [vmem:[%s3994 + $0x30] sm:$0xf]
        %v4008 = vld [vmem:[%s3994 + $0x34] sm:$0xf]
        %v4009 = vld [vmem:[%s3994 + $0x38] sm:$0xf]
        %v4010 = vld [vmem:[%s3994 + $0x3c] sm:$0xf]
        %v4027 = vunpack.c.l.b16 %v3995
        %v4028 = vunpack.c.l.b16 %v3996
        %v4029 = vunpack.c.l.b16 %v3997
        %v4030 = vunpack.c.l.b16 %v3998
        %v4031 = vunpack.c.l.b16 %v3999
        %v4032 = vunpack.c.l.b16 %v4000
        %v4033 = vunpack.c.l.b16 %v4001
        %v4034 = vunpack.c.l.b16 %v4002
        %v4035 = vunpack.c.l.b16 %v4003
        %v4036 = vunpack.c.l.b16 %v4004
        %v4037 = vunpack.c.l.b16 %v4005
        %v4038 = vunpack.c.l.b16 %v4006
        %v4039 = vunpack.c.l.b16 %v4007
        %v4040 = vunpack.c.l.b16 %v4008
        %v4041 = vunpack.c.l.b16 %v4009
        %v4042 = vunpack.c.l.b16 %v4010
        %v4043 = vpack.c.b16 %v4028, %v4027
        %v4044 = vpack.c.b16 %v4030, %v4029
        %v4045 = vpack.c.b16 %v4032, %v4031
        %v4046 = vpack.c.b16 %v4034, %v4033
        %v4047 = vpack.c.b16 %v4036, %v4035
        %v4048 = vpack.c.b16 %v4038, %v4037
        %v4049 = vpack.c.b16 %v4040, %v4039
        %v4050 = vpack.c.b16 %v4042, %v4041
        %4059 = vmatprep.subr.bf16.mxu0 0
        %4060 = vmatpush1.bf16.msra.mxu0 %v4043
        %4061 = vmatprep.subr.bf16.mxu0 0
        %4062 = vmatpush1.bf16.msra.mxu0 %v4044
        %4063 = vmatprep.subr.bf16.mxu0 0
        %4064 = vmatpush1.bf16.msra.mxu0 %v4045
        %4065 = vmatprep.subr.bf16.mxu0 0
        %4066 = vmatpush1.bf16.msra.mxu0 %v4046
        %4067 = vmatprep.subr.bf16.mxu0 0
        %4068 = vmatpush1.bf16.msra.mxu0 %v4047
        %4069 = vmatprep.subr.bf16.mxu0 0
        %4070 = vmatpush1.bf16.msra.mxu0 %v4048
        %4071 = vmatprep.subr.bf16.mxu0 0
        %4072 = vmatpush1.bf16.msra.mxu0 %v4049
        %4073 = vmatprep.subr.bf16.mxu0 0
        %4074 = vmatpush1.bf16.msra.mxu0 %v4050
        %4075 = vmatprep.subr.bf16.mxu0 0
        %4076 = vmatpush1.bf16.msra.mxu0 0
        %4077 = vmatprep.subr.bf16.mxu0 0
        %4078 = vmatpush1.bf16.msra.mxu0 0
        %4079 = vmatprep.subr.bf16.mxu0 0
        %4080 = vmatpush1.bf16.msra.mxu0 0
        %4081 = vmatprep.subr.bf16.mxu0 0
        %4082 = vmatpush1.bf16.msra.mxu0 0
        %4083 = vmatprep.subr.bf16.mxu0 0
        %4084 = vmatpush1.bf16.msra.mxu0 0
        %4085 = vmatprep.subr.bf16.mxu0 0
        %4086 = vmatpush1.bf16.msra.mxu0 0
        %4087 = vmatprep.subr.bf16.mxu0 0
        %4088 = vmatpush1.bf16.msra.mxu0 0
        %4089 = vmatprep.subr.bf16.mxu0 0
        %4090 = vmatpush1.bf16.msra.mxu0 0
        %4091 = vmatprep.mubr.bf16.mxu0 0
        %4092 = vmatmul.mubr.bf16.gmra.mrb[0].mxu0 %v3884
        %v4093 = vpop.f32.mrb[0].mxu0
        %v4094 = vadd.f32 0.0, %v4093
        %v4095 = vpop.f32.mrb[0].mxu0
        %v4096 = vpop.f32.mrb[0].mxu0
        %v4097 = vadd.f32 0.0, %v4096
        %v4098 = vpop.f32.mrb[0].mxu0
        %4099 = vdwg.mxu0
        %v4100 = vadd.s32 %v3990, 1
        %vm4101 = vcmp.eq.s32.totalorder %v1224, %v4100
        %v4102 = vsel %vm4101, 1, 0
        %v4103 = vcvt.s32.f32 %v4102
        %v4105 = vsel %vm1305, %v4103, 0
        %4107 = vmatprep.subr.mxu0 0.0
        %4108 = vmatpush1.msra.mxu0 %v4094
        %4109 = vmatprep.subr.mxu0 0.0
        %4110 = vmatpush1.msra.mxu0 %v4097
        %4111 = vmatprep.subr.mxu0 0.0
        %4112 = vmatpush1.msra.mxu0 0.0
        %4113 = vmatprep.subr.mxu0 0.0
        %4114 = vmatpush1.msra.mxu0 0.0
        %4115 = vmatprep.subr.mxu0 0.0
        %4116 = vmatpush1.msra.mxu0 0.0
        %4117 = vmatprep.subr.mxu0 0.0
        %4118 = vmatpush1.msra.mxu0 0.0
        %4119 = vmatprep.subr.mxu0 0.0
        %4120 = vmatpush1.msra.mxu0 0.0
        %4121 = vmatprep.subr.mxu0 0.0
        %4122 = vmatpush1.msra.mxu0 0.0
        %4123 = vmatprep.subr.mxu0 0.0
        %4124 = vmatpush1.msra.mxu0 0.0
        %4125 = vmatprep.subr.mxu0 0.0
        %4126 = vmatpush1.msra.mxu0 0.0
        %4127 = vmatprep.subr.mxu0 0.0
        %4128 = vmatpush1.msra.mxu0 0.0
        %4129 = vmatprep.subr.mxu0 0.0
        %4130 = vmatpush1.msra.mxu0 0.0
        %4131 = vmatprep.subr.mxu0 0.0
        %4132 = vmatpush1.msra.mxu0 0.0
        %4133 = vmatprep.subr.mxu0 0.0
        %4134 = vmatpush1.msra.mxu0 0.0
        %4135 = vmatprep.subr.mxu0 0.0
        %4136 = vmatpush1.msra.mxu0 0.0
        %4137 = vmatprep.subr.mxu0 0.0
        %4138 = vmatpush1.msra.mxu0 0.0
        %4139 = vmatprep.subr.mxu0 0.0
        %4140 = vmatpush1.msra.mxu0 0.0
        %4141 = vmatprep.subr.mxu0 0.0
        %4142 = vmatpush1.msra.mxu0 0.0
        %4143 = vmatprep.subr.mxu0 0.0
        %4144 = vmatpush1.msra.mxu0 0.0
        %4145 = vmatprep.subr.mxu0 0.0
        %4146 = vmatpush1.msra.mxu0 0.0
        %4147 = vmatprep.subr.mxu0 0.0
        %4148 = vmatpush1.msra.mxu0 0.0
        %4149 = vmatprep.subr.mxu0 0.0
        %4150 = vmatpush1.msra.mxu0 0.0
        %4151 = vmatprep.subr.mxu0 0.0
        %4152 = vmatpush1.msra.mxu0 0.0
        %4153 = vmatprep.subr.mxu0 0.0
        %4154 = vmatpush1.msra.mxu0 0.0
        %4155 = vmatprep.subr.mxu0 0.0
        %4156 = vmatpush1.msra.mxu0 0.0
        %4157 = vmatprep.subr.mxu0 0.0
        %4158 = vmatpush1.msra.mxu0 0.0
        %4159 = vmatprep.subr.mxu0 0.0
        %4160 = vmatpush1.msra.mxu0 0.0
        %4161 = vmatprep.subr.mxu0 0.0
        %4162 = vmatpush1.msra.mxu0 0.0
        %4163 = vmatprep.subr.mxu0 0.0
        %4164 = vmatpush1.msra.mxu0 0.0
        %4165 = vmatprep.subr.mxu0 0.0
        %4166 = vmatpush1.msra.mxu0 0.0
        %4167 = vmatprep.subr.mxu0 0.0
        %4168 = vmatpush1.msra.mxu0 0.0
        %4169 = vmatprep.subr.mxu0 0.0
        %4170 = vmatpush1.msra.mxu0 0.0
        %4171 = vmatprep.mubr.f32.mxu0 0.0
        %4172 = vmatmul.mubr.f32.gmra.mrb[0].mxu0 %v4105
        %v4173 = vpop.f32.mrb[0].mxu0
        %v4174 = vadd.f32 0.0, %v4173
        %v4175 = vpop.f32.mrb[0].mxu0
        %4176 = vdwg.mxu0
        %v4178 = vsel %vm1305, %v3993, 0
        %4180 = vmatprep.subr.mxu0 0.0
        %4181 = vmatpush1.msra.mxu0 %v3984
        %4182 = vmatprep.subr.mxu0 0.0
        %4183 = vmatpush1.msra.mxu0 %v3987
        %4184 = vmatprep.subr.mxu0 0.0
        %4185 = vmatpush1.msra.mxu0 0.0
        %4186 = vmatprep.subr.mxu0 0.0
        %4187 = vmatpush1.msra.mxu0 0.0
        %4188 = vmatprep.subr.mxu0 0.0
        %4189 = vmatpush1.msra.mxu0 0.0
        %4190 = vmatprep.subr.mxu0 0.0
        %4191 = vmatpush1.msra.mxu0 0.0
        %4192 = vmatprep.subr.mxu0 0.0
        %4193 = vmatpush1.msra.mxu0 0.0
        %4194 = vmatprep.subr.mxu0 0.0
        %4195 = vmatpush1.msra.mxu0 0.0
        %4196 = vmatprep.subr.mxu0 0.0
        %4197 = vmatpush1.msra.mxu0 0.0
        %4198 = vmatprep.subr.mxu0 0.0
        %4199 = vmatpush1.msra.mxu0 0.0
        %4200 = vmatprep.subr.mxu0 0.0
        %4201 = vmatpush1.msra.mxu0 0.0
        %4202 = vmatprep.subr.mxu0 0.0
        %4203 = vmatpush1.msra.mxu0 0.0
        %4204 = vmatprep.subr.mxu0 0.0
        %4205 = vmatpush1.msra.mxu0 0.0
        %4206 = vmatprep.subr.mxu0 0.0
        %4207 = vmatpush1.msra.mxu0 0.0
        %4208 = vmatprep.subr.mxu0 0.0
        %4209 = vmatpush1.msra.mxu0 0.0
        %4210 = vmatprep.subr.mxu0 0.0
        %4211 = vmatpush1.msra.mxu0 0.0
        %4212 = vmatprep.subr.mxu0 0.0
        %4213 = vmatpush1.msra.mxu0 0.0
        %4214 = vmatprep.subr.mxu0 0.0
        %4215 = vmatpush1.msra.mxu0 0.0
        %4216 = vmatprep.subr.mxu0 0.0
        %4217 = vmatpush1.msra.mxu0 0.0
        %4218 = vmatprep.subr.mxu0 0.0
        %4219 = vmatpush1.msra.mxu0 0.0
        %4220 = vmatprep.subr.mxu0 0.0
        %4221 = vmatpush1.msra.mxu0 0.0
        %4222 = vmatprep.subr.mxu0 0.0
        %4223 = vmatpush1.msra.mxu0 0.0
        %4224 = vmatprep.subr.mxu0 0.0
        %4225 = vmatpush1.msra.mxu0 0.0
        %4226 = vmatprep.subr.mxu0 0.0
        %4227 = vmatpush1.msra.mxu0 0.0
        %4228 = vmatprep.subr.mxu0 0.0
        %4229 = vmatpush1.msra.mxu0 0.0
        %4230 = vmatprep.subr.mxu0 0.0
        %4231 = vmatpush1.msra.mxu0 0.0
        %4232 = vmatprep.subr.mxu0 0.0
        %4233 = vmatpush1.msra.mxu0 0.0
        %4234 = vmatprep.subr.mxu0 0.0
        %4235 = vmatpush1.msra.mxu0 0.0
        %4236 = vmatprep.subr.mxu0 0.0
        %4237 = vmatpush1.msra.mxu0 0.0
        %4238 = vmatprep.subr.mxu0 0.0
        %4239 = vmatpush1.msra.mxu0 0.0
        %4240 = vmatprep.subr.mxu0 0.0
        %4241 = vmatpush1.msra.mxu0 0.0
        %4242 = vmatprep.subr.mxu0 0.0
        %4243 = vmatpush1.msra.mxu0 0.0
        %4244 = vmatprep.mubr.f32.mxu0 0.0
        %4245 = vmatmul.mubr.f32.gmra.mrb[0].mxu0 %v4178
        %v4246 = vpop.f32.mrb[0].mxu0
        %v4247 = vadd.f32 %v4174, %v4246
        %v4248 = vpop.f32.mrb[0].mxu0
        %4249 = vdwg.mxu0
        %s4250 = scalar_lea.vmem %s23, 128
        %v4251 = vld [vmem:[%s4250] sm:$0xf]
        %v4252 = vld [vmem:[%s4250 + $0x4] sm:$0xf]
        %v4253 = vld [vmem:[%s4250 + $0x8] sm:$0xf]
        %v4254 = vld [vmem:[%s4250 + $0xc] sm:$0xf]
        %v4255 = vld [vmem:[%s4250 + $0x10] sm:$0xf]
        %v4256 = vld [vmem:[%s4250 + $0x14] sm:$0xf]
        %v4257 = vld [vmem:[%s4250 + $0x18] sm:$0xf]
        %v4258 = vld [vmem:[%s4250 + $0x1c] sm:$0xf]
        %v4259 = vld [vmem:[%s4250 + $0x20] sm:$0xf]
        %v4260 = vld [vmem:[%s4250 + $0x24] sm:$0xf]
        %v4261 = vld [vmem:[%s4250 + $0x28] sm:$0xf]
        %v4262 = vld [vmem:[%s4250 + $0x2c] sm:$0xf]
        %v4263 = vld [vmem:[%s4250 + $0x30] sm:$0xf]
        %v4264 = vld [vmem:[%s4250 + $0x34] sm:$0xf]
        %v4265 = vld [vmem:[%s4250 + $0x38] sm:$0xf]
        %v4266 = vld [vmem:[%s4250 + $0x3c] sm:$0xf]
        %v4283 = vunpack.c.l.b16 %v4251
        %v4284 = vunpack.c.l.b16 %v4252
        %v4285 = vunpack.c.l.b16 %v4253
        %v4286 = vunpack.c.l.b16 %v4254
        %v4287 = vunpack.c.l.b16 %v4255
        %v4288 = vunpack.c.l.b16 %v4256
        %v4289 = vunpack.c.l.b16 %v4257
        %v4290 = vunpack.c.l.b16 %v4258
        %v4291 = vunpack.c.l.b16 %v4259
        %v4292 = vunpack.c.l.b16 %v4260
        %v4293 = vunpack.c.l.b16 %v4261
        %v4294 = vunpack.c.l.b16 %v4262
        %v4295 = vunpack.c.l.b16 %v4263
        %v4296 = vunpack.c.l.b16 %v4264
        %v4297 = vunpack.c.l.b16 %v4265
        %v4298 = vunpack.c.l.b16 %v4266
        %v4299 = vpack.c.b16 %v4284, %v4283
        %v4300 = vpack.c.b16 %v4286, %v4285
        %v4301 = vpack.c.b16 %v4288, %v4287
        %v4302 = vpack.c.b16 %v4290, %v4289
        %v4303 = vpack.c.b16 %v4292, %v4291
        %v4304 = vpack.c.b16 %v4294, %v4293
        %v4305 = vpack.c.b16 %v4296, %v4295
        %v4306 = vpack.c.b16 %v4298, %v4297
        %4315 = vmatprep.subr.bf16.mxu0 0
        %4316 = vmatpush1.bf16.msra.mxu0 %v4299
        %4317 = vmatprep.subr.bf16.mxu0 0
        %4318 = vmatpush1.bf16.msra.mxu0 %v4300
        %4319 = vmatprep.subr.bf16.mxu0 0
        %4320 = vmatpush1.bf16.msra.mxu0 %v4301
        %4321 = vmatprep.subr.bf16.mxu0 0
        %4322 = vmatpush1.bf16.msra.mxu0 %v4302
        %4323 = vmatprep.subr.bf16.mxu0 0
        %4324 = vmatpush1.bf16.msra.mxu0 %v4303
        %4325 = vmatprep.subr.bf16.mxu0 0
        %4326 = vmatpush1.bf16.msra.mxu0 %v4304
        %4327 = vmatprep.subr.bf16.mxu0 0
        %4328 = vmatpush1.bf16.msra.mxu0 %v4305
        %4329 = vmatprep.subr.bf16.mxu0 0
        %4330 = vmatpush1.bf16.msra.mxu0 %v4306
        %4331 = vmatprep.subr.bf16.mxu0 0
        %4332 = vmatpush1.bf16.msra.mxu0 0
        %4333 = vmatprep.subr.bf16.mxu0 0
        %4334 = vmatpush1.bf16.msra.mxu0 0
        %4335 = vmatprep.subr.bf16.mxu0 0
        %4336 = vmatpush1.bf16.msra.mxu0 0
        %4337 = vmatprep.subr.bf16.mxu0 0
        %4338 = vmatpush1.bf16.msra.mxu0 0
        %4339 = vmatprep.subr.bf16.mxu0 0
        %4340 = vmatpush1.bf16.msra.mxu0 0
        %4341 = vmatprep.subr.bf16.mxu0 0
        %4342 = vmatpush1.bf16.msra.mxu0 0
        %4343 = vmatprep.subr.bf16.mxu0 0
        %4344 = vmatpush1.bf16.msra.mxu0 0
        %4345 = vmatprep.subr.bf16.mxu0 0
        %4346 = vmatpush1.bf16.msra.mxu0 0
        %4347 = vmatprep.mubr.bf16.mxu0 0
        %4348 = vmatmul.mubr.bf16.gmra.mrb[0].mxu0 %v3884
        %v4349 = vpop.f32.mrb[0].mxu0
        %v4350 = vadd.f32 0.0, %v4349
        %v4351 = vpop.f32.mrb[0].mxu0
        %v4352 = vpop.f32.mrb[0].mxu0
        %v4353 = vadd.f32 0.0, %v4352
        %v4354 = vpop.f32.mrb[0].mxu0
        %4355 = vdwg.mxu0
        %v4356 = vadd.s32 %v3990, 2
        %vm4357 = vcmp.eq.s32.totalorder %v1224, %v4356
        %v4358 = vsel %vm4357, 1, 0
        %v4359 = vcvt.s32.f32 %v4358
        %v4361 = vsel %vm1305, %v4359, 0
        %4363 = vmatprep.subr.mxu0 0.0
        %4364 = vmatpush1.msra.mxu0 %v4350
        %4365 = vmatprep.subr.mxu0 0.0
        %4366 = vmatpush1.msra.mxu0 %v4353
        %4367 = vmatprep.subr.mxu0 0.0
        %4368 = vmatpush1.msra.mxu0 0.0
        %4369 = vmatprep.subr.mxu0 0.0
        %4370 = vmatpush1.msra.mxu0 0.0
        %4371 = vmatprep.subr.mxu0 0.0
        %4372 = vmatpush1.msra.mxu0 0.0
        %4373 = vmatprep.subr.mxu0 0.0
        %4374 = vmatpush1.msra.mxu0 0.0
        %4375 = vmatprep.subr.mxu0 0.0
        %4376 = vmatpush1.msra.mxu0 0.0
        %4377 = vmatprep.subr.mxu0 0.0
        %4378 = vmatpush1.msra.mxu0 0.0
        %4379 = vmatprep.subr.mxu0 0.0
        %4380 = vmatpush1.msra.mxu0 0.0
        %4381 = vmatprep.subr.mxu0 0.0
        %4382 = vmatpush1.msra.mxu0 0.0
        %4383 = vmatprep.subr.mxu0 0.0
        %4384 = vmatpush1.msra.mxu0 0.0
        %4385 = vmatprep.subr.mxu0 0.0
        %4386 = vmatpush1.msra.mxu0 0.0
        %4387 = vmatprep.subr.mxu0 0.0
        %4388 = vmatpush1.msra.mxu0 0.0
        %4389 = vmatprep.subr.mxu0 0.0
        %4390 = vmatpush1.msra.mxu0 0.0
        %4391 = vmatprep.subr.mxu0 0.0
        %4392 = vmatpush1.msra.mxu0 0.0
        %4393 = vmatprep.subr.mxu0 0.0
        %4394 = vmatpush1.msra.mxu0 0.0
        %4395 = vmatprep.subr.mxu0 0.0
        %4396 = vmatpush1.msra.mxu0 0.0
        %4397 = vmatprep.subr.mxu0 0.0
        %4398 = vmatpush1.msra.mxu0 0.0
        %4399 = vmatprep.subr.mxu0 0.0
        %4400 = vmatpush1.msra.mxu0 0.0
        %4401 = vmatprep.subr.mxu0 0.0
        %4402 = vmatpush1.msra.mxu0 0.0
        %4403 = vmatprep.subr.mxu0 0.0
        %4404 = vmatpush1.msra.mxu0 0.0
        %4405 = vmatprep.subr.mxu0 0.0
        %4406 = vmatpush1.msra.mxu0 0.0
        %4407 = vmatprep.subr.mxu0 0.0
        %4408 = vmatpush1.msra.mxu0 0.0
        %4409 = vmatprep.subr.mxu0 0.0
        %4410 = vmatpush1.msra.mxu0 0.0
        %4411 = vmatprep.subr.mxu0 0.0
        %4412 = vmatpush1.msra.mxu0 0.0
        %4413 = vmatprep.subr.mxu0 0.0
        %4414 = vmatpush1.msra.mxu0 0.0
        %4415 = vmatprep.subr.mxu0 0.0
        %4416 = vmatpush1.msra.mxu0 0.0
        %4417 = vmatprep.subr.mxu0 0.0
        %4418 = vmatpush1.msra.mxu0 0.0
        %4419 = vmatprep.subr.mxu0 0.0
        %4420 = vmatpush1.msra.mxu0 0.0
        %4421 = vmatprep.subr.mxu0 0.0
        %4422 = vmatpush1.msra.mxu0 0.0
        %4423 = vmatprep.subr.mxu0 0.0
        %4424 = vmatpush1.msra.mxu0 0.0
        %4425 = vmatprep.subr.mxu0 0.0
        %4426 = vmatpush1.msra.mxu0 0.0
        %4427 = vmatprep.mubr.f32.mxu0 0.0
        %4428 = vmatmul.mubr.f32.gmra.mrb[0].mxu0 %v4361
        %v4429 = vpop.f32.mrb[0].mxu0
        %v4430 = vadd.f32 0.0, %v4429
        %v4431 = vpop.f32.mrb[0].mxu0
        %4432 = vdwg.mxu0
        %v4433 = vadd.f32 %v4247, %v4430
        %s4434 = scalar_lea.vmem %s23, 192
        %v4435 = vld [vmem:[%s4434] sm:$0xf]
        %v4436 = vld [vmem:[%s4434 + $0x4] sm:$0xf]
        %v4437 = vld [vmem:[%s4434 + $0x8] sm:$0xf]
        %v4438 = vld [vmem:[%s4434 + $0xc] sm:$0xf]
        %v4439 = vld [vmem:[%s4434 + $0x10] sm:$0xf]
        %v4440 = vld [vmem:[%s4434 + $0x14] sm:$0xf]
        %v4441 = vld [vmem:[%s4434 + $0x18] sm:$0xf]
        %v4442 = vld [vmem:[%s4434 + $0x1c] sm:$0xf]
        %v4443 = vld [vmem:[%s4434 + $0x20] sm:$0xf]
        %v4444 = vld [vmem:[%s4434 + $0x24] sm:$0xf]
        %v4445 = vld [vmem:[%s4434 + $0x28] sm:$0xf]
        %v4446 = vld [vmem:[%s4434 + $0x2c] sm:$0xf]
        %v4447 = vld [vmem:[%s4434 + $0x30] sm:$0xf]
        %v4448 = vld [vmem:[%s4434 + $0x34] sm:$0xf]
        %v4449 = vld [vmem:[%s4434 + $0x38] sm:$0xf]
        %v4450 = vld [vmem:[%s4434 + $0x3c] sm:$0xf]
        %v4467 = vunpack.c.l.b16 %v4435
        %v4468 = vunpack.c.l.b16 %v4436
        %v4469 = vunpack.c.l.b16 %v4437
        %v4470 = vunpack.c.l.b16 %v4438
        %v4471 = vunpack.c.l.b16 %v4439
        %v4472 = vunpack.c.l.b16 %v4440
        %v4473 = vunpack.c.l.b16 %v4441
        %v4474 = vunpack.c.l.b16 %v4442
        %v4475 = vunpack.c.l.b16 %v4443
        %v4476 = vunpack.c.l.b16 %v4444
        %v4477 = vunpack.c.l.b16 %v4445
        %v4478 = vunpack.c.l.b16 %v4446
        %v4479 = vunpack.c.l.b16 %v4447
        %v4480 = vunpack.c.l.b16 %v4448
        %v4481 = vunpack.c.l.b16 %v4449
        %v4482 = vunpack.c.l.b16 %v4450
        %v4483 = vpack.c.b16 %v4468, %v4467
        %v4484 = vpack.c.b16 %v4470, %v4469
        %v4485 = vpack.c.b16 %v4472, %v4471
        %v4486 = vpack.c.b16 %v4474, %v4473
        %v4487 = vpack.c.b16 %v4476, %v4475
        %v4488 = vpack.c.b16 %v4478, %v4477
        %v4489 = vpack.c.b16 %v4480, %v4479
        %v4490 = vpack.c.b16 %v4482, %v4481
        %4499 = vmatprep.subr.bf16.mxu0 0
        %4500 = vmatpush1.bf16.msra.mxu0 %v4483
        %4501 = vmatprep.subr.bf16.mxu0 0
        %4502 = vmatpush1.bf16.msra.mxu0 %v4484
        %4503 = vmatprep.subr.bf16.mxu0 0
        %4504 = vmatpush1.bf16.msra.mxu0 %v4485
        %4505 = vmatprep.subr.bf16.mxu0 0
        %4506 = vmatpush1.bf16.msra.mxu0 %v4486
        %4507 = vmatprep.subr.bf16.mxu0 0
        %4508 = vmatpush1.bf16.msra.mxu0 %v4487
        %4509 = vmatprep.subr.bf16.mxu0 0
        %4510 = vmatpush1.bf16.msra.mxu0 %v4488
        %4511 = vmatprep.subr.bf16.mxu0 0
        %4512 = vmatpush1.bf16.msra.mxu0 %v4489
        %4513 = vmatprep.subr.bf16.mxu0 0
        %4514 = vmatpush1.bf16.msra.mxu0 %v4490
        %4515 = vmatprep.subr.bf16.mxu0 0
        %4516 = vmatpush1.bf16.msra.mxu0 0
        %4517 = vmatprep.subr.bf16.mxu0 0
        %4518 = vmatpush1.bf16.msra.mxu0 0
        %4519 = vmatprep.subr.bf16.mxu0 0
        %4520 = vmatpush1.bf16.msra.mxu0 0
        %4521 = vmatprep.subr.bf16.mxu0 0
        %4522 = vmatpush1.bf16.msra.mxu0 0
        %4523 = vmatprep.subr.bf16.mxu0 0
        %4524 = vmatpush1.bf16.msra.mxu0 0
        %4525 = vmatprep.subr.bf16.mxu0 0
        %4526 = vmatpush1.bf16.msra.mxu0 0
        %4527 = vmatprep.subr.bf16.mxu0 0
        %4528 = vmatpush1.bf16.msra.mxu0 0
        %4529 = vmatprep.subr.bf16.mxu0 0
        %4530 = vmatpush1.bf16.msra.mxu0 0
        %4531 = vmatprep.mubr.bf16.mxu0 0
        %4532 = vmatmul.mubr.bf16.gmra.mrb[0].mxu0 %v3884
        %v4533 = vpop.f32.mrb[0].mxu0
        %v4534 = vadd.f32 0.0, %v4533
        %v4535 = vpop.f32.mrb[0].mxu0
        %v4536 = vpop.f32.mrb[0].mxu0
        %v4537 = vadd.f32 0.0, %v4536
        %v4538 = vpop.f32.mrb[0].mxu0
        %4539 = vdwg.mxu0
        %v4540 = vadd.s32 %v3990, 3
        %vm4541 = vcmp.eq.s32.totalorder %v1224, %v4540
        %v4542 = vsel %vm4541, 1, 0
        %v4543 = vcvt.s32.f32 %v4542
        %v4545 = vsel %vm1305, %v4543, 0
        %4547 = vmatprep.subr.mxu0 0.0
        %4548 = vmatpush1.msra.mxu0 %v4534
        %4549 = vmatprep.subr.mxu0 0.0
        %4550 = vmatpush1.msra.mxu0 %v4537
        %4551 = vmatprep.subr.mxu0 0.0
        %4552 = vmatpush1.msra.mxu0 0.0
        %4553 = vmatprep.subr.mxu0 0.0
        %4554 = vmatpush1.msra.mxu0 0.0
        %4555 = vmatprep.subr.mxu0 0.0
        %4556 = vmatpush1.msra.mxu0 0.0
        %4557 = vmatprep.subr.mxu0 0.0
        %4558 = vmatpush1.msra.mxu0 0.0
        %4559 = vmatprep.subr.mxu0 0.0
        %4560 = vmatpush1.msra.mxu0 0.0
        %4561 = vmatprep.subr.mxu0 0.0
        %4562 = vmatpush1.msra.mxu0 0.0
        %4563 = vmatprep.subr.mxu0 0.0
        %4564 = vmatpush1.msra.mxu0 0.0
        %4565 = vmatprep.subr.mxu0 0.0
        %4566 = vmatpush1.msra.mxu0 0.0
        %4567 = vmatprep.subr.mxu0 0.0
        %4568 = vmatpush1.msra.mxu0 0.0
        %4569 = vmatprep.subr.mxu0 0.0
        %4570 = vmatpush1.msra.mxu0 0.0
        %4571 = vmatprep.subr.mxu0 0.0
        %4572 = vmatpush1.msra.mxu0 0.0
        %4573 = vmatprep.subr.mxu0 0.0
        %4574 = vmatpush1.msra.mxu0 0.0
        %4575 = vmatprep.subr.mxu0 0.0
        %4576 = vmatpush1.msra.mxu0 0.0
        %4577 = vmatprep.subr.mxu0 0.0
        %4578 = vmatpush1.msra.mxu0 0.0
        %4579 = vmatprep.subr.mxu0 0.0
        %4580 = vmatpush1.msra.mxu0 0.0
        %4581 = vmatprep.subr.mxu0 0.0
        %4582 = vmatpush1.msra.mxu0 0.0
        %4583 = vmatprep.subr.mxu0 0.0
        %4584 = vmatpush1.msra.mxu0 0.0
        %4585 = vmatprep.subr.mxu0 0.0
        %4586 = vmatpush1.msra.mxu0 0.0
        %4587 = vmatprep.subr.mxu0 0.0
        %4588 = vmatpush1.msra.mxu0 0.0
        %4589 = vmatprep.subr.mxu0 0.0
        %4590 = vmatpush1.msra.mxu0 0.0
        %4591 = vmatprep.subr.mxu0 0.0
        %4592 = vmatpush1.msra.mxu0 0.0
        %4593 = vmatprep.subr.mxu0 0.0
        %4594 = vmatpush1.msra.mxu0 0.0
        %4595 = vmatprep.subr.mxu0 0.0
        %4596 = vmatpush1.msra.mxu0 0.0
        %4597 = vmatprep.subr.mxu0 0.0
        %4598 = vmatpush1.msra.mxu0 0.0
        %4599 = vmatprep.subr.mxu0 0.0
        %4600 = vmatpush1.msra.mxu0 0.0
        %4601 = vmatprep.subr.mxu0 0.0
        %4602 = vmatpush1.msra.mxu0 0.0
        %4603 = vmatprep.subr.mxu0 0.0
        %4604 = vmatpush1.msra.mxu0 0.0
        %4605 = vmatprep.subr.mxu0 0.0
        %4606 = vmatpush1.msra.mxu0 0.0
        %4607 = vmatprep.subr.mxu0 0.0
        %4608 = vmatpush1.msra.mxu0 0.0
        %4609 = vmatprep.subr.mxu0 0.0
        %4610 = vmatpush1.msra.mxu0 0.0
        %4611 = vmatprep.mubr.f32.mxu0 0.0
        %4612 = vmatmul.mubr.f32.gmra.mrb[0].mxu0 %v4545
        %v4613 = vpop.f32.mrb[0].mxu0
        %v4614 = vadd.f32 0.0, %v4613
        %v4615 = vpop.f32.mrb[0].mxu0
        %4616 = vdwg.mxu0
        %v4617 = vadd.f32 %v4433, %v4614
        %v4618 = vld [vmem:[#allocation16] sm:$0x1]
        %v4620 = vlaneseq
        %v4621 = vshrl.u32 %v4620, 7
        %v4622 = vsub.s32 0, %v4621
        %v4623 = vrot.slane %v4618, %v4622
        %v4625 = vadd.f32 %v4617, %v4623
        %vm4626 = vcmp.gt.f32.partialorder %v4625, 0.0
        %v4627 = vmul.f32 %v4625, 0.2
        %v4628 = vsel %vm4626, %v4625, %v4627
        %v4629 = vld [vmem:[#allocation18] sm:$0xf]
        %v4630 = vld [vmem:[#allocation18 + $0x4] sm:$0xf]
        %v4631 = vld [vmem:[#allocation18 + $0x8] sm:$0xf]
        %v4632 = vld [vmem:[#allocation18 + $0xc] sm:$0xf]
        %v4633 = vld [vmem:[#allocation18 + $0x10] sm:$0xf]
        %v4634 = vld [vmem:[#allocation18 + $0x14] sm:$0xf]
        %v4635 = vld [vmem:[#allocation18 + $0x18] sm:$0xf]
        %v4636 = vld [vmem:[#allocation18 + $0x1c] sm:$0xf]
        %v4637 = vld [vmem:[#allocation18 + $0x20] sm:$0xf]
        %v4638 = vld [vmem:[#allocation18 + $0x24] sm:$0xf]
        %v4639 = vld [vmem:[#allocation18 + $0x28] sm:$0xf]
        %v4640 = vld [vmem:[#allocation18 + $0x2c] sm:$0xf]
        %v4641 = vld [vmem:[#allocation18 + $0x30] sm:$0xf]
        %v4642 = vld [vmem:[#allocation18 + $0x34] sm:$0xf]
        %v4643 = vld [vmem:[#allocation18 + $0x38] sm:$0xf]
        %v4644 = vld [vmem:[#allocation18 + $0x3c] sm:$0xf]
        %v4661 = vunpack.c.l.b16 %v4629
        %v4662 = vunpack.c.l.b16 %v4630
        %v4663 = vunpack.c.l.b16 %v4631
        %v4664 = vunpack.c.l.b16 %v4632
        %v4665 = vunpack.c.l.b16 %v4633
        %v4666 = vunpack.c.l.b16 %v4634
        %v4667 = vunpack.c.l.b16 %v4635
        %v4668 = vunpack.c.l.b16 %v4636
        %v4669 = vunpack.c.l.b16 %v4637
        %v4670 = vunpack.c.l.b16 %v4638
        %v4671 = vunpack.c.l.b16 %v4639
        %v4672 = vunpack.c.l.b16 %v4640
        %v4673 = vunpack.c.l.b16 %v4641
        %v4674 = vunpack.c.l.b16 %v4642
        %v4675 = vunpack.c.l.b16 %v4643
        %v4676 = vunpack.c.l.b16 %v4644
        %v4677 = vpack.c.b16 %v4662, %v4661
        %v4678 = vpack.c.b16 %v4664, %v4663
        %v4679 = vpack.c.b16 %v4666, %v4665
        %v4680 = vpack.c.b16 %v4668, %v4667
        %v4681 = vpack.c.b16 %v4670, %v4669
        %v4682 = vpack.c.b16 %v4672, %v4671
        %v4683 = vpack.c.b16 %v4674, %v4673
        %v4684 = vpack.c.b16 %v4676, %v4675
        %4693 = vmatprep.subr.bf16.mxu0 0
        %4694 = vmatpush1.bf16.msra.mxu0 %v4677
        %4695 = vmatprep.subr.bf16.mxu0 0
        %4696 = vmatpush1.bf16.msra.mxu0 %v4678
        %4697 = vmatprep.subr.bf16.mxu0 0
        %4698 = vmatpush1.bf16.msra.mxu0 %v4679
        %4699 = vmatprep.subr.bf16.mxu0 0
        %4700 = vmatpush1.bf16.msra.mxu0 %v4680
        %4701 = vmatprep.subr.bf16.mxu0 0
        %4702 = vmatpush1.bf16.msra.mxu0 %v4681
        %4703 = vmatprep.subr.bf16.mxu0 0
        %4704 = vmatpush1.bf16.msra.mxu0 %v4682
        %4705 = vmatprep.subr.bf16.mxu0 0
        %4706 = vmatpush1.bf16.msra.mxu0 %v4683
        %4707 = vmatprep.subr.bf16.mxu0 0
        %4708 = vmatpush1.bf16.msra.mxu0 %v4684
        %4709 = vmatprep.subr.bf16.mxu0 0
        %4710 = vmatpush1.bf16.msra.mxu0 0
        %4711 = vmatprep.subr.bf16.mxu0 0
        %4712 = vmatpush1.bf16.msra.mxu0 0
        %4713 = vmatprep.subr.bf16.mxu0 0
        %4714 = vmatpush1.bf16.msra.mxu0 0
        %4715 = vmatprep.subr.bf16.mxu0 0
        %4716 = vmatpush1.bf16.msra.mxu0 0
        %4717 = vmatprep.subr.bf16.mxu0 0
        %4718 = vmatpush1.bf16.msra.mxu0 0
        %4719 = vmatprep.subr.bf16.mxu0 0
        %4720 = vmatpush1.bf16.msra.mxu0 0
        %4721 = vmatprep.subr.bf16.mxu0 0
        %4722 = vmatpush1.bf16.msra.mxu0 0
        %4723 = vmatprep.subr.bf16.mxu0 0
        %4724 = vmatpush1.bf16.msra.mxu0 0
        %4725 = vmatprep.mubr.bf16.mxu0 0
        %4726 = vmatmul.mubr.bf16.gmra.mrb[0].mxu0 %v3884
        %v4727 = vpop.f32.mrb[0].mxu0
        %v4728 = vadd.f32 0.0, %v4727
        %v4729 = vpop.f32.mrb[0].mxu0
        %v4730 = vpop.f32.mrb[0].mxu0
        %v4731 = vadd.f32 0.0, %v4730
        %v4732 = vpop.f32.mrb[0].mxu0
        %4733 = vdwg.mxu0
        %v4734 = vmul.u32 %v1221, 2
        %vm4735 = vcmp.eq.s32.totalorder %v1224, %v4734
        %v4736 = vsel %vm4735, 1, 0
        %v4737 = vcvt.s32.f32 %v4736
        %s4738 = scalar_lea.vmem [#allocation18], 64
        %v4739 = vld [vmem:[%s4738] sm:$0xf]
        %v4740 = vld [vmem:[%s4738 + $0x4] sm:$0xf]
        %v4741 = vld [vmem:[%s4738 + $0x8] sm:$0xf]
        %v4742 = vld [vmem:[%s4738 + $0xc] sm:$0xf]
        %v4743 = vld [vmem:[%s4738 + $0x10] sm:$0xf]
        %v4744 = vld [vmem:[%s4738 + $0x14] sm:$0xf]
        %v4745 = vld [vmem:[%s4738 + $0x18] sm:$0xf]
        %v4746 = vld [vmem:[%s4738 + $0x1c] sm:$0xf]
        %v4747 = vld [vmem:[%s4738 + $0x20] sm:$0xf]
        %v4748 = vld [vmem:[%s4738 + $0x24] sm:$0xf]
        %v4749 = vld [vmem:[%s4738 + $0x28] sm:$0xf]
        %v4750 = vld [vmem:[%s4738 + $0x2c] sm:$0xf]
        %v4751 = vld [vmem:[%s4738 + $0x30] sm:$0xf]
        %v4752 = vld [vmem:[%s4738 + $0x34] sm:$0xf]
        %v4753 = vld [vmem:[%s4738 + $0x38] sm:$0xf]
        %v4754 = vld [vmem:[%s4738 + $0x3c] sm:$0xf]
        %v4771 = vunpack.c.l.b16 %v4739
        %v4772 = vunpack.c.l.b16 %v4740
        %v4773 = vunpack.c.l.b16 %v4741
        %v4774 = vunpack.c.l.b16 %v4742
        %v4775 = vunpack.c.l.b16 %v4743
        %v4776 = vunpack.c.l.b16 %v4744
        %v4777 = vunpack.c.l.b16 %v4745
        %v4778 = vunpack.c.l.b16 %v4746
        %v4779 = vunpack.c.l.b16 %v4747
        %v4780 = vunpack.c.l.b16 %v4748
        %v4781 = vunpack.c.l.b16 %v4749
        %v4782 = vunpack.c.l.b16 %v4750
        %v4783 = vunpack.c.l.b16 %v4751
        %v4784 = vunpack.c.l.b16 %v4752
        %v4785 = vunpack.c.l.b16 %v4753
        %v4786 = vunpack.c.l.b16 %v4754
        %v4787 = vpack.c.b16 %v4772, %v4771
        %v4788 = vpack.c.b16 %v4774, %v4773
        %v4789 = vpack.c.b16 %v4776, %v4775
        %v4790 = vpack.c.b16 %v4778, %v4777
        %v4791 = vpack.c.b16 %v4780, %v4779
        %v4792 = vpack.c.b16 %v4782, %v4781
        %v4793 = vpack.c.b16 %v4784, %v4783
        %v4794 = vpack.c.b16 %v4786, %v4785
        %4803 = vmatprep.subr.bf16.mxu0 0
        %4804 = vmatpush1.bf16.msra.mxu0 %v4787
        %4805 = vmatprep.subr.bf16.mxu0 0
        %4806 = vmatpush1.bf16.msra.mxu0 %v4788
        %4807 = vmatprep.subr.bf16.mxu0 0
        %4808 = vmatpush1.bf16.msra.mxu0 %v4789
        %4809 = vmatprep.subr.bf16.mxu0 0
        %4810 = vmatpush1.bf16.msra.mxu0 %v4790
        %4811 = vmatprep.subr.bf16.mxu0 0
        %4812 = vmatpush1.bf16.msra.mxu0 %v4791
        %4813 = vmatprep.subr.bf16.mxu0 0
        %4814 = vmatpush1.bf16.msra.mxu0 %v4792
        %4815 = vmatprep.subr.bf16.mxu0 0
        %4816 = vmatpush1.bf16.msra.mxu0 %v4793
        %4817 = vmatprep.subr.bf16.mxu0 0
        %4818 = vmatpush1.bf16.msra.mxu0 %v4794
        %4819 = vmatprep.subr.bf16.mxu0 0
        %4820 = vmatpush1.bf16.msra.mxu0 0
        %4821 = vmatprep.subr.bf16.mxu0 0
        %4822 = vmatpush1.bf16.msra.mxu0 0
        %4823 = vmatprep.subr.bf16.mxu0 0
        %4824 = vmatpush1.bf16.msra.mxu0 0
        %4825 = vmatprep.subr.bf16.mxu0 0
        %4826 = vmatpush1.bf16.msra.mxu0 0
        %4827 = vmatprep.subr.bf16.mxu0 0
        %4828 = vmatpush1.bf16.msra.mxu0 0
        %4829 = vmatprep.subr.bf16.mxu0 0
        %4830 = vmatpush1.bf16.msra.mxu0 0
        %4831 = vmatprep.subr.bf16.mxu0 0
        %4832 = vmatpush1.bf16.msra.mxu0 0
        %4833 = vmatprep.subr.bf16.mxu0 0
        %4834 = vmatpush1.bf16.msra.mxu0 0
        %4835 = vmatprep.mubr.bf16.mxu0 0
        %4836 = vmatmul.mubr.bf16.gmra.mrb[0].mxu0 %v3884
        %v4837 = vpop.f32.mrb[0].mxu0
        %v4838 = vadd.f32 0.0, %v4837
        %v4839 = vpop.f32.mrb[0].mxu0
        %v4840 = vpop.f32.mrb[0].mxu0
        %v4841 = vadd.f32 0.0, %v4840
        %v4842 = vpop.f32.mrb[0].mxu0
        %4843 = vdwg.mxu0
        %v4844 = vadd.s32 %v4734, 1
        %vm4845 = vcmp.eq.s32.totalorder %v1224, %v4844
        %v4846 = vsel %vm4845, 1, 0
        %v4847 = vcvt.s32.f32 %v4846
        %v4849 = vsel %vm1305, %v4847, 0
        %4851 = vmatprep.subr.mxu0 0.0
        %4852 = vmatpush1.msra.mxu0 %v4838
        %4853 = vmatprep.subr.mxu0 0.0
        %4854 = vmatpush1.msra.mxu0 %v4841
        %4855 = vmatprep.subr.mxu0 0.0
        %4856 = vmatpush1.msra.mxu0 0.0
        %4857 = vmatprep.subr.mxu0 0.0
        %4858 = vmatpush1.msra.mxu0 0.0
        %4859 = vmatprep.subr.mxu0 0.0
        %4860 = vmatpush1.msra.mxu0 0.0
        %4861 = vmatprep.subr.mxu0 0.0
        %4862 = vmatpush1.msra.mxu0 0.0
        %4863 = vmatprep.subr.mxu0 0.0
        %4864 = vmatpush1.msra.mxu0 0.0
        %4865 = vmatprep.subr.mxu0 0.0
        %4866 = vmatpush1.msra.mxu0 0.0
        %4867 = vmatprep.subr.mxu0 0.0
        %4868 = vmatpush1.msra.mxu0 0.0
        %4869 = vmatprep.subr.mxu0 0.0
        %4870 = vmatpush1.msra.mxu0 0.0
        %4871 = vmatprep.subr.mxu0 0.0
        %4872 = vmatpush1.msra.mxu0 0.0
        %4873 = vmatprep.subr.mxu0 0.0
        %4874 = vmatpush1.msra.mxu0 0.0
        %4875 = vmatprep.subr.mxu0 0.0
        %4876 = vmatpush1.msra.mxu0 0.0
        %4877 = vmatprep.subr.mxu0 0.0
        %4878 = vmatpush1.msra.mxu0 0.0
        %4879 = vmatprep.subr.mxu0 0.0
        %4880 = vmatpush1.msra.mxu0 0.0
        %4881 = vmatprep.subr.mxu0 0.0
        %4882 = vmatpush1.msra.mxu0 0.0
        %4883 = vmatprep.subr.mxu0 0.0
        %4884 = vmatpush1.msra.mxu0 0.0
        %4885 = vmatprep.subr.mxu0 0.0
        %4886 = vmatpush1.msra.mxu0 0.0
        %4887 = vmatprep.subr.mxu0 0.0
        %4888 = vmatpush1.msra.mxu0 0.0
        %4889 = vmatprep.subr.mxu0 0.0
        %4890 = vmatpush1.msra.mxu0 0.0
        %4891 = vmatprep.subr.mxu0 0.0
        %4892 = vmatpush1.msra.mxu0 0.0
        %4893 = vmatprep.subr.mxu0 0.0
        %4894 = vmatpush1.msra.mxu0 0.0
        %4895 = vmatprep.subr.mxu0 0.0
        %4896 = vmatpush1.msra.mxu0 0.0
        %4897 = vmatprep.subr.mxu0 0.0
        %4898 = vmatpush1.msra.mxu0 0.0
        %4899 = vmatprep.subr.mxu0 0.0
        %4900 = vmatpush1.msra.mxu0 0.0
        %4901 = vmatprep.subr.mxu0 0.0
        %4902 = vmatpush1.msra.mxu0 0.0
        %4903 = vmatprep.subr.mxu0 0.0
        %4904 = vmatpush1.msra.mxu0 0.0
        %4905 = vmatprep.subr.mxu0 0.0
        %4906 = vmatpush1.msra.mxu0 0.0
        %4907 = vmatprep.subr.mxu0 0.0
        %4908 = vmatpush1.msra.mxu0 0.0
        %4909 = vmatprep.subr.mxu0 0.0
        %4910 = vmatpush1.msra.mxu0 0.0
        %4911 = vmatprep.subr.mxu0 0.0
        %4912 = vmatpush1.msra.mxu0 0.0
        %4913 = vmatprep.subr.mxu0 0.0
        %4914 = vmatpush1.msra.mxu0 0.0
        %4915 = vmatprep.mubr.f32.mxu0 0.0
        %4916 = vmatmul.mubr.f32.gmra.mrb[0].mxu0 %v4849
        %v4917 = vpop.f32.mrb[0].mxu0
        %v4918 = vadd.f32 0.0, %v4917
        %v4919 = vpop.f32.mrb[0].mxu0
        %4920 = vdwg.mxu0
        %v4922 = vsel %vm1305, %v4737, 0
        %4924 = vmatprep.subr.mxu0 0.0
        %4925 = vmatpush1.msra.mxu0 %v4728
        %4926 = vmatprep.subr.mxu0 0.0
        %4927 = vmatpush1.msra.mxu0 %v4731
        %4928 = vmatprep.subr.mxu0 0.0
        %4929 = vmatpush1.msra.mxu0 0.0
        %4930 = vmatprep.subr.mxu0 0.0
        %4931 = vmatpush1.msra.mxu0 0.0
        %4932 = vmatprep.subr.mxu0 0.0
        %4933 = vmatpush1.msra.mxu0 0.0
        %4934 = vmatprep.subr.mxu0 0.0
        %4935 = vmatpush1.msra.mxu0 0.0
        %4936 = vmatprep.subr.mxu0 0.0
        %4937 = vmatpush1.msra.mxu0 0.0
        %4938 = vmatprep.subr.mxu0 0.0
        %4939 = vmatpush1.msra.mxu0 0.0
        %4940 = vmatprep.subr.mxu0 0.0
        %4941 = vmatpush1.msra.mxu0 0.0
        %4942 = vmatprep.subr.mxu0 0.0
        %4943 = vmatpush1.msra.mxu0 0.0
        %4944 = vmatprep.subr.mxu0 0.0
        %4945 = vmatpush1.msra.mxu0 0.0
        %4946 = vmatprep.subr.mxu0 0.0
        %4947 = vmatpush1.msra.mxu0 0.0
        %4948 = vmatprep.subr.mxu0 0.0
        %4949 = vmatpush1.msra.mxu0 0.0
        %4950 = vmatprep.subr.mxu0 0.0
        %4951 = vmatpush1.msra.mxu0 0.0
        %4952 = vmatprep.subr.mxu0 0.0
        %4953 = vmatpush1.msra.mxu0 0.0
        %4954 = vmatprep.subr.mxu0 0.0
        %4955 = vmatpush1.msra.mxu0 0.0
        %4956 = vmatprep.subr.mxu0 0.0
        %4957 = vmatpush1.msra.mxu0 0.0
        %4958 = vmatprep.subr.mxu0 0.0
        %4959 = vmatpush1.msra.mxu0 0.0
        %4960 = vmatprep.subr.mxu0 0.0
        %4961 = vmatpush1.msra.mxu0 0.0
        %4962 = vmatprep.subr.mxu0 0.0
        %4963 = vmatpush1.msra.mxu0 0.0
        %4964 = vmatprep.subr.mxu0 0.0
        %4965 = vmatpush1.msra.mxu0 0.0
        %4966 = vmatprep.subr.mxu0 0.0
        %4967 = vmatpush1.msra.mxu0 0.0
        %4968 = vmatprep.subr.mxu0 0.0
        %4969 = vmatpush1.msra.mxu0 0.0
        %4970 = vmatprep.subr.mxu0 0.0
        %4971 = vmatpush1.msra.mxu0 0.0
        %4972 = vmatprep.subr.mxu0 0.0
        %4973 = vmatpush1.msra.mxu0 0.0
        %4974 = vmatprep.subr.mxu0 0.0
        %4975 = vmatpush1.msra.mxu0 0.0
        %4976 = vmatprep.subr.mxu0 0.0
        %4977 = vmatpush1.msra.mxu0 0.0
        %4978 = vmatprep.subr.mxu0 0.0
        %4979 = vmatpush1.msra.mxu0 0.0
        %4980 = vmatprep.subr.mxu0 0.0
        %4981 = vmatpush1.msra.mxu0 0.0
        %4982 = vmatprep.subr.mxu0 0.0
        %4983 = vmatpush1.msra.mxu0 0.0
        %4984 = vmatprep.subr.mxu0 0.0
        %4985 = vmatpush1.msra.mxu0 0.0
        %4986 = vmatprep.subr.mxu0 0.0
        %4987 = vmatpush1.msra.mxu0 0.0
        %4988 = vmatprep.mubr.f32.mxu0 0.0
        %4989 = vmatmul.mubr.f32.gmra.mrb[0].mxu0 %v4922
        %v4990 = vpop.f32.mrb[0].mxu0
        %v4991 = vadd.f32 %v4918, %v4990
        %v4992 = vpop.f32.mrb[0].mxu0
        %4993 = vdwg.mxu0
        %v4994 = vld [vmem:[#allocation19] sm:$0x1]
        %v4996 = vlaneseq
        %v4997 = vshrl.u32 %v4996, 7
        %v4998 = vsub.s32 0, %v4997
        %v4999 = vrot.slane %v4994, %v4998
        %v5001 = vadd.f32 %v4991, %v4999
        %vm5002 = vcmp.gt.f32.partialorder %v5001, 0.0
        %v5003 = vmul.f32 %v5001, 0.2
        %v5004 = vsel %vm5002, %v5001, %v5003
        %v5005 = vpack.c.bf16 %v5004, %v5004
        %v5006 = vld [vmem:[#allocation21] sm:$0xf]
        %v5007 = vld [vmem:[#allocation21 + $0x4] sm:$0xf]
        %v5008 = vld [vmem:[#allocation21 + $0x8] sm:$0xf]
        %v5009 = vld [vmem:[#allocation21 + $0xc] sm:$0xf]
        %v5010 = vld [vmem:[#allocation21 + $0x10] sm:$0xf]
        %v5011 = vld [vmem:[#allocation21 + $0x14] sm:$0xf]
        %v5012 = vld [vmem:[#allocation21 + $0x18] sm:$0xf]
        %v5013 = vld [vmem:[#allocation21 + $0x1c] sm:$0xf]
        %v5014 = vld [vmem:[#allocation21 + $0x20] sm:$0xf]
        %v5015 = vld [vmem:[#allocation21 + $0x24] sm:$0xf]
        %v5016 = vld [vmem:[#allocation21 + $0x28] sm:$0xf]
        %v5017 = vld [vmem:[#allocation21 + $0x2c] sm:$0xf]
        %v5018 = vld [vmem:[#allocation21 + $0x30] sm:$0xf]
        %v5019 = vld [vmem:[#allocation21 + $0x34] sm:$0xf]
        %v5020 = vld [vmem:[#allocation21 + $0x38] sm:$0xf]
        %v5021 = vld [vmem:[#allocation21 + $0x3c] sm:$0xf]
        %v5038 = vunpack.c.l.b16 %v5006
        %v5039 = vunpack.c.l.b16 %v5007
        %v5040 = vunpack.c.l.b16 %v5008
        %v5041 = vunpack.c.l.b16 %v5009
        %v5042 = vunpack.c.l.b16 %v5010
        %v5043 = vunpack.c.l.b16 %v5011
        %v5044 = vunpack.c.l.b16 %v5012
        %v5045 = vunpack.c.l.b16 %v5013
        %v5046 = vunpack.c.l.b16 %v5014
        %v5047 = vunpack.c.l.b16 %v5015
        %v5048 = vunpack.c.l.b16 %v5016
        %v5049 = vunpack.c.l.b16 %v5017
        %v5050 = vunpack.c.l.b16 %v5018
        %v5051 = vunpack.c.l.b16 %v5019
        %v5052 = vunpack.c.l.b16 %v5020
        %v5053 = vunpack.c.l.b16 %v5021
        %v5054 = vpack.c.b16 %v5039, %v5038
        %v5055 = vpack.c.b16 %v5041, %v5040
        %v5056 = vpack.c.b16 %v5043, %v5042
        %v5057 = vpack.c.b16 %v5045, %v5044
        %v5058 = vpack.c.b16 %v5047, %v5046
        %v5059 = vpack.c.b16 %v5049, %v5048
        %v5060 = vpack.c.b16 %v5051, %v5050
        %v5061 = vpack.c.b16 %v5053, %v5052
        %5070 = vmatprep.subr.bf16.mxu0 0
        %5071 = vmatpush1.bf16.msra.mxu0 %v5054
        %5072 = vmatprep.subr.bf16.mxu0 0
        %5073 = vmatpush1.bf16.msra.mxu0 %v5055
        %5074 = vmatprep.subr.bf16.mxu0 0
        %5075 = vmatpush1.bf16.msra.mxu0 %v5056
        %5076 = vmatprep.subr.bf16.mxu0 0
        %5077 = vmatpush1.bf16.msra.mxu0 %v5057
        %5078 = vmatprep.subr.bf16.mxu0 0
        %5079 = vmatpush1.bf16.msra.mxu0 %v5058
        %5080 = vmatprep.subr.bf16.mxu0 0
        %5081 = vmatpush1.bf16.msra.mxu0 %v5059
        %5082 = vmatprep.subr.bf16.mxu0 0
        %5083 = vmatpush1.bf16.msra.mxu0 %v5060
        %5084 = vmatprep.subr.bf16.mxu0 0
        %5085 = vmatpush1.bf16.msra.mxu0 %v5061
        %5086 = vmatprep.subr.bf16.mxu0 0
        %5087 = vmatpush1.bf16.msra.mxu0 0
        %5088 = vmatprep.subr.bf16.mxu0 0
        %5089 = vmatpush1.bf16.msra.mxu0 0
        %5090 = vmatprep.subr.bf16.mxu0 0
        %5091 = vmatpush1.bf16.msra.mxu0 0
        %5092 = vmatprep.subr.bf16.mxu0 0
        %5093 = vmatpush1.bf16.msra.mxu0 0
        %5094 = vmatprep.subr.bf16.mxu0 0
        %5095 = vmatpush1.bf16.msra.mxu0 0
        %5096 = vmatprep.subr.bf16.mxu0 0
        %5097 = vmatpush1.bf16.msra.mxu0 0
        %5098 = vmatprep.subr.bf16.mxu0 0
        %5099 = vmatpush1.bf16.msra.mxu0 0
        %5100 = vmatprep.subr.bf16.mxu0 0
        %5101 = vmatpush1.bf16.msra.mxu0 0
        %5102 = vmatprep.mubr.bf16.mxu0 0
        %5103 = vmatmul.mubr.bf16.gmra.mrb[0].mxu0 %v5005
        %v5104 = vpop.f32.mrb[0].mxu0
        %v5105 = vadd.f32 0.0, %v5104
        %v5106 = vpop.f32.mrb[0].mxu0
        %v5107 = vpop.f32.mrb[0].mxu0
        %v5108 = vpop.f32.mrb[0].mxu0
        %5109 = vdwg.mxu0
        %s5110 = scalar_lea.vmem [#allocation21], 64
        %v5111 = vld [vmem:[%s5110] sm:$0xf]
        %v5112 = vld [vmem:[%s5110 + $0x4] sm:$0xf]
        %v5113 = vld [vmem:[%s5110 + $0x8] sm:$0xf]
        %v5114 = vld [vmem:[%s5110 + $0xc] sm:$0xf]
        %v5115 = vld [vmem:[%s5110 + $0x10] sm:$0xf]
        %v5116 = vld [vmem:[%s5110 + $0x14] sm:$0xf]
        %v5117 = vld [vmem:[%s5110 + $0x18] sm:$0xf]
        %v5118 = vld [vmem:[%s5110 + $0x1c] sm:$0xf]
        %v5119 = vld [vmem:[%s5110 + $0x20] sm:$0xf]
        %v5120 = vld [vmem:[%s5110 + $0x24] sm:$0xf]
        %v5121 = vld [vmem:[%s5110 + $0x28] sm:$0xf]
        %v5122 = vld [vmem:[%s5110 + $0x2c] sm:$0xf]
        %v5123 = vld [vmem:[%s5110 + $0x30] sm:$0xf]
        %v5124 = vld [vmem:[%s5110 + $0x34] sm:$0xf]
        %v5125 = vld [vmem:[%s5110 + $0x38] sm:$0xf]
        %v5126 = vld [vmem:[%s5110 + $0x3c] sm:$0xf]
        %v5143 = vunpack.c.l.b16 %v5111
        %v5144 = vunpack.c.l.b16 %v5112
        %v5145 = vunpack.c.l.b16 %v5113
        %v5146 = vunpack.c.l.b16 %v5114
        %v5147 = vunpack.c.l.b16 %v5115
        %v5148 = vunpack.c.l.b16 %v5116
        %v5149 = vunpack.c.l.b16 %v5117
        %v5150 = vunpack.c.l.b16 %v5118
        %v5151 = vunpack.c.l.b16 %v5119
        %v5152 = vunpack.c.l.b16 %v5120
        %v5153 = vunpack.c.l.b16 %v5121
        %v5154 = vunpack.c.l.b16 %v5122
        %v5155 = vunpack.c.l.b16 %v5123
        %v5156 = vunpack.c.l.b16 %v5124
        %v5157 = vunpack.c.l.b16 %v5125
        %v5158 = vunpack.c.l.b16 %v5126
        %v5159 = vpack.c.b16 %v5144, %v5143
        %v5160 = vpack.c.b16 %v5146, %v5145
        %v5161 = vpack.c.b16 %v5148, %v5147
        %v5162 = vpack.c.b16 %v5150, %v5149
        %v5163 = vpack.c.b16 %v5152, %v5151
        %v5164 = vpack.c.b16 %v5154, %v5153
        %v5165 = vpack.c.b16 %v5156, %v5155
        %v5166 = vpack.c.b16 %v5158, %v5157
        %5175 = vmatprep.subr.bf16.mxu0 0
        %5176 = vmatpush1.bf16.msra.mxu0 %v5159
        %5177 = vmatprep.subr.bf16.mxu0 0
        %5178 = vmatpush1.bf16.msra.mxu0 %v5160
        %5179 = vmatprep.subr.bf16.mxu0 0
        %5180 = vmatpush1.bf16.msra.mxu0 %v5161
        %5181 = vmatprep.subr.bf16.mxu0 0
        %5182 = vmatpush1.bf16.msra.mxu0 %v5162
        %5183 = vmatprep.subr.bf16.mxu0 0
        %5184 = vmatpush1.bf16.msra.mxu0 %v5163
        %5185 = vmatprep.subr.bf16.mxu0 0
        %5186 = vmatpush1.bf16.msra.mxu0 %v5164
        %5187 = vmatprep.subr.bf16.mxu0 0
        %5188 = vmatpush1.bf16.msra.mxu0 %v5165
        %5189 = vmatprep.subr.bf16.mxu0 0
        %5190 = vmatpush1.bf16.msra.mxu0 %v5166
        %5191 = vmatprep.subr.bf16.mxu0 0
        %5192 = vmatpush1.bf16.msra.mxu0 0
        %5193 = vmatprep.subr.bf16.mxu0 0
        %5194 = vmatpush1.bf16.msra.mxu0 0
        %5195 = vmatprep.subr.bf16.mxu0 0
        %5196 = vmatpush1.bf16.msra.mxu0 0
        %5197 = vmatprep.subr.bf16.mxu0 0
        %5198 = vmatpush1.bf16.msra.mxu0 0
        %5199 = vmatprep.subr.bf16.mxu0 0
        %5200 = vmatpush1.bf16.msra.mxu0 0
        %5201 = vmatprep.subr.bf16.mxu0 0
        %5202 = vmatpush1.bf16.msra.mxu0 0
        %5203 = vmatprep.subr.bf16.mxu0 0
        %5204 = vmatpush1.bf16.msra.mxu0 0
        %5205 = vmatprep.subr.bf16.mxu0 0
        %5206 = vmatpush1.bf16.msra.mxu0 0
        %5207 = vmatprep.mubr.bf16.mxu0 0
        %5208 = vmatmul.mubr.bf16.gmra.mrb[0].mxu0 %v5005
        %v5209 = vpop.f32.mrb[0].mxu0
        %v5210 = vadd.f32 0.0, %v5209
        %v5211 = vpop.f32.mrb[0].mxu0
        %v5212 = vpop.f32.mrb[0].mxu0
        %v5213 = vpop.f32.mrb[0].mxu0
        %5214 = vdwg.mxu0
        %vm5215 = vcmask 64512
        %v5216 = vsel %vm5215, %v1303, 0
        %5218 = vmatprep.subr.mxu0 0.0
        %5219 = vmatpush1.msra.mxu0 %v5210
        %5220 = vmatprep.subr.mxu0 0.0
        %5221 = vmatpush1.msra.mxu0 0.0
        %5222 = vmatprep.subr.mxu0 0.0
        %5223 = vmatpush1.msra.mxu0 0.0
        %5224 = vmatprep.subr.mxu0 0.0
        %5225 = vmatpush1.msra.mxu0 0.0
        %5226 = vmatprep.subr.mxu0 0.0
        %5227 = vmatpush1.msra.mxu0 0.0
        %5228 = vmatprep.subr.mxu0 0.0
        %5229 = vmatpush1.msra.mxu0 0.0
        %5230 = vmatprep.subr.mxu0 0.0
        %5231 = vmatpush1.msra.mxu0 0.0
        %5232 = vmatprep.subr.mxu0 0.0
        %5233 = vmatpush1.msra.mxu0 0.0
        %5234 = vmatprep.subr.mxu0 0.0
        %5235 = vmatpush1.msra.mxu0 0.0
        %5236 = vmatprep.subr.mxu0 0.0
        %5237 = vmatpush1.msra.mxu0 0.0
        %5238 = vmatprep.subr.mxu0 0.0
        %5239 = vmatpush1.msra.mxu0 0.0
        %5240 = vmatprep.subr.mxu0 0.0
        %5241 = vmatpush1.msra.mxu0 0.0
        %5242 = vmatprep.subr.mxu0 0.0
        %5243 = vmatpush1.msra.mxu0 0.0
        %5244 = vmatprep.subr.mxu0 0.0
        %5245 = vmatpush1.msra.mxu0 0.0
        %5246 = vmatprep.subr.mxu0 0.0
        %5247 = vmatpush1.msra.mxu0 0.0
        %5248 = vmatprep.subr.mxu0 0.0
        %5249 = vmatpush1.msra.mxu0 0.0
        %5250 = vmatprep.subr.mxu0 0.0
        %5251 = vmatpush1.msra.mxu0 0.0
        %5252 = vmatprep.subr.mxu0 0.0
        %5253 = vmatpush1.msra.mxu0 0.0
        %5254 = vmatprep.subr.mxu0 0.0
        %5255 = vmatpush1.msra.mxu0 0.0
        %5256 = vmatprep.subr.mxu0 0.0
        %5257 = vmatpush1.msra.mxu0 0.0
        %5258 = vmatprep.subr.mxu0 0.0
        %5259 = vmatpush1.msra.mxu0 0.0
        %5260 = vmatprep.subr.mxu0 0.0
        %5261 = vmatpush1.msra.mxu0 0.0
        %5262 = vmatprep.subr.mxu0 0.0
        %5263 = vmatpush1.msra.mxu0 0.0
        %5264 = vmatprep.subr.mxu0 0.0
        %5265 = vmatpush1.msra.mxu0 0.0
        %5266 = vmatprep.subr.mxu0 0.0
        %5267 = vmatpush1.msra.mxu0 0.0
        %5268 = vmatprep.subr.mxu0 0.0
        %5269 = vmatpush1.msra.mxu0 0.0
        %5270 = vmatprep.subr.mxu0 0.0
        %5271 = vmatpush1.msra.mxu0 0.0
        %5272 = vmatprep.subr.mxu0 0.0
        %5273 = vmatpush1.msra.mxu0 0.0
        %5274 = vmatprep.subr.mxu0 0.0
        %5275 = vmatpush1.msra.mxu0 0.0
        %5276 = vmatprep.subr.mxu0 0.0
        %5277 = vmatpush1.msra.mxu0 0.0
        %5278 = vmatprep.subr.mxu0 0.0
        %5279 = vmatpush1.msra.mxu0 0.0
        %5280 = vmatprep.subr.mxu0 0.0
        %5281 = vmatpush1.msra.mxu0 0.0
        %5282 = vmatprep.mubr.f32.mxu0 0.0
        %5283 = vmatmul.mubr.f32.gmra.mrb[0].mxu0 %v5216
        %v5284 = vpop.f32.mrb[0].mxu0
        %v5285 = vadd.f32 0.0, %v5284
        %v5286 = vpop.f32.mrb[0].mxu0
        %5287 = vdwg.mxu0
        %v5288 = vsel %vm5215, %v1231, 0
        %5290 = vmatprep.subr.mxu0 0.0
        %5291 = vmatpush1.msra.mxu0 %v5105
        %5292 = vmatprep.subr.mxu0 0.0
        %5293 = vmatpush1.msra.mxu0 0.0
        %5294 = vmatprep.subr.mxu0 0.0
        %5295 = vmatpush1.msra.mxu0 0.0
        %5296 = vmatprep.subr.mxu0 0.0
        %5297 = vmatpush1.msra.mxu0 0.0
        %5298 = vmatprep.subr.mxu0 0.0
        %5299 = vmatpush1.msra.mxu0 0.0
        %5300 = vmatprep.subr.mxu0 0.0
        %5301 = vmatpush1.msra.mxu0 0.0
        %5302 = vmatprep.subr.mxu0 0.0
        %5303 = vmatpush1.msra.mxu0 0.0
        %5304 = vmatprep.subr.mxu0 0.0
        %5305 = vmatpush1.msra.mxu0 0.0
        %5306 = vmatprep.subr.mxu0 0.0
        %5307 = vmatpush1.msra.mxu0 0.0
        %5308 = vmatprep.subr.mxu0 0.0
        %5309 = vmatpush1.msra.mxu0 0.0
        %5310 = vmatprep.subr.mxu0 0.0
        %5311 = vmatpush1.msra.mxu0 0.0
        %5312 = vmatprep.subr.mxu0 0.0
        %5313 = vmatpush1.msra.mxu0 0.0
        %5314 = vmatprep.subr.mxu0 0.0
        %5315 = vmatpush1.msra.mxu0 0.0
        %5316 = vmatprep.subr.mxu0 0.0
        %5317 = vmatpush1.msra.mxu0 0.0
        %5318 = vmatprep.subr.mxu0 0.0
        %5319 = vmatpush1.msra.mxu0 0.0
        %5320 = vmatprep.subr.mxu0 0.0
        %5321 = vmatpush1.msra.mxu0 0.0
        %5322 = vmatprep.subr.mxu0 0.0
        %5323 = vmatpush1.msra.mxu0 0.0
        %5324 = vmatprep.subr.mxu0 0.0
        %5325 = vmatpush1.msra.mxu0 0.0
        %5326 = vmatprep.subr.mxu0 0.0
        %5327 = vmatpush1.msra.mxu0 0.0
        %5328 = vmatprep.subr.mxu0 0.0
        %5329 = vmatpush1.msra.mxu0 0.0
        %5330 = vmatprep.subr.mxu0 0.0
        %5331 = vmatpush1.msra.mxu0 0.0
        %5332 = vmatprep.subr.mxu0 0.0
        %5333 = vmatpush1.msra.mxu0 0.0
        %5334 = vmatprep.subr.mxu0 0.0
        %5335 = vmatpush1.msra.mxu0 0.0
        %5336 = vmatprep.subr.mxu0 0.0
        %5337 = vmatpush1.msra.mxu0 0.0
        %5338 = vmatprep.subr.mxu0 0.0
        %5339 = vmatpush1.msra.mxu0 0.0
        %5340 = vmatprep.subr.mxu0 0.0
        %5341 = vmatpush1.msra.mxu0 0.0
        %5342 = vmatprep.subr.mxu0 0.0
        %5343 = vmatpush1.msra.mxu0 0.0
        %5344 = vmatprep.subr.mxu0 0.0
        %5345 = vmatpush1.msra.mxu0 0.0
        %5346 = vmatprep.subr.mxu0 0.0
        %5347 = vmatpush1.msra.mxu0 0.0
        %5348 = vmatprep.subr.mxu0 0.0
        %5349 = vmatpush1.msra.mxu0 0.0
        %5350 = vmatprep.subr.mxu0 0.0
        %5351 = vmatpush1.msra.mxu0 0.0
        %5352 = vmatprep.subr.mxu0 0.0
        %5353 = vmatpush1.msra.mxu0 0.0
        %5354 = vmatprep.mubr.f32.mxu0 0.0
        %5355 = vmatmul.mubr.f32.gmra.mrb[0].mxu0 %v5288
        %v5356 = vpop.f32.mrb[0].mxu0
        %v5357 = vadd.f32 %v5285, %v5356
        %v5358 = vpop.f32.mrb[0].mxu0
        %5359 = vdwg.mxu0
        %s5360 = scalar_lea.vmem [#allocation21], 128
        %v5361 = vld [vmem:[%s5360] sm:$0xf]
        %v5362 = vld [vmem:[%s5360 + $0x4] sm:$0xf]
        %v5363 = vld [vmem:[%s5360 + $0x8] sm:$0xf]
        %v5364 = vld [vmem:[%s5360 + $0xc] sm:$0xf]
        %v5365 = vld [vmem:[%s5360 + $0x10] sm:$0xf]
        %v5366 = vld [vmem:[%s5360 + $0x14] sm:$0xf]
        %v5367 = vld [vmem:[%s5360 + $0x18] sm:$0xf]
        %v5368 = vld [vmem:[%s5360 + $0x1c] sm:$0xf]
        %v5369 = vld [vmem:[%s5360 + $0x20] sm:$0xf]
        %v5370 = vld [vmem:[%s5360 + $0x24] sm:$0xf]
        %v5371 = vld [vmem:[%s5360 + $0x28] sm:$0xf]
        %v5372 = vld [vmem:[%s5360 + $0x2c] sm:$0xf]
        %v5373 = vld [vmem:[%s5360 + $0x30] sm:$0xf]
        %v5374 = vld [vmem:[%s5360 + $0x34] sm:$0xf]
        %v5375 = vld [vmem:[%s5360 + $0x38] sm:$0xf]
        %v5376 = vld [vmem:[%s5360 + $0x3c] sm:$0xf]
        %v5393 = vunpack.c.l.b16 %v5361
        %v5394 = vunpack.c.l.b16 %v5362
        %v5395 = vunpack.c.l.b16 %v5363
        %v5396 = vunpack.c.l.b16 %v5364
        %v5397 = vunpack.c.l.b16 %v5365
        %v5398 = vunpack.c.l.b16 %v5366
        %v5399 = vunpack.c.l.b16 %v5367
        %v5400 = vunpack.c.l.b16 %v5368
        %v5401 = vunpack.c.l.b16 %v5369
        %v5402 = vunpack.c.l.b16 %v5370
        %v5403 = vunpack.c.l.b16 %v5371
        %v5404 = vunpack.c.l.b16 %v5372
        %v5405 = vunpack.c.l.b16 %v5373
        %v5406 = vunpack.c.l.b16 %v5374
        %v5407 = vunpack.c.l.b16 %v5375
        %v5408 = vunpack.c.l.b16 %v5376
        %v5409 = vpack.c.b16 %v5394, %v5393
        %v5410 = vpack.c.b16 %v5396, %v5395
        %v5411 = vpack.c.b16 %v5398, %v5397
        %v5412 = vpack.c.b16 %v5400, %v5399
        %v5413 = vpack.c.b16 %v5402, %v5401
        %v5414 = vpack.c.b16 %v5404, %v5403
        %v5415 = vpack.c.b16 %v5406, %v5405
        %v5416 = vpack.c.b16 %v5408, %v5407
        %5425 = vmatprep.subr.bf16.mxu0 0
        %5426 = vmatpush1.bf16.msra.mxu0 %v5409
        %5427 = vmatprep.subr.bf16.mxu0 0
        %5428 = vmatpush1.bf16.msra.mxu0 %v5410
        %5429 = vmatprep.subr.bf16.mxu0 0
        %5430 = vmatpush1.bf16.msra.mxu0 %v5411
        %5431 = vmatprep.subr.bf16.mxu0 0
        %5432 = vmatpush1.bf16.msra.mxu0 %v5412
        %5433 = vmatprep.subr.bf16.mxu0 0
        %5434 = vmatpush1.bf16.msra.mxu0 %v5413
        %5435 = vmatprep.subr.bf16.mxu0 0
        %5436 = vmatpush1.bf16.msra.mxu0 %v5414
        %5437 = vmatprep.subr.bf16.mxu0 0
        %5438 = vmatpush1.bf16.msra.mxu0 %v5415
        %5439 = vmatprep.subr.bf16.mxu0 0
        %5440 = vmatpush1.bf16.msra.mxu0 %v5416
        %5441 = vmatprep.subr.bf16.mxu0 0
        %5442 = vmatpush1.bf16.msra.mxu0 0
        %5443 = vmatprep.subr.bf16.mxu0 0
        %5444 = vmatpush1.bf16.msra.mxu0 0
        %5445 = vmatprep.subr.bf16.mxu0 0
        %5446 = vmatpush1.bf16.msra.mxu0 0
        %5447 = vmatprep.subr.bf16.mxu0 0
        %5448 = vmatpush1.bf16.msra.mxu0 0
        %5449 = vmatprep.subr.bf16.mxu0 0
        %5450 = vmatpush1.bf16.msra.mxu0 0
        %5451 = vmatprep.subr.bf16.mxu0 0
        %5452 = vmatpush1.bf16.msra.mxu0 0
        %5453 = vmatprep.subr.bf16.mxu0 0
        %5454 = vmatpush1.bf16.msra.mxu0 0
        %5455 = vmatprep.subr.bf16.mxu0 0
        %5456 = vmatpush1.bf16.msra.mxu0 0
        %5457 = vmatprep.mubr.bf16.mxu0 0
        %5458 = vmatmul.mubr.bf16.gmra.mrb[0].mxu0 %v5005
        %v5459 = vpop.f32.mrb[0].mxu0
        %v5460 = vadd.f32 0.0, %v5459
        %v5461 = vpop.f32.mrb[0].mxu0
        %v5462 = vpop.f32.mrb[0].mxu0
        %v5463 = vpop.f32.mrb[0].mxu0
        %5464 = vdwg.mxu0
        %v5465 = vsel %vm5215, %v1540, 0
        %5467 = vmatprep.subr.mxu0 0.0
        %5468 = vmatpush1.msra.mxu0 %v5460
        %5469 = vmatprep.subr.mxu0 0.0
        %5470 = vmatpush1.msra.mxu0 0.0
        %5471 = vmatprep.subr.mxu0 0.0
        %5472 = vmatpush1.msra.mxu0 0.0
        %5473 = vmatprep.subr.mxu0 0.0
        %5474 = vmatpush1.msra.mxu0 0.0
        %5475 = vmatprep.subr.mxu0 0.0
        %5476 = vmatpush1.msra.mxu0 0.0
        %5477 = vmatprep.subr.mxu0 0.0
        %5478 = vmatpush1.msra.mxu0 0.0
        %5479 = vmatprep.subr.mxu0 0.0
        %5480 = vmatpush1.msra.mxu0 0.0
        %5481 = vmatprep.subr.mxu0 0.0
        %5482 = vmatpush1.msra.mxu0 0.0
        %5483 = vmatprep.subr.mxu0 0.0
        %5484 = vmatpush1.msra.mxu0 0.0
        %5485 = vmatprep.subr.mxu0 0.0
        %5486 = vmatpush1.msra.mxu0 0.0
        %5487 = vmatprep.subr.mxu0 0.0
        %5488 = vmatpush1.msra.mxu0 0.0
        %5489 = vmatprep.subr.mxu0 0.0
        %5490 = vmatpush1.msra.mxu0 0.0
        %5491 = vmatprep.subr.mxu0 0.0
        %5492 = vmatpush1.msra.mxu0 0.0
        %5493 = vmatprep.subr.mxu0 0.0
        %5494 = vmatpush1.msra.mxu0 0.0
        %5495 = vmatprep.subr.mxu0 0.0
        %5496 = vmatpush1.msra.mxu0 0.0
        %5497 = vmatprep.subr.mxu0 0.0
        %5498 = vmatpush1.msra.mxu0 0.0
        %5499 = vmatprep.subr.mxu0 0.0
        %5500 = vmatpush1.msra.mxu0 0.0
        %5501 = vmatprep.subr.mxu0 0.0
        %5502 = vmatpush1.msra.mxu0 0.0
        %5503 = vmatprep.subr.mxu0 0.0
        %5504 = vmatpush1.msra.mxu0 0.0
        %5505 = vmatprep.subr.mxu0 0.0
        %5506 = vmatpush1.msra.mxu0 0.0
        %5507 = vmatprep.subr.mxu0 0.0
        %5508 = vmatpush1.msra.mxu0 0.0
        %5509 = vmatprep.subr.mxu0 0.0
        %5510 = vmatpush1.msra.mxu0 0.0
        %5511 = vmatprep.subr.mxu0 0.0
        %5512 = vmatpush1.msra.mxu0 0.0
        %5513 = vmatprep.subr.mxu0 0.0
        %5514 = vmatpush1.msra.mxu0 0.0
        %5515 = vmatprep.subr.mxu0 0.0
        %5516 = vmatpush1.msra.mxu0 0.0
        %5517 = vmatprep.subr.mxu0 0.0
        %5518 = vmatpush1.msra.mxu0 0.0
        %5519 = vmatprep.subr.mxu0 0.0
        %5520 = vmatpush1.msra.mxu0 0.0
        %5521 = vmatprep.subr.mxu0 0.0
        %5522 = vmatpush1.msra.mxu0 0.0
        %5523 = vmatprep.subr.mxu0 0.0
        %5524 = vmatpush1.msra.mxu0 0.0
        %5525 = vmatprep.subr.mxu0 0.0
        %5526 = vmatpush1.msra.mxu0 0.0
        %5527 = vmatprep.subr.mxu0 0.0
        %5528 = vmatpush1.msra.mxu0 0.0
        %5529 = vmatprep.subr.mxu0 0.0
        %5530 = vmatpush1.msra.mxu0 0.0
        %5531 = vmatprep.mubr.f32.mxu0 0.0
        %5532 = vmatmul.mubr.f32.gmra.mrb[0].mxu0 %v5465
        %v5533 = vpop.f32.mrb[0].mxu0
        %v5534 = vadd.f32 0.0, %v5533
        %v5535 = vpop.f32.mrb[0].mxu0
        %5536 = vdwg.mxu0
        %v5537 = vadd.f32 %v5357, %v5534
        %v5538 = vld [vmem:[#allocation22] sm:$0x1]
        %v5540 = vlaneseq
        %v5541 = vshrl.u32 %v5540, 7
        %v5542 = vsub.s32 0, %v5541
        %v5543 = vrot.slane %v5538, %v5542
        %v5545 = vadd.f32 %v5537, %v5543
        %vm5546 = vcmp.gt.f32.partialorder %v5545, 0.0
        %v5547 = vmul.f32 %v5545, 0.2
        %v5548 = vsel %vm5546, %v5545, %v5547
        %v5549 = vpack.c.bf16 %v5548, %v5548
        %v5550 = vld [vmem:[%s35] sm:$0xf]
        %v5551 = vld [vmem:[%s35 + $0x4] sm:$0xf]
        %v5552 = vld [vmem:[%s35 + $0x8] sm:$0xf]
        %v5553 = vld [vmem:[%s35 + $0xc] sm:$0xf]
        %v5554 = vld [vmem:[%s35 + $0x10] sm:$0xf]
        %v5555 = vld [vmem:[%s35 + $0x14] sm:$0xf]
        %v5556 = vld [vmem:[%s35 + $0x18] sm:$0xf]
        %v5557 = vld [vmem:[%s35 + $0x1c] sm:$0xf]
        %v5558 = vld [vmem:[%s35 + $0x20] sm:$0xf]
        %v5559 = vld [vmem:[%s35 + $0x24] sm:$0xf]
        %v5560 = vld [vmem:[%s35 + $0x28] sm:$0xf]
        %v5561 = vld [vmem:[%s35 + $0x2c] sm:$0xf]
        %v5562 = vld [vmem:[%s35 + $0x30] sm:$0xf]
        %v5563 = vld [vmem:[%s35 + $0x34] sm:$0xf]
        %v5564 = vld [vmem:[%s35 + $0x38] sm:$0xf]
        %v5565 = vld [vmem:[%s35 + $0x3c] sm:$0xf]
        %v5582 = vunpack.c.l.b16 %v5550
        %v5583 = vunpack.c.l.b16 %v5551
        %v5584 = vunpack.c.l.b16 %v5552
        %v5585 = vunpack.c.l.b16 %v5553
        %v5586 = vunpack.c.l.b16 %v5554
        %v5587 = vunpack.c.l.b16 %v5555
        %v5588 = vunpack.c.l.b16 %v5556
        %v5589 = vunpack.c.l.b16 %v5557
        %v5590 = vunpack.c.l.b16 %v5558
        %v5591 = vunpack.c.l.b16 %v5559
        %v5592 = vunpack.c.l.b16 %v5560
        %v5593 = vunpack.c.l.b16 %v5561
        %v5594 = vunpack.c.l.b16 %v5562
        %v5595 = vunpack.c.l.b16 %v5563
        %v5596 = vunpack.c.l.b16 %v5564
        %v5597 = vunpack.c.l.b16 %v5565
        %v5598 = vpack.c.b16 %v5583, %v5582
        %v5599 = vpack.c.b16 %v5585, %v5584
        %v5600 = vpack.c.b16 %v5587, %v5586
        %v5601 = vpack.c.b16 %v5589, %v5588
        %v5602 = vpack.c.b16 %v5591, %v5590
        %v5603 = vpack.c.b16 %v5593, %v5592
        %v5604 = vpack.c.b16 %v5595, %v5594
        %v5605 = vpack.c.b16 %v5597, %v5596
        %5614 = vmatprep.subr.bf16.mxu0 0
        %5615 = vmatpush1.bf16.msra.mxu0 %v5598
        %5616 = vmatprep.subr.bf16.mxu0 0
        %5617 = vmatpush1.bf16.msra.mxu0 %v5599
        %5618 = vmatprep.subr.bf16.mxu0 0
        %5619 = vmatpush1.bf16.msra.mxu0 %v5600
        %5620 = vmatprep.subr.bf16.mxu0 0
        %5621 = vmatpush1.bf16.msra.mxu0 %v5601
        %5622 = vmatprep.subr.bf16.mxu0 0
        %5623 = vmatpush1.bf16.msra.mxu0 %v5602
        %5624 = vmatprep.subr.bf16.mxu0 0
        %5625 = vmatpush1.bf16.msra.mxu0 %v5603
        %5626 = vmatprep.subr.bf16.mxu0 0
        %5627 = vmatpush1.bf16.msra.mxu0 %v5604
        %5628 = vmatprep.subr.bf16.mxu0 0
        %5629 = vmatpush1.bf16.msra.mxu0 %v5605
        %5630 = vmatprep.subr.bf16.mxu0 0
        %5631 = vmatpush1.bf16.msra.mxu0 0
        %5632 = vmatprep.subr.bf16.mxu0 0
        %5633 = vmatpush1.bf16.msra.mxu0 0
        %5634 = vmatprep.subr.bf16.mxu0 0
        %5635 = vmatpush1.bf16.msra.mxu0 0
        %5636 = vmatprep.subr.bf16.mxu0 0
        %5637 = vmatpush1.bf16.msra.mxu0 0
        %5638 = vmatprep.subr.bf16.mxu0 0
        %5639 = vmatpush1.bf16.msra.mxu0 0
        %5640 = vmatprep.subr.bf16.mxu0 0
        %5641 = vmatpush1.bf16.msra.mxu0 0
        %5642 = vmatprep.subr.bf16.mxu0 0
        %5643 = vmatpush1.bf16.msra.mxu0 0
        %5644 = vmatprep.subr.bf16.mxu0 0
        %5645 = vmatpush1.bf16.msra.mxu0 0
        %5646 = vmatprep.mubr.bf16.mxu0 0
        %5647 = vmatmul.mubr.bf16.gmra.mrb[0].mxu0 %v5549
        %v5648 = vpop.f32.mrb[0].mxu0
        %v5649 = vadd.f32 0.0, %v5648
        %v5650 = vpop.f32.mrb[0].mxu0
        %v5651 = vpop.f32.mrb[0].mxu0
        %v5652 = vpop.f32.mrb[0].mxu0
        %5653 = vdwg.mxu0
        %s5654 = scalar_lea.vmem %s35, 64
        %v5655 = vld [vmem:[%s5654] sm:$0xf]
        %v5656 = vld [vmem:[%s5654 + $0x4] sm:$0xf]
        %v5657 = vld [vmem:[%s5654 + $0x8] sm:$0xf]
        %v5658 = vld [vmem:[%s5654 + $0xc] sm:$0xf]
        %v5659 = vld [vmem:[%s5654 + $0x10] sm:$0xf]
        %v5660 = vld [vmem:[%s5654 + $0x14] sm:$0xf]
        %v5661 = vld [vmem:[%s5654 + $0x18] sm:$0xf]
        %v5662 = vld [vmem:[%s5654 + $0x1c] sm:$0xf]
        %v5663 = vld [vmem:[%s5654 + $0x20] sm:$0xf]
        %v5664 = vld [vmem:[%s5654 + $0x24] sm:$0xf]
        %v5665 = vld [vmem:[%s5654 + $0x28] sm:$0xf]
        %v5666 = vld [vmem:[%s5654 + $0x2c] sm:$0xf]
        %v5667 = vld [vmem:[%s5654 + $0x30] sm:$0xf]
        %v5668 = vld [vmem:[%s5654 + $0x34] sm:$0xf]
        %v5669 = vld [vmem:[%s5654 + $0x38] sm:$0xf]
        %v5670 = vld [vmem:[%s5654 + $0x3c] sm:$0xf]
        %v5687 = vunpack.c.l.b16 %v5655
        %v5688 = vunpack.c.l.b16 %v5656
        %v5689 = vunpack.c.l.b16 %v5657
        %v5690 = vunpack.c.l.b16 %v5658
        %v5691 = vunpack.c.l.b16 %v5659
        %v5692 = vunpack.c.l.b16 %v5660
        %v5693 = vunpack.c.l.b16 %v5661
        %v5694 = vunpack.c.l.b16 %v5662
        %v5695 = vunpack.c.l.b16 %v5663
        %v5696 = vunpack.c.l.b16 %v5664
        %v5697 = vunpack.c.l.b16 %v5665
        %v5698 = vunpack.c.l.b16 %v5666
        %v5699 = vunpack.c.l.b16 %v5667
        %v5700 = vunpack.c.l.b16 %v5668
        %v5701 = vunpack.c.l.b16 %v5669
        %v5702 = vunpack.c.l.b16 %v5670
        %v5703 = vpack.c.b16 %v5688, %v5687
        %v5704 = vpack.c.b16 %v5690, %v5689
        %v5705 = vpack.c.b16 %v5692, %v5691
        %v5706 = vpack.c.b16 %v5694, %v5693
        %v5707 = vpack.c.b16 %v5696, %v5695
        %v5708 = vpack.c.b16 %v5698, %v5697
        %v5709 = vpack.c.b16 %v5700, %v5699
        %v5710 = vpack.c.b16 %v5702, %v5701
        %5719 = vmatprep.subr.bf16.mxu0 0
        %5720 = vmatpush1.bf16.msra.mxu0 %v5703
        %5721 = vmatprep.subr.bf16.mxu0 0
        %5722 = vmatpush1.bf16.msra.mxu0 %v5704
        %5723 = vmatprep.subr.bf16.mxu0 0
        %5724 = vmatpush1.bf16.msra.mxu0 %v5705
        %5725 = vmatprep.subr.bf16.mxu0 0
        %5726 = vmatpush1.bf16.msra.mxu0 %v5706
        %5727 = vmatprep.subr.bf16.mxu0 0
        %5728 = vmatpush1.bf16.msra.mxu0 %v5707
        %5729 = vmatprep.subr.bf16.mxu0 0
        %5730 = vmatpush1.bf16.msra.mxu0 %v5708
        %5731 = vmatprep.subr.bf16.mxu0 0
        %5732 = vmatpush1.bf16.msra.mxu0 %v5709
        %5733 = vmatprep.subr.bf16.mxu0 0
        %5734 = vmatpush1.bf16.msra.mxu0 %v5710
        %5735 = vmatprep.subr.bf16.mxu0 0
        %5736 = vmatpush1.bf16.msra.mxu0 0
        %5737 = vmatprep.subr.bf16.mxu0 0
        %5738 = vmatpush1.bf16.msra.mxu0 0
        %5739 = vmatprep.subr.bf16.mxu0 0
        %5740 = vmatpush1.bf16.msra.mxu0 0
        %5741 = vmatprep.subr.bf16.mxu0 0
        %5742 = vmatpush1.bf16.msra.mxu0 0
        %5743 = vmatprep.subr.bf16.mxu0 0
        %5744 = vmatpush1.bf16.msra.mxu0 0
        %5745 = vmatprep.subr.bf16.mxu0 0
        %5746 = vmatpush1.bf16.msra.mxu0 0
        %5747 = vmatprep.subr.bf16.mxu0 0
        %5748 = vmatpush1.bf16.msra.mxu0 0
        %5749 = vmatprep.subr.bf16.mxu0 0
        %5750 = vmatpush1.bf16.msra.mxu0 0
        %5751 = vmatprep.mubr.bf16.mxu0 0
        %5752 = vmatmul.mubr.bf16.gmra.mrb[0].mxu0 %v5549
        %v5753 = vpop.f32.mrb[0].mxu0
        %v5754 = vadd.f32 0.0, %v5753
        %v5755 = vpop.f32.mrb[0].mxu0
        %v5756 = vpop.f32.mrb[0].mxu0
        %v5757 = vpop.f32.mrb[0].mxu0
        %5758 = vdwg.mxu0
        %5759 = vmatprep.subr.mxu0 0.0
        %5760 = vmatpush1.msra.mxu0 %v5754
        %5761 = vmatprep.subr.mxu0 0.0
        %5762 = vmatpush1.msra.mxu0 0.0
        %5763 = vmatprep.subr.mxu0 0.0
        %5764 = vmatpush1.msra.mxu0 0.0
        %5765 = vmatprep.subr.mxu0 0.0
        %5766 = vmatpush1.msra.mxu0 0.0
        %5767 = vmatprep.subr.mxu0 0.0
        %5768 = vmatpush1.msra.mxu0 0.0
        %5769 = vmatprep.subr.mxu0 0.0
        %5770 = vmatpush1.msra.mxu0 0.0
        %5771 = vmatprep.subr.mxu0 0.0
        %5772 = vmatpush1.msra.mxu0 0.0
        %5773 = vmatprep.subr.mxu0 0.0
        %5774 = vmatpush1.msra.mxu0 0.0
        %5775 = vmatprep.subr.mxu0 0.0
        %5776 = vmatpush1.msra.mxu0 0.0
        %5777 = vmatprep.subr.mxu0 0.0
        %5778 = vmatpush1.msra.mxu0 0.0
        %5779 = vmatprep.subr.mxu0 0.0
        %5780 = vmatpush1.msra.mxu0 0.0
        %5781 = vmatprep.subr.mxu0 0.0
        %5782 = vmatpush1.msra.mxu0 0.0
        %5783 = vmatprep.subr.mxu0 0.0
        %5784 = vmatpush1.msra.mxu0 0.0
        %5785 = vmatprep.subr.mxu0 0.0
        %5786 = vmatpush1.msra.mxu0 0.0
        %5787 = vmatprep.subr.mxu0 0.0
        %5788 = vmatpush1.msra.mxu0 0.0
        %5789 = vmatprep.subr.mxu0 0.0
        %5790 = vmatpush1.msra.mxu0 0.0
        %5791 = vmatprep.subr.mxu0 0.0
        %5792 = vmatpush1.msra.mxu0 0.0
        %5793 = vmatprep.subr.mxu0 0.0
        %5794 = vmatpush1.msra.mxu0 0.0
        %5795 = vmatprep.subr.mxu0 0.0
        %5796 = vmatpush1.msra.mxu0 0.0
        %5797 = vmatprep.subr.mxu0 0.0
        %5798 = vmatpush1.msra.mxu0 0.0
        %5799 = vmatprep.subr.mxu0 0.0
        %5800 = vmatpush1.msra.mxu0 0.0
        %5801 = vmatprep.subr.mxu0 0.0
        %5802 = vmatpush1.msra.mxu0 0.0
        %5803 = vmatprep.subr.mxu0 0.0
        %5804 = vmatpush1.msra.mxu0 0.0
        %5805 = vmatprep.subr.mxu0 0.0
        %5806 = vmatpush1.msra.mxu0 0.0
        %5807 = vmatprep.subr.mxu0 0.0
        %5808 = vmatpush1.msra.mxu0 0.0
        %5809 = vmatprep.subr.mxu0 0.0
        %5810 = vmatpush1.msra.mxu0 0.0
        %5811 = vmatprep.subr.mxu0 0.0
        %5812 = vmatpush1.msra.mxu0 0.0
        %5813 = vmatprep.subr.mxu0 0.0
        %5814 = vmatpush1.msra.mxu0 0.0
        %5815 = vmatprep.subr.mxu0 0.0
        %5816 = vmatpush1.msra.mxu0 0.0
        %5817 = vmatprep.subr.mxu0 0.0
        %5818 = vmatpush1.msra.mxu0 0.0
        %5819 = vmatprep.subr.mxu0 0.0
        %5820 = vmatpush1.msra.mxu0 0.0
        %5821 = vmatprep.subr.mxu0 0.0
        %5822 = vmatpush1.msra.mxu0 0.0
        %5823 = vmatprep.mubr.f32.mxu0 0.0
        %5824 = vmatmul.mubr.f32.gmra.mrb[0].mxu0 %v5216
        %v5825 = vpop.f32.mrb[0].mxu0
        %v5826 = vadd.f32 0.0, %v5825
        %v5827 = vpop.f32.mrb[0].mxu0
        %5828 = vdwg.mxu0
        %5829 = vmatprep.subr.mxu0 0.0
        %5830 = vmatpush1.msra.mxu0 %v5649
        %5831 = vmatprep.subr.mxu0 0.0
        %5832 = vmatpush1.msra.mxu0 0.0
        %5833 = vmatprep.subr.mxu0 0.0
        %5834 = vmatpush1.msra.mxu0 0.0
        %5835 = vmatprep.subr.mxu0 0.0
        %5836 = vmatpush1.msra.mxu0 0.0
        %5837 = vmatprep.subr.mxu0 0.0
        %5838 = vmatpush1.msra.mxu0 0.0
        %5839 = vmatprep.subr.mxu0 0.0
        %5840 = vmatpush1.msra.mxu0 0.0
        %5841 = vmatprep.subr.mxu0 0.0
        %5842 = vmatpush1.msra.mxu0 0.0
        %5843 = vmatprep.subr.mxu0 0.0
        %5844 = vmatpush1.msra.mxu0 0.0
        %5845 = vmatprep.subr.mxu0 0.0
        %5846 = vmatpush1.msra.mxu0 0.0
        %5847 = vmatprep.subr.mxu0 0.0
        %5848 = vmatpush1.msra.mxu0 0.0
        %5849 = vmatprep.subr.mxu0 0.0
        %5850 = vmatpush1.msra.mxu0 0.0
        %5851 = vmatprep.subr.mxu0 0.0
        %5852 = vmatpush1.msra.mxu0 0.0
        %5853 = vmatprep.subr.mxu0 0.0
        %5854 = vmatpush1.msra.mxu0 0.0
        %5855 = vmatprep.subr.mxu0 0.0
        %5856 = vmatpush1.msra.mxu0 0.0
        %5857 = vmatprep.subr.mxu0 0.0
        %5858 = vmatpush1.msra.mxu0 0.0
        %5859 = vmatprep.subr.mxu0 0.0
        %5860 = vmatpush1.msra.mxu0 0.0
        %5861 = vmatprep.subr.mxu0 0.0
        %5862 = vmatpush1.msra.mxu0 0.0
        %5863 = vmatprep.subr.mxu0 0.0
        %5864 = vmatpush1.msra.mxu0 0.0
        %5865 = vmatprep.subr.mxu0 0.0
        %5866 = vmatpush1.msra.mxu0 0.0
        %5867 = vmatprep.subr.mxu0 0.0
        %5868 = vmatpush1.msra.mxu0 0.0
        %5869 = vmatprep.subr.mxu0 0.0
        %5870 = vmatpush1.msra.mxu0 0.0
        %5871 = vmatprep.subr.mxu0 0.0
        %5872 = vmatpush1.msra.mxu0 0.0
        %5873 = vmatprep.subr.mxu0 0.0
        %5874 = vmatpush1.msra.mxu0 0.0
        %5875 = vmatprep.subr.mxu0 0.0
        %5876 = vmatpush1.msra.mxu0 0.0
        %5877 = vmatprep.subr.mxu0 0.0
        %5878 = vmatpush1.msra.mxu0 0.0
        %5879 = vmatprep.subr.mxu0 0.0
        %5880 = vmatpush1.msra.mxu0 0.0
        %5881 = vmatprep.subr.mxu0 0.0
        %5882 = vmatpush1.msra.mxu0 0.0
        %5883 = vmatprep.subr.mxu0 0.0
        %5884 = vmatpush1.msra.mxu0 0.0
        %5885 = vmatprep.subr.mxu0 0.0
        %5886 = vmatpush1.msra.mxu0 0.0
        %5887 = vmatprep.subr.mxu0 0.0
        %5888 = vmatpush1.msra.mxu0 0.0
        %5889 = vmatprep.subr.mxu0 0.0
        %5890 = vmatpush1.msra.mxu0 0.0
        %5891 = vmatprep.subr.mxu0 0.0
        %5892 = vmatpush1.msra.mxu0 0.0
        %5893 = vmatprep.mubr.f32.mxu0 0.0
        %5894 = vmatmul.mubr.f32.gmra.mrb[0].mxu0 %v5288
        %v5895 = vpop.f32.mrb[0].mxu0
        %v5896 = vadd.f32 %v5826, %v5895
        %v5897 = vpop.f32.mrb[0].mxu0
        %5898 = vdwg.mxu0
        %s5899 = scalar_lea.vmem %s35, 128
        %v5900 = vld [vmem:[%s5899] sm:$0xf]
        %v5901 = vld [vmem:[%s5899 + $0x4] sm:$0xf]
        %v5902 = vld [vmem:[%s5899 + $0x8] sm:$0xf]
        %v5903 = vld [vmem:[%s5899 + $0xc] sm:$0xf]
        %v5904 = vld [vmem:[%s5899 + $0x10] sm:$0xf]
        %v5905 = vld [vmem:[%s5899 + $0x14] sm:$0xf]
        %v5906 = vld [vmem:[%s5899 + $0x18] sm:$0xf]
        %v5907 = vld [vmem:[%s5899 + $0x1c] sm:$0xf]
        %v5908 = vld [vmem:[%s5899 + $0x20] sm:$0xf]
        %v5909 = vld [vmem:[%s5899 + $0x24] sm:$0xf]
        %v5910 = vld [vmem:[%s5899 + $0x28] sm:$0xf]
        %v5911 = vld [vmem:[%s5899 + $0x2c] sm:$0xf]
        %v5912 = vld [vmem:[%s5899 + $0x30] sm:$0xf]
        %v5913 = vld [vmem:[%s5899 + $0x34] sm:$0xf]
        %v5914 = vld [vmem:[%s5899 + $0x38] sm:$0xf]
        %v5915 = vld [vmem:[%s5899 + $0x3c] sm:$0xf]
        %v5932 = vunpack.c.l.b16 %v5900
        %v5933 = vunpack.c.l.b16 %v5901
        %v5934 = vunpack.c.l.b16 %v5902
        %v5935 = vunpack.c.l.b16 %v5903
        %v5936 = vunpack.c.l.b16 %v5904
        %v5937 = vunpack.c.l.b16 %v5905
        %v5938 = vunpack.c.l.b16 %v5906
        %v5939 = vunpack.c.l.b16 %v5907
        %v5940 = vunpack.c.l.b16 %v5908
        %v5941 = vunpack.c.l.b16 %v5909
        %v5942 = vunpack.c.l.b16 %v5910
        %v5943 = vunpack.c.l.b16 %v5911
        %v5944 = vunpack.c.l.b16 %v5912
        %v5945 = vunpack.c.l.b16 %v5913
        %v5946 = vunpack.c.l.b16 %v5914
        %v5947 = vunpack.c.l.b16 %v5915
        %v5948 = vpack.c.b16 %v5933, %v5932
        %v5949 = vpack.c.b16 %v5935, %v5934
        %v5950 = vpack.c.b16 %v5937, %v5936
        %v5951 = vpack.c.b16 %v5939, %v5938
        %v5952 = vpack.c.b16 %v5941, %v5940
        %v5953 = vpack.c.b16 %v5943, %v5942
        %v5954 = vpack.c.b16 %v5945, %v5944
        %v5955 = vpack.c.b16 %v5947, %v5946
        %5964 = vmatprep.subr.bf16.mxu0 0
        %5965 = vmatpush1.bf16.msra.mxu0 %v5948
        %5966 = vmatprep.subr.bf16.mxu0 0
        %5967 = vmatpush1.bf16.msra.mxu0 %v5949
        %5968 = vmatprep.subr.bf16.mxu0 0
        %5969 = vmatpush1.bf16.msra.mxu0 %v5950
        %5970 = vmatprep.subr.bf16.mxu0 0
        %5971 = vmatpush1.bf16.msra.mxu0 %v5951
        %5972 = vmatprep.subr.bf16.mxu0 0
        %5973 = vmatpush1.bf16.msra.mxu0 %v5952
        %5974 = vmatprep.subr.bf16.mxu0 0
        %5975 = vmatpush1.bf16.msra.mxu0 %v5953
        %5976 = vmatprep.subr.bf16.mxu0 0
        %5977 = vmatpush1.bf16.msra.mxu0 %v5954
        %5978 = vmatprep.subr.bf16.mxu0 0
        %5979 = vmatpush1.bf16.msra.mxu0 %v5955
        %5980 = vmatprep.subr.bf16.mxu0 0
        %5981 = vmatpush1.bf16.msra.mxu0 0
        %5982 = vmatprep.subr.bf16.mxu0 0
        %5983 = vmatpush1.bf16.msra.mxu0 0
        %5984 = vmatprep.subr.bf16.mxu0 0
        %5985 = vmatpush1.bf16.msra.mxu0 0
        %5986 = vmatprep.subr.bf16.mxu0 0
        %5987 = vmatpush1.bf16.msra.mxu0 0
        %5988 = vmatprep.subr.bf16.mxu0 0
        %5989 = vmatpush1.bf16.msra.mxu0 0
        %5990 = vmatprep.subr.bf16.mxu0 0
        %5991 = vmatpush1.bf16.msra.mxu0 0
        %5992 = vmatprep.subr.bf16.mxu0 0
        %5993 = vmatpush1.bf16.msra.mxu0 0
        %5994 = vmatprep.subr.bf16.mxu0 0
        %5995 = vmatpush1.bf16.msra.mxu0 0
        %5996 = vmatprep.mubr.bf16.mxu0 0
        %5997 = vmatmul.mubr.bf16.gmra.mrb[0].mxu0 %v5549
        %v5998 = vpop.f32.mrb[0].mxu0
        %v5999 = vadd.f32 0.0, %v5998
        %v6000 = vpop.f32.mrb[0].mxu0
        %v6001 = vpop.f32.mrb[0].mxu0
        %v6002 = vpop.f32.mrb[0].mxu0
        %6003 = vdwg.mxu0
        %6004 = vmatprep.subr.mxu0 0.0
        %6005 = vmatpush1.msra.mxu0 %v5999
        %6006 = vmatprep.subr.mxu0 0.0
        %6007 = vmatpush1.msra.mxu0 0.0
        %6008 = vmatprep.subr.mxu0 0.0
        %6009 = vmatpush1.msra.mxu0 0.0
        %6010 = vmatprep.subr.mxu0 0.0
        %6011 = vmatpush1.msra.mxu0 0.0
        %6012 = vmatprep.subr.mxu0 0.0
        %6013 = vmatpush1.msra.mxu0 0.0
        %6014 = vmatprep.subr.mxu0 0.0
        %6015 = vmatpush1.msra.mxu0 0.0
        %6016 = vmatprep.subr.mxu0 0.0
        %6017 = vmatpush1.msra.mxu0 0.0
        %6018 = vmatprep.subr.mxu0 0.0
        %6019 = vmatpush1.msra.mxu0 0.0
        %6020 = vmatprep.subr.mxu0 0.0
        %6021 = vmatpush1.msra.mxu0 0.0
        %6022 = vmatprep.subr.mxu0 0.0
        %6023 = vmatpush1.msra.mxu0 0.0
        %6024 = vmatprep.subr.mxu0 0.0
        %6025 = vmatpush1.msra.mxu0 0.0
        %6026 = vmatprep.subr.mxu0 0.0
        %6027 = vmatpush1.msra.mxu0 0.0
        %6028 = vmatprep.subr.mxu0 0.0
        %6029 = vmatpush1.msra.mxu0 0.0
        %6030 = vmatprep.subr.mxu0 0.0
        %6031 = vmatpush1.msra.mxu0 0.0
        %6032 = vmatprep.subr.mxu0 0.0
        %6033 = vmatpush1.msra.mxu0 0.0
        %6034 = vmatprep.subr.mxu0 0.0
        %6035 = vmatpush1.msra.mxu0 0.0
        %6036 = vmatprep.subr.mxu0 0.0
        %6037 = vmatpush1.msra.mxu0 0.0
        %6038 = vmatprep.subr.mxu0 0.0
        %6039 = vmatpush1.msra.mxu0 0.0
        %6040 = vmatprep.subr.mxu0 0.0
        %6041 = vmatpush1.msra.mxu0 0.0
        %6042 = vmatprep.subr.mxu0 0.0
        %6043 = vmatpush1.msra.mxu0 0.0
        %6044 = vmatprep.subr.mxu0 0.0
        %6045 = vmatpush1.msra.mxu0 0.0
        %6046 = vmatprep.subr.mxu0 0.0
        %6047 = vmatpush1.msra.mxu0 0.0
        %6048 = vmatprep.subr.mxu0 0.0
        %6049 = vmatpush1.msra.mxu0 0.0
        %6050 = vmatprep.subr.mxu0 0.0
        %6051 = vmatpush1.msra.mxu0 0.0
        %6052 = vmatprep.subr.mxu0 0.0
        %6053 = vmatpush1.msra.mxu0 0.0
        %6054 = vmatprep.subr.mxu0 0.0
        %6055 = vmatpush1.msra.mxu0 0.0
        %6056 = vmatprep.subr.mxu0 0.0
        %6057 = vmatpush1.msra.mxu0 0.0
        %6058 = vmatprep.subr.mxu0 0.0
        %6059 = vmatpush1.msra.mxu0 0.0
        %6060 = vmatprep.subr.mxu0 0.0
        %6061 = vmatpush1.msra.mxu0 0.0
        %6062 = vmatprep.subr.mxu0 0.0
        %6063 = vmatpush1.msra.mxu0 0.0
        %6064 = vmatprep.subr.mxu0 0.0
        %6065 = vmatpush1.msra.mxu0 0.0
        %6066 = vmatprep.subr.mxu0 0.0
        %6067 = vmatpush1.msra.mxu0 0.0
        %6068 = vmatprep.mubr.f32.mxu0 0.0
        %6069 = vmatmul.mubr.f32.gmra.mrb[0].mxu0 %v5465
        %v6070 = vpop.f32.mrb[0].mxu0
        %v6071 = vadd.f32 0.0, %v6070
        %v6072 = vpop.f32.mrb[0].mxu0
        %6073 = vdwg.mxu0
        %v6074 = vadd.f32 %v5896, %v6071
        %v6075 = vld [vmem:[%s37] sm:$0x1]
        %v6077 = vlaneseq
        %v6078 = vshrl.u32 %v6077, 7
        %v6079 = vsub.s32 0, %v6078
        %v6080 = vrot.slane %v6075, %v6079
        %v6082 = vadd.f32 %v6074, %v6080
        %vm6083 = vcmp.gt.f32.partialorder %v6082, 0.0
        %v6084 = vmul.f32 %v6082, 0.2
        %v6085 = vsel %vm6083, %v6082, %v6084
        %v6086 = vadd.f32 %v5004, %v6085
        %v6087 = vpack.c.bf16 %v6086, %v6086
        %v6088 = vld [vmem:[#allocation24] sm:$0xf]
        %v6089 = vld [vmem:[#allocation24 + $0x4] sm:$0xf]
        %v6090 = vld [vmem:[#allocation24 + $0x8] sm:$0xf]
        %v6091 = vld [vmem:[#allocation24 + $0xc] sm:$0xf]
        %v6092 = vld [vmem:[#allocation24 + $0x10] sm:$0xf]
        %v6093 = vld [vmem:[#allocation24 + $0x14] sm:$0xf]
        %v6094 = vld [vmem:[#allocation24 + $0x18] sm:$0xf]
        %v6095 = vld [vmem:[#allocation24 + $0x1c] sm:$0xf]
        %v6096 = vld [vmem:[#allocation24 + $0x20] sm:$0xf]
        %v6097 = vld [vmem:[#allocation24 + $0x24] sm:$0xf]
        %v6098 = vld [vmem:[#allocation24 + $0x28] sm:$0xf]
        %v6099 = vld [vmem:[#allocation24 + $0x2c] sm:$0xf]
        %v6100 = vld [vmem:[#allocation24 + $0x30] sm:$0xf]
        %v6101 = vld [vmem:[#allocation24 + $0x34] sm:$0xf]
        %v6102 = vld [vmem:[#allocation24 + $0x38] sm:$0xf]
        %v6103 = vld [vmem:[#allocation24 + $0x3c] sm:$0xf]
        %v6120 = vunpack.c.l.b16 %v6088
        %v6121 = vunpack.c.l.b16 %v6089
        %v6122 = vunpack.c.l.b16 %v6090
        %v6123 = vunpack.c.l.b16 %v6091
        %v6124 = vunpack.c.l.b16 %v6092
        %v6125 = vunpack.c.l.b16 %v6093
        %v6126 = vunpack.c.l.b16 %v6094
        %v6127 = vunpack.c.l.b16 %v6095
        %v6128 = vunpack.c.l.b16 %v6096
        %v6129 = vunpack.c.l.b16 %v6097
        %v6130 = vunpack.c.l.b16 %v6098
        %v6131 = vunpack.c.l.b16 %v6099
        %v6132 = vunpack.c.l.b16 %v6100
        %v6133 = vunpack.c.l.b16 %v6101
        %v6134 = vunpack.c.l.b16 %v6102
        %v6135 = vunpack.c.l.b16 %v6103
        %v6136 = vpack.c.b16 %v6121, %v6120
        %v6137 = vpack.c.b16 %v6123, %v6122
        %v6138 = vpack.c.b16 %v6125, %v6124
        %v6139 = vpack.c.b16 %v6127, %v6126
        %v6140 = vpack.c.b16 %v6129, %v6128
        %v6141 = vpack.c.b16 %v6131, %v6130
        %v6142 = vpack.c.b16 %v6133, %v6132
        %v6143 = vpack.c.b16 %v6135, %v6134
        %6152 = vmatprep.subr.bf16.mxu0 0
        %6153 = vmatpush1.bf16.msra.mxu0 %v6136
        %6154 = vmatprep.subr.bf16.mxu0 0
        %6155 = vmatpush1.bf16.msra.mxu0 %v6137
        %6156 = vmatprep.subr.bf16.mxu0 0
        %6157 = vmatpush1.bf16.msra.mxu0 %v6138
        %6158 = vmatprep.subr.bf16.mxu0 0
        %6159 = vmatpush1.bf16.msra.mxu0 %v6139
        %6160 = vmatprep.subr.bf16.mxu0 0
        %6161 = vmatpush1.bf16.msra.mxu0 %v6140
        %6162 = vmatprep.subr.bf16.mxu0 0
        %6163 = vmatpush1.bf16.msra.mxu0 %v6141
        %6164 = vmatprep.subr.bf16.mxu0 0
        %6165 = vmatpush1.bf16.msra.mxu0 %v6142
        %6166 = vmatprep.subr.bf16.mxu0 0
        %6167 = vmatpush1.bf16.msra.mxu0 %v6143
        %6168 = vmatprep.subr.bf16.mxu0 0
        %6169 = vmatpush1.bf16.msra.mxu0 0
        %6170 = vmatprep.subr.bf16.mxu0 0
        %6171 = vmatpush1.bf16.msra.mxu0 0
        %6172 = vmatprep.subr.bf16.mxu0 0
        %6173 = vmatpush1.bf16.msra.mxu0 0
        %6174 = vmatprep.subr.bf16.mxu0 0
        %6175 = vmatpush1.bf16.msra.mxu0 0
        %6176 = vmatprep.subr.bf16.mxu0 0
        %6177 = vmatpush1.bf16.msra.mxu0 0
        %6178 = vmatprep.subr.bf16.mxu0 0
        %6179 = vmatpush1.bf16.msra.mxu0 0
        %6180 = vmatprep.subr.bf16.mxu0 0
        %6181 = vmatpush1.bf16.msra.mxu0 0
        %6182 = vmatprep.subr.bf16.mxu0 0
        %6183 = vmatpush1.bf16.msra.mxu0 0
        %6184 = vmatprep.mubr.bf16.mxu0 0
        %6185 = vmatmul.mubr.bf16.gmra.mrb[0].mxu0 %v6087
        %v6186 = vpop.f32.mrb[0].mxu0
        %v6187 = vadd.f32 0.0, %v6186
        %v6188 = vpop.f32.mrb[0].mxu0
        %v6189 = vpop.f32.mrb[0].mxu0
        %v6190 = vpop.f32.mrb[0].mxu0
        %6191 = vdwg.mxu0
        %s6192 = scalar_lea.vmem [#allocation24], 64
        %v6193 = vld [vmem:[%s6192] sm:$0xf]
        %v6194 = vld [vmem:[%s6192 + $0x4] sm:$0xf]
        %v6195 = vld [vmem:[%s6192 + $0x8] sm:$0xf]
        %v6196 = vld [vmem:[%s6192 + $0xc] sm:$0xf]
        %v6197 = vld [vmem:[%s6192 + $0x10] sm:$0xf]
        %v6198 = vld [vmem:[%s6192 + $0x14] sm:$0xf]
        %v6199 = vld [vmem:[%s6192 + $0x18] sm:$0xf]
        %v6200 = vld [vmem:[%s6192 + $0x1c] sm:$0xf]
        %v6201 = vld [vmem:[%s6192 + $0x20] sm:$0xf]
        %v6202 = vld [vmem:[%s6192 + $0x24] sm:$0xf]
        %v6203 = vld [vmem:[%s6192 + $0x28] sm:$0xf]
        %v6204 = vld [vmem:[%s6192 + $0x2c] sm:$0xf]
        %v6205 = vld [vmem:[%s6192 + $0x30] sm:$0xf]
        %v6206 = vld [vmem:[%s6192 + $0x34] sm:$0xf]
        %v6207 = vld [vmem:[%s6192 + $0x38] sm:$0xf]
        %v6208 = vld [vmem:[%s6192 + $0x3c] sm:$0xf]
        %v6225 = vunpack.c.l.b16 %v6193
        %v6226 = vunpack.c.l.b16 %v6194
        %v6227 = vunpack.c.l.b16 %v6195
        %v6228 = vunpack.c.l.b16 %v6196
        %v6229 = vunpack.c.l.b16 %v6197
        %v6230 = vunpack.c.l.b16 %v6198
        %v6231 = vunpack.c.l.b16 %v6199
        %v6232 = vunpack.c.l.b16 %v6200
        %v6233 = vunpack.c.l.b16 %v6201
        %v6234 = vunpack.c.l.b16 %v6202
        %v6235 = vunpack.c.l.b16 %v6203
        %v6236 = vunpack.c.l.b16 %v6204
        %v6237 = vunpack.c.l.b16 %v6205
        %v6238 = vunpack.c.l.b16 %v6206
        %v6239 = vunpack.c.l.b16 %v6207
        %v6240 = vunpack.c.l.b16 %v6208
        %v6241 = vpack.c.b16 %v6226, %v6225
        %v6242 = vpack.c.b16 %v6228, %v6227
        %v6243 = vpack.c.b16 %v6230, %v6229
        %v6244 = vpack.c.b16 %v6232, %v6231
        %v6245 = vpack.c.b16 %v6234, %v6233
        %v6246 = vpack.c.b16 %v6236, %v6235
        %v6247 = vpack.c.b16 %v6238, %v6237
        %v6248 = vpack.c.b16 %v6240, %v6239
        %6257 = vmatprep.subr.bf16.mxu0 0
        %6258 = vmatpush1.bf16.msra.mxu0 %v6241
        %6259 = vmatprep.subr.bf16.mxu0 0
        %6260 = vmatpush1.bf16.msra.mxu0 %v6242
        %6261 = vmatprep.subr.bf16.mxu0 0
        %6262 = vmatpush1.bf16.msra.mxu0 %v6243
        %6263 = vmatprep.subr.bf16.mxu0 0
        %6264 = vmatpush1.bf16.msra.mxu0 %v6244
        %6265 = vmatprep.subr.bf16.mxu0 0
        %6266 = vmatpush1.bf16.msra.mxu0 %v6245
        %6267 = vmatprep.subr.bf16.mxu0 0
        %6268 = vmatpush1.bf16.msra.mxu0 %v6246
        %6269 = vmatprep.subr.bf16.mxu0 0
        %6270 = vmatpush1.bf16.msra.mxu0 %v6247
        %6271 = vmatprep.subr.bf16.mxu0 0
        %6272 = vmatpush1.bf16.msra.mxu0 %v6248
        %6273 = vmatprep.subr.bf16.mxu0 0
        %6274 = vmatpush1.bf16.msra.mxu0 0
        %6275 = vmatprep.subr.bf16.mxu0 0
        %6276 = vmatpush1.bf16.msra.mxu0 0
        %6277 = vmatprep.subr.bf16.mxu0 0
        %6278 = vmatpush1.bf16.msra.mxu0 0
        %6279 = vmatprep.subr.bf16.mxu0 0
        %6280 = vmatpush1.bf16.msra.mxu0 0
        %6281 = vmatprep.subr.bf16.mxu0 0
        %6282 = vmatpush1.bf16.msra.mxu0 0
        %6283 = vmatprep.subr.bf16.mxu0 0
        %6284 = vmatpush1.bf16.msra.mxu0 0
        %6285 = vmatprep.subr.bf16.mxu0 0
        %6286 = vmatpush1.bf16.msra.mxu0 0
        %6287 = vmatprep.subr.bf16.mxu0 0
        %6288 = vmatpush1.bf16.msra.mxu0 0
        %6289 = vmatprep.mubr.bf16.mxu0 0
        %6290 = vmatmul.mubr.bf16.gmra.mrb[0].mxu0 %v6087
        %v6291 = vpop.f32.mrb[0].mxu0
        %v6292 = vadd.f32 0.0, %v6291
        %v6293 = vpop.f32.mrb[0].mxu0
        %v6294 = vpop.f32.mrb[0].mxu0
        %v6295 = vpop.f32.mrb[0].mxu0
        %6296 = vdwg.mxu0
        %6297 = vmatprep.subr.mxu0 0.0
        %6298 = vmatpush1.msra.mxu0 %v6292
        %6299 = vmatprep.subr.mxu0 0.0
        %6300 = vmatpush1.msra.mxu0 0.0
        %6301 = vmatprep.subr.mxu0 0.0
        %6302 = vmatpush1.msra.mxu0 0.0
        %6303 = vmatprep.subr.mxu0 0.0
        %6304 = vmatpush1.msra.mxu0 0.0
        %6305 = vmatprep.subr.mxu0 0.0
        %6306 = vmatpush1.msra.mxu0 0.0
        %6307 = vmatprep.subr.mxu0 0.0
        %6308 = vmatpush1.msra.mxu0 0.0
        %6309 = vmatprep.subr.mxu0 0.0
        %6310 = vmatpush1.msra.mxu0 0.0
        %6311 = vmatprep.subr.mxu0 0.0
        %6312 = vmatpush1.msra.mxu0 0.0
        %6313 = vmatprep.subr.mxu0 0.0
        %6314 = vmatpush1.msra.mxu0 0.0
        %6315 = vmatprep.subr.mxu0 0.0
        %6316 = vmatpush1.msra.mxu0 0.0
        %6317 = vmatprep.subr.mxu0 0.0
        %6318 = vmatpush1.msra.mxu0 0.0
        %6319 = vmatprep.subr.mxu0 0.0
        %6320 = vmatpush1.msra.mxu0 0.0
        %6321 = vmatprep.subr.mxu0 0.0
        %6322 = vmatpush1.msra.mxu0 0.0
        %6323 = vmatprep.subr.mxu0 0.0
        %6324 = vmatpush1.msra.mxu0 0.0
        %6325 = vmatprep.subr.mxu0 0.0
        %6326 = vmatpush1.msra.mxu0 0.0
        %6327 = vmatprep.subr.mxu0 0.0
        %6328 = vmatpush1.msra.mxu0 0.0
        %6329 = vmatprep.subr.mxu0 0.0
        %6330 = vmatpush1.msra.mxu0 0.0
        %6331 = vmatprep.subr.mxu0 0.0
        %6332 = vmatpush1.msra.mxu0 0.0
        %6333 = vmatprep.subr.mxu0 0.0
        %6334 = vmatpush1.msra.mxu0 0.0
        %6335 = vmatprep.subr.mxu0 0.0
        %6336 = vmatpush1.msra.mxu0 0.0
        %6337 = vmatprep.subr.mxu0 0.0
        %6338 = vmatpush1.msra.mxu0 0.0
        %6339 = vmatprep.subr.mxu0 0.0
        %6340 = vmatpush1.msra.mxu0 0.0
        %6341 = vmatprep.subr.mxu0 0.0
        %6342 = vmatpush1.msra.mxu0 0.0
        %6343 = vmatprep.subr.mxu0 0.0
        %6344 = vmatpush1.msra.mxu0 0.0
        %6345 = vmatprep.subr.mxu0 0.0
        %6346 = vmatpush1.msra.mxu0 0.0
        %6347 = vmatprep.subr.mxu0 0.0
        %6348 = vmatpush1.msra.mxu0 0.0
        %6349 = vmatprep.subr.mxu0 0.0
        %6350 = vmatpush1.msra.mxu0 0.0
        %6351 = vmatprep.subr.mxu0 0.0
        %6352 = vmatpush1.msra.mxu0 0.0
        %6353 = vmatprep.subr.mxu0 0.0
        %6354 = vmatpush1.msra.mxu0 0.0
        %6355 = vmatprep.subr.mxu0 0.0
        %6356 = vmatpush1.msra.mxu0 0.0
        %6357 = vmatprep.subr.mxu0 0.0
        %6358 = vmatpush1.msra.mxu0 0.0
        %6359 = vmatprep.subr.mxu0 0.0
        %6360 = vmatpush1.msra.mxu0 0.0
        %6361 = vmatprep.mubr.f32.mxu0 0.0
        %6362 = vmatmul.mubr.f32.gmra.mrb[0].mxu0 %v5216
        %v6363 = vpop.f32.mrb[0].mxu0
        %v6364 = vadd.f32 0.0, %v6363
        %v6365 = vpop.f32.mrb[0].mxu0
        %6366 = vdwg.mxu0
        %6367 = vmatprep.subr.mxu0 0.0
        %6368 = vmatpush1.msra.mxu0 %v6187
        %6369 = vmatprep.subr.mxu0 0.0
        %6370 = vmatpush1.msra.mxu0 0.0
        %6371 = vmatprep.subr.mxu0 0.0
        %6372 = vmatpush1.msra.mxu0 0.0
        %6373 = vmatprep.subr.mxu0 0.0
        %6374 = vmatpush1.msra.mxu0 0.0
        %6375 = vmatprep.subr.mxu0 0.0
        %6376 = vmatpush1.msra.mxu0 0.0
        %6377 = vmatprep.subr.mxu0 0.0
        %6378 = vmatpush1.msra.mxu0 0.0
        %6379 = vmatprep.subr.mxu0 0.0
        %6380 = vmatpush1.msra.mxu0 0.0
        %6381 = vmatprep.subr.mxu0 0.0
        %6382 = vmatpush1.msra.mxu0 0.0
        %6383 = vmatprep.subr.mxu0 0.0
        %6384 = vmatpush1.msra.mxu0 0.0
        %6385 = vmatprep.subr.mxu0 0.0
        %6386 = vmatpush1.msra.mxu0 0.0
        %6387 = vmatprep.subr.mxu0 0.0
        %6388 = vmatpush1.msra.mxu0 0.0
        %6389 = vmatprep.subr.mxu0 0.0
        %6390 = vmatpush1.msra.mxu0 0.0
        %6391 = vmatprep.subr.mxu0 0.0
        %6392 = vmatpush1.msra.mxu0 0.0
        %6393 = vmatprep.subr.mxu0 0.0
        %6394 = vmatpush1.msra.mxu0 0.0
        %6395 = vmatprep.subr.mxu0 0.0
        %6396 = vmatpush1.msra.mxu0 0.0
        %6397 = vmatprep.subr.mxu0 0.0
        %6398 = vmatpush1.msra.mxu0 0.0
        %6399 = vmatprep.subr.mxu0 0.0
        %6400 = vmatpush1.msra.mxu0 0.0
        %6401 = vmatprep.subr.mxu0 0.0
        %6402 = vmatpush1.msra.mxu0 0.0
        %6403 = vmatprep.subr.mxu0 0.0
        %6404 = vmatpush1.msra.mxu0 0.0
        %6405 = vmatprep.subr.mxu0 0.0
        %6406 = vmatpush1.msra.mxu0 0.0
        %6407 = vmatprep.subr.mxu0 0.0
        %6408 = vmatpush1.msra.mxu0 0.0
        %6409 = vmatprep.subr.mxu0 0.0
        %6410 = vmatpush1.msra.mxu0 0.0
        %6411 = vmatprep.subr.mxu0 0.0
        %6412 = vmatpush1.msra.mxu0 0.0
        %6413 = vmatprep.subr.mxu0 0.0
        %6414 = vmatpush1.msra.mxu0 0.0
        %6415 = vmatprep.subr.mxu0 0.0
        %6416 = vmatpush1.msra.mxu0 0.0
        %6417 = vmatprep.subr.mxu0 0.0
        %6418 = vmatpush1.msra.mxu0 0.0
        %6419 = vmatprep.subr.mxu0 0.0
        %6420 = vmatpush1.msra.mxu0 0.0
        %6421 = vmatprep.subr.mxu0 0.0
        %6422 = vmatpush1.msra.mxu0 0.0
        %6423 = vmatprep.subr.mxu0 0.0
        %6424 = vmatpush1.msra.mxu0 0.0
        %6425 = vmatprep.subr.mxu0 0.0
        %6426 = vmatpush1.msra.mxu0 0.0
        %6427 = vmatprep.subr.mxu0 0.0
        %6428 = vmatpush1.msra.mxu0 0.0
        %6429 = vmatprep.subr.mxu0 0.0
        %6430 = vmatpush1.msra.mxu0 0.0
        %6431 = vmatprep.mubr.f32.mxu0 0.0
        %6432 = vmatmul.mubr.f32.gmra.mrb[0].mxu0 %v5288
        %v6433 = vpop.f32.mrb[0].mxu0
        %v6434 = vadd.f32 %v6364, %v6433
        %v6435 = vpop.f32.mrb[0].mxu0
        %6436 = vdwg.mxu0
        %s6437 = scalar_lea.vmem [#allocation24], 128
        %v6438 = vld [vmem:[%s6437] sm:$0xf]
        %v6439 = vld [vmem:[%s6437 + $0x4] sm:$0xf]
        %v6440 = vld [vmem:[%s6437 + $0x8] sm:$0xf]
        %v6441 = vld [vmem:[%s6437 + $0xc] sm:$0xf]
        %v6442 = vld [vmem:[%s6437 + $0x10] sm:$0xf]
        %v6443 = vld [vmem:[%s6437 + $0x14] sm:$0xf]
        %v6444 = vld [vmem:[%s6437 + $0x18] sm:$0xf]
        %v6445 = vld [vmem:[%s6437 + $0x1c] sm:$0xf]
        %v6446 = vld [vmem:[%s6437 + $0x20] sm:$0xf]
        %v6447 = vld [vmem:[%s6437 + $0x24] sm:$0xf]
        %v6448 = vld [vmem:[%s6437 + $0x28] sm:$0xf]
        %v6449 = vld [vmem:[%s6437 + $0x2c] sm:$0xf]
        %v6450 = vld [vmem:[%s6437 + $0x30] sm:$0xf]
        %v6451 = vld [vmem:[%s6437 + $0x34] sm:$0xf]
        %v6452 = vld [vmem:[%s6437 + $0x38] sm:$0xf]
        %v6453 = vld [vmem:[%s6437 + $0x3c] sm:$0xf]
        %v6470 = vunpack.c.l.b16 %v6438
        %v6471 = vunpack.c.l.b16 %v6439
        %v6472 = vunpack.c.l.b16 %v6440
        %v6473 = vunpack.c.l.b16 %v6441
        %v6474 = vunpack.c.l.b16 %v6442
        %v6475 = vunpack.c.l.b16 %v6443
        %v6476 = vunpack.c.l.b16 %v6444
        %v6477 = vunpack.c.l.b16 %v6445
        %v6478 = vunpack.c.l.b16 %v6446
        %v6479 = vunpack.c.l.b16 %v6447
        %v6480 = vunpack.c.l.b16 %v6448
        %v6481 = vunpack.c.l.b16 %v6449
        %v6482 = vunpack.c.l.b16 %v6450
        %v6483 = vunpack.c.l.b16 %v6451
        %v6484 = vunpack.c.l.b16 %v6452
        %v6485 = vunpack.c.l.b16 %v6453
        %v6486 = vpack.c.b16 %v6471, %v6470
        %v6487 = vpack.c.b16 %v6473, %v6472
        %v6488 = vpack.c.b16 %v6475, %v6474
        %v6489 = vpack.c.b16 %v6477, %v6476
        %v6490 = vpack.c.b16 %v6479, %v6478
        %v6491 = vpack.c.b16 %v6481, %v6480
        %v6492 = vpack.c.b16 %v6483, %v6482
        %v6493 = vpack.c.b16 %v6485, %v6484
        %6502 = vmatprep.subr.bf16.mxu0 0
        %6503 = vmatpush1.bf16.msra.mxu0 %v6486
        %6504 = vmatprep.subr.bf16.mxu0 0
        %6505 = vmatpush1.bf16.msra.mxu0 %v6487
        %6506 = vmatprep.subr.bf16.mxu0 0
        %6507 = vmatpush1.bf16.msra.mxu0 %v6488
        %6508 = vmatprep.subr.bf16.mxu0 0
        %6509 = vmatpush1.bf16.msra.mxu0 %v6489
        %6510 = vmatprep.subr.bf16.mxu0 0
        %6511 = vmatpush1.bf16.msra.mxu0 %v6490
        %6512 = vmatprep.subr.bf16.mxu0 0
        %6513 = vmatpush1.bf16.msra.mxu0 %v6491
        %6514 = vmatprep.subr.bf16.mxu0 0
        %6515 = vmatpush1.bf16.msra.mxu0 %v6492
        %6516 = vmatprep.subr.bf16.mxu0 0
        %6517 = vmatpush1.bf16.msra.mxu0 %v6493
        %6518 = vmatprep.subr.bf16.mxu0 0
        %6519 = vmatpush1.bf16.msra.mxu0 0
        %6520 = vmatprep.subr.bf16.mxu0 0
        %6521 = vmatpush1.bf16.msra.mxu0 0
        %6522 = vmatprep.subr.bf16.mxu0 0
        %6523 = vmatpush1.bf16.msra.mxu0 0
        %6524 = vmatprep.subr.bf16.mxu0 0
        %6525 = vmatpush1.bf16.msra.mxu0 0
        %6526 = vmatprep.subr.bf16.mxu0 0
        %6527 = vmatpush1.bf16.msra.mxu0 0
        %6528 = vmatprep.subr.bf16.mxu0 0
        %6529 = vmatpush1.bf16.msra.mxu0 0
        %6530 = vmatprep.subr.bf16.mxu0 0
        %6531 = vmatpush1.bf16.msra.mxu0 0
        %6532 = vmatprep.subr.bf16.mxu0 0
        %6533 = vmatpush1.bf16.msra.mxu0 0
        %6534 = vmatprep.mubr.bf16.mxu0 0
        %6535 = vmatmul.mubr.bf16.gmra.mrb[0].mxu0 %v6087
        %v6536 = vpop.f32.mrb[0].mxu0
        %v6537 = vadd.f32 0.0, %v6536
        %v6538 = vpop.f32.mrb[0].mxu0
        %v6539 = vpop.f32.mrb[0].mxu0
        %v6540 = vpop.f32.mrb[0].mxu0
        %6541 = vdwg.mxu0
        %6542 = vmatprep.subr.mxu0 0.0
        %6543 = vmatpush1.msra.mxu0 %v6537
        %6544 = vmatprep.subr.mxu0 0.0
        %6545 = vmatpush1.msra.mxu0 0.0
        %6546 = vmatprep.subr.mxu0 0.0
        %6547 = vmatpush1.msra.mxu0 0.0
        %6548 = vmatprep.subr.mxu0 0.0
        %6549 = vmatpush1.msra.mxu0 0.0
        %6550 = vmatprep.subr.mxu0 0.0
        %6551 = vmatpush1.msra.mxu0 0.0
        %6552 = vmatprep.subr.mxu0 0.0
        %6553 = vmatpush1.msra.mxu0 0.0
        %6554 = vmatprep.subr.mxu0 0.0
        %6555 = vmatpush1.msra.mxu0 0.0
        %6556 = vmatprep.subr.mxu0 0.0
        %6557 = vmatpush1.msra.mxu0 0.0
        %6558 = vmatprep.subr.mxu0 0.0
        %6559 = vmatpush1.msra.mxu0 0.0
        %6560 = vmatprep.subr.mxu0 0.0
        %6561 = vmatpush1.msra.mxu0 0.0
        %6562 = vmatprep.subr.mxu0 0.0
        %6563 = vmatpush1.msra.mxu0 0.0
        %6564 = vmatprep.subr.mxu0 0.0
        %6565 = vmatpush1.msra.mxu0 0.0
        %6566 = vmatprep.subr.mxu0 0.0
        %6567 = vmatpush1.msra.mxu0 0.0
        %6568 = vmatprep.subr.mxu0 0.0
        %6569 = vmatpush1.msra.mxu0 0.0
        %6570 = vmatprep.subr.mxu0 0.0
        %6571 = vmatpush1.msra.mxu0 0.0
        %6572 = vmatprep.subr.mxu0 0.0
        %6573 = vmatpush1.msra.mxu0 0.0
        %6574 = vmatprep.subr.mxu0 0.0
        %6575 = vmatpush1.msra.mxu0 0.0
        %6576 = vmatprep.subr.mxu0 0.0
        %6577 = vmatpush1.msra.mxu0 0.0
        %6578 = vmatprep.subr.mxu0 0.0
        %6579 = vmatpush1.msra.mxu0 0.0
        %6580 = vmatprep.subr.mxu0 0.0
        %6581 = vmatpush1.msra.mxu0 0.0
        %6582 = vmatprep.subr.mxu0 0.0
        %6583 = vmatpush1.msra.mxu0 0.0
        %6584 = vmatprep.subr.mxu0 0.0
        %6585 = vmatpush1.msra.mxu0 0.0
        %6586 = vmatprep.subr.mxu0 0.0
        %6587 = vmatpush1.msra.mxu0 0.0
        %6588 = vmatprep.subr.mxu0 0.0
        %6589 = vmatpush1.msra.mxu0 0.0
        %6590 = vmatprep.subr.mxu0 0.0
        %6591 = vmatpush1.msra.mxu0 0.0
        %6592 = vmatprep.subr.mxu0 0.0
        %6593 = vmatpush1.msra.mxu0 0.0
        %6594 = vmatprep.subr.mxu0 0.0
        %6595 = vmatpush1.msra.mxu0 0.0
        %6596 = vmatprep.subr.mxu0 0.0
        %6597 = vmatpush1.msra.mxu0 0.0
        %6598 = vmatprep.subr.mxu0 0.0
        %6599 = vmatpush1.msra.mxu0 0.0
        %6600 = vmatprep.subr.mxu0 0.0
        %6601 = vmatpush1.msra.mxu0 0.0
        %6602 = vmatprep.subr.mxu0 0.0
        %6603 = vmatpush1.msra.mxu0 0.0
        %6604 = vmatprep.subr.mxu0 0.0
        %6605 = vmatpush1.msra.mxu0 0.0
        %6606 = vmatprep.mubr.f32.mxu0 0.0
        %6607 = vmatmul.mubr.f32.gmra.mrb[0].mxu0 %v5465
        %v6608 = vpop.f32.mrb[0].mxu0
        %v6609 = vadd.f32 0.0, %v6608
        %v6610 = vpop.f32.mrb[0].mxu0
        %6611 = vdwg.mxu0
        %v6612 = vadd.f32 %v6434, %v6609
        %v6613 = vld [vmem:[%s41] sm:$0x1]
        %v6615 = vlaneseq
        %v6616 = vshrl.u32 %v6615, 7
        %v6617 = vsub.s32 0, %v6616
        %v6618 = vrot.slane %v6613, %v6617
        %v6620 = vadd.f32 %v6612, %v6618
        %vm6621 = vcmp.gt.f32.partialorder %v6620, 0.0
        %v6622 = vmul.f32 %v6620, 0.2
        %v6623 = vsel %vm6621, %v6620, %v6622
        %v6624 = vpack.c.bf16 %v6623, %v6623
        %v6625 = vld [vmem:[#allocation25] sm:$0xf]
        %v6626 = vld [vmem:[#allocation25 + $0x4] sm:$0xf]
        %v6627 = vld [vmem:[#allocation25 + $0x8] sm:$0xf]
        %v6628 = vld [vmem:[#allocation25 + $0xc] sm:$0xf]
        %v6629 = vld [vmem:[#allocation25 + $0x10] sm:$0xf]
        %v6630 = vld [vmem:[#allocation25 + $0x14] sm:$0xf]
        %v6631 = vld [vmem:[#allocation25 + $0x18] sm:$0xf]
        %v6632 = vld [vmem:[#allocation25 + $0x1c] sm:$0xf]
        %v6633 = vld [vmem:[#allocation25 + $0x20] sm:$0xf]
        %v6634 = vld [vmem:[#allocation25 + $0x24] sm:$0xf]
        %v6635 = vld [vmem:[#allocation25 + $0x28] sm:$0xf]
        %v6636 = vld [vmem:[#allocation25 + $0x2c] sm:$0xf]
        %v6637 = vld [vmem:[#allocation25 + $0x30] sm:$0xf]
        %v6638 = vld [vmem:[#allocation25 + $0x34] sm:$0xf]
        %v6639 = vld [vmem:[#allocation25 + $0x38] sm:$0xf]
        %v6640 = vld [vmem:[#allocation25 + $0x3c] sm:$0xf]
        %v6657 = vunpack.c.l.b16 %v6625
        %v6658 = vunpack.c.l.b16 %v6626
        %v6659 = vunpack.c.l.b16 %v6627
        %v6660 = vunpack.c.l.b16 %v6628
        %v6661 = vunpack.c.l.b16 %v6629
        %v6662 = vunpack.c.l.b16 %v6630
        %v6663 = vunpack.c.l.b16 %v6631
        %v6664 = vunpack.c.l.b16 %v6632
        %v6665 = vunpack.c.l.b16 %v6633
        %v6666 = vunpack.c.l.b16 %v6634
        %v6667 = vunpack.c.l.b16 %v6635
        %v6668 = vunpack.c.l.b16 %v6636
        %v6669 = vunpack.c.l.b16 %v6637
        %v6670 = vunpack.c.l.b16 %v6638
        %v6671 = vunpack.c.l.b16 %v6639
        %v6672 = vunpack.c.l.b16 %v6640
        %v6673 = vpack.c.b16 %v6658, %v6657
        %v6674 = vpack.c.b16 %v6660, %v6659
        %v6675 = vpack.c.b16 %v6662, %v6661
        %v6676 = vpack.c.b16 %v6664, %v6663
        %v6677 = vpack.c.b16 %v6666, %v6665
        %v6678 = vpack.c.b16 %v6668, %v6667
        %v6679 = vpack.c.b16 %v6670, %v6669
        %v6680 = vpack.c.b16 %v6672, %v6671
        %6689 = vmatprep.subr.bf16.mxu0 0
        %6690 = vmatpush1.bf16.msra.mxu0 %v6673
        %6691 = vmatprep.subr.bf16.mxu0 0
        %6692 = vmatpush1.bf16.msra.mxu0 %v6674
        %6693 = vmatprep.subr.bf16.mxu0 0
        %6694 = vmatpush1.bf16.msra.mxu0 %v6675
        %6695 = vmatprep.subr.bf16.mxu0 0
        %6696 = vmatpush1.bf16.msra.mxu0 %v6676
        %6697 = vmatprep.subr.bf16.mxu0 0
        %6698 = vmatpush1.bf16.msra.mxu0 %v6677
        %6699 = vmatprep.subr.bf16.mxu0 0
        %6700 = vmatpush1.bf16.msra.mxu0 %v6678
        %6701 = vmatprep.subr.bf16.mxu0 0
        %6702 = vmatpush1.bf16.msra.mxu0 %v6679
        %6703 = vmatprep.subr.bf16.mxu0 0
        %6704 = vmatpush1.bf16.msra.mxu0 %v6680
        %6705 = vmatprep.subr.bf16.mxu0 0
        %6706 = vmatpush1.bf16.msra.mxu0 0
        %6707 = vmatprep.subr.bf16.mxu0 0
        %6708 = vmatpush1.bf16.msra.mxu0 0
        %6709 = vmatprep.subr.bf16.mxu0 0
        %6710 = vmatpush1.bf16.msra.mxu0 0
        %6711 = vmatprep.subr.bf16.mxu0 0
        %6712 = vmatpush1.bf16.msra.mxu0 0
        %6713 = vmatprep.subr.bf16.mxu0 0
        %6714 = vmatpush1.bf16.msra.mxu0 0
        %6715 = vmatprep.subr.bf16.mxu0 0
        %6716 = vmatpush1.bf16.msra.mxu0 0
        %6717 = vmatprep.subr.bf16.mxu0 0
        %6718 = vmatpush1.bf16.msra.mxu0 0
        %6719 = vmatprep.subr.bf16.mxu0 0
        %6720 = vmatpush1.bf16.msra.mxu0 0
        %6721 = vmatprep.mubr.bf16.mxu0 0
        %6722 = vmatmul.mubr.bf16.gmra.mrb[0].mxu0 %v6624
        %v6723 = vpop.f32.mrb[0].mxu0
        %v6724 = vadd.f32 0.0, %v6723
        %v6725 = vpop.f32.mrb[0].mxu0
        %v6726 = vpop.f32.mrb[0].mxu0
        %v6727 = vpop.f32.mrb[0].mxu0
        %6728 = vdwg.mxu0
        %s6729 = scalar_lea.vmem [#allocation25], 64
        %v6730 = vld [vmem:[%s6729] sm:$0xf]
        %v6731 = vld [vmem:[%s6729 + $0x4] sm:$0xf]
        %v6732 = vld [vmem:[%s6729 + $0x8] sm:$0xf]
        %v6733 = vld [vmem:[%s6729 + $0xc] sm:$0xf]
        %v6734 = vld [vmem:[%s6729 + $0x10] sm:$0xf]
        %v6735 = vld [vmem:[%s6729 + $0x14] sm:$0xf]
        %v6736 = vld [vmem:[%s6729 + $0x18] sm:$0xf]
        %v6737 = vld [vmem:[%s6729 + $0x1c] sm:$0xf]
        %v6738 = vld [vmem:[%s6729 + $0x20] sm:$0xf]
        %v6739 = vld [vmem:[%s6729 + $0x24] sm:$0xf]
        %v6740 = vld [vmem:[%s6729 + $0x28] sm:$0xf]
        %v6741 = vld [vmem:[%s6729 + $0x2c] sm:$0xf]
        %v6742 = vld [vmem:[%s6729 + $0x30] sm:$0xf]
        %v6743 = vld [vmem:[%s6729 + $0x34] sm:$0xf]
        %v6744 = vld [vmem:[%s6729 + $0x38] sm:$0xf]
        %v6745 = vld [vmem:[%s6729 + $0x3c] sm:$0xf]
        %v6762 = vunpack.c.l.b16 %v6730
        %v6763 = vunpack.c.l.b16 %v6731
        %v6764 = vunpack.c.l.b16 %v6732
        %v6765 = vunpack.c.l.b16 %v6733
        %v6766 = vunpack.c.l.b16 %v6734
        %v6767 = vunpack.c.l.b16 %v6735
        %v6768 = vunpack.c.l.b16 %v6736
        %v6769 = vunpack.c.l.b16 %v6737
        %v6770 = vunpack.c.l.b16 %v6738
        %v6771 = vunpack.c.l.b16 %v6739
        %v6772 = vunpack.c.l.b16 %v6740
        %v6773 = vunpack.c.l.b16 %v6741
        %v6774 = vunpack.c.l.b16 %v6742
        %v6775 = vunpack.c.l.b16 %v6743
        %v6776 = vunpack.c.l.b16 %v6744
        %v6777 = vunpack.c.l.b16 %v6745
        %v6778 = vpack.c.b16 %v6763, %v6762
        %v6779 = vpack.c.b16 %v6765, %v6764
        %v6780 = vpack.c.b16 %v6767, %v6766
        %v6781 = vpack.c.b16 %v6769, %v6768
        %v6782 = vpack.c.b16 %v6771, %v6770
        %v6783 = vpack.c.b16 %v6773, %v6772
        %v6784 = vpack.c.b16 %v6775, %v6774
        %v6785 = vpack.c.b16 %v6777, %v6776
        %6794 = vmatprep.subr.bf16.mxu0 0
        %6795 = vmatpush1.bf16.msra.mxu0 %v6778
        %6796 = vmatprep.subr.bf16.mxu0 0
        %6797 = vmatpush1.bf16.msra.mxu0 %v6779
        %6798 = vmatprep.subr.bf16.mxu0 0
        %6799 = vmatpush1.bf16.msra.mxu0 %v6780
        %6800 = vmatprep.subr.bf16.mxu0 0
        %6801 = vmatpush1.bf16.msra.mxu0 %v6781
        %6802 = vmatprep.subr.bf16.mxu0 0
        %6803 = vmatpush1.bf16.msra.mxu0 %v6782
        %6804 = vmatprep.subr.bf16.mxu0 0
        %6805 = vmatpush1.bf16.msra.mxu0 %v6783
        %6806 = vmatprep.subr.bf16.mxu0 0
        %6807 = vmatpush1.bf16.msra.mxu0 %v6784
        %6808 = vmatprep.subr.bf16.mxu0 0
        %6809 = vmatpush1.bf16.msra.mxu0 %v6785
        %6810 = vmatprep.subr.bf16.mxu0 0
        %6811 = vmatpush1.bf16.msra.mxu0 0
        %6812 = vmatprep.subr.bf16.mxu0 0
        %6813 = vmatpush1.bf16.msra.mxu0 0
        %6814 = vmatprep.subr.bf16.mxu0 0
        %6815 = vmatpush1.bf16.msra.mxu0 0
        %6816 = vmatprep.subr.bf16.mxu0 0
        %6817 = vmatpush1.bf16.msra.mxu0 0
        %6818 = vmatprep.subr.bf16.mxu0 0
        %6819 = vmatpush1.bf16.msra.mxu0 0
        %6820 = vmatprep.subr.bf16.mxu0 0
        %6821 = vmatpush1.bf16.msra.mxu0 0
        %6822 = vmatprep.subr.bf16.mxu0 0
        %6823 = vmatpush1.bf16.msra.mxu0 0
        %6824 = vmatprep.subr.bf16.mxu0 0
        %6825 = vmatpush1.bf16.msra.mxu0 0
        %6826 = vmatprep.mubr.bf16.mxu0 0
        %6827 = vmatmul.mubr.bf16.gmra.mrb[0].mxu0 %v6624
        %v6828 = vpop.f32.mrb[0].mxu0
        %v6829 = vadd.f32 0.0, %v6828
        %v6830 = vpop.f32.mrb[0].mxu0
        %v6831 = vpop.f32.mrb[0].mxu0
        %v6832 = vpop.f32.mrb[0].mxu0
        %6833 = vdwg.mxu0
        %6834 = vmatprep.subr.mxu0 0.0
        %6835 = vmatpush1.msra.mxu0 %v6829
        %6836 = vmatprep.subr.mxu0 0.0
        %6837 = vmatpush1.msra.mxu0 0.0
        %6838 = vmatprep.subr.mxu0 0.0
        %6839 = vmatpush1.msra.mxu0 0.0
        %6840 = vmatprep.subr.mxu0 0.0
        %6841 = vmatpush1.msra.mxu0 0.0
        %6842 = vmatprep.subr.mxu0 0.0
        %6843 = vmatpush1.msra.mxu0 0.0
        %6844 = vmatprep.subr.mxu0 0.0
        %6845 = vmatpush1.msra.mxu0 0.0
        %6846 = vmatprep.subr.mxu0 0.0
        %6847 = vmatpush1.msra.mxu0 0.0
        %6848 = vmatprep.subr.mxu0 0.0
        %6849 = vmatpush1.msra.mxu0 0.0
        %6850 = vmatprep.subr.mxu0 0.0
        %6851 = vmatpush1.msra.mxu0 0.0
        %6852 = vmatprep.subr.mxu0 0.0
        %6853 = vmatpush1.msra.mxu0 0.0
        %6854 = vmatprep.subr.mxu0 0.0
        %6855 = vmatpush1.msra.mxu0 0.0
        %6856 = vmatprep.subr.mxu0 0.0
        %6857 = vmatpush1.msra.mxu0 0.0
        %6858 = vmatprep.subr.mxu0 0.0
        %6859 = vmatpush1.msra.mxu0 0.0
        %6860 = vmatprep.subr.mxu0 0.0
        %6861 = vmatpush1.msra.mxu0 0.0
        %6862 = vmatprep.subr.mxu0 0.0
        %6863 = vmatpush1.msra.mxu0 0.0
        %6864 = vmatprep.subr.mxu0 0.0
        %6865 = vmatpush1.msra.mxu0 0.0
        %6866 = vmatprep.subr.mxu0 0.0
        %6867 = vmatpush1.msra.mxu0 0.0
        %6868 = vmatprep.subr.mxu0 0.0
        %6869 = vmatpush1.msra.mxu0 0.0
        %6870 = vmatprep.subr.mxu0 0.0
        %6871 = vmatpush1.msra.mxu0 0.0
        %6872 = vmatprep.subr.mxu0 0.0
        %6873 = vmatpush1.msra.mxu0 0.0
        %6874 = vmatprep.subr.mxu0 0.0
        %6875 = vmatpush1.msra.mxu0 0.0
        %6876 = vmatprep.subr.mxu0 0.0
        %6877 = vmatpush1.msra.mxu0 0.0
        %6878 = vmatprep.subr.mxu0 0.0
        %6879 = vmatpush1.msra.mxu0 0.0
        %6880 = vmatprep.subr.mxu0 0.0
        %6881 = vmatpush1.msra.mxu0 0.0
        %6882 = vmatprep.subr.mxu0 0.0
        %6883 = vmatpush1.msra.mxu0 0.0
        %6884 = vmatprep.subr.mxu0 0.0
        %6885 = vmatpush1.msra.mxu0 0.0
        %6886 = vmatprep.subr.mxu0 0.0
        %6887 = vmatpush1.msra.mxu0 0.0
        %6888 = vmatprep.subr.mxu0 0.0
        %6889 = vmatpush1.msra.mxu0 0.0
        %6890 = vmatprep.subr.mxu0 0.0
        %6891 = vmatpush1.msra.mxu0 0.0
        %6892 = vmatprep.subr.mxu0 0.0
        %6893 = vmatpush1.msra.mxu0 0.0
        %6894 = vmatprep.subr.mxu0 0.0
        %6895 = vmatpush1.msra.mxu0 0.0
        %6896 = vmatprep.subr.mxu0 0.0
        %6897 = vmatpush1.msra.mxu0 0.0
        %6898 = vmatprep.mubr.f32.mxu0 0.0
        %6899 = vmatmul.mubr.f32.gmra.mrb[0].mxu0 %v5216
        %v6900 = vpop.f32.mrb[0].mxu0
        %v6901 = vadd.f32 0.0, %v6900
        %v6902 = vpop.f32.mrb[0].mxu0
        %6903 = vdwg.mxu0
        %6904 = vmatprep.subr.mxu0 0.0
        %6905 = vmatpush1.msra.mxu0 %v6724
        %6906 = vmatprep.subr.mxu0 0.0
        %6907 = vmatpush1.msra.mxu0 0.0
        %6908 = vmatprep.subr.mxu0 0.0
        %6909 = vmatpush1.msra.mxu0 0.0
        %6910 = vmatprep.subr.mxu0 0.0
        %6911 = vmatpush1.msra.mxu0 0.0
        %6912 = vmatprep.subr.mxu0 0.0
        %6913 = vmatpush1.msra.mxu0 0.0
        %6914 = vmatprep.subr.mxu0 0.0
        %6915 = vmatpush1.msra.mxu0 0.0
        %6916 = vmatprep.subr.mxu0 0.0
        %6917 = vmatpush1.msra.mxu0 0.0
        %6918 = vmatprep.subr.mxu0 0.0
        %6919 = vmatpush1.msra.mxu0 0.0
        %6920 = vmatprep.subr.mxu0 0.0
        %6921 = vmatpush1.msra.mxu0 0.0
        %6922 = vmatprep.subr.mxu0 0.0
        %6923 = vmatpush1.msra.mxu0 0.0
        %6924 = vmatprep.subr.mxu0 0.0
        %6925 = vmatpush1.msra.mxu0 0.0
        %6926 = vmatprep.subr.mxu0 0.0
        %6927 = vmatpush1.msra.mxu0 0.0
        %6928 = vmatprep.subr.mxu0 0.0
        %6929 = vmatpush1.msra.mxu0 0.0
        %6930 = vmatprep.subr.mxu0 0.0
        %6931 = vmatpush1.msra.mxu0 0.0
        %6932 = vmatprep.subr.mxu0 0.0
        %6933 = vmatpush1.msra.mxu0 0.0
        %6934 = vmatprep.subr.mxu0 0.0
        %6935 = vmatpush1.msra.mxu0 0.0
        %6936 = vmatprep.subr.mxu0 0.0
        %6937 = vmatpush1.msra.mxu0 0.0
        %6938 = vmatprep.subr.mxu0 0.0
        %6939 = vmatpush1.msra.mxu0 0.0
        %6940 = vmatprep.subr.mxu0 0.0
        %6941 = vmatpush1.msra.mxu0 0.0
        %6942 = vmatprep.subr.mxu0 0.0
        %6943 = vmatpush1.msra.mxu0 0.0
        %6944 = vmatprep.subr.mxu0 0.0
        %6945 = vmatpush1.msra.mxu0 0.0
        %6946 = vmatprep.subr.mxu0 0.0
        %6947 = vmatpush1.msra.mxu0 0.0
        %6948 = vmatprep.subr.mxu0 0.0
        %6949 = vmatpush1.msra.mxu0 0.0
        %6950 = vmatprep.subr.mxu0 0.0
        %6951 = vmatpush1.msra.mxu0 0.0
        %6952 = vmatprep.subr.mxu0 0.0
        %6953 = vmatpush1.msra.mxu0 0.0
        %6954 = vmatprep.subr.mxu0 0.0
        %6955 = vmatpush1.msra.mxu0 0.0
        %6956 = vmatprep.subr.mxu0 0.0
        %6957 = vmatpush1.msra.mxu0 0.0
        %6958 = vmatprep.subr.mxu0 0.0
        %6959 = vmatpush1.msra.mxu0 0.0
        %6960 = vmatprep.subr.mxu0 0.0
        %6961 = vmatpush1.msra.mxu0 0.0
        %6962 = vmatprep.subr.mxu0 0.0
        %6963 = vmatpush1.msra.mxu0 0.0
        %6964 = vmatprep.subr.mxu0 0.0
        %6965 = vmatpush1.msra.mxu0 0.0
        %6966 = vmatprep.subr.mxu0 0.0
        %6967 = vmatpush1.msra.mxu0 0.0
        %6968 = vmatprep.mubr.f32.mxu0 0.0
        %6969 = vmatmul.mubr.f32.gmra.mrb[0].mxu0 %v5288
        %v6970 = vpop.f32.mrb[0].mxu0
        %v6971 = vadd.f32 %v6901, %v6970
        %v6972 = vpop.f32.mrb[0].mxu0
        %6973 = vdwg.mxu0
        %s6974 = scalar_lea.vmem [#allocation25], 128
        %v6975 = vld [vmem:[%s6974] sm:$0xf]
        %v6976 = vld [vmem:[%s6974 + $0x4] sm:$0xf]
        %v6977 = vld [vmem:[%s6974 + $0x8] sm:$0xf]
        %v6978 = vld [vmem:[%s6974 + $0xc] sm:$0xf]
        %v6979 = vld [vmem:[%s6974 + $0x10] sm:$0xf]
        %v6980 = vld [vmem:[%s6974 + $0x14] sm:$0xf]
        %v6981 = vld [vmem:[%s6974 + $0x18] sm:$0xf]
        %v6982 = vld [vmem:[%s6974 + $0x1c] sm:$0xf]
        %v6983 = vld [vmem:[%s6974 + $0x20] sm:$0xf]
        %v6984 = vld [vmem:[%s6974 + $0x24] sm:$0xf]
        %v6985 = vld [vmem:[%s6974 + $0x28] sm:$0xf]
        %v6986 = vld [vmem:[%s6974 + $0x2c] sm:$0xf]
        %v6987 = vld [vmem:[%s6974 + $0x30] sm:$0xf]
        %v6988 = vld [vmem:[%s6974 + $0x34] sm:$0xf]
        %v6989 = vld [vmem:[%s6974 + $0x38] sm:$0xf]
        %v6990 = vld [vmem:[%s6974 + $0x3c] sm:$0xf]
        %v7007 = vunpack.c.l.b16 %v6975
        %v7008 = vunpack.c.l.b16 %v6976
        %v7009 = vunpack.c.l.b16 %v6977
        %v7010 = vunpack.c.l.b16 %v6978
        %v7011 = vunpack.c.l.b16 %v6979
        %v7012 = vunpack.c.l.b16 %v6980
        %v7013 = vunpack.c.l.b16 %v6981
        %v7014 = vunpack.c.l.b16 %v6982
        %v7015 = vunpack.c.l.b16 %v6983
        %v7016 = vunpack.c.l.b16 %v6984
        %v7017 = vunpack.c.l.b16 %v6985
        %v7018 = vunpack.c.l.b16 %v6986
        %v7019 = vunpack.c.l.b16 %v6987
        %v7020 = vunpack.c.l.b16 %v6988
        %v7021 = vunpack.c.l.b16 %v6989
        %v7022 = vunpack.c.l.b16 %v6990
        %v7023 = vpack.c.b16 %v7008, %v7007
        %v7024 = vpack.c.b16 %v7010, %v7009
        %v7025 = vpack.c.b16 %v7012, %v7011
        %v7026 = vpack.c.b16 %v7014, %v7013
        %v7027 = vpack.c.b16 %v7016, %v7015
        %v7028 = vpack.c.b16 %v7018, %v7017
        %v7029 = vpack.c.b16 %v7020, %v7019
        %v7030 = vpack.c.b16 %v7022, %v7021
        %7039 = vmatprep.subr.bf16.mxu0 0
        %7040 = vmatpush1.bf16.msra.mxu0 %v7023
        %7041 = vmatprep.subr.bf16.mxu0 0
        %7042 = vmatpush1.bf16.msra.mxu0 %v7024
        %7043 = vmatprep.subr.bf16.mxu0 0
        %7044 = vmatpush1.bf16.msra.mxu0 %v7025
        %7045 = vmatprep.subr.bf16.mxu0 0
        %7046 = vmatpush1.bf16.msra.mxu0 %v7026
        %7047 = vmatprep.subr.bf16.mxu0 0
        %7048 = vmatpush1.bf16.msra.mxu0 %v7027
        %7049 = vmatprep.subr.bf16.mxu0 0
        %7050 = vmatpush1.bf16.msra.mxu0 %v7028
        %7051 = vmatprep.subr.bf16.mxu0 0
        %7052 = vmatpush1.bf16.msra.mxu0 %v7029
        %7053 = vmatprep.subr.bf16.mxu0 0
        %7054 = vmatpush1.bf16.msra.mxu0 %v7030
        %7055 = vmatprep.subr.bf16.mxu0 0
        %7056 = vmatpush1.bf16.msra.mxu0 0
        %7057 = vmatprep.subr.bf16.mxu0 0
        %7058 = vmatpush1.bf16.msra.mxu0 0
        %7059 = vmatprep.subr.bf16.mxu0 0
        %7060 = vmatpush1.bf16.msra.mxu0 0
        %7061 = vmatprep.subr.bf16.mxu0 0
        %7062 = vmatpush1.bf16.msra.mxu0 0
        %7063 = vmatprep.subr.bf16.mxu0 0
        %7064 = vmatpush1.bf16.msra.mxu0 0
        %7065 = vmatprep.subr.bf16.mxu0 0
        %7066 = vmatpush1.bf16.msra.mxu0 0
        %7067 = vmatprep.subr.bf16.mxu0 0
        %7068 = vmatpush1.bf16.msra.mxu0 0
        %7069 = vmatprep.subr.bf16.mxu0 0
        %7070 = vmatpush1.bf16.msra.mxu0 0
        %7071 = vmatprep.mubr.bf16.mxu0 0
        %7072 = vmatmul.mubr.bf16.gmra.mrb[0].mxu0 %v6624
        %v7073 = vpop.f32.mrb[0].mxu0
        %v7074 = vadd.f32 0.0, %v7073
        %v7075 = vpop.f32.mrb[0].mxu0
        %v7076 = vpop.f32.mrb[0].mxu0
        %v7077 = vpop.f32.mrb[0].mxu0
        %7078 = vdwg.mxu0
        %7079 = vmatprep.subr.mxu0 0.0
        %7080 = vmatpush1.msra.mxu0 %v7074
        %7081 = vmatprep.subr.mxu0 0.0
        %7082 = vmatpush1.msra.mxu0 0.0
        %7083 = vmatprep.subr.mxu0 0.0
        %7084 = vmatpush1.msra.mxu0 0.0
        %7085 = vmatprep.subr.mxu0 0.0
        %7086 = vmatpush1.msra.mxu0 0.0
        %7087 = vmatprep.subr.mxu0 0.0
        %7088 = vmatpush1.msra.mxu0 0.0
        %7089 = vmatprep.subr.mxu0 0.0
        %7090 = vmatpush1.msra.mxu0 0.0
        %7091 = vmatprep.subr.mxu0 0.0
        %7092 = vmatpush1.msra.mxu0 0.0
        %7093 = vmatprep.subr.mxu0 0.0
        %7094 = vmatpush1.msra.mxu0 0.0
        %7095 = vmatprep.subr.mxu0 0.0
        %7096 = vmatpush1.msra.mxu0 0.0
        %7097 = vmatprep.subr.mxu0 0.0
        %7098 = vmatpush1.msra.mxu0 0.0
        %7099 = vmatprep.subr.mxu0 0.0
        %7100 = vmatpush1.msra.mxu0 0.0
        %7101 = vmatprep.subr.mxu0 0.0
        %7102 = vmatpush1.msra.mxu0 0.0
        %7103 = vmatprep.subr.mxu0 0.0
        %7104 = vmatpush1.msra.mxu0 0.0
        %7105 = vmatprep.subr.mxu0 0.0
        %7106 = vmatpush1.msra.mxu0 0.0
        %7107 = vmatprep.subr.mxu0 0.0
        %7108 = vmatpush1.msra.mxu0 0.0
        %7109 = vmatprep.subr.mxu0 0.0
        %7110 = vmatpush1.msra.mxu0 0.0
        %7111 = vmatprep.subr.mxu0 0.0
        %7112 = vmatpush1.msra.mxu0 0.0
        %7113 = vmatprep.subr.mxu0 0.0
        %7114 = vmatpush1.msra.mxu0 0.0
        %7115 = vmatprep.subr.mxu0 0.0
        %7116 = vmatpush1.msra.mxu0 0.0
        %7117 = vmatprep.subr.mxu0 0.0
        %7118 = vmatpush1.msra.mxu0 0.0
        %7119 = vmatprep.subr.mxu0 0.0
        %7120 = vmatpush1.msra.mxu0 0.0
        %7121 = vmatprep.subr.mxu0 0.0
        %7122 = vmatpush1.msra.mxu0 0.0
        %7123 = vmatprep.subr.mxu0 0.0
        %7124 = vmatpush1.msra.mxu0 0.0
        %7125 = vmatprep.subr.mxu0 0.0
        %7126 = vmatpush1.msra.mxu0 0.0
        %7127 = vmatprep.subr.mxu0 0.0
        %7128 = vmatpush1.msra.mxu0 0.0
        %7129 = vmatprep.subr.mxu0 0.0
        %7130 = vmatpush1.msra.mxu0 0.0
        %7131 = vmatprep.subr.mxu0 0.0
        %7132 = vmatpush1.msra.mxu0 0.0
        %7133 = vmatprep.subr.mxu0 0.0
        %7134 = vmatpush1.msra.mxu0 0.0
        %7135 = vmatprep.subr.mxu0 0.0
        %7136 = vmatpush1.msra.mxu0 0.0
        %7137 = vmatprep.subr.mxu0 0.0
        %7138 = vmatpush1.msra.mxu0 0.0
        %7139 = vmatprep.subr.mxu0 0.0
        %7140 = vmatpush1.msra.mxu0 0.0
        %7141 = vmatprep.subr.mxu0 0.0
        %7142 = vmatpush1.msra.mxu0 0.0
        %7143 = vmatprep.mubr.f32.mxu0 0.0
        %7144 = vmatmul.mubr.f32.gmra.mrb[0].mxu0 %v5465
        %v7145 = vpop.f32.mrb[0].mxu0
        %v7146 = vadd.f32 0.0, %v7145
        %v7147 = vpop.f32.mrb[0].mxu0
        %7148 = vdwg.mxu0
        %v7149 = vadd.f32 %v6971, %v7146
        %v7150 = vld [vmem:[%s45] sm:$0x1]
        %v7152 = vlaneseq
        %v7153 = vshrl.u32 %v7152, 7
        %v7154 = vsub.s32 0, %v7153
        %v7155 = vrot.slane %v7150, %v7154
        %v7157 = vadd.f32 %v7149, %v7155
        %vm7158 = vcmp.gt.f32.partialorder %v7157, 0.0
        %v7159 = vmul.f32 %v7157, 0.2
        %v7160 = vsel %vm7158, %v7157, %v7159
        %v7161 = vadd.f32 %v6086, %v7160
        %v7162 = vpack.c.bf16 %v7161, %v7161
        %v7163 = vld [vmem:[#allocation27] sm:$0xf]
        %v7164 = vld [vmem:[#allocation27 + $0x4] sm:$0xf]
        %v7165 = vld [vmem:[#allocation27 + $0x8] sm:$0xf]
        %v7166 = vld [vmem:[#allocation27 + $0xc] sm:$0xf]
        %v7167 = vld [vmem:[#allocation27 + $0x10] sm:$0xf]
        %v7168 = vld [vmem:[#allocation27 + $0x14] sm:$0xf]
        %v7169 = vld [vmem:[#allocation27 + $0x18] sm:$0xf]
        %v7170 = vld [vmem:[#allocation27 + $0x1c] sm:$0xf]
        %v7171 = vld [vmem:[#allocation27 + $0x20] sm:$0xf]
        %v7172 = vld [vmem:[#allocation27 + $0x24] sm:$0xf]
        %v7173 = vld [vmem:[#allocation27 + $0x28] sm:$0xf]
        %v7174 = vld [vmem:[#allocation27 + $0x2c] sm:$0xf]
        %v7175 = vld [vmem:[#allocation27 + $0x30] sm:$0xf]
        %v7176 = vld [vmem:[#allocation27 + $0x34] sm:$0xf]
        %v7177 = vld [vmem:[#allocation27 + $0x38] sm:$0xf]
        %v7178 = vld [vmem:[#allocation27 + $0x3c] sm:$0xf]
        %v7195 = vunpack.c.l.b16 %v7163
        %v7196 = vunpack.c.l.b16 %v7164
        %v7197 = vunpack.c.l.b16 %v7165
        %v7198 = vunpack.c.l.b16 %v7166
        %v7199 = vunpack.c.l.b16 %v7167
        %v7200 = vunpack.c.l.b16 %v7168
        %v7201 = vunpack.c.l.b16 %v7169
        %v7202 = vunpack.c.l.b16 %v7170
        %v7203 = vunpack.c.l.b16 %v7171
        %v7204 = vunpack.c.l.b16 %v7172
        %v7205 = vunpack.c.l.b16 %v7173
        %v7206 = vunpack.c.l.b16 %v7174
        %v7207 = vunpack.c.l.b16 %v7175
        %v7208 = vunpack.c.l.b16 %v7176
        %v7209 = vunpack.c.l.b16 %v7177
        %v7210 = vunpack.c.l.b16 %v7178
        %v7211 = vpack.c.b16 %v7196, %v7195
        %v7212 = vpack.c.b16 %v7198, %v7197
        %v7213 = vpack.c.b16 %v7200, %v7199
        %v7214 = vpack.c.b16 %v7202, %v7201
        %v7215 = vpack.c.b16 %v7204, %v7203
        %v7216 = vpack.c.b16 %v7206, %v7205
        %v7217 = vpack.c.b16 %v7208, %v7207
        %v7218 = vpack.c.b16 %v7210, %v7209
        %7227 = vmatprep.subr.bf16.mxu0 0
        %7228 = vmatpush1.bf16.msra.mxu0 %v7211
        %7229 = vmatprep.subr.bf16.mxu0 0
        %7230 = vmatpush1.bf16.msra.mxu0 %v7212
        %7231 = vmatprep.subr.bf16.mxu0 0
        %7232 = vmatpush1.bf16.msra.mxu0 %v7213
        %7233 = vmatprep.subr.bf16.mxu0 0
        %7234 = vmatpush1.bf16.msra.mxu0 %v7214
        %7235 = vmatprep.subr.bf16.mxu0 0
        %7236 = vmatpush1.bf16.msra.mxu0 %v7215
        %7237 = vmatprep.subr.bf16.mxu0 0
        %7238 = vmatpush1.bf16.msra.mxu0 %v7216
        %7239 = vmatprep.subr.bf16.mxu0 0
        %7240 = vmatpush1.bf16.msra.mxu0 %v7217
        %7241 = vmatprep.subr.bf16.mxu0 0
        %7242 = vmatpush1.bf16.msra.mxu0 %v7218
        %7243 = vmatprep.subr.bf16.mxu0 0
        %7244 = vmatpush1.bf16.msra.mxu0 0
        %7245 = vmatprep.subr.bf16.mxu0 0
        %7246 = vmatpush1.bf16.msra.mxu0 0
        %7247 = vmatprep.subr.bf16.mxu0 0
        %7248 = vmatpush1.bf16.msra.mxu0 0
        %7249 = vmatprep.subr.bf16.mxu0 0
        %7250 = vmatpush1.bf16.msra.mxu0 0
        %7251 = vmatprep.subr.bf16.mxu0 0
        %7252 = vmatpush1.bf16.msra.mxu0 0
        %7253 = vmatprep.subr.bf16.mxu0 0
        %7254 = vmatpush1.bf16.msra.mxu0 0
        %7255 = vmatprep.subr.bf16.mxu0 0
        %7256 = vmatpush1.bf16.msra.mxu0 0
        %7257 = vmatprep.subr.bf16.mxu0 0
        %7258 = vmatpush1.bf16.msra.mxu0 0
        %7259 = vmatprep.mubr.bf16.mxu0 0
        %7260 = vmatmul.mubr.bf16.gmra.mrb[0].mxu0 %v7162
        %v7261 = vpop.f32.mrb[0].mxu0
        %v7262 = vadd.f32 0.0, %v7261
        %v7263 = vpop.f32.mrb[0].mxu0
        %v7264 = vpop.f32.mrb[0].mxu0
        %v7265 = vpop.f32.mrb[0].mxu0
        %7266 = vdwg.mxu0
        %s7267 = scalar_lea.vmem [#allocation27], 64
        %v7268 = vld [vmem:[%s7267] sm:$0xf]
        %v7269 = vld [vmem:[%s7267 + $0x4] sm:$0xf]
        %v7270 = vld [vmem:[%s7267 + $0x8] sm:$0xf]
        %v7271 = vld [vmem:[%s7267 + $0xc] sm:$0xf]
        %v7272 = vld [vmem:[%s7267 + $0x10] sm:$0xf]
        %v7273 = vld [vmem:[%s7267 + $0x14] sm:$0xf]
        %v7274 = vld [vmem:[%s7267 + $0x18] sm:$0xf]
        %v7275 = vld [vmem:[%s7267 + $0x1c] sm:$0xf]
        %v7276 = vld [vmem:[%s7267 + $0x20] sm:$0xf]
        %v7277 = vld [vmem:[%s7267 + $0x24] sm:$0xf]
        %v7278 = vld [vmem:[%s7267 + $0x28] sm:$0xf]
        %v7279 = vld [vmem:[%s7267 + $0x2c] sm:$0xf]
        %v7280 = vld [vmem:[%s7267 + $0x30] sm:$0xf]
        %v7281 = vld [vmem:[%s7267 + $0x34] sm:$0xf]
        %v7282 = vld [vmem:[%s7267 + $0x38] sm:$0xf]
        %v7283 = vld [vmem:[%s7267 + $0x3c] sm:$0xf]
        %v7300 = vunpack.c.l.b16 %v7268
        %v7301 = vunpack.c.l.b16 %v7269
        %v7302 = vunpack.c.l.b16 %v7270
        %v7303 = vunpack.c.l.b16 %v7271
        %v7304 = vunpack.c.l.b16 %v7272
        %v7305 = vunpack.c.l.b16 %v7273
        %v7306 = vunpack.c.l.b16 %v7274
        %v7307 = vunpack.c.l.b16 %v7275
        %v7308 = vunpack.c.l.b16 %v7276
        %v7309 = vunpack.c.l.b16 %v7277
        %v7310 = vunpack.c.l.b16 %v7278
        %v7311 = vunpack.c.l.b16 %v7279
        %v7312 = vunpack.c.l.b16 %v7280
        %v7313 = vunpack.c.l.b16 %v7281
        %v7314 = vunpack.c.l.b16 %v7282
        %v7315 = vunpack.c.l.b16 %v7283
        %v7316 = vpack.c.b16 %v7301, %v7300
        %v7317 = vpack.c.b16 %v7303, %v7302
        %v7318 = vpack.c.b16 %v7305, %v7304
        %v7319 = vpack.c.b16 %v7307, %v7306
        %v7320 = vpack.c.b16 %v7309, %v7308
        %v7321 = vpack.c.b16 %v7311, %v7310
        %v7322 = vpack.c.b16 %v7313, %v7312
        %v7323 = vpack.c.b16 %v7315, %v7314
        %7332 = vmatprep.subr.bf16.mxu0 0
        %7333 = vmatpush1.bf16.msra.mxu0 %v7316
        %7334 = vmatprep.subr.bf16.mxu0 0
        %7335 = vmatpush1.bf16.msra.mxu0 %v7317
        %7336 = vmatprep.subr.bf16.mxu0 0
        %7337 = vmatpush1.bf16.msra.mxu0 %v7318
        %7338 = vmatprep.subr.bf16.mxu0 0
        %7339 = vmatpush1.bf16.msra.mxu0 %v7319
        %7340 = vmatprep.subr.bf16.mxu0 0
        %7341 = vmatpush1.bf16.msra.mxu0 %v7320
        %7342 = vmatprep.subr.bf16.mxu0 0
        %7343 = vmatpush1.bf16.msra.mxu0 %v7321
        %7344 = vmatprep.subr.bf16.mxu0 0
        %7345 = vmatpush1.bf16.msra.mxu0 %v7322
        %7346 = vmatprep.subr.bf16.mxu0 0
        %7347 = vmatpush1.bf16.msra.mxu0 %v7323
        %7348 = vmatprep.subr.bf16.mxu0 0
        %7349 = vmatpush1.bf16.msra.mxu0 0
        %7350 = vmatprep.subr.bf16.mxu0 0
        %7351 = vmatpush1.bf16.msra.mxu0 0
        %7352 = vmatprep.subr.bf16.mxu0 0
        %7353 = vmatpush1.bf16.msra.mxu0 0
        %7354 = vmatprep.subr.bf16.mxu0 0
        %7355 = vmatpush1.bf16.msra.mxu0 0
        %7356 = vmatprep.subr.bf16.mxu0 0
        %7357 = vmatpush1.bf16.msra.mxu0 0
        %7358 = vmatprep.subr.bf16.mxu0 0
        %7359 = vmatpush1.bf16.msra.mxu0 0
        %7360 = vmatprep.subr.bf16.mxu0 0
        %7361 = vmatpush1.bf16.msra.mxu0 0
        %7362 = vmatprep.subr.bf16.mxu0 0
        %7363 = vmatpush1.bf16.msra.mxu0 0
        %7364 = vmatprep.mubr.bf16.mxu0 0
        %7365 = vmatmul.mubr.bf16.gmra.mrb[0].mxu0 %v7162
        %v7366 = vpop.f32.mrb[0].mxu0
        %v7367 = vadd.f32 0.0, %v7366
        %v7368 = vpop.f32.mrb[0].mxu0
        %v7369 = vpop.f32.mrb[0].mxu0
        %v7370 = vpop.f32.mrb[0].mxu0
        %7371 = vdwg.mxu0
        %v7372 = vsel %vm5215, %v4847, 0
        %7374 = vmatprep.subr.mxu0 0.0
        %7375 = vmatpush1.msra.mxu0 %v7367
        %7376 = vmatprep.subr.mxu0 0.0
        %7377 = vmatpush1.msra.mxu0 0.0
        %7378 = vmatprep.subr.mxu0 0.0
        %7379 = vmatpush1.msra.mxu0 0.0
        %7380 = vmatprep.subr.mxu0 0.0
        %7381 = vmatpush1.msra.mxu0 0.0
        %7382 = vmatprep.subr.mxu0 0.0
        %7383 = vmatpush1.msra.mxu0 0.0
        %7384 = vmatprep.subr.mxu0 0.0
        %7385 = vmatpush1.msra.mxu0 0.0
        %7386 = vmatprep.subr.mxu0 0.0
        %7387 = vmatpush1.msra.mxu0 0.0
        %7388 = vmatprep.subr.mxu0 0.0
        %7389 = vmatpush1.msra.mxu0 0.0
        %7390 = vmatprep.subr.mxu0 0.0
        %7391 = vmatpush1.msra.mxu0 0.0
        %7392 = vmatprep.subr.mxu0 0.0
        %7393 = vmatpush1.msra.mxu0 0.0
        %7394 = vmatprep.subr.mxu0 0.0
        %7395 = vmatpush1.msra.mxu0 0.0
        %7396 = vmatprep.subr.mxu0 0.0
        %7397 = vmatpush1.msra.mxu0 0.0
        %7398 = vmatprep.subr.mxu0 0.0
        %7399 = vmatpush1.msra.mxu0 0.0
        %7400 = vmatprep.subr.mxu0 0.0
        %7401 = vmatpush1.msra.mxu0 0.0
        %7402 = vmatprep.subr.mxu0 0.0
        %7403 = vmatpush1.msra.mxu0 0.0
        %7404 = vmatprep.subr.mxu0 0.0
        %7405 = vmatpush1.msra.mxu0 0.0
        %7406 = vmatprep.subr.mxu0 0.0
        %7407 = vmatpush1.msra.mxu0 0.0
        %7408 = vmatprep.subr.mxu0 0.0
        %7409 = vmatpush1.msra.mxu0 0.0
        %7410 = vmatprep.subr.mxu0 0.0
        %7411 = vmatpush1.msra.mxu0 0.0
        %7412 = vmatprep.subr.mxu0 0.0
        %7413 = vmatpush1.msra.mxu0 0.0
        %7414 = vmatprep.subr.mxu0 0.0
        %7415 = vmatpush1.msra.mxu0 0.0
        %7416 = vmatprep.subr.mxu0 0.0
        %7417 = vmatpush1.msra.mxu0 0.0
        %7418 = vmatprep.subr.mxu0 0.0
        %7419 = vmatpush1.msra.mxu0 0.0
        %7420 = vmatprep.subr.mxu0 0.0
        %7421 = vmatpush1.msra.mxu0 0.0
        %7422 = vmatprep.subr.mxu0 0.0
        %7423 = vmatpush1.msra.mxu0 0.0
        %7424 = vmatprep.subr.mxu0 0.0
        %7425 = vmatpush1.msra.mxu0 0.0
        %7426 = vmatprep.subr.mxu0 0.0
        %7427 = vmatpush1.msra.mxu0 0.0
        %7428 = vmatprep.subr.mxu0 0.0
        %7429 = vmatpush1.msra.mxu0 0.0
        %7430 = vmatprep.subr.mxu0 0.0
        %7431 = vmatpush1.msra.mxu0 0.0
        %7432 = vmatprep.subr.mxu0 0.0
        %7433 = vmatpush1.msra.mxu0 0.0
        %7434 = vmatprep.subr.mxu0 0.0
        %7435 = vmatpush1.msra.mxu0 0.0
        %7436 = vmatprep.subr.mxu0 0.0
        %7437 = vmatpush1.msra.mxu0 0.0
        %7438 = vmatprep.mubr.f32.mxu0 0.0
        %7439 = vmatmul.mubr.f32.gmra.mrb[0].mxu0 %v7372
        %v7440 = vpop.f32.mrb[0].mxu0
        %v7441 = vadd.f32 0.0, %v7440
        %v7442 = vpop.f32.mrb[0].mxu0
        %7443 = vdwg.mxu0
        %v7444 = vsel %vm5215, %v4737, 0
        %7446 = vmatprep.subr.mxu0 0.0
        %7447 = vmatpush1.msra.mxu0 %v7262
        %7448 = vmatprep.subr.mxu0 0.0
        %7449 = vmatpush1.msra.mxu0 0.0
        %7450 = vmatprep.subr.mxu0 0.0
        %7451 = vmatpush1.msra.mxu0 0.0
        %7452 = vmatprep.subr.mxu0 0.0
        %7453 = vmatpush1.msra.mxu0 0.0
        %7454 = vmatprep.subr.mxu0 0.0
        %7455 = vmatpush1.msra.mxu0 0.0
        %7456 = vmatprep.subr.mxu0 0.0
        %7457 = vmatpush1.msra.mxu0 0.0
        %7458 = vmatprep.subr.mxu0 0.0
        %7459 = vmatpush1.msra.mxu0 0.0
        %7460 = vmatprep.subr.mxu0 0.0
        %7461 = vmatpush1.msra.mxu0 0.0
        %7462 = vmatprep.subr.mxu0 0.0
        %7463 = vmatpush1.msra.mxu0 0.0
        %7464 = vmatprep.subr.mxu0 0.0
        %7465 = vmatpush1.msra.mxu0 0.0
        %7466 = vmatprep.subr.mxu0 0.0
        %7467 = vmatpush1.msra.mxu0 0.0
        %7468 = vmatprep.subr.mxu0 0.0
        %7469 = vmatpush1.msra.mxu0 0.0
        %7470 = vmatprep.subr.mxu0 0.0
        %7471 = vmatpush1.msra.mxu0 0.0
        %7472 = vmatprep.subr.mxu0 0.0
        %7473 = vmatpush1.msra.mxu0 0.0
        %7474 = vmatprep.subr.mxu0 0.0
        %7475 = vmatpush1.msra.mxu0 0.0
        %7476 = vmatprep.subr.mxu0 0.0
        %7477 = vmatpush1.msra.mxu0 0.0
        %7478 = vmatprep.subr.mxu0 0.0
        %7479 = vmatpush1.msra.mxu0 0.0
        %7480 = vmatprep.subr.mxu0 0.0
        %7481 = vmatpush1.msra.mxu0 0.0
        %7482 = vmatprep.subr.mxu0 0.0
        %7483 = vmatpush1.msra.mxu0 0.0
        %7484 = vmatprep.subr.mxu0 0.0
        %7485 = vmatpush1.msra.mxu0 0.0
        %7486 = vmatprep.subr.mxu0 0.0
        %7487 = vmatpush1.msra.mxu0 0.0
        %7488 = vmatprep.subr.mxu0 0.0
        %7489 = vmatpush1.msra.mxu0 0.0
        %7490 = vmatprep.subr.mxu0 0.0
        %7491 = vmatpush1.msra.mxu0 0.0
        %7492 = vmatprep.subr.mxu0 0.0
        %7493 = vmatpush1.msra.mxu0 0.0
        %7494 = vmatprep.subr.mxu0 0.0
        %7495 = vmatpush1.msra.mxu0 0.0
        %7496 = vmatprep.subr.mxu0 0.0
        %7497 = vmatpush1.msra.mxu0 0.0
        %7498 = vmatprep.subr.mxu0 0.0
        %7499 = vmatpush1.msra.mxu0 0.0
        %7500 = vmatprep.subr.mxu0 0.0
        %7501 = vmatpush1.msra.mxu0 0.0
        %7502 = vmatprep.subr.mxu0 0.0
        %7503 = vmatpush1.msra.mxu0 0.0
        %7504 = vmatprep.subr.mxu0 0.0
        %7505 = vmatpush1.msra.mxu0 0.0
        %7506 = vmatprep.subr.mxu0 0.0
        %7507 = vmatpush1.msra.mxu0 0.0
        %7508 = vmatprep.subr.mxu0 0.0
        %7509 = vmatpush1.msra.mxu0 0.0
        %7510 = vmatprep.mubr.f32.mxu0 0.0
        %7511 = vmatmul.mubr.f32.gmra.mrb[0].mxu0 %v7444
        %v7512 = vpop.f32.mrb[0].mxu0
        %v7513 = vadd.f32 %v7441, %v7512
        %v7514 = vpop.f32.mrb[0].mxu0
        %7515 = vdwg.mxu0
        %v7516 = vld [vmem:[%s49] sm:$0x1]
        %v7518 = vlaneseq
        %v7519 = vshrl.u32 %v7518, 7
        %v7520 = vsub.s32 0, %v7519
        %v7521 = vrot.slane %v7516, %v7520
        %v7523 = vadd.f32 %v7513, %v7521
        %vm7524 = vcmp.gt.f32.partialorder %v7523, 0.0
        %v7525 = vmul.f32 %v7523, 0.2
        %v7526 = vsel %vm7524, %v7523, %v7525
        %v7527 = vadd.f32 %v4628, %v7526
        %v7528 = vld [vmem:[#allocation28] sm:$0xf]
        %v7529 = vld [vmem:[#allocation28 + $0x4] sm:$0xf]
        %v7530 = vld [vmem:[#allocation28 + $0x8] sm:$0xf]
        %v7531 = vld [vmem:[#allocation28 + $0xc] sm:$0xf]
        %v7532 = vld [vmem:[#allocation28 + $0x10] sm:$0xf]
        %v7533 = vld [vmem:[#allocation28 + $0x14] sm:$0xf]
        %v7534 = vld [vmem:[#allocation28 + $0x18] sm:$0xf]
        %v7535 = vld [vmem:[#allocation28 + $0x1c] sm:$0xf]
        %v7536 = vld [vmem:[#allocation28 + $0x20] sm:$0xf]
        %v7537 = vld [vmem:[#allocation28 + $0x24] sm:$0xf]
        %v7538 = vld [vmem:[#allocation28 + $0x28] sm:$0xf]
        %v7539 = vld [vmem:[#allocation28 + $0x2c] sm:$0xf]
        %v7540 = vld [vmem:[#allocation28 + $0x30] sm:$0xf]
        %v7541 = vld [vmem:[#allocation28 + $0x34] sm:$0xf]
        %v7542 = vld [vmem:[#allocation28 + $0x38] sm:$0xf]
        %v7543 = vld [vmem:[#allocation28 + $0x3c] sm:$0xf]
        %v7560 = vunpack.c.l.b16 %v7528
        %v7561 = vunpack.c.l.b16 %v7529
        %v7562 = vunpack.c.l.b16 %v7530
        %v7563 = vunpack.c.l.b16 %v7531
        %v7564 = vunpack.c.l.b16 %v7532
        %v7565 = vunpack.c.l.b16 %v7533
        %v7566 = vunpack.c.l.b16 %v7534
        %v7567 = vunpack.c.l.b16 %v7535
        %v7568 = vunpack.c.l.b16 %v7536
        %v7569 = vunpack.c.l.b16 %v7537
        %v7570 = vunpack.c.l.b16 %v7538
        %v7571 = vunpack.c.l.b16 %v7539
        %v7572 = vunpack.c.l.b16 %v7540
        %v7573 = vunpack.c.l.b16 %v7541
        %v7574 = vunpack.c.l.b16 %v7542
        %v7575 = vunpack.c.l.b16 %v7543
        %v7576 = vpack.c.b16 %v7561, %v7560
        %v7577 = vpack.c.b16 %v7563, %v7562
        %v7578 = vpack.c.b16 %v7565, %v7564
        %v7579 = vpack.c.b16 %v7567, %v7566
        %v7580 = vpack.c.b16 %v7569, %v7568
        %v7581 = vpack.c.b16 %v7571, %v7570
        %v7582 = vpack.c.b16 %v7573, %v7572
        %v7583 = vpack.c.b16 %v7575, %v7574
        %7592 = vmatprep.subr.bf16.mxu0 0
        %7593 = vmatpush1.bf16.msra.mxu0 %v7576
        %7594 = vmatprep.subr.bf16.mxu0 0
        %7595 = vmatpush1.bf16.msra.mxu0 %v7577
        %7596 = vmatprep.subr.bf16.mxu0 0
        %7597 = vmatpush1.bf16.msra.mxu0 %v7578
        %7598 = vmatprep.subr.bf16.mxu0 0
        %7599 = vmatpush1.bf16.msra.mxu0 %v7579
        %7600 = vmatprep.subr.bf16.mxu0 0
        %7601 = vmatpush1.bf16.msra.mxu0 %v7580
        %7602 = vmatprep.subr.bf16.mxu0 0
        %7603 = vmatpush1.bf16.msra.mxu0 %v7581
        %7604 = vmatprep.subr.bf16.mxu0 0
        %7605 = vmatpush1.bf16.msra.mxu0 %v7582
        %7606 = vmatprep.subr.bf16.mxu0 0
        %7607 = vmatpush1.bf16.msra.mxu0 %v7583
        %7608 = vmatprep.subr.bf16.mxu0 0
        %7609 = vmatpush1.bf16.msra.mxu0 0
        %7610 = vmatprep.subr.bf16.mxu0 0
        %7611 = vmatpush1.bf16.msra.mxu0 0
        %7612 = vmatprep.subr.bf16.mxu0 0
        %7613 = vmatpush1.bf16.msra.mxu0 0
        %7614 = vmatprep.subr.bf16.mxu0 0
        %7615 = vmatpush1.bf16.msra.mxu0 0
        %7616 = vmatprep.subr.bf16.mxu0 0
        %7617 = vmatpush1.bf16.msra.mxu0 0
        %7618 = vmatprep.subr.bf16.mxu0 0
        %7619 = vmatpush1.bf16.msra.mxu0 0
        %7620 = vmatprep.subr.bf16.mxu0 0
        %7621 = vmatpush1.bf16.msra.mxu0 0
        %7622 = vmatprep.subr.bf16.mxu0 0
        %7623 = vmatpush1.bf16.msra.mxu0 0
        %7624 = vmatprep.mubr.bf16.mxu0 0
        %7625 = vmatmul.mubr.bf16.gmra.mrb[0].mxu0 %v7162
        %v7626 = vpop.f32.mrb[0].mxu0
        %v7627 = vadd.f32 0.0, %v7626
        %v7628 = vpop.f32.mrb[0].mxu0
        %v7629 = vpop.f32.mrb[0].mxu0
        %v7630 = vpop.f32.mrb[0].mxu0
        %7631 = vdwg.mxu0
        %s7632 = scalar_lea.vmem [#allocation28], 64
        %v7633 = vld [vmem:[%s7632] sm:$0xf]
        %v7634 = vld [vmem:[%s7632 + $0x4] sm:$0xf]
        %v7635 = vld [vmem:[%s7632 + $0x8] sm:$0xf]
        %v7636 = vld [vmem:[%s7632 + $0xc] sm:$0xf]
        %v7637 = vld [vmem:[%s7632 + $0x10] sm:$0xf]
        %v7638 = vld [vmem:[%s7632 + $0x14] sm:$0xf]
        %v7639 = vld [vmem:[%s7632 + $0x18] sm:$0xf]
        %v7640 = vld [vmem:[%s7632 + $0x1c] sm:$0xf]
        %v7641 = vld [vmem:[%s7632 + $0x20] sm:$0xf]
        %v7642 = vld [vmem:[%s7632 + $0x24] sm:$0xf]
        %v7643 = vld [vmem:[%s7632 + $0x28] sm:$0xf]
        %v7644 = vld [vmem:[%s7632 + $0x2c] sm:$0xf]
        %v7645 = vld [vmem:[%s7632 + $0x30] sm:$0xf]
        %v7646 = vld [vmem:[%s7632 + $0x34] sm:$0xf]
        %v7647 = vld [vmem:[%s7632 + $0x38] sm:$0xf]
        %v7648 = vld [vmem:[%s7632 + $0x3c] sm:$0xf]
        %v7665 = vunpack.c.l.b16 %v7633
        %v7666 = vunpack.c.l.b16 %v7634
        %v7667 = vunpack.c.l.b16 %v7635
        %v7668 = vunpack.c.l.b16 %v7636
        %v7669 = vunpack.c.l.b16 %v7637
        %v7670 = vunpack.c.l.b16 %v7638
        %v7671 = vunpack.c.l.b16 %v7639
        %v7672 = vunpack.c.l.b16 %v7640
        %v7673 = vunpack.c.l.b16 %v7641
        %v7674 = vunpack.c.l.b16 %v7642
        %v7675 = vunpack.c.l.b16 %v7643
        %v7676 = vunpack.c.l.b16 %v7644
        %v7677 = vunpack.c.l.b16 %v7645
        %v7678 = vunpack.c.l.b16 %v7646
        %v7679 = vunpack.c.l.b16 %v7647
        %v7680 = vunpack.c.l.b16 %v7648
        %v7681 = vpack.c.b16 %v7666, %v7665
        %v7682 = vpack.c.b16 %v7668, %v7667
        %v7683 = vpack.c.b16 %v7670, %v7669
        %v7684 = vpack.c.b16 %v7672, %v7671
        %v7685 = vpack.c.b16 %v7674, %v7673
        %v7686 = vpack.c.b16 %v7676, %v7675
        %v7687 = vpack.c.b16 %v7678, %v7677
        %v7688 = vpack.c.b16 %v7680, %v7679
        %7697 = vmatprep.subr.bf16.mxu0 0
        %7698 = vmatpush1.bf16.msra.mxu0 %v7681
        %7699 = vmatprep.subr.bf16.mxu0 0
        %7700 = vmatpush1.bf16.msra.mxu0 %v7682
        %7701 = vmatprep.subr.bf16.mxu0 0
        %7702 = vmatpush1.bf16.msra.mxu0 %v7683
        %7703 = vmatprep.subr.bf16.mxu0 0
        %7704 = vmatpush1.bf16.msra.mxu0 %v7684
        %7705 = vmatprep.subr.bf16.mxu0 0
        %7706 = vmatpush1.bf16.msra.mxu0 %v7685
        %7707 = vmatprep.subr.bf16.mxu0 0
        %7708 = vmatpush1.bf16.msra.mxu0 %v7686
        %7709 = vmatprep.subr.bf16.mxu0 0
        %7710 = vmatpush1.bf16.msra.mxu0 %v7687
        %7711 = vmatprep.subr.bf16.mxu0 0
        %7712 = vmatpush1.bf16.msra.mxu0 %v7688
        %7713 = vmatprep.subr.bf16.mxu0 0
        %7714 = vmatpush1.bf16.msra.mxu0 0
        %7715 = vmatprep.subr.bf16.mxu0 0
        %7716 = vmatpush1.bf16.msra.mxu0 0
        %7717 = vmatprep.subr.bf16.mxu0 0
        %7718 = vmatpush1.bf16.msra.mxu0 0
        %7719 = vmatprep.subr.bf16.mxu0 0
        %7720 = vmatpush1.bf16.msra.mxu0 0
        %7721 = vmatprep.subr.bf16.mxu0 0
        %7722 = vmatpush1.bf16.msra.mxu0 0
        %7723 = vmatprep.subr.bf16.mxu0 0
        %7724 = vmatpush1.bf16.msra.mxu0 0
        %7725 = vmatprep.subr.bf16.mxu0 0
        %7726 = vmatpush1.bf16.msra.mxu0 0
        %7727 = vmatprep.subr.bf16.mxu0 0
        %7728 = vmatpush1.bf16.msra.mxu0 0
        %7729 = vmatprep.mubr.bf16.mxu0 0
        %7730 = vmatmul.mubr.bf16.gmra.mrb[0].mxu0 %v7162
        %v7731 = vpop.f32.mrb[0].mxu0
        %v7732 = vadd.f32 0.0, %v7731
        %v7733 = vpop.f32.mrb[0].mxu0
        %v7734 = vpop.f32.mrb[0].mxu0
        %v7735 = vpop.f32.mrb[0].mxu0
        %7736 = vdwg.mxu0
        %7737 = vmatprep.subr.mxu0 0.0
        %7738 = vmatpush1.msra.mxu0 %v7732
        %7739 = vmatprep.subr.mxu0 0.0
        %7740 = vmatpush1.msra.mxu0 0.0
        %7741 = vmatprep.subr.mxu0 0.0
        %7742 = vmatpush1.msra.mxu0 0.0
        %7743 = vmatprep.subr.mxu0 0.0
        %7744 = vmatpush1.msra.mxu0 0.0
        %7745 = vmatprep.subr.mxu0 0.0
        %7746 = vmatpush1.msra.mxu0 0.0
        %7747 = vmatprep.subr.mxu0 0.0
        %7748 = vmatpush1.msra.mxu0 0.0
        %7749 = vmatprep.subr.mxu0 0.0
        %7750 = vmatpush1.msra.mxu0 0.0
        %7751 = vmatprep.subr.mxu0 0.0
        %7752 = vmatpush1.msra.mxu0 0.0
        %7753 = vmatprep.subr.mxu0 0.0
        %7754 = vmatpush1.msra.mxu0 0.0
        %7755 = vmatprep.subr.mxu0 0.0
        %7756 = vmatpush1.msra.mxu0 0.0
        %7757 = vmatprep.subr.mxu0 0.0
        %7758 = vmatpush1.msra.mxu0 0.0
        %7759 = vmatprep.subr.mxu0 0.0
        %7760 = vmatpush1.msra.mxu0 0.0
        %7761 = vmatprep.subr.mxu0 0.0
        %7762 = vmatpush1.msra.mxu0 0.0
        %7763 = vmatprep.subr.mxu0 0.0
        %7764 = vmatpush1.msra.mxu0 0.0
        %7765 = vmatprep.subr.mxu0 0.0
        %7766 = vmatpush1.msra.mxu0 0.0
        %7767 = vmatprep.subr.mxu0 0.0
        %7768 = vmatpush1.msra.mxu0 0.0
        %7769 = vmatprep.subr.mxu0 0.0
        %7770 = vmatpush1.msra.mxu0 0.0
        %7771 = vmatprep.subr.mxu0 0.0
        %7772 = vmatpush1.msra.mxu0 0.0
        %7773 = vmatprep.subr.mxu0 0.0
        %7774 = vmatpush1.msra.mxu0 0.0
        %7775 = vmatprep.subr.mxu0 0.0
        %7776 = vmatpush1.msra.mxu0 0.0
        %7777 = vmatprep.subr.mxu0 0.0
        %7778 = vmatpush1.msra.mxu0 0.0
        %7779 = vmatprep.subr.mxu0 0.0
        %7780 = vmatpush1.msra.mxu0 0.0
        %7781 = vmatprep.subr.mxu0 0.0
        %7782 = vmatpush1.msra.mxu0 0.0
        %7783 = vmatprep.subr.mxu0 0.0
        %7784 = vmatpush1.msra.mxu0 0.0
        %7785 = vmatprep.subr.mxu0 0.0
        %7786 = vmatpush1.msra.mxu0 0.0
        %7787 = vmatprep.subr.mxu0 0.0
        %7788 = vmatpush1.msra.mxu0 0.0
        %7789 = vmatprep.subr.mxu0 0.0
        %7790 = vmatpush1.msra.mxu0 0.0
        %7791 = vmatprep.subr.mxu0 0.0
        %7792 = vmatpush1.msra.mxu0 0.0
        %7793 = vmatprep.subr.mxu0 0.0
        %7794 = vmatpush1.msra.mxu0 0.0
        %7795 = vmatprep.subr.mxu0 0.0
        %7796 = vmatpush1.msra.mxu0 0.0
        %7797 = vmatprep.subr.mxu0 0.0
        %7798 = vmatpush1.msra.mxu0 0.0
        %7799 = vmatprep.subr.mxu0 0.0
        %7800 = vmatpush1.msra.mxu0 0.0
        %7801 = vmatprep.mubr.f32.mxu0 0.0
        %7802 = vmatmul.mubr.f32.gmra.mrb[0].mxu0 %v7372
        %v7803 = vpop.f32.mrb[0].mxu0
        %v7804 = vadd.f32 0.0, %v7803
        %v7805 = vpop.f32.mrb[0].mxu0
        %7806 = vdwg.mxu0
        %7807 = vmatprep.subr.mxu0 0.0
        %7808 = vmatpush1.msra.mxu0 %v7627
        %7809 = vmatprep.subr.mxu0 0.0
        %7810 = vmatpush1.msra.mxu0 0.0
        %7811 = vmatprep.subr.mxu0 0.0
        %7812 = vmatpush1.msra.mxu0 0.0
        %7813 = vmatprep.subr.mxu0 0.0
        %7814 = vmatpush1.msra.mxu0 0.0
        %7815 = vmatprep.subr.mxu0 0.0
        %7816 = vmatpush1.msra.mxu0 0.0
        %7817 = vmatprep.subr.mxu0 0.0
        %7818 = vmatpush1.msra.mxu0 0.0
        %7819 = vmatprep.subr.mxu0 0.0
        %7820 = vmatpush1.msra.mxu0 0.0
        %7821 = vmatprep.subr.mxu0 0.0
        %7822 = vmatpush1.msra.mxu0 0.0
        %7823 = vmatprep.subr.mxu0 0.0
        %7824 = vmatpush1.msra.mxu0 0.0
        %7825 = vmatprep.subr.mxu0 0.0
        %7826 = vmatpush1.msra.mxu0 0.0
        %7827 = vmatprep.subr.mxu0 0.0
        %7828 = vmatpush1.msra.mxu0 0.0
        %7829 = vmatprep.subr.mxu0 0.0
        %7830 = vmatpush1.msra.mxu0 0.0
        %7831 = vmatprep.subr.mxu0 0.0
        %7832 = vmatpush1.msra.mxu0 0.0
        %7833 = vmatprep.subr.mxu0 0.0
        %7834 = vmatpush1.msra.mxu0 0.0
        %7835 = vmatprep.subr.mxu0 0.0
        %7836 = vmatpush1.msra.mxu0 0.0
        %7837 = vmatprep.subr.mxu0 0.0
        %7838 = vmatpush1.msra.mxu0 0.0
        %7839 = vmatprep.subr.mxu0 0.0
        %7840 = vmatpush1.msra.mxu0 0.0
        %7841 = vmatprep.subr.mxu0 0.0
        %7842 = vmatpush1.msra.mxu0 0.0
        %7843 = vmatprep.subr.mxu0 0.0
        %7844 = vmatpush1.msra.mxu0 0.0
        %7845 = vmatprep.subr.mxu0 0.0
        %7846 = vmatpush1.msra.mxu0 0.0
        %7847 = vmatprep.subr.mxu0 0.0
        %7848 = vmatpush1.msra.mxu0 0.0
        %7849 = vmatprep.subr.mxu0 0.0
        %7850 = vmatpush1.msra.mxu0 0.0
        %7851 = vmatprep.subr.mxu0 0.0
        %7852 = vmatpush1.msra.mxu0 0.0
        %7853 = vmatprep.subr.mxu0 0.0
        %7854 = vmatpush1.msra.mxu0 0.0
        %7855 = vmatprep.subr.mxu0 0.0
        %7856 = vmatpush1.msra.mxu0 0.0
        %7857 = vmatprep.subr.mxu0 0.0
        %7858 = vmatpush1.msra.mxu0 0.0
        %7859 = vmatprep.subr.mxu0 0.0
        %7860 = vmatpush1.msra.mxu0 0.0
        %7861 = vmatprep.subr.mxu0 0.0
        %7862 = vmatpush1.msra.mxu0 0.0
        %7863 = vmatprep.subr.mxu0 0.0
        %7864 = vmatpush1.msra.mxu0 0.0
        %7865 = vmatprep.subr.mxu0 0.0
        %7866 = vmatpush1.msra.mxu0 0.0
        %7867 = vmatprep.subr.mxu0 0.0
        %7868 = vmatpush1.msra.mxu0 0.0
        %7869 = vmatprep.subr.mxu0 0.0
        %7870 = vmatpush1.msra.mxu0 0.0
        %7871 = vmatprep.mubr.f32.mxu0 0.0
        %7872 = vmatmul.mubr.f32.gmra.mrb[0].mxu0 %v7444
        %v7873 = vpop.f32.mrb[0].mxu0
        %v7874 = vadd.f32 %v7804, %v7873
        %v7875 = vpop.f32.mrb[0].mxu0
        %7876 = vdwg.mxu0
        %v7877 = vld [vmem:[%s53] sm:$0x1]
        %v7879 = vlaneseq
        %v7880 = vshrl.u32 %v7879, 7
        %v7881 = vsub.s32 0, %v7880
        %v7882 = vrot.slane %v7877, %v7881
        %v7884 = vadd.f32 %v7874, %v7882
        %vm7885 = vcmp.gt.f32.partialorder %v7884, 0.0
        %v7886 = vmul.f32 %v7884, 0.2
        %v7887 = vsel %vm7885, %v7884, %v7886
        %v7888 = vadd.f32 %v7887, %v7527
        %v7889 = vpack.c.bf16 %v7888, %v7888
        %v7890 = vld [vmem:[%s55] sm:$0xf]
        %v7891 = vld [vmem:[%s55 + $0x4] sm:$0xf]
        %v7892 = vld [vmem:[%s55 + $0x8] sm:$0xf]
        %v7893 = vld [vmem:[%s55 + $0xc] sm:$0xf]
        %v7894 = vld [vmem:[%s55 + $0x10] sm:$0xf]
        %v7895 = vld [vmem:[%s55 + $0x14] sm:$0xf]
        %v7896 = vld [vmem:[%s55 + $0x18] sm:$0xf]
        %v7897 = vld [vmem:[%s55 + $0x1c] sm:$0xf]
        %v7898 = vld [vmem:[%s55 + $0x20] sm:$0xf]
        %v7899 = vld [vmem:[%s55 + $0x24] sm:$0xf]
        %v7900 = vld [vmem:[%s55 + $0x28] sm:$0xf]
        %v7901 = vld [vmem:[%s55 + $0x2c] sm:$0xf]
        %v7902 = vld [vmem:[%s55 + $0x30] sm:$0xf]
        %v7903 = vld [vmem:[%s55 + $0x34] sm:$0xf]
        %v7904 = vld [vmem:[%s55 + $0x38] sm:$0xf]
        %v7905 = vld [vmem:[%s55 + $0x3c] sm:$0xf]
        %v7922 = vunpack.c.l.b16 %v7890
        %v7923 = vunpack.c.l.b16 %v7891
        %v7924 = vunpack.c.l.b16 %v7892
        %v7925 = vunpack.c.l.b16 %v7893
        %v7926 = vunpack.c.l.b16 %v7894
        %v7927 = vunpack.c.l.b16 %v7895
        %v7928 = vunpack.c.l.b16 %v7896
        %v7929 = vunpack.c.l.b16 %v7897
        %v7930 = vunpack.c.l.b16 %v7898
        %v7931 = vunpack.c.l.b16 %v7899
        %v7932 = vunpack.c.l.b16 %v7900
        %v7933 = vunpack.c.l.b16 %v7901
        %v7934 = vunpack.c.l.b16 %v7902
        %v7935 = vunpack.c.l.b16 %v7903
        %v7936 = vunpack.c.l.b16 %v7904
        %v7937 = vunpack.c.l.b16 %v7905
        %v7938 = vpack.c.b16 %v7923, %v7922
        %v7939 = vpack.c.b16 %v7925, %v7924
        %v7940 = vpack.c.b16 %v7927, %v7926
        %v7941 = vpack.c.b16 %v7929, %v7928
        %v7942 = vpack.c.b16 %v7931, %v7930
        %v7943 = vpack.c.b16 %v7933, %v7932
        %v7944 = vpack.c.b16 %v7935, %v7934
        %v7945 = vpack.c.b16 %v7937, %v7936
        %7954 = vmatprep.subr.bf16.mxu0 0
        %7955 = vmatpush1.bf16.msra.mxu0 %v7938
        %7956 = vmatprep.subr.bf16.mxu0 0
        %7957 = vmatpush1.bf16.msra.mxu0 %v7939
        %7958 = vmatprep.subr.bf16.mxu0 0
        %7959 = vmatpush1.bf16.msra.mxu0 %v7940
        %7960 = vmatprep.subr.bf16.mxu0 0
        %7961 = vmatpush1.bf16.msra.mxu0 %v7941
        %7962 = vmatprep.subr.bf16.mxu0 0
        %7963 = vmatpush1.bf16.msra.mxu0 %v7942
        %7964 = vmatprep.subr.bf16.mxu0 0
        %7965 = vmatpush1.bf16.msra.mxu0 %v7943
        %7966 = vmatprep.subr.bf16.mxu0 0
        %7967 = vmatpush1.bf16.msra.mxu0 %v7944
        %7968 = vmatprep.subr.bf16.mxu0 0
        %7969 = vmatpush1.bf16.msra.mxu0 %v7945
        %7970 = vmatprep.subr.bf16.mxu0 0
        %7971 = vmatpush1.bf16.msra.mxu0 0
        %7972 = vmatprep.subr.bf16.mxu0 0
        %7973 = vmatpush1.bf16.msra.mxu0 0
        %7974 = vmatprep.subr.bf16.mxu0 0
        %7975 = vmatpush1.bf16.msra.mxu0 0
        %7976 = vmatprep.subr.bf16.mxu0 0
        %7977 = vmatpush1.bf16.msra.mxu0 0
        %7978 = vmatprep.subr.bf16.mxu0 0
        %7979 = vmatpush1.bf16.msra.mxu0 0
        %7980 = vmatprep.subr.bf16.mxu0 0
        %7981 = vmatpush1.bf16.msra.mxu0 0
        %7982 = vmatprep.subr.bf16.mxu0 0
        %7983 = vmatpush1.bf16.msra.mxu0 0
        %7984 = vmatprep.subr.bf16.mxu0 0
        %7985 = vmatpush1.bf16.msra.mxu0 0
        %7986 = vmatprep.mubr.bf16.mxu0 0
        %7987 = vmatmul.mubr.bf16.gmra.mrb[0].mxu0 %v7889
        %v7988 = vpop.f32.mrb[0].mxu0
        %v7989 = vadd.f32 0.0, %v7988
        %v7990 = vpop.f32.mrb[0].mxu0
        %v7991 = vpop.f32.mrb[0].mxu0
        %v7992 = vpop.f32.mrb[0].mxu0
        %7993 = vdwg.mxu0
        %s7994 = scalar_lea.vmem %s55, 64
        %v7995 = vld [vmem:[%s7994] sm:$0xf]
        %v7996 = vld [vmem:[%s7994 + $0x4] sm:$0xf]
        %v7997 = vld [vmem:[%s7994 + $0x8] sm:$0xf]
        %v7998 = vld [vmem:[%s7994 + $0xc] sm:$0xf]
        %v7999 = vld [vmem:[%s7994 + $0x10] sm:$0xf]
        %v8000 = vld [vmem:[%s7994 + $0x14] sm:$0xf]
        %v8001 = vld [vmem:[%s7994 + $0x18] sm:$0xf]
        %v8002 = vld [vmem:[%s7994 + $0x1c] sm:$0xf]
        %v8003 = vld [vmem:[%s7994 + $0x20] sm:$0xf]
        %v8004 = vld [vmem:[%s7994 + $0x24] sm:$0xf]
        %v8005 = vld [vmem:[%s7994 + $0x28] sm:$0xf]
        %v8006 = vld [vmem:[%s7994 + $0x2c] sm:$0xf]
        %v8007 = vld [vmem:[%s7994 + $0x30] sm:$0xf]
        %v8008 = vld [vmem:[%s7994 + $0x34] sm:$0xf]
        %v8009 = vld [vmem:[%s7994 + $0x38] sm:$0xf]
        %v8010 = vld [vmem:[%s7994 + $0x3c] sm:$0xf]
        %v8027 = vunpack.c.l.b16 %v7995
        %v8028 = vunpack.c.l.b16 %v7996
        %v8029 = vunpack.c.l.b16 %v7997
        %v8030 = vunpack.c.l.b16 %v7998
        %v8031 = vunpack.c.l.b16 %v7999
        %v8032 = vunpack.c.l.b16 %v8000
        %v8033 = vunpack.c.l.b16 %v8001
        %v8034 = vunpack.c.l.b16 %v8002
        %v8035 = vunpack.c.l.b16 %v8003
        %v8036 = vunpack.c.l.b16 %v8004
        %v8037 = vunpack.c.l.b16 %v8005
        %v8038 = vunpack.c.l.b16 %v8006
        %v8039 = vunpack.c.l.b16 %v8007
        %v8040 = vunpack.c.l.b16 %v8008
        %v8041 = vunpack.c.l.b16 %v8009
        %v8042 = vunpack.c.l.b16 %v8010
        %v8043 = vpack.c.b16 %v8028, %v8027
        %v8044 = vpack.c.b16 %v8030, %v8029
        %v8045 = vpack.c.b16 %v8032, %v8031
        %v8046 = vpack.c.b16 %v8034, %v8033
        %v8047 = vpack.c.b16 %v8036, %v8035
        %v8048 = vpack.c.b16 %v8038, %v8037
        %v8049 = vpack.c.b16 %v8040, %v8039
        %v8050 = vpack.c.b16 %v8042, %v8041
        %8059 = vmatprep.subr.bf16.mxu0 0
        %8060 = vmatpush1.bf16.msra.mxu0 %v8043
        %8061 = vmatprep.subr.bf16.mxu0 0
        %8062 = vmatpush1.bf16.msra.mxu0 %v8044
        %8063 = vmatprep.subr.bf16.mxu0 0
        %8064 = vmatpush1.bf16.msra.mxu0 %v8045
        %8065 = vmatprep.subr.bf16.mxu0 0
        %8066 = vmatpush1.bf16.msra.mxu0 %v8046
        %8067 = vmatprep.subr.bf16.mxu0 0
        %8068 = vmatpush1.bf16.msra.mxu0 %v8047
        %8069 = vmatprep.subr.bf16.mxu0 0
        %8070 = vmatpush1.bf16.msra.mxu0 %v8048
        %8071 = vmatprep.subr.bf16.mxu0 0
        %8072 = vmatpush1.bf16.msra.mxu0 %v8049
        %8073 = vmatprep.subr.bf16.mxu0 0
        %8074 = vmatpush1.bf16.msra.mxu0 %v8050
        %8075 = vmatprep.subr.bf16.mxu0 0
        %8076 = vmatpush1.bf16.msra.mxu0 0
        %8077 = vmatprep.subr.bf16.mxu0 0
        %8078 = vmatpush1.bf16.msra.mxu0 0
        %8079 = vmatprep.subr.bf16.mxu0 0
        %8080 = vmatpush1.bf16.msra.mxu0 0
        %8081 = vmatprep.subr.bf16.mxu0 0
        %8082 = vmatpush1.bf16.msra.mxu0 0
        %8083 = vmatprep.subr.bf16.mxu0 0
        %8084 = vmatpush1.bf16.msra.mxu0 0
        %8085 = vmatprep.subr.bf16.mxu0 0
        %8086 = vmatpush1.bf16.msra.mxu0 0
        %8087 = vmatprep.subr.bf16.mxu0 0
        %8088 = vmatpush1.bf16.msra.mxu0 0
        %8089 = vmatprep.subr.bf16.mxu0 0
        %8090 = vmatpush1.bf16.msra.mxu0 0
        %8091 = vmatprep.mubr.bf16.mxu0 0
        %8092 = vmatmul.mubr.bf16.gmra.mrb[0].mxu0 %v7889
        %v8093 = vpop.f32.mrb[0].mxu0
        %v8094 = vadd.f32 0.0, %v8093
        %v8095 = vpop.f32.mrb[0].mxu0
        %v8096 = vpop.f32.mrb[0].mxu0
        %v8097 = vpop.f32.mrb[0].mxu0
        %8098 = vdwg.mxu0
        %vm8099 = vcmask 31744
        %v8100 = vsel %vm8099, %v1303, 0
        %vm8102 = vcmask 1043456
        %v8104 = vsel %vm8102, %v8094, 0
        %8106 = vmatprep.subr.mxu0 0.0
        %8107 = vmatpush1.msra.mxu0 %v8104
        %8108 = vmatprep.subr.mxu0 0.0
        %8109 = vmatpush1.msra.mxu0 0.0
        %8110 = vmatprep.subr.mxu0 0.0
        %8111 = vmatpush1.msra.mxu0 0.0
        %8112 = vmatprep.subr.mxu0 0.0
        %8113 = vmatpush1.msra.mxu0 0.0
        %8114 = vmatprep.subr.mxu0 0.0
        %8115 = vmatpush1.msra.mxu0 0.0
        %8116 = vmatprep.subr.mxu0 0.0
        %8117 = vmatpush1.msra.mxu0 0.0
        %8118 = vmatprep.subr.mxu0 0.0
        %8119 = vmatpush1.msra.mxu0 0.0
        %8120 = vmatprep.subr.mxu0 0.0
        %8121 = vmatpush1.msra.mxu0 0.0
        %8122 = vmatprep.subr.mxu0 0.0
        %8123 = vmatpush1.msra.mxu0 0.0
        %8124 = vmatprep.subr.mxu0 0.0
        %8125 = vmatpush1.msra.mxu0 0.0
        %8126 = vmatprep.subr.mxu0 0.0
        %8127 = vmatpush1.msra.mxu0 0.0
        %8128 = vmatprep.subr.mxu0 0.0
        %8129 = vmatpush1.msra.mxu0 0.0
        %8130 = vmatprep.subr.mxu0 0.0
        %8131 = vmatpush1.msra.mxu0 0.0
        %8132 = vmatprep.subr.mxu0 0.0
        %8133 = vmatpush1.msra.mxu0 0.0
        %8134 = vmatprep.subr.mxu0 0.0
        %8135 = vmatpush1.msra.mxu0 0.0
        %8136 = vmatprep.subr.mxu0 0.0
        %8137 = vmatpush1.msra.mxu0 0.0
        %8138 = vmatprep.subr.mxu0 0.0
        %8139 = vmatpush1.msra.mxu0 0.0
        %8140 = vmatprep.subr.mxu0 0.0
        %8141 = vmatpush1.msra.mxu0 0.0
        %8142 = vmatprep.subr.mxu0 0.0
        %8143 = vmatpush1.msra.mxu0 0.0
        %8144 = vmatprep.subr.mxu0 0.0
        %8145 = vmatpush1.msra.mxu0 0.0
        %8146 = vmatprep.subr.mxu0 0.0
        %8147 = vmatpush1.msra.mxu0 0.0
        %8148 = vmatprep.subr.mxu0 0.0
        %8149 = vmatpush1.msra.mxu0 0.0
        %8150 = vmatprep.subr.mxu0 0.0
        %8151 = vmatpush1.msra.mxu0 0.0
        %8152 = vmatprep.subr.mxu0 0.0
        %8153 = vmatpush1.msra.mxu0 0.0
        %8154 = vmatprep.subr.mxu0 0.0
        %8155 = vmatpush1.msra.mxu0 0.0
        %8156 = vmatprep.subr.mxu0 0.0
        %8157 = vmatpush1.msra.mxu0 0.0
        %8158 = vmatprep.subr.mxu0 0.0
        %8159 = vmatpush1.msra.mxu0 0.0
        %8160 = vmatprep.subr.mxu0 0.0
        %8161 = vmatpush1.msra.mxu0 0.0
        %8162 = vmatprep.subr.mxu0 0.0
        %8163 = vmatpush1.msra.mxu0 0.0
        %8164 = vmatprep.subr.mxu0 0.0
        %8165 = vmatpush1.msra.mxu0 0.0
        %8166 = vmatprep.subr.mxu0 0.0
        %8167 = vmatpush1.msra.mxu0 0.0
        %8168 = vmatprep.subr.mxu0 0.0
        %8169 = vmatpush1.msra.mxu0 0.0
        %8170 = vmatprep.mubr.f32.mxu0 0.0
        %8171 = vmatmul.mubr.f32.gmra.mrb[0].mxu0 %v8100
        %v8172 = vpop.f32.mrb[0].mxu0
        %v8173 = vadd.f32 0.0, %v8172
        %v8174 = vpop.f32.mrb[0].mxu0
        %8175 = vdwg.mxu0
        %v8176 = vsel %vm8099, %v1231, 0
        %v8179 = vsel %vm8102, %v7989, 0
        %8181 = vmatprep.subr.mxu0 0.0
        %8182 = vmatpush1.msra.mxu0 %v8179
        %8183 = vmatprep.subr.mxu0 0.0
        %8184 = vmatpush1.msra.mxu0 0.0
        %8185 = vmatprep.subr.mxu0 0.0
        %8186 = vmatpush1.msra.mxu0 0.0
        %8187 = vmatprep.subr.mxu0 0.0
        %8188 = vmatpush1.msra.mxu0 0.0
        %8189 = vmatprep.subr.mxu0 0.0
        %8190 = vmatpush1.msra.mxu0 0.0
        %8191 = vmatprep.subr.mxu0 0.0
        %8192 = vmatpush1.msra.mxu0 0.0
        %8193 = vmatprep.subr.mxu0 0.0
        %8194 = vmatpush1.msra.mxu0 0.0
        %8195 = vmatprep.subr.mxu0 0.0
        %8196 = vmatpush1.msra.mxu0 0.0
        %8197 = vmatprep.subr.mxu0 0.0
        %8198 = vmatpush1.msra.mxu0 0.0
        %8199 = vmatprep.subr.mxu0 0.0
        %8200 = vmatpush1.msra.mxu0 0.0
        %8201 = vmatprep.subr.mxu0 0.0
        %8202 = vmatpush1.msra.mxu0 0.0
        %8203 = vmatprep.subr.mxu0 0.0
        %8204 = vmatpush1.msra.mxu0 0.0
        %8205 = vmatprep.subr.mxu0 0.0
        %8206 = vmatpush1.msra.mxu0 0.0
        %8207 = vmatprep.subr.mxu0 0.0
        %8208 = vmatpush1.msra.mxu0 0.0
        %8209 = vmatprep.subr.mxu0 0.0
        %8210 = vmatpush1.msra.mxu0 0.0
        %8211 = vmatprep.subr.mxu0 0.0
        %8212 = vmatpush1.msra.mxu0 0.0
        %8213 = vmatprep.subr.mxu0 0.0
        %8214 = vmatpush1.msra.mxu0 0.0
        %8215 = vmatprep.subr.mxu0 0.0
        %8216 = vmatpush1.msra.mxu0 0.0
        %8217 = vmatprep.subr.mxu0 0.0
        %8218 = vmatpush1.msra.mxu0 0.0
        %8219 = vmatprep.subr.mxu0 0.0
        %8220 = vmatpush1.msra.mxu0 0.0
        %8221 = vmatprep.subr.mxu0 0.0
        %8222 = vmatpush1.msra.mxu0 0.0
        %8223 = vmatprep.subr.mxu0 0.0
        %8224 = vmatpush1.msra.mxu0 0.0
        %8225 = vmatprep.subr.mxu0 0.0
        %8226 = vmatpush1.msra.mxu0 0.0
        %8227 = vmatprep.subr.mxu0 0.0
        %8228 = vmatpush1.msra.mxu0 0.0
        %8229 = vmatprep.subr.mxu0 0.0
        %8230 = vmatpush1.msra.mxu0 0.0
        %8231 = vmatprep.subr.mxu0 0.0
        %8232 = vmatpush1.msra.mxu0 0.0
        %8233 = vmatprep.subr.mxu0 0.0
        %8234 = vmatpush1.msra.mxu0 0.0
        %8235 = vmatprep.subr.mxu0 0.0
        %8236 = vmatpush1.msra.mxu0 0.0
        %8237 = vmatprep.subr.mxu0 0.0
        %8238 = vmatpush1.msra.mxu0 0.0
        %8239 = vmatprep.subr.mxu0 0.0
        %8240 = vmatpush1.msra.mxu0 0.0
        %8241 = vmatprep.subr.mxu0 0.0
        %8242 = vmatpush1.msra.mxu0 0.0
        %8243 = vmatprep.subr.mxu0 0.0
        %8244 = vmatpush1.msra.mxu0 0.0
        %8245 = vmatprep.mubr.f32.mxu0 0.0
        %8246 = vmatmul.mubr.f32.gmra.mrb[0].mxu0 %v8176
        %v8247 = vpop.f32.mrb[0].mxu0
        %v8248 = vadd.f32 %v8173, %v8247
        %v8249 = vpop.f32.mrb[0].mxu0
        %8250 = vdwg.mxu0
        %s8251 = scalar_lea.vmem %s55, 128
        %v8252 = vld [vmem:[%s8251] sm:$0xf]
        %v8253 = vld [vmem:[%s8251 + $0x4] sm:$0xf]
        %v8254 = vld [vmem:[%s8251 + $0x8] sm:$0xf]
        %v8255 = vld [vmem:[%s8251 + $0xc] sm:$0xf]
        %v8256 = vld [vmem:[%s8251 + $0x10] sm:$0xf]
        %v8257 = vld [vmem:[%s8251 + $0x14] sm:$0xf]
        %v8258 = vld [vmem:[%s8251 + $0x18] sm:$0xf]
        %v8259 = vld [vmem:[%s8251 + $0x1c] sm:$0xf]
        %v8260 = vld [vmem:[%s8251 + $0x20] sm:$0xf]
        %v8261 = vld [vmem:[%s8251 + $0x24] sm:$0xf]
        %v8262 = vld [vmem:[%s8251 + $0x28] sm:$0xf]
        %v8263 = vld [vmem:[%s8251 + $0x2c] sm:$0xf]
        %v8264 = vld [vmem:[%s8251 + $0x30] sm:$0xf]
        %v8265 = vld [vmem:[%s8251 + $0x34] sm:$0xf]
        %v8266 = vld [vmem:[%s8251 + $0x38] sm:$0xf]
        %v8267 = vld [vmem:[%s8251 + $0x3c] sm:$0xf]
        %v8284 = vunpack.c.l.b16 %v8252
        %v8285 = vunpack.c.l.b16 %v8253
        %v8286 = vunpack.c.l.b16 %v8254
        %v8287 = vunpack.c.l.b16 %v8255
        %v8288 = vunpack.c.l.b16 %v8256
        %v8289 = vunpack.c.l.b16 %v8257
        %v8290 = vunpack.c.l.b16 %v8258
        %v8291 = vunpack.c.l.b16 %v8259
        %v8292 = vunpack.c.l.b16 %v8260
        %v8293 = vunpack.c.l.b16 %v8261
        %v8294 = vunpack.c.l.b16 %v8262
        %v8295 = vunpack.c.l.b16 %v8263
        %v8296 = vunpack.c.l.b16 %v8264
        %v8297 = vunpack.c.l.b16 %v8265
        %v8298 = vunpack.c.l.b16 %v8266
        %v8299 = vunpack.c.l.b16 %v8267
        %v8300 = vpack.c.b16 %v8285, %v8284
        %v8301 = vpack.c.b16 %v8287, %v8286
        %v8302 = vpack.c.b16 %v8289, %v8288
        %v8303 = vpack.c.b16 %v8291, %v8290
        %v8304 = vpack.c.b16 %v8293, %v8292
        %v8305 = vpack.c.b16 %v8295, %v8294
        %v8306 = vpack.c.b16 %v8297, %v8296
        %v8307 = vpack.c.b16 %v8299, %v8298
        %8316 = vmatprep.subr.bf16.mxu0 0
        %8317 = vmatpush1.bf16.msra.mxu0 %v8300
        %8318 = vmatprep.subr.bf16.mxu0 0
        %8319 = vmatpush1.bf16.msra.mxu0 %v8301
        %8320 = vmatprep.subr.bf16.mxu0 0
        %8321 = vmatpush1.bf16.msra.mxu0 %v8302
        %8322 = vmatprep.subr.bf16.mxu0 0
        %8323 = vmatpush1.bf16.msra.mxu0 %v8303
        %8324 = vmatprep.subr.bf16.mxu0 0
        %8325 = vmatpush1.bf16.msra.mxu0 %v8304
        %8326 = vmatprep.subr.bf16.mxu0 0
        %8327 = vmatpush1.bf16.msra.mxu0 %v8305
        %8328 = vmatprep.subr.bf16.mxu0 0
        %8329 = vmatpush1.bf16.msra.mxu0 %v8306
        %8330 = vmatprep.subr.bf16.mxu0 0
        %8331 = vmatpush1.bf16.msra.mxu0 %v8307
        %8332 = vmatprep.subr.bf16.mxu0 0
        %8333 = vmatpush1.bf16.msra.mxu0 0
        %8334 = vmatprep.subr.bf16.mxu0 0
        %8335 = vmatpush1.bf16.msra.mxu0 0
        %8336 = vmatprep.subr.bf16.mxu0 0
        %8337 = vmatpush1.bf16.msra.mxu0 0
        %8338 = vmatprep.subr.bf16.mxu0 0
        %8339 = vmatpush1.bf16.msra.mxu0 0
        %8340 = vmatprep.subr.bf16.mxu0 0
        %8341 = vmatpush1.bf16.msra.mxu0 0
        %8342 = vmatprep.subr.bf16.mxu0 0
        %8343 = vmatpush1.bf16.msra.mxu0 0
        %8344 = vmatprep.subr.bf16.mxu0 0
        %8345 = vmatpush1.bf16.msra.mxu0 0
        %8346 = vmatprep.subr.bf16.mxu0 0
        %8347 = vmatpush1.bf16.msra.mxu0 0
        %8348 = vmatprep.mubr.bf16.mxu0 0
        %8349 = vmatmul.mubr.bf16.gmra.mrb[0].mxu0 %v7889
        %v8350 = vpop.f32.mrb[0].mxu0
        %v8351 = vadd.f32 0.0, %v8350
        %v8352 = vpop.f32.mrb[0].mxu0
        %v8353 = vpop.f32.mrb[0].mxu0
        %v8354 = vpop.f32.mrb[0].mxu0
        %8355 = vdwg.mxu0
        %v8356 = vsel %vm8099, %v1540, 0
        %v8359 = vsel %vm8102, %v8351, 0
        %8361 = vmatprep.subr.mxu0 0.0
        %8362 = vmatpush1.msra.mxu0 %v8359
        %8363 = vmatprep.subr.mxu0 0.0
        %8364 = vmatpush1.msra.mxu0 0.0
        %8365 = vmatprep.subr.mxu0 0.0
        %8366 = vmatpush1.msra.mxu0 0.0
        %8367 = vmatprep.subr.mxu0 0.0
        %8368 = vmatpush1.msra.mxu0 0.0
        %8369 = vmatprep.subr.mxu0 0.0
        %8370 = vmatpush1.msra.mxu0 0.0
        %8371 = vmatprep.subr.mxu0 0.0
        %8372 = vmatpush1.msra.mxu0 0.0
        %8373 = vmatprep.subr.mxu0 0.0
        %8374 = vmatpush1.msra.mxu0 0.0
        %8375 = vmatprep.subr.mxu0 0.0
        %8376 = vmatpush1.msra.mxu0 0.0
        %8377 = vmatprep.subr.mxu0 0.0
        %8378 = vmatpush1.msra.mxu0 0.0
        %8379 = vmatprep.subr.mxu0 0.0
        %8380 = vmatpush1.msra.mxu0 0.0
        %8381 = vmatprep.subr.mxu0 0.0
        %8382 = vmatpush1.msra.mxu0 0.0
        %8383 = vmatprep.subr.mxu0 0.0
        %8384 = vmatpush1.msra.mxu0 0.0
        %8385 = vmatprep.subr.mxu0 0.0
        %8386 = vmatpush1.msra.mxu0 0.0
        %8387 = vmatprep.subr.mxu0 0.0
        %8388 = vmatpush1.msra.mxu0 0.0
        %8389 = vmatprep.subr.mxu0 0.0
        %8390 = vmatpush1.msra.mxu0 0.0
        %8391 = vmatprep.subr.mxu0 0.0
        %8392 = vmatpush1.msra.mxu0 0.0
        %8393 = vmatprep.subr.mxu0 0.0
        %8394 = vmatpush1.msra.mxu0 0.0
        %8395 = vmatprep.subr.mxu0 0.0
        %8396 = vmatpush1.msra.mxu0 0.0
        %8397 = vmatprep.subr.mxu0 0.0
        %8398 = vmatpush1.msra.mxu0 0.0
        %8399 = vmatprep.subr.mxu0 0.0
        %8400 = vmatpush1.msra.mxu0 0.0
        %8401 = vmatprep.subr.mxu0 0.0
        %8402 = vmatpush1.msra.mxu0 0.0
        %8403 = vmatprep.subr.mxu0 0.0
        %8404 = vmatpush1.msra.mxu0 0.0
        %8405 = vmatprep.subr.mxu0 0.0
        %8406 = vmatpush1.msra.mxu0 0.0
        %8407 = vmatprep.subr.mxu0 0.0
        %8408 = vmatpush1.msra.mxu0 0.0
        %8409 = vmatprep.subr.mxu0 0.0
        %8410 = vmatpush1.msra.mxu0 0.0
        %8411 = vmatprep.subr.mxu0 0.0
        %8412 = vmatpush1.msra.mxu0 0.0
        %8413 = vmatprep.subr.mxu0 0.0
        %8414 = vmatpush1.msra.mxu0 0.0
        %8415 = vmatprep.subr.mxu0 0.0
        %8416 = vmatpush1.msra.mxu0 0.0
        %8417 = vmatprep.subr.mxu0 0.0
        %8418 = vmatpush1.msra.mxu0 0.0
        %8419 = vmatprep.subr.mxu0 0.0
        %8420 = vmatpush1.msra.mxu0 0.0
        %8421 = vmatprep.subr.mxu0 0.0
        %8422 = vmatpush1.msra.mxu0 0.0
        %8423 = vmatprep.subr.mxu0 0.0
        %8424 = vmatpush1.msra.mxu0 0.0
        %8425 = vmatprep.mubr.f32.mxu0 0.0
        %8426 = vmatmul.mubr.f32.gmra.mrb[0].mxu0 %v8356
        %v8427 = vpop.f32.mrb[0].mxu0
        %v8428 = vadd.f32 0.0, %v8427
        %v8429 = vpop.f32.mrb[0].mxu0
        %8430 = vdwg.mxu0
        %v8431 = vadd.f32 %v8248, %v8428
        %v8432 = vld [vmem:[%s57] sm:$0x1]
        %v8434 = vlaneseq
        %v8435 = vshrl.u32 %v8434, 7
        %v8436 = vsub.s32 0, %v8435
        %v8437 = vrot.slane %v8432, %v8436
        %v8439 = vadd.f32 %v8431, %v8437
        %vm8440 = vcmask 322560
        %8441 = vst.msk [vmem:[%s1146] sm:$0xf] %vm8440, %v8439
        %p8442 = scmp.lt.s32.totalorder %s80, 1
        %s8443 = scalar_select %p8442, %s80, 1
        %s8444 = smul.addr %s8443, 4
        %s8445 = scalar_lea.vmem %s59, %s8444
        // Predicated region
        $region209: #{resnet_encoder_forward.1} parent=135 // pred_check
          %p8446 = pneg %p712
        $region210: #{resnet_encoder_forward.1} parent=135 // pred_check_branch
          %8448 = sbr.rel (%p8446) target = $region212
        $region211: #{resnet_encoder_forward.1} parent=135 // pred_region
          _
        $region212: #{resnet_encoder_forward.1} parent=135 // pred_fallthru
          _
      $region136: #{resnet_encoder_forward.1} parent=5 // pred_fallthru
        _
      %p8449 = scmp.le.s32.totalorder 2, %s75
      // Predicated region
      $region213: #{resnet_encoder_forward.1} parent=5 // pred_check
        %p8450 = pneg %p8449
      $region214: #{resnet_encoder_forward.1} parent=5 // pred_check_branch
        %8452 = sbr.rel (%p8450) target = $region216
      $region215: #{resnet_encoder_forward.1} parent=5 // pred_region
        %s8453 = ssub.s32 %s75, 2
        // Predicated region
        $region217: #{resnet_encoder_forward.1} parent=215 // pred_check
          %p8454 = pneg %p718
        $region218: #{resnet_encoder_forward.1} parent=215 // pred_check_branch
          %8456 = sbr.rel (%p8454) target = $region220
        $region219: #{resnet_encoder_forward.1} parent=215 // pred_region
          %p8457 = scmp.lt.s32.totalorder %s81, 1
          %s8458 = scalar_select %p8457, %s81, 1
          %s8459 = smul.addr %s8458, 4
          %s8460 = scalar_lea.vmem %s59, %s8459
        $region220: #{resnet_encoder_forward.1} parent=215 // pred_fallthru
          _
      $region216: #{resnet_encoder_forward.1} parent=5 // pred_fallthru
        _
    $region6: #{resnet_encoder_forward.1} parent=1 // loop_footer
      %s79 = sadd.s32 1, %s75
    $region7: #{resnet_encoder_forward.1} parent=1 // loop_footer_branch
      %74 = sbr.rel target = $region3
    $region8: #{resnet_encoder_forward.1} parent=1 // loop_exit
      _
    %8461 = vsyncpa [#allocation3], 1
    %s8462 = scalar_lea.sflag [#allocation3], 1
    %8463 = vsyncpa %s8462, 1
    %8464 = vsyncpa [#allocation5], 1
    %8465 = vsyncpa [#allocation8], 1
    %8466 = vsyncpa [#allocation11], 1
    %8467 = vsyncpa [#allocation14], 1
    %8468 = vsyncpa [#allocation17], 1
    %8469 = vsyncpa [#allocation20], 1
    %8470 = vsyncpa [#allocation23], 1
    %8471 = vsyncpa [#allocation26], 1
    %8472 = vsyncpa [#allocation29], 1

</llo_original>
